<compile_context>
chip_gen: v7x
topology: tpu7x:2x2x1
jax: 0.10.0
libtpu: 0.0.40
codegen_flags: <defaults>
</compile_context>

<pallas_src>
import functools
import math
from typing import NamedTuple

import jax
import jax.numpy as jnp
from jax.experimental import pallas as pl
from jax.experimental.pallas import tpu as pltpu


# ---------------------------------------------------------------------------
# small helpers
# ---------------------------------------------------------------------------
_MM = functools.partial(jnp.dot, preferred_element_type=jnp.float32)   # MXU, f32 acc


def _bf16(x):
    return x.astype(jnp.bfloat16)


def _resident_spec(arr):
    """BlockSpec for a weight that stays resident in VMEM across all grid steps."""
    zeros = (0,) * arr.ndim
    return pl.BlockSpec(arr.shape, lambda i, _z=zeros: _z)


def _compiler_params():
    return pltpu.CompilerParams(
        dimension_semantics=("parallel",),
        vmem_limit_bytes=32 * 1024 * 1024,
    )


# ---------------------------------------------------------------------------
# shared in-kernel building block: Resnet1D stack on a padded VMEM stream
# ---------------------------------------------------------------------------
def _resnet_stage(s_ref, rw1_ref, rb1_ref, rw2_ref, rb2_ref, *, base, length, pad, dils):
    """Resnet1D stack on the residual stream held in a zero-padded f32 scratch
    (center rows [pad : pad+length])."""
    for j, d in enumerate(dils):
        # relu + bf16 cast once per layer; all three tap slices reuse this value.
        rr = _bf16(jnp.maximum(s_ref[...], 0.0))
        t1 = (_MM(rr[pad - d:pad - d + length, :], rw1_ref[base + j, 0])
              + _MM(rr[pad:pad + length, :], rw1_ref[base + j, 1])
              + _MM(rr[pad + d:pad + d + length, :], rw1_ref[base + j, 2])
              + rb1_ref[base + j])
        t1 = jnp.maximum(t1, 0.0)
        t2 = _MM(_bf16(t1), rw2_ref[base + j]) + rb2_ref[base + j]
        s_ref[pad:pad + length, :] = s_ref[pad:pad + length, :] + t2


# ---------------------------------------------------------------------------
# fused encoder kernel:  conv_in + ReLU  ->  [strided conv + Resnet1D]*down_t  ->  conv_out
# ---------------------------------------------------------------------------
def _make_encoder_kernel(*, t_in, down_t, depth, dils, pad):
    lens = [t_in >> i for i in range(down_t + 1)]

    def kernel(x_ref, w_in_ref, b_in_ref, wd_ref, bd_ref,
               rw1_ref, rb1_ref, rw2_ref, rb2_ref, w_out_ref, b_out_ref,
               o_ref, xin_ref, *streams):
        # zero the scratches (pads stay zero; centers are overwritten below)
        xin_ref[...] = jnp.zeros_like(xin_ref)
        for s_ref in streams:
            s_ref[...] = jnp.zeros_like(s_ref)

        # ---- conv_in (k=3, s=1, p=1) + ReLU ---------------------------------
        t0 = lens[0]
        xin_ref[1:t0 + 1, :] = x_ref[0]
        xb = _bf16(xin_ref[...])
        h = (_MM(xb[0:t0, :], w_in_ref[0])
             + _MM(xb[1:t0 + 1, :], w_in_ref[1])
             + _MM(xb[2:t0 + 2, :], w_in_ref[2])
             + b_in_ref[...])
        streams[0][pad:pad + t0, :] = jnp.maximum(h, 0.0)

        # ---- down blocks: Conv1d(k=4, s=2, p=1) + Resnet1D stack -------------
        for i in range(down_t):
            l_in, l_out = lens[i], lens[i + 1]
            s_prev, s_cur = streams[i], streams[i + 1]
            sb = _bf16(s_prev[...])                      # cast whole stream once
            # full-resolution k=4 conv over the zero-padded stream ...
            yf = (_MM(sb[pad - 1:pad - 1 + l_in - 1, :], wd_ref[i, 0])
                  + _MM(sb[pad:pad + l_in - 1, :], wd_ref[i, 1])
                  + _MM(sb[pad + 1:pad + 1 + l_in - 1, :], wd_ref[i, 2])
                  + _MM(sb[pad + 2:pad + 2 + l_in - 1, :], wd_ref[i, 3]))
            # ... then the stride-2 selection as a tiny matmul on the idle MXU.
            # TODO(synk): at production sizes replace with strided
            # `s_prev[pl.ds(start, l_out, 2), :]` tap loads to avoid the ~2x down-conv flops.
            row = jax.lax.broadcasted_iota(jnp.int32, (l_out, l_in - 1), 0)
            col = jax.lax.broadcasted_iota(jnp.int32, (l_out, l_in - 1), 1)
            sel = (col == 2 * row).astype(jnp.float32)
            s_cur[pad:pad + l_out, :] = _MM(sel, yf) + bd_ref[i]
            _resnet_stage(s_cur, rw1_ref, rb1_ref, rw2_ref, rb2_ref,
                          base=i * depth, length=l_out, pad=pad, dils=dils)

        # ---- conv_out (k=3, s=1, p=1) ----------------------------------------
        t_e = lens[down_t]
        sb = _bf16(streams[down_t][...])
        y = (_MM(sb[pad - 1:pad - 1 + t_e, :], w_out_ref[0])
             + _MM(sb[pad:pad + t_e, :], w_out_ref[1])
             + _MM(sb[pad + 1:pad + 1 + t_e, :], w_out_ref[2])
             + b_out_ref[...])
        o_ref[0] = y.astype(o_ref.dtype)

    return kernel


def apply_encoder(ep, x, cfg):
    n_b, t_in, c_in = x.shape
    w, d = cfg.width, cfg.code_dim
    down_t, depth = cfg.down_t, cfg.depth
    assert cfg.stride_t == 2, "down/up fusion is specialised for stride_t == 2"
    assert t_in % (1 << down_t) == 0
    dils = tuple(cfg.dilation_growth_rate ** k for k in range(depth))   # encoder: natural order
    pad = max(1, max(dils))
    t_enc = t_in >> down_t
    lens = [t_in >> i for i in range(down_t + 1)]

    kernel = _make_encoder_kernel(t_in=t_in, down_t=down_t, depth=depth, dils=dils, pad=pad)
    weights = (ep["w_in"], ep["b_in"], ep["wd"], ep["bd"],
               ep["rw1"], ep["rb1"], ep["rw2"], ep["rb2"],
               ep["w_out"], ep["b_out"])
    return pl.pallas_call(
        kernel,
        out_shape=jax.ShapeDtypeStruct((n_b, t_enc, d), jnp.float32),
        grid=(n_b,),
        in_specs=[pl.BlockSpec((1, t_in, c_in), lambda b: (b, 0, 0))]
                 + [_resident_spec(a) for a in weights],
        out_specs=pl.BlockSpec((1, t_enc, d), lambda b: (b, 0, 0)),
        scratch_shapes=[pltpu.VMEM((t_in + 2, c_in), jnp.float32)]
                       + [pltpu.VMEM((lens[i] + 2 * pad, w), jnp.float32)
                          for i in range(down_t + 1)],
        compiler_params=_compiler_params(),
    )(x, *weights)


# ---------------------------------------------------------------------------
# fused decoder kernel:  conv_in + ReLU -> [Resnet1D + x2 upsample + conv]*down_t
#                        -> conv_mid + ReLU -> conv_out
# ---------------------------------------------------------------------------
def _make_decoder_kernel(*, t_enc, down_t, depth, dils, pad):
    lens = [t_enc << i for i in range(down_t + 1)]
    t_out = lens[-1]

    def kernel(xq_ref, w_in_ref, b_in_ref, rw1_ref, rb1_ref, rw2_ref, rb2_ref,
               wu_ref, bu_ref, w_mid_ref, b_mid_ref, w_out_ref, b_out_ref,
               o_ref, xin_ref, u_ref, *streams):
        xin_ref[...] = jnp.zeros_like(xin_ref)
        for s_ref in streams:
            s_ref[...] = jnp.zeros_like(s_ref)

        # ---- conv_in (k=3, s=1, p=1) + ReLU ---------------------------------
        l0 = lens[0]
        xin_ref[1:l0 + 1, :] = xq_ref[0]
        xb = _bf16(xin_ref[...])
        h = (_MM(xb[0:l0, :], w_in_ref[0])
             + _MM(xb[1:l0 + 1, :], w_in_ref[1])
             + _MM(xb[2:l0 + 2, :], w_in_ref[2])
             + b_in_ref[...])
        streams[0][pad:pad + l0, :] = jnp.maximum(h, 0.0)

        # ---- up blocks: Resnet1D + nearest x2 upsample + Conv1d(k=3, p=1) ----
        for i in range(down_t):
            l_in, l_out = lens[i], lens[i + 1]
            s_prev, s_cur = streams[i], streams[i + 1]
            _resnet_stage(s_prev, rw1_ref, rb1_ref, rw2_ref, rb2_ref,
                          base=i * depth, length=l_in, pad=pad, dils=dils)
            # nearest x2 upsample via a repeat matrix on the idle MXU: keeps the
            # upsampled stream time-major without strided stores / reshapes.
            row = jax.lax.broadcasted_iota(jnp.int32, (l_out, l_in), 0)
            col = jax.lax.broadcasted_iota(jnp.int32, (l_out, l_in), 1)
            rep = jnp.logical_or(row == 2 * col, row == 2 * col + 1).astype(jnp.bfloat16)
            u_ref[...] = jnp.zeros_like(u_ref)
            u_ref[1:1 + l_out, :] = _MM(rep, _bf16(s_prev[pad:pad + l_in, :]))
            ub = _bf16(u_ref[...])
            y = (_MM(ub[0:l_out, :], wu_ref[i, 0])
                 + _MM(ub[1:1 + l_out, :], wu_ref[i, 1])
                 + _MM(ub[2:2 + l_out, :], wu_ref[i, 2])
                 + bu_ref[i])
            s_cur[pad:pad + l_out, :] = y

        # ---- conv_mid + ReLU, conv_out ----------------------------------------
        sb = _bf16(streams[down_t][...])
        ym = (_MM(sb[pad - 1:pad - 1 + t_out, :], w_mid_ref[0])
              + _MM(sb[pad:pad + t_out, :], w_mid_ref[1])
              + _MM(sb[pad + 1:pad + 1 + t_out, :], w_mid_ref[2])
              + b_mid_ref[...])
        u_ref[...] = jnp.zeros_like(u_ref)          # reuse u scratch as the mid buffer
        u_ref[1:1 + t_out, :] = jnp.maximum(ym, 0.0)
        ub = _bf16(u_ref[...])
        yo = (_MM(ub[0:t_out, :], w_out_ref[0])
              + _MM(ub[1:1 + t_out, :], w_out_ref[1])
              + _MM(ub[2:2 + t_out, :], w_out_ref[2])
              + b_out_ref[...])
        o_ref[0] = yo.astype(o_ref.dtype)

    return kernel


def apply_decoder(dp, xq, cfg):
    n_b, t_enc, d = xq.shape
    w, c_out = cfg.width, cfg.input_dim
    down_t, depth = cfg.down_t, cfg.depth
    dils = tuple(cfg.dilation_growth_rate ** k for k in range(depth))[::-1]   # reverse_dilation
    pad = max(1, max(dils))
    lens = [t_enc << i for i in range(down_t + 1)]
    t_out = lens[-1]

    kernel = _make_decoder_kernel(t_enc=t_enc, down_t=down_t, depth=depth, dils=dils, pad=pad)
    weights = (dp["w_in"], dp["b_in"], dp["rw1"], dp["rb1"], dp["rw2"], dp["rb2"],
               dp["wu"], dp["bu"], dp["w_mid"], dp["b_mid"], dp["w_out"], dp["b_out"])
    return pl.pallas_call(
        kernel,
        out_shape=jax.ShapeDtypeStruct((n_b, t_out, c_out), jnp.float32),
        grid=(n_b,),
        in_specs=[pl.BlockSpec((1, t_enc, d), lambda b: (b, 0, 0))]
                 + [_resident_spec(a) for a in weights],
        out_specs=pl.BlockSpec((1, t_out, c_out), lambda b: (b, 0, 0)),
        scratch_shapes=[pltpu.VMEM((t_enc + 2, d), jnp.float32),
                        pltpu.VMEM((t_out + 2, w), jnp.float32)]
                       + [pltpu.VMEM((lens[i] + 2 * pad, w), jnp.float32)
                          for i in range(down_t + 1)],
        compiler_params=_compiler_params(),
    )(xq, *weights)


# ---------------------------------------------------------------------------
# vector quantization (eval-mode QuantizeEMAReset)
# ---------------------------------------------------------------------------
def _vq_kernel(x_ref, cbt_ref, cb_ref, cb2_ref, xd_ref, idx_ref, cnt_ref, sse_ref):
    x = x_ref[...]                                            # (tm, D) f32
    # ||x||^2 is constant per row and does not affect the argmin -> omitted.
    xc = _MM(x, cbt_ref[...])                                 # natural (M,D)x(D,C) feed
    dist = cb2_ref[...] - 2.0 * xc                            # (tm, C)
    dmin = jnp.min(dist, axis=-1, keepdims=True)
    n_code = dist.shape[-1]
    lane = jax.lax.broadcasted_iota(jnp.int32, dist.shape, 1)
    idx = jnp.min(jnp.where(dist <= dmin, lane, n_code), axis=-1, keepdims=True)
    onehot = (lane == idx).astype(jnp.float32)
    xd = _MM(onehot, cb_ref[...])                             # exact codebook rows

    xd_ref[...] = xd
    idx_ref[...] = idx
    cnt_ref[...] = jnp.sum(onehot, axis=0, keepdims=True)     # per-tile counts
    diff = x - xd
    sse_ref[...] = jnp.sum(diff * diff, keepdims=True)        # per-tile SSE


def vector_quantize(x_flat, cb, cb_t, cb2, *, block_m=512):
    """x_flat: (M, D) f32; codebook resident, M tiled with a 'parallel' grid."""
    m, d = x_flat.shape
    c = cb.shape[0]
    tm = m if m <= block_m else block_m
    assert m % tm == 0, "pad M to a multiple of the VQ tile at production sizes"
    n_tiles = m // tm

    xd, idx, counts, sse = pl.pallas_call(
        _vq_kernel,
        out_shape=(jax.ShapeDtypeStruct((m, d), jnp.float32),
                   jax.ShapeDtypeStruct((m, 1), jnp.int32),
                   jax.ShapeDtypeStruct((n_tiles, c), jnp.float32),
                   jax.ShapeDtypeStruct((n_tiles, 1), jnp.float32)),
        grid=(n_tiles,),
        in_specs=[pl.BlockSpec((tm, d), lambda i: (i, 0)),
                  _resident_spec(cb_t), _resident_spec(cb), _resident_spec(cb2)],
        out_specs=(pl.BlockSpec((tm, d), lambda i: (i, 0)),
                   pl.BlockSpec((tm, 1), lambda i: (i, 0)),
                   pl.BlockSpec((1, c), lambda i: (i, 0)),
                   pl.BlockSpec((1, 1), lambda i: (i, 0))),
        compiler_params=_compiler_params(),
    )(x_flat, cb_t, cb, cb2)
    return xd, idx, jnp.sum(counts, axis=0), jnp.sum(sse)


# ---------------------------------------------------------------------------
# model definition / parameters
# ---------------------------------------------------------------------------
class VQVAEConfig(NamedTuple):
    input_dim: int = 8
    nb_code: int = 64
    code_dim: int = 32
    down_t: int = 2
    stride_t: int = 2
    width: int = 32
    depth: int = 2
    dilation_growth_rate: int = 3


class VQVAEOutput(NamedTuple):
    decoded_motion: jnp.ndarray
    indices: jnp.ndarray
    commit_loss: jnp.ndarray
    perplexity: jnp.ndarray
    quantized_motion: jnp.ndarray


def init_params(key, cfg: VQVAEConfig):
    keys = iter(jax.random.split(key, 512))

    def conv_p(k, cin, cout):
        kw, kb = jax.random.split(next(keys))
        bound = 1.0 / math.sqrt(cin * k)
        w = jax.random.uniform(kw, (k, cin, cout), jnp.float32, -bound, bound)
        b = jax.random.uniform(kb, (cout,), jnp.float32, -bound, bound)
        return (w, b)

    def resnet_p(n_in, n_state):
        # each block: (w1 (3,n_in,n_state), b1, w2 (1,n_state,n_in), b2)
        return [(*conv_p(3, n_in, n_state), *conv_p(1, n_state, n_in))
                for _ in range(cfg.depth)]

    enc = {
        "conv_in": conv_p(3, cfg.input_dim, cfg.width),
        "down": [{"down_conv": conv_p(cfg.stride_t * 2, cfg.width, cfg.width),
                  "res": resnet_p(cfg.width, cfg.width)}
                 for _ in range(cfg.down_t)],
        "conv_out": conv_p(3, cfg.width, cfg.code_dim),
    }
    dec = {
        "conv_in": conv_p(3, cfg.code_dim, cfg.width),
        "up": [{"res": resnet_p(cfg.width, cfg.width),
                "up_conv": conv_p(3, cfg.width, cfg.width)}
               for _ in range(cfg.down_t)],
        "conv_mid": conv_p(3, cfg.width, cfg.width),
        "conv_out": conv_p(3, cfg.width, cfg.input_dim),
    }
    codebook = jax.random.normal(next(keys), (cfg.nb_code, cfg.code_dim), jnp.float32)
    return {"encoder": enc, "decoder": dec, "codebook": codebook}


def prepare_params(params, cfg: VQVAEConfig):
    """Hoisted weight prep: bf16 casts, stacking, bias reshapes, codebook transpose/norms."""
    def conv_w(p):
        return _bf16(p[0])

    def conv_b(p):
        return p[1].reshape(1, -1).astype(jnp.float32)

    def stack_res(blocks_list):
        flat = [r for blk in blocks_list for r in blk]
        rw1 = _bf16(jnp.stack([r[0] for r in flat]))                  # (down_t*depth, 3, W, W)
        rb1 = jnp.stack([r[1].reshape(1, -1) for r in flat]).astype(jnp.float32)
        rw2 = _bf16(jnp.stack([r[2][0] for r in flat]))               # (down_t*depth, W, W)
        rb2 = jnp.stack([r[3].reshape(1, -1) for r in flat]).astype(jnp.float32)
        return rw1, rb1, rw2, rb2

    enc = params["encoder"]
    e_rw1, e_rb1, e_rw2, e_rb2 = stack_res([blk["res"] for blk in enc["down"]])
    ep = {
        "w_in": conv_w(enc["conv_in"]), "b_in": conv_b(enc["conv_in"]),
        "wd": _bf16(jnp.stack([blk["down_conv"][0] for blk in enc["down"]])),
        "bd": jnp.stack([blk["down_conv"][1].reshape(1, -1) for blk in enc["down"]]
                        ).astype(jnp.float32),
        "rw1": e_rw1, "rb1": e_rb1, "rw2": e_rw2, "rb2": e_rb2,
        "w_out": conv_w(enc["conv_out"]), "b_out": conv_b(enc["conv_out"]),
    }

    dec = params["decoder"]
    d_rw1, d_rb1, d_rw2, d_rb2 = stack_res([blk["res"] for blk in dec["up"]])
    dp = {
        "w_in": conv_w(dec["conv_in"]), "b_in": conv_b(dec["conv_in"]),
        "rw1": d_rw1, "rb1": d_rb1, "rw2": d_rw2, "rb2": d_rb2,
        "wu": _bf16(jnp.stack([blk["up_conv"][0] for blk in dec["up"]])),
        "bu": jnp.stack([blk["up_conv"][1].reshape(1, -1) for blk in dec["up"]]
                        ).astype(jnp.float32),
        "w_mid": conv_w(dec["conv_mid"]), "b_mid": conv_b(dec["conv_mid"]),
        "w_out": conv_w(dec["conv_out"]), "b_out": conv_b(dec["conv_out"]),
    }

    cb = params["codebook"].astype(jnp.float32)
    return {"enc": ep, "dec": dp,
            "cb": cb, "cb_t": cb.T, "cb2": jnp.sum(cb * cb, axis=-1)[None, :]}


# ---------------------------------------------------------------------------
# forward
# ---------------------------------------------------------------------------
def vqvae_forward(kp, x, cfg: VQVAEConfig):
    """x: (B, T, input_dim) — matches the torch forward's (N, T, D) input."""
    n_b, _, _ = x.shape
    h = apply_encoder(kp["enc"], x, cfg)                       # (B, T_enc, code_dim) f32
    _, t_enc, d = h.shape
    x_flat = h.reshape(n_b * t_enc, d)

    xd, idx, counts, sse = vector_quantize(x_flat, kp["cb"], kp["cb_t"], kp["cb2"])

    # eval-mode QuantizeEMAReset: commit loss (mse mean), perplexity from code counts
    commit_loss = sse / (x_flat.shape[0] * x_flat.shape[1])
    prob = counts / jnp.sum(counts)
    perplexity = jnp.exp(-jnp.sum(prob * jnp.log(prob + 1e-7)))

    # straight-through: forward value is x_d (exact codebook rows, kept in f32)
    x_quantized = xd.reshape(n_b, t_enc, d)

    x_decoder = apply_decoder(kp["dec"], x_quantized, cfg)     # (B, T, input_dim) f32

    # TODO(synk): mask / max_pool1d masking path and gumbel temperature sampling
    # (temperature > 0) of the torch forward are not exercised here (mask=None, temp=0.0).
    return VQVAEOutput(decoded_motion=x_decoder,
                       indices=idx.reshape(-1),
                       commit_loss=commit_loss,
                       perplexity=perplexity,
                       quantized_motion=x_quantized)


# ---------------------------------------------------------------------------
if __name__ == "__main__":
    cfg = VQVAEConfig(input_dim=8, nb_code=64, code_dim=32, down_t=2,
                      stride_t=2, width=32, depth=2, dilation_growth_rate=3)
    key = jax.random.PRNGKey(0)
    pkey, xkey = jax.random.split(key)
    params = init_params(pkey, cfg)
    kparams = prepare_params(params, cfg)       # weight prep hoisted out of the jitted forward

    B, T = 2, 16
    x = jax.random.normal(xkey, (B, T, cfg.input_dim), jnp.float32)

    fwd = jax.jit(functools.partial(vqvae_forward, cfg=cfg))
    out = fwd(kparams, x)
    jax.block_until_ready(out.decoded_motion)
    jax.block_until_ready(out.indices)
    jax.block_until_ready(out.commit_loss)
    jax.block_until_ready(out.perplexity)
    jax.block_until_ready(out.quantized_motion)

    assert out.decoded_motion.shape == (B, T, cfg.input_dim)
    assert out.quantized_motion.shape == (B, T // 4, cfg.code_dim)
    assert out.indices.shape == (B * (T // 4),)
    print("KERNEL_OK")
</pallas_src>

<mosaic_0001>
module attributes {stable_mosaic.version = 11 : i64} {
  func.func @_vq_kernel(%arg0: i32, %arg1: memref<8x32xf32, #tpu.memory_space<vmem>>, %arg2: memref<32x64xf32, #tpu.memory_space<vmem>>, %arg3: memref<64x32xf32, #tpu.memory_space<vmem>>, %arg4: memref<1x64xf32, #tpu.memory_space<vmem>>, %arg5: memref<8x32xf32, #tpu.memory_space<vmem>>, %arg6: memref<8x1xi32, #tpu.memory_space<vmem>>, %arg7: memref<1x64xf32, #tpu.memory_space<vmem>>, %arg8: memref<1x1xf32, #tpu.memory_space<vmem>>) attributes {dimension_semantics = [#tpu.dimension_semantics<parallel>], iteration_bounds = array<i64: 1>, scalar_prefetch = 0 : i64, scratch_operands = 0 : i64, tpu.core_type = #tpu.core_type<tc>, window_params = [{transform_indices = @transform_0, window_bounds = array<i64: 8, 32>}, {pipeline_mode = #tpu.pipeline_mode<synchronous>, transform_indices = @transform_1, window_bounds = array<i64: 32, 64>}, {pipeline_mode = #tpu.pipeline_mode<synchronous>, transform_indices = @transform_2, window_bounds = array<i64: 64, 32>}, {pipeline_mode = #tpu.pipeline_mode<synchronous>, transform_indices = @transform_3, window_bounds = array<i64: 1, 64>}, {transform_indices = @transform_4, window_bounds = array<i64: 8, 32>}, {transform_indices = @transform_5, window_bounds = array<i64: 8, 1>}, {transform_indices = @transform_6, window_bounds = array<i64: 1, 64>}, {transform_indices = @transform_7, window_bounds = array<i64: 1, 1>}]} {
    %c0 = arith.constant 0 : index
    %c0_0 = arith.constant 0 : index
    %0 = vector.load %arg1[%c0, %c0_0] : memref<8x32xf32, #tpu.memory_space<vmem>>, vector<8x32xf32>
    %c0_1 = arith.constant 0 : index
    %c0_2 = arith.constant 0 : index
    %1 = vector.load %arg2[%c0_1, %c0_2] : memref<32x64xf32, #tpu.memory_space<vmem>>, vector<32x64xf32>
    %cst = arith.constant dense<0.000000e+00> : vector<8x64xf32>
    %2 = tpu.matmul %0, %1, %cst {dimension_numbers = #tpu.dot_dimension_numbers<[1], [0], [0], [1], [0, 0, 1, 1], [], []>} : vector<8x32xf32>, vector<32x64xf32>, vector<8x64xf32> -> vector<8x64xf32>
    %c0_3 = arith.constant 0 : index
    %c0_4 = arith.constant 0 : index
    %3 = vector.load %arg4[%c0_3, %c0_4] : memref<1x64xf32, #tpu.memory_space<vmem>>, vector<1x64xf32>
    %cst_5 = arith.constant 2.000000e+00 : f32
    %4 = vector.broadcast %cst_5 : f32 to vector<8x64xf32>
    %5 = arith.mulf %4, %2 : vector<8x64xf32>
    %6 = vector.broadcast %3 : vector<1x64xf32> to vector<8x64xf32>
    %7 = arith.subf %6, %5 : vector<8x64xf32>
    %cst_6 = arith.constant dense<0x7F800000> : vector<8xf32>
    %8 = vector.multi_reduction <minimumf>, %7, %cst_6 [1] : vector<8x64xf32> to vector<8xf32>
    %9 = vector.shape_cast %8 : vector<8xf32> to vector<8x1xf32>
    %10 = tpu.iota {dimensions = array<i32: 1>} : vector<8x64xi32>
    %11 = vector.broadcast %9 : vector<8x1xf32> to vector<8x64xf32>
    %12 = arith.cmpf ole, %7, %11 : vector<8x64xf32>
    %c64_i32 = arith.constant 64 : i32
    %13 = vector.broadcast %c64_i32 : i32 to vector<8x64xi32>
    %14 = arith.select %12, %10, %13 : vector<8x64xi1>, vector<8x64xi32>
    %cst_7 = arith.constant dense<2147483647> : vector<8xi32>
    %15 = vector.multi_reduction <minsi>, %14, %cst_7 [1] : vector<8x64xi32> to vector<8xi32>
    %16 = vector.shape_cast %15 : vector<8xi32> to vector<8x1xi32>
    %17 = vector.broadcast %16 : vector<8x1xi32> to vector<8x64xi32>
    %18 = arith.cmpi eq, %10, %17 : vector<8x64xi32>
    %19 = arith.extui %18 : vector<8x64xi1> to vector<8x64xi32>
    %20 = arith.sitofp %19 : vector<8x64xi32> to vector<8x64xf32>
    %c0_8 = arith.constant 0 : index
    %c0_9 = arith.constant 0 : index
    %21 = vector.load %arg3[%c0_8, %c0_9] : memref<64x32xf32, #tpu.memory_space<vmem>>, vector<64x32xf32>
    %cst_10 = arith.constant dense<0.000000e+00> : vector<8x32xf32>
    %22 = tpu.matmul %20, %21, %cst_10 {dimension_numbers = #tpu.dot_dimension_numbers<[1], [0], [0], [1], [0, 0, 1, 1], [], []>} : vector<8x64xf32>, vector<64x32xf32>, vector<8x32xf32> -> vector<8x32xf32>
    %c0_11 = arith.constant 0 : index
    %c0_12 = arith.constant 0 : index
    %23 = vector.load %arg5[%c0_11, %c0_12] : memref<8x32xf32, #tpu.memory_space<vmem>>, vector<8x32xf32>
    tpu.vector_store %arg5[%c0_11, %c0_12], %22 {strides = array<i32>} : memref<8x32xf32, #tpu.memory_space<vmem>>, vector<8x32xf32>,
    %c0_13 = arith.constant 0 : index
    %c0_14 = arith.constant 0 : index
    %24 = vector.load %arg6[%c0_13, %c0_14] : memref<8x1xi32, #tpu.memory_space<vmem>>, vector<8x1xi32>
    tpu.vector_store %arg6[%c0_13, %c0_14], %16 {strides = array<i32>} : memref<8x1xi32, #tpu.memory_space<vmem>>, vector<8x1xi32>,
    %cst_15 = arith.constant dense<0.000000e+00> : vector<64xf32>
    %25 = vector.multi_reduction <add>, %20, %cst_15 [0] : vector<8x64xf32> to vector<64xf32>
    %26 = vector.shape_cast %25 : vector<64xf32> to vector<1x64xf32>
    %c0_16 = arith.constant 0 : index
    %c0_17 = arith.constant 0 : index
    %27 = vector.load %arg7[%c0_16, %c0_17] : memref<1x64xf32, #tpu.memory_space<vmem>>, vector<1x64xf32>
    tpu.vector_store %arg7[%c0_16, %c0_17], %26 {strides = array<i32>} : memref<1x64xf32, #tpu.memory_space<vmem>>, vector<1x64xf32>,
    %28 = arith.subf %0, %22 : vector<8x32xf32>
    %29 = arith.mulf %28, %28 : vector<8x32xf32>
    %30 = vector.shape_cast %29 : vector<8x32xf32> to vector<1x8x32xf32>
    %cst_18 = arith.constant dense<0.000000e+00> : vector<1xf32>
    %31 = vector.multi_reduction <add>, %30, %cst_18 [1, 2] : vector<1x8x32xf32> to vector<1xf32>
    %32 = vector.shape_cast %31 : vector<1xf32> to vector<1x1x1xf32>
    %33 = vector.extract %32[0, 0, 0] : f32 from vector<1x1x1xf32>
    %34 = vector.broadcast %33 : f32 to vector<1x1xf32>
    %c0_19 = arith.constant 0 : index
    %c0_20 = arith.constant 0 : index
    %35 = vector.load %arg8[%c0_19, %c0_20] : memref<1x1xf32, #tpu.memory_space<vmem>>, vector<1x1xf32>
    tpu.vector_store %arg8[%c0_19, %c0_20], %34 {strides = array<i32>} : memref<1x1xf32, #tpu.memory_space<vmem>>, vector<1x1xf32>,
    return
  }
  func.func @transform_0(%arg0: i32) -> (i32, i32) {
    %c0_i32 = arith.constant 0 : i32
    %c0_i32_0 = arith.constant 0 : i32
    return %arg0, %c0_i32 : i32, i32
  }
  func.func @transform_1(%arg0: i32) -> (i32, i32) {
    %c0_i32 = arith.constant 0 : i32
    %c0_i32_0 = arith.constant 0 : i32
    %c0_i32_1 = arith.constant 0 : i32
    return %c0_i32, %c0_i32_0 : i32, i32
  }
  func.func @transform_2(%arg0: i32) -> (i32, i32) {
    %c0_i32 = arith.constant 0 : i32
    %c0_i32_0 = arith.constant 0 : i32
    %c0_i32_1 = arith.constant 0 : i32
    return %c0_i32, %c0_i32_0 : i32, i32
  }
  func.func @transform_3(%arg0: i32) -> (i32, i32) {
    %c0_i32 = arith.constant 0 : i32
    %c0_i32_0 = arith.constant 0 : i32
    %c0_i32_1 = arith.constant 0 : i32
    return %c0_i32, %c0_i32_0 : i32, i32
  }
  func.func @transform_4(%arg0: i32) -> (i32, i32) {
    %c0_i32 = arith.constant 0 : i32
    %c0_i32_0 = arith.constant 0 : i32
    return %arg0, %c0_i32 : i32, i32
  }
  func.func @transform_5(%arg0: i32) -> (i32, i32) {
    %c0_i32 = arith.constant 0 : i32
    %c0_i32_0 = arith.constant 0 : i32
    return %arg0, %c0_i32 : i32, i32
  }
  func.func @transform_6(%arg0: i32) -> (i32, i32) {
    %c0_i32 = arith.constant 0 : i32
    %c0_i32_0 = arith.constant 0 : i32
    return %arg0, %c0_i32 : i32, i32
  }
  func.func @transform_7(%arg0: i32) -> (i32, i32) {
    %c0_i32 = arith.constant 0 : i32
    %c0_i32_0 = arith.constant 0 : i32
    return %arg0, %c0_i32 : i32, i32
  }
}

module attributes {stable_mosaic.version = 11 : i64} {
  func.func @kernel(%arg0: i32, %arg1: memref<1x16x8xf32, #tpu.memory_space<vmem>>, %arg2: memref<3x8x32xbf16, #tpu.memory_space<vmem>>, %arg3: memref<1x32xf32, #tpu.memory_space<vmem>>, %arg4: memref<2x4x32x32xbf16, #tpu.memory_space<vmem>>, %arg5: memref<2x1x32xf32, #tpu.memory_space<vmem>>, %arg6: memref<4x3x32x32xbf16, #tpu.memory_space<vmem>>, %arg7: memref<4x1x32xf32, #tpu.memory_space<vmem>>, %arg8: memref<4x32x32xbf16, #tpu.memory_space<vmem>>, %arg9: memref<4x1x32xf32, #tpu.memory_space<vmem>>, %arg10: memref<3x32x32xbf16, #tpu.memory_space<vmem>>, %arg11: memref<1x32xf32, #tpu.memory_space<vmem>>, %arg12: memref<1x4x32xf32, #tpu.memory_space<vmem>>, %arg13: memref<18x8xf32, #tpu.memory_space<vmem>>, %arg14: memref<22x32xf32, #tpu.memory_space<vmem>>, %arg15: memref<14x32xf32, #tpu.memory_space<vmem>>, %arg16: memref<10x32xf32, #tpu.memory_space<vmem>>) attributes {dimension_semantics = [#tpu.dimension_semantics<parallel>], iteration_bounds = array<i64: 2>, scalar_prefetch = 0 : i64, scratch_operands = 4 : i64, tpu.core_type = #tpu.core_type<tc>, window_params = [{transform_indices = @transform_0, window_bounds = array<i64: 1, 16, 8>}, {pipeline_mode = #tpu.pipeline_mode<synchronous>, transform_indices = @transform_1, window_bounds = array<i64: 3, 8, 32>}, {pipeline_mode = #tpu.pipeline_mode<synchronous>, transform_indices = @transform_2, window_bounds = array<i64: 1, 32>}, {pipeline_mode = #tpu.pipeline_mode<synchronous>, transform_indices = @transform_3, window_bounds = array<i64: 2, 4, 32, 32>}, {pipeline_mode = #tpu.pipeline_mode<synchronous>, transform_indices = @transform_4, window_bounds = array<i64: 2, 1, 32>}, {pipeline_mode = #tpu.pipeline_mode<synchronous>, transform_indices = @transform_5, window_bounds = array<i64: 4, 3, 32, 32>}, {pipeline_mode = #tpu.pipeline_mode<synchronous>, transform_indices = @transform_6, window_bounds = array<i64: 4, 1, 32>}, {pipeline_mode = #tpu.pipeline_mode<synchronous>, transform_indices = @transform_7, window_bounds = array<i64: 4, 32, 32>}, {pipeline_mode = #tpu.pipeline_mode<synchronous>, transform_indices = @transform_8, window_bounds = array<i64: 4, 1, 32>}, {pipeline_mode = #tpu.pipeline_mode<synchronous>, transform_indices = @transform_9, window_bounds = array<i64: 3, 32, 32>}, {pipeline_mode = #tpu.pipeline_mode<synchronous>, transform_indices = @transform_10, window_bounds = array<i64: 1, 32>}, {transform_indices = @transform_11, window_bounds = array<i64: 1, 4, 32>}]} {
    %cst = arith.constant 0.000000e+00 : f32
    %0 = vector.broadcast %cst : f32 to vector<18x8xf32>
    %c0 = arith.constant 0 : index
    %c0_0 = arith.constant 0 : index
    %1 = vector.load %arg13[%c0, %c0_0] : memref<18x8xf32, #tpu.memory_space<vmem>>, vector<18x8xf32>
    tpu.vector_store %arg13[%c0, %c0_0], %0 {strides = array<i32>} : memref<18x8xf32, #tpu.memory_space<vmem>>, vector<18x8xf32>,
    %cst_1 = arith.constant 0.000000e+00 : f32
    %2 = vector.broadcast %cst_1 : f32 to vector<22x32xf32>
    %c0_2 = arith.constant 0 : index
    %c0_3 = arith.constant 0 : index
    %3 = vector.load %arg14[%c0_2, %c0_3] : memref<22x32xf32, #tpu.memory_space<vmem>>, vector<22x32xf32>
    tpu.vector_store %arg14[%c0_2, %c0_3], %2 {strides = array<i32>} : memref<22x32xf32, #tpu.memory_space<vmem>>, vector<22x32xf32>,
    %cst_4 = arith.constant 0.000000e+00 : f32
    %4 = vector.broadcast %cst_4 : f32 to vector<14x32xf32>
    %c0_5 = arith.constant 0 : index
    %c0_6 = arith.constant 0 : index
    %5 = vector.load %arg15[%c0_5, %c0_6] : memref<14x32xf32, #tpu.memory_space<vmem>>, vector<14x32xf32>
    tpu.vector_store %arg15[%c0_5, %c0_6], %4 {strides = array<i32>} : memref<14x32xf32, #tpu.memory_space<vmem>>, vector<14x32xf32>,
    %cst_7 = arith.constant 0.000000e+00 : f32
    %6 = vector.broadcast %cst_7 : f32 to vector<10x32xf32>
    %c0_8 = arith.constant 0 : index
    %c0_9 = arith.constant 0 : index
    %7 = vector.load %arg16[%c0_8, %c0_9] : memref<10x32xf32, #tpu.memory_space<vmem>>, vector<10x32xf32>
    tpu.vector_store %arg16[%c0_8, %c0_9], %6 {strides = array<i32>} : memref<10x32xf32, #tpu.memory_space<vmem>>, vector<10x32xf32>,
    %c0_10 = arith.constant 0 : index
    %c0_11 = arith.constant 0 : index
    %c0_12 = arith.constant 0 : index
    %8 = vector.load %arg1[%c0_10, %c0_11, %c0_12] : memref<1x16x8xf32, #tpu.memory_space<vmem>>, vector<1x16x8xf32>
    %9 = vector.shape_cast %8 : vector<1x16x8xf32> to vector<16x8xf32>
    %c1 = arith.constant 1 : index
    %c0_13 = arith.constant 0 : index
    %10 = vector.load %arg13[%c1, %c0_13] : memref<18x8xf32, #tpu.memory_space<vmem>>, vector<16x8xf32>
    tpu.vector_store %arg13[%c1, %c0_13], %9 {strides = array<i32>} : memref<18x8xf32, #tpu.memory_space<vmem>>, vector<16x8xf32>,
    %c0_14 = arith.constant 0 : index
    %c0_15 = arith.constant 0 : index
    %11 = vector.load %arg13[%c0_14, %c0_15] : memref<18x8xf32, #tpu.memory_space<vmem>>, vector<18x8xf32>
    %12 = arith.truncf %11 : vector<18x8xf32> to vector<18x8xbf16>
    %13 = vector.extract_strided_slice %12 {offsets = [0, 0], sizes = [16, 8], strides = [1, 1]} : vector<18x8xbf16> to vector<16x8xbf16>
    %c0_16 = arith.constant 0 : index
    %c0_17 = arith.constant 0 : index
    %c0_18 = arith.constant 0 : index
    %14 = vector.load %arg2[%c0_16, %c0_17, %c0_18] : memref<3x8x32xbf16, #tpu.memory_space<vmem>>, vector<1x8x32xbf16>
    %15 = vector.shape_cast %14 : vector<1x8x32xbf16> to vector<8x32xbf16>
    %cst_19 = arith.constant dense<0.000000e+00> : vector<16x32xf32>
    %16 = tpu.matmul %13, %15, %cst_19 {dimension_numbers = #tpu.dot_dimension_numbers<[1], [0], [0], [1], [0, 0, 1, 1], [], []>} : vector<16x8xbf16>, vector<8x32xbf16>, vector<16x32xf32> -> vector<16x32xf32>
    %17 = vector.extract_strided_slice %12 {offsets = [1, 0], sizes = [16, 8], strides = [1, 1]} : vector<18x8xbf16> to vector<16x8xbf16>
    %c1_20 = arith.constant 1 : index
    %c0_21 = arith.constant 0 : index
    %c0_22 = arith.constant 0 : index
    %18 = vector.load %arg2[%c1_20, %c0_21, %c0_22] : memref<3x8x32xbf16, #tpu.memory_space<vmem>>, vector<1x8x32xbf16>
    %19 = vector.shape_cast %18 : vector<1x8x32xbf16> to vector<8x32xbf16>
    %cst_23 = arith.constant dense<0.000000e+00> : vector<16x32xf32>
    %20 = tpu.matmul %17, %19, %cst_23 {dimension_numbers = #tpu.dot_dimension_numbers<[1], [0], [0], [1], [0, 0, 1, 1], [], []>} : vector<16x8xbf16>, vector<8x32xbf16>, vector<16x32xf32> -> vector<16x32xf32>
    %21 = arith.addf %16, %20 : vector<16x32xf32>
    %22 = vector.extract_strided_slice %12 {offsets = [2, 0], sizes = [16, 8], strides = [1, 1]} : vector<18x8xbf16> to vector<16x8xbf16>
    %c2 = arith.constant 2 : index
    %c0_24 = arith.constant 0 : index
    %c0_25 = arith.constant 0 : index
    %23 = vector.load %arg2[%c2, %c0_24, %c0_25] : memref<3x8x32xbf16, #tpu.memory_space<vmem>>, vector<1x8x32xbf16>
    %24 = vector.shape_cast %23 : vector<1x8x32xbf16> to vector<8x32xbf16>
    %cst_26 = arith.constant dense<0.000000e+00> : vector<16x32xf32>
    %25 = tpu.matmul %22, %24, %cst_26 {dimension_numbers = #tpu.dot_dimension_numbers<[1], [0], [0], [1], [0, 0, 1, 1], [], []>} : vector<16x8xbf16>, vector<8x32xbf16>, vector<16x32xf32> -> vector<16x32xf32>
    %26 = arith.addf %21, %25 : vector<16x32xf32>
    %c0_27 = arith.constant 0 : index
    %c0_28 = arith.constant 0 : index
    %27 = vector.load %arg3[%c0_27, %c0_28] : memref<1x32xf32, #tpu.memory_space<vmem>>, vector<1x32xf32>
    %28 = vector.broadcast %27 : vector<1x32xf32> to vector<16x32xf32>
    %29 = arith.addf %26, %28 : vector<16x32xf32>
    %cst_29 = arith.constant 0.000000e+00 : f32
    %30 = vector.broadcast %cst_29 : f32 to vector<16x32xf32>
    %31 = arith.maximumf %29, %30 : vector<16x32xf32>
    %c3 = arith.constant 3 : index
    %c0_30 = arith.constant 0 : index
    %32 = vector.load %arg14[%c3, %c0_30] : memref<22x32xf32, #tpu.memory_space<vmem>>, vector<16x32xf32>
    tpu.vector_store %arg14[%c3, %c0_30], %31 {strides = array<i32>} : memref<22x32xf32, #tpu.memory_space<vmem>>, vector<16x32xf32>,
    %c0_31 = arith.constant 0 : index
    %c0_32 = arith.constant 0 : index
    %33 = vector.load %arg14[%c0_31, %c0_32] : memref<22x32xf32, #tpu.memory_space<vmem>>, vector<22x32xf32>
    %34 = arith.truncf %33 : vector<22x32xf32> to vector<22x32xbf16>
    %35 = vector.extract_strided_slice %34 {offsets = [2, 0], sizes = [15, 32], strides = [1, 1]} : vector<22x32xbf16> to vector<15x32xbf16>
    %c0_33 = arith.constant 0 : index
    %c0_34 = arith.constant 0 : index
    %c0_35 = arith.constant 0 : index
    %c0_36 = arith.constant 0 : index
    %36 = vector.load %arg4[%c0_33, %c0_34, %c0_35, %c0_36] : memref<2x4x32x32xbf16, #tpu.memory_space<vmem>>, vector<1x1x32x32xbf16>
    %37 = vector.shape_cast %36 : vector<1x1x32x32xbf16> to vector<32x32xbf16>
    %cst_37 = arith.constant dense<0.000000e+00> : vector<15x32xf32>
    %38 = tpu.matmul %35, %37, %cst_37 {dimension_numbers = #tpu.dot_dimension_numbers<[1], [0], [0], [1], [0, 0, 1, 1], [], []>} : vector<15x32xbf16>, vector<32x32xbf16>, vector<15x32xf32> -> vector<15x32xf32>
    %39 = vector.extract_strided_slice %34 {offsets = [3, 0], sizes = [15, 32], strides = [1, 1]} : vector<22x32xbf16> to vector<15x32xbf16>
    %c0_38 = arith.constant 0 : index
    %c1_39 = arith.constant 1 : index
    %c0_40 = arith.constant 0 : index
    %c0_41 = arith.constant 0 : index
    %40 = vector.load %arg4[%c0_38, %c1_39, %c0_40, %c0_41] : memref<2x4x32x32xbf16, #tpu.memory_space<vmem>>, vector<1x1x32x32xbf16>
    %41 = vector.shape_cast %40 : vector<1x1x32x32xbf16> to vector<32x32xbf16>
    %cst_42 = arith.constant dense<0.000000e+00> : vector<15x32xf32>
    %42 = tpu.matmul %39, %41, %cst_42 {dimension_numbers = #tpu.dot_dimension_numbers<[1], [0], [0], [1], [0, 0, 1, 1], [], []>} : vector<15x32xbf16>, vector<32x32xbf16>, vector<15x32xf32> -> vector<15x32xf32>
    %43 = arith.addf %38, %42 : vector<15x32xf32>
    %44 = vector.extract_strided_slice %34 {offsets = [4, 0], sizes = [15, 32], strides = [1, 1]} : vector<22x32xbf16> to vector<15x32xbf16>
    %c0_43 = arith.constant 0 : index
    %c2_44 = arith.constant 2 : index
    %c0_45 = arith.constant 0 : index
    %c0_46 = arith.constant 0 : index
    %45 = vector.load %arg4[%c0_43, %c2_44, %c0_45, %c0_46] : memref<2x4x32x32xbf16, #tpu.memory_space<vmem>>, vector<1x1x32x32xbf16>
    %46 = vector.shape_cast %45 : vector<1x1x32x32xbf16> to vector<32x32xbf16>
    %cst_47 = arith.constant dense<0.000000e+00> : vector<15x32xf32>
    %47 = tpu.matmul %44, %46, %cst_47 {dimension_numbers = #tpu.dot_dimension_numbers<[1], [0], [0], [1], [0, 0, 1, 1], [], []>} : vector<15x32xbf16>, vector<32x32xbf16>, vector<15x32xf32> -> vector<15x32xf32>
    %48 = arith.addf %43, %47 : vector<15x32xf32>
    %49 = vector.extract_strided_slice %34 {offsets = [5, 0], sizes = [15, 32], strides = [1, 1]} : vector<22x32xbf16> to vector<15x32xbf16>
    %c0_48 = arith.constant 0 : index
    %c3_49 = arith.constant 3 : index
    %c0_50 = arith.constant 0 : index
    %c0_51 = arith.constant 0 : index
    %50 = vector.load %arg4[%c0_48, %c3_49, %c0_50, %c0_51] : memref<2x4x32x32xbf16, #tpu.memory_space<vmem>>, vector<1x1x32x32xbf16>
    %51 = vector.shape_cast %50 : vector<1x1x32x32xbf16> to vector<32x32xbf16>
    %cst_52 = arith.constant dense<0.000000e+00> : vector<15x32xf32>
    %52 = tpu.matmul %49, %51, %cst_52 {dimension_numbers = #tpu.dot_dimension_numbers<[1], [0], [0], [1], [0, 0, 1, 1], [], []>} : vector<15x32xbf16>, vector<32x32xbf16>, vector<15x32xf32> -> vector<15x32xf32>
    %53 = arith.addf %48, %52 : vector<15x32xf32>
    %54 = tpu.iota {dimensions = array<i32: 0>} : vector<8x15xi32>
    %55 = tpu.iota {dimensions = array<i32: 1>} : vector<8x15xi32>
    %c2_i32 = arith.constant 2 : i32
    %56 = vector.broadcast %c2_i32 : i32 to vector<8x15xi32>
    %57 = arith.muli %56, %54 : vector<8x15xi32>
    %58 = arith.cmpi eq, %55, %57 : vector<8x15xi32>
    %59 = arith.extui %58 : vector<8x15xi1> to vector<8x15xi32>
    %60 = arith.sitofp %59 : vector<8x15xi32> to vector<8x15xf32>
    %cst_53 = arith.constant dense<0.000000e+00> : vector<8x32xf32>
    %61 = tpu.matmul %60, %53, %cst_53 {dimension_numbers = #tpu.dot_dimension_numbers<[1], [0], [0], [1], [0, 0, 1, 1], [], []>} : vector<8x15xf32>, vector<15x32xf32>, vector<8x32xf32> -> vector<8x32xf32>
    %c0_54 = arith.constant 0 : index
    %c0_55 = arith.constant 0 : index
    %c0_56 = arith.constant 0 : index
    %62 = vector.load %arg5[%c0_54, %c0_55, %c0_56] : memref<2x1x32xf32, #tpu.memory_space<vmem>>, vector<1x1x32xf32>
    %63 = vector.shape_cast %62 : vector<1x1x32xf32> to vector<1x32xf32>
    %64 = vector.broadcast %63 : vector<1x32xf32> to vector<8x32xf32>
    %65 = arith.addf %61, %64 : vector<8x32xf32>
    %c3_57 = arith.constant 3 : index
    %c0_58 = arith.constant 0 : index
    %66 = vector.load %arg15[%c3_57, %c0_58] : memref<14x32xf32, #tpu.memory_space<vmem>>, vector<8x32xf32>
    tpu.vector_store %arg15[%c3_57, %c0_58], %65 {strides = array<i32>} : memref<14x32xf32, #tpu.memory_space<vmem>>, vector<8x32xf32>,
    %c0_59 = arith.constant 0 : index
    %c0_60 = arith.constant 0 : index
    %67 = vector.load %arg15[%c0_59, %c0_60] : memref<14x32xf32, #tpu.memory_space<vmem>>, vector<14x32xf32>
    %cst_61 = arith.constant 0.000000e+00 : f32
    %68 = vector.broadcast %cst_61 : f32 to vector<14x32xf32>
    %69 = arith.maximumf %67, %68 : vector<14x32xf32>
    %70 = arith.truncf %69 : vector<14x32xf32> to vector<14x32xbf16>
    %71 = vector.extract_strided_slice %70 {offsets = [2, 0], sizes = [8, 32], strides = [1, 1]} : vector<14x32xbf16> to vector<8x32xbf16>
    %c0_62 = arith.constant 0 : index
    %c0_63 = arith.constant 0 : index
    %c0_64 = arith.constant 0 : index
    %c0_65 = arith.constant 0 : index
    %72 = vector.load %arg6[%c0_62, %c0_63, %c0_64, %c0_65] : memref<4x3x32x32xbf16, #tpu.memory_space<vmem>>, vector<1x1x32x32xbf16>
    %73 = vector.shape_cast %72 : vector<1x1x32x32xbf16> to vector<32x32xbf16>
    %cst_66 = arith.constant dense<0.000000e+00> : vector<8x32xf32>
    %74 = tpu.matmul %71, %73, %cst_66 {dimension_numbers = #tpu.dot_dimension_numbers<[1], [0], [0], [1], [0, 0, 1, 1], [], []>} : vector<8x32xbf16>, vector<32x32xbf16>, vector<8x32xf32> -> vector<8x32xf32>
    %75 = vector.extract_strided_slice %70 {offsets = [3, 0], sizes = [8, 32], strides = [1, 1]} : vector<14x32xbf16> to vector<8x32xbf16>
    %c0_67 = arith.constant 0 : index
    %c1_68 = arith.constant 1 : index
    %c0_69 = arith.constant 0 : index
    %c0_70 = arith.constant 0 : index
    %76 = vector.load %arg6[%c0_67, %c1_68, %c0_69, %c0_70] : memref<4x3x32x32xbf16, #tpu.memory_space<vmem>>, vector<1x1x32x32xbf16>
    %77 = vector.shape_cast %76 : vector<1x1x32x32xbf16> to vector<32x32xbf16>
    %cst_71 = arith.constant dense<0.000000e+00> : vector<8x32xf32>
    %78 = tpu.matmul %75, %77, %cst_71 {dimension_numbers = #tpu.dot_dimension_numbers<[1], [0], [0], [1], [0, 0, 1, 1], [], []>} : vector<8x32xbf16>, vector<32x32xbf16>, vector<8x32xf32> -> vector<8x32xf32>
    %79 = arith.addf %74, %78 : vector<8x32xf32>
    %80 = vector.extract_strided_slice %70 {offsets = [4, 0], sizes = [8, 32], strides = [1, 1]} : vector<14x32xbf16> to vector<8x32xbf16>
    %c0_72 = arith.constant 0 : index
    %c2_73 = arith.constant 2 : index
    %c0_74 = arith.constant 0 : index
    %c0_75 = arith.constant 0 : index
    %81 = vector.load %arg6[%c0_72, %c2_73, %c0_74, %c0_75] : memref<4x3x32x32xbf16, #tpu.memory_space<vmem>>, vector<1x1x32x32xbf16>
    %82 = vector.shape_cast %81 : vector<1x1x32x32xbf16> to vector<32x32xbf16>
    %cst_76 = arith.constant dense<0.000000e+00> : vector<8x32xf32>
    %83 = tpu.matmul %80, %82, %cst_76 {dimension_numbers = #tpu.dot_dimension_numbers<[1], [0], [0], [1], [0, 0, 1, 1], [], []>} : vector<8x32xbf16>, vector<32x32xbf16>, vector<8x32xf32> -> vector<8x32xf32>
    %84 = arith.addf %79, %83 : vector<8x32xf32>
    %c0_77 = arith.constant 0 : index
    %c0_78 = arith.constant 0 : index
    %c0_79 = arith.constant 0 : index
    %85 = vector.load %arg7[%c0_77, %c0_78, %c0_79] : memref<4x1x32xf32, #tpu.memory_space<vmem>>, vector<1x1x32xf32>
    %86 = vector.shape_cast %85 : vector<1x1x32xf32> to vector<1x32xf32>
    %87 = vector.broadcast %86 : vector<1x32xf32> to vector<8x32xf32>
    %88 = arith.addf %84, %87 : vector<8x32xf32>
    %cst_80 = arith.constant 0.000000e+00 : f32
    %89 = vector.broadcast %cst_80 : f32 to vector<8x32xf32>
    %90 = arith.maximumf %88, %89 : vector<8x32xf32>
    %91 = arith.truncf %90 : vector<8x32xf32> to vector<8x32xbf16>
    %c0_81 = arith.constant 0 : index
    %c0_82 = arith.constant 0 : index
    %c0_83 = arith.constant 0 : index
    %92 = vector.load %arg8[%c0_81, %c0_82, %c0_83] : memref<4x32x32xbf16, #tpu.memory_space<vmem>>, vector<1x32x32xbf16>
    %93 = vector.shape_cast %92 : vector<1x32x32xbf16> to vector<32x32xbf16>
    %cst_84 = arith.constant dense<0.000000e+00> : vector<8x32xf32>
    %94 = tpu.matmul %91, %93, %cst_84 {dimension_numbers = #tpu.dot_dimension_numbers<[1], [0], [0], [1], [0, 0, 1, 1], [], []>} : vector<8x32xbf16>, vector<32x32xbf16>, vector<8x32xf32> -> vector<8x32xf32>
    %c0_85 = arith.constant 0 : index
    %c0_86 = arith.constant 0 : index
    %c0_87 = arith.constant 0 : index
    %95 = vector.load %arg9[%c0_85, %c0_86, %c0_87] : memref<4x1x32xf32, #tpu.memory_space<vmem>>, vector<1x1x32xf32>
    %96 = vector.shape_cast %95 : vector<1x1x32xf32> to vector<1x32xf32>
    %97 = vector.broadcast %96 : vector<1x32xf32> to vector<8x32xf32>
    %98 = arith.addf %94, %97 : vector<8x32xf32>
    %c3_88 = arith.constant 3 : index
    %c0_89 = arith.constant 0 : index
    %99 = vector.load %arg15[%c3_88, %c0_89] : memref<14x32xf32, #tpu.memory_space<vmem>>, vector<8x32xf32>
    %100 = arith.addf %99, %98 : vector<8x32xf32>
    %c3_90 = arith.constant 3 : index
    %c0_91 = arith.constant 0 : index
    %101 = vector.load %arg15[%c3_90, %c0_91] : memref<14x32xf32, #tpu.memory_space<vmem>>, vector<8x32xf32>
    tpu.vector_store %arg15[%c3_90, %c0_91], %100 {strides = array<i32>} : memref<14x32xf32, #tpu.memory_space<vmem>>, vector<8x32xf32>,
    %c0_92 = arith.constant 0 : index
    %c0_93 = arith.constant 0 : index
    %102 = vector.load %arg15[%c0_92, %c0_93] : memref<14x32xf32, #tpu.memory_space<vmem>>, vector<14x32xf32>
    %cst_94 = arith.constant 0.000000e+00 : f32
    %103 = vector.broadcast %cst_94 : f32 to vector<14x32xf32>
    %104 = arith.maximumf %102, %103 : vector<14x32xf32>
    %105 = arith.truncf %104 : vector<14x32xf32> to vector<14x32xbf16>
    %106 = vector.extract_strided_slice %105 {offsets = [0, 0], sizes = [8, 32], strides = [1, 1]} : vector<14x32xbf16> to vector<8x32xbf16>
    %c1_95 = arith.constant 1 : index
    %c0_96 = arith.constant 0 : index
    %c0_97 = arith.constant 0 : index
    %c0_98 = arith.constant 0 : index
    %107 = vector.load %arg6[%c1_95, %c0_96, %c0_97, %c0_98] : memref<4x3x32x32xbf16, #tpu.memory_space<vmem>>, vector<1x1x32x32xbf16>
    %108 = vector.shape_cast %107 : vector<1x1x32x32xbf16> to vector<32x32xbf16>
    %cst_99 = arith.constant dense<0.000000e+00> : vector<8x32xf32>
    %109 = tpu.matmul %106, %108, %cst_99 {dimension_numbers = #tpu.dot_dimension_numbers<[1], [0], [0], [1], [0, 0, 1, 1], [], []>} : vector<8x32xbf16>, vector<32x32xbf16>, vector<8x32xf32> -> vector<8x32xf32>
    %110 = vector.extract_strided_slice %105 {offsets = [3, 0], sizes = [8, 32], strides = [1, 1]} : vector<14x32xbf16> to vector<8x32xbf16>
    %c1_100 = arith.constant 1 : index
    %c1_101 = arith.constant 1 : index
    %c0_102 = arith.constant 0 : index
    %c0_103 = arith.constant 0 : index
    %111 = vector.load %arg6[%c1_100, %c1_101, %c0_102, %c0_103] : memref<4x3x32x32xbf16, #tpu.memory_space<vmem>>, vector<1x1x32x32xbf16>
    %112 = vector.shape_cast %111 : vector<1x1x32x32xbf16> to vector<32x32xbf16>
    %cst_104 = arith.constant dense<0.000000e+00> : vector<8x32xf32>
    %113 = tpu.matmul %110, %112, %cst_104 {dimension_numbers = #tpu.dot_dimension_numbers<[1], [0], [0], [1], [0, 0, 1, 1], [], []>} : vector<8x32xbf16>, vector<32x32xbf16>, vector<8x32xf32> -> vector<8x32xf32>
    %114 = arith.addf %109, %113 : vector<8x32xf32>
    %115 = vector.extract_strided_slice %105 {offsets = [6, 0], sizes = [8, 32], strides = [1, 1]} : vector<14x32xbf16> to vector<8x32xbf16>
    %c1_105 = arith.constant 1 : index
    %c2_106 = arith.constant 2 : index
    %c0_107 = arith.constant 0 : index
    %c0_108 = arith.constant 0 : index
    %116 = vector.load %arg6[%c1_105, %c2_106, %c0_107, %c0_108] : memref<4x3x32x32xbf16, #tpu.memory_space<vmem>>, vector<1x1x32x32xbf16>
    %117 = vector.shape_cast %116 : vector<1x1x32x32xbf16> to vector<32x32xbf16>
    %cst_109 = arith.constant dense<0.000000e+00> : vector<8x32xf32>
    %118 = tpu.matmul %115, %117, %cst_109 {dimension_numbers = #tpu.dot_dimension_numbers<[1], [0], [0], [1], [0, 0, 1, 1], [], []>} : vector<8x32xbf16>, vector<32x32xbf16>, vector<8x32xf32> -> vector<8x32xf32>
    %119 = arith.addf %114, %118 : vector<8x32xf32>
    %c1_110 = arith.constant 1 : index
    %c0_111 = arith.constant 0 : index
    %c0_112 = arith.constant 0 : index
    %120 = vector.load %arg7[%c1_110, %c0_111, %c0_112] : memref<4x1x32xf32, #tpu.memory_space<vmem>>, vector<1x1x32xf32>
    %121 = vector.shape_cast %120 : vector<1x1x32xf32> to vector<1x32xf32>
    %122 = vector.broadcast %121 : vector<1x32xf32> to vector<8x32xf32>
    %123 = arith.addf %119, %122 : vector<8x32xf32>
    %cst_113 = arith.constant 0.000000e+00 : f32
    %124 = vector.broadcast %cst_113 : f32 to vector<8x32xf32>
    %125 = arith.maximumf %123, %124 : vector<8x32xf32>
    %126 = arith.truncf %125 : vector<8x32xf32> to vector<8x32xbf16>
    %c1_114 = arith.constant 1 : index
    %c0_115 = arith.constant 0 : index
    %c0_116 = arith.constant 0 : index
    %127 = vector.load %arg8[%c1_114, %c0_115, %c0_116] : memref<4x32x32xbf16, #tpu.memory_space<vmem>>, vector<1x32x32xbf16>
    %128 = vector.shape_cast %127 : vector<1x32x32xbf16> to vector<32x32xbf16>
    %cst_117 = arith.constant dense<0.000000e+00> : vector<8x32xf32>
    %129 = tpu.matmul %126, %128, %cst_117 {dimension_numbers = #tpu.dot_dimension_numbers<[1], [0], [0], [1], [0, 0, 1, 1], [], []>} : vector<8x32xbf16>, vector<32x32xbf16>, vector<8x32xf32> -> vector<8x32xf32>
    %c1_118 = arith.constant 1 : index
    %c0_119 = arith.constant 0 : index
    %c0_120 = arith.constant 0 : index
    %130 = vector.load %arg9[%c1_118, %c0_119, %c0_120] : memref<4x1x32xf32, #tpu.memory_space<vmem>>, vector<1x1x32xf32>
    %131 = vector.shape_cast %130 : vector<1x1x32xf32> to vector<1x32xf32>
    %132 = vector.broadcast %131 : vector<1x32xf32> to vector<8x32xf32>
    %133 = arith.addf %129, %132 : vector<8x32xf32>
    %c3_121 = arith.constant 3 : index
    %c0_122 = arith.constant 0 : index
    %134 = vector.load %arg15[%c3_121, %c0_122] : memref<14x32xf32, #tpu.memory_space<vmem>>, vector<8x32xf32>
    %135 = arith.addf %134, %133 : vector<8x32xf32>
    %c3_123 = arith.constant 3 : index
    %c0_124 = arith.constant 0 : index
    %136 = vector.load %arg15[%c3_123, %c0_124] : memref<14x32xf32, #tpu.memory_space<vmem>>, vector<8x32xf32>
    tpu.vector_store %arg15[%c3_123, %c0_124], %135 {strides = array<i32>} : memref<14x32xf32, #tpu.memory_space<vmem>>, vector<8x32xf32>,
    %c0_125 = arith.constant 0 : index
    %c0_126 = arith.constant 0 : index
    %137 = vector.load %arg15[%c0_125, %c0_126] : memref<14x32xf32, #tpu.memory_space<vmem>>, vector<14x32xf32>
    %138 = arith.truncf %137 : vector<14x32xf32> to vector<14x32xbf16>
    %139 = vector.extract_strided_slice %138 {offsets = [2, 0], sizes = [7, 32], strides = [1, 1]} : vector<14x32xbf16> to vector<7x32xbf16>
    %c1_127 = arith.constant 1 : index
    %c0_128 = arith.constant 0 : index
    %c0_129 = arith.constant 0 : index
    %c0_130 = arith.constant 0 : index
    %140 = vector.load %arg4[%c1_127, %c0_128, %c0_129, %c0_130] : memref<2x4x32x32xbf16, #tpu.memory_space<vmem>>, vector<1x1x32x32xbf16>
    %141 = vector.shape_cast %140 : vector<1x1x32x32xbf16> to vector<32x32xbf16>
    %cst_131 = arith.constant dense<0.000000e+00> : vector<7x32xf32>
    %142 = tpu.matmul %139, %141, %cst_131 {dimension_numbers = #tpu.dot_dimension_numbers<[1], [0], [0], [1], [0, 0, 1, 1], [], []>} : vector<7x32xbf16>, vector<32x32xbf16>, vector<7x32xf32> -> vector<7x32xf32>
    %143 = vector.extract_strided_slice %138 {offsets = [3, 0], sizes = [7, 32], strides = [1, 1]} : vector<14x32xbf16> to vector<7x32xbf16>
    %c1_132 = arith.constant 1 : index
    %c1_133 = arith.constant 1 : index
    %c0_134 = arith.constant 0 : index
    %c0_135 = arith.constant 0 : index
    %144 = vector.load %arg4[%c1_132, %c1_133, %c0_134, %c0_135] : memref<2x4x32x32xbf16, #tpu.memory_space<vmem>>, vector<1x1x32x32xbf16>
    %145 = vector.shape_cast %144 : vector<1x1x32x32xbf16> to vector<32x32xbf16>
    %cst_136 = arith.constant dense<0.000000e+00> : vector<7x32xf32>
    %146 = tpu.matmul %143, %145, %cst_136 {dimension_numbers = #tpu.dot_dimension_numbers<[1], [0], [0], [1], [0, 0, 1, 1], [], []>} : vector<7x32xbf16>, vector<32x32xbf16>, vector<7x32xf32> -> vector<7x32xf32>
    %147 = arith.addf %142, %146 : vector<7x32xf32>
    %148 = vector.extract_strided_slice %138 {offsets = [4, 0], sizes = [7, 32], strides = [1, 1]} : vector<14x32xbf16> to vector<7x32xbf16>
    %c1_137 = arith.constant 1 : index
    %c2_138 = arith.constant 2 : index
    %c0_139 = arith.constant 0 : index
    %c0_140 = arith.constant 0 : index
    %149 = vector.load %arg4[%c1_137, %c2_138, %c0_139, %c0_140] : memref<2x4x32x32xbf16, #tpu.memory_space<vmem>>, vector<1x1x32x32xbf16>
    %150 = vector.shape_cast %149 : vector<1x1x32x32xbf16> to vector<32x32xbf16>
    %cst_141 = arith.constant dense<0.000000e+00> : vector<7x32xf32>
    %151 = tpu.matmul %148, %150, %cst_141 {dimension_numbers = #tpu.dot_dimension_numbers<[1], [0], [0], [1], [0, 0, 1, 1], [], []>} : vector<7x32xbf16>, vector<32x32xbf16>, vector<7x32xf32> -> vector<7x32xf32>
    %152 = arith.addf %147, %151 : vector<7x32xf32>
    %153 = vector.extract_strided_slice %138 {offsets = [5, 0], sizes = [7, 32], strides = [1, 1]} : vector<14x32xbf16> to vector<7x32xbf16>
    %c1_142 = arith.constant 1 : index
    %c3_143 = arith.constant 3 : index
    %c0_144 = arith.constant 0 : index
    %c0_145 = arith.constant 0 : index
    %154 = vector.load %arg4[%c1_142, %c3_143, %c0_144, %c0_145] : memref<2x4x32x32xbf16, #tpu.memory_space<vmem>>, vector<1x1x32x32xbf16>
    %155 = vector.shape_cast %154 : vector<1x1x32x32xbf16> to vector<32x32xbf16>
    %cst_146 = arith.constant dense<0.000000e+00> : vector<7x32xf32>
    %156 = tpu.matmul %153, %155, %cst_146 {dimension_numbers = #tpu.dot_dimension_numbers<[1], [0], [0], [1], [0, 0, 1, 1], [], []>} : vector<7x32xbf16>, vector<32x32xbf16>, vector<7x32xf32> -> vector<7x32xf32>
    %157 = arith.addf %152, %156 : vector<7x32xf32>
    %158 = tpu.iota {dimensions = array<i32: 0>} : vector<4x7xi32>
    %159 = tpu.iota {dimensions = array<i32: 1>} : vector<4x7xi32>
    %c2_i32_147 = arith.constant 2 : i32
    %160 = vector.broadcast %c2_i32_147 : i32 to vector<4x7xi32>
    %161 = arith.muli %160, %158 : vector<4x7xi32>
    %162 = arith.cmpi eq, %159, %161 : vector<4x7xi32>
    %163 = arith.extui %162 : vector<4x7xi1> to vector<4x7xi32>
    %164 = arith.sitofp %163 : vector<4x7xi32> to vector<4x7xf32>
    %cst_148 = arith.constant dense<0.000000e+00> : vector<4x32xf32>
    %165 = tpu.matmul %164, %157, %cst_148 {dimension_numbers = #tpu.dot_dimension_numbers<[1], [0], [0], [1], [0, 0, 1, 1], [], []>} : vector<4x7xf32>, vector<7x32xf32>, vector<4x32xf32> -> vector<4x32xf32>
    %c1_149 = arith.constant 1 : index
    %c0_150 = arith.constant 0 : index
    %c0_151 = arith.constant 0 : index
    %166 = vector.load %arg5[%c1_149, %c0_150, %c0_151] : memref<2x1x32xf32, #tpu.memory_space<vmem>>, vector<1x1x32xf32>
    %167 = vector.shape_cast %166 : vector<1x1x32xf32> to vector<1x32xf32>
    %168 = vector.broadcast %167 : vector<1x32xf32> to vector<4x32xf32>
    %169 = arith.addf %165, %168 : vector<4x32xf32>
    %c3_152 = arith.constant 3 : index
    %c0_153 = arith.constant 0 : index
    %170 = vector.load %arg16[%c3_152, %c0_153] : memref<10x32xf32, #tpu.memory_space<vmem>>, vector<4x32xf32>
    tpu.vector_store %arg16[%c3_152, %c0_153], %169 {strides = array<i32>} : memref<10x32xf32, #tpu.memory_space<vmem>>, vector<4x32xf32>,
    %c0_154 = arith.constant 0 : index
    %c0_155 = arith.constant 0 : index
    %171 = vector.load %arg16[%c0_154, %c0_155] : memref<10x32xf32, #tpu.memory_space<vmem>>, vector<10x32xf32>
    %cst_156 = arith.constant 0.000000e+00 : f32
    %172 = vector.broadcast %cst_156 : f32 to vector<10x32xf32>
    %173 = arith.maximumf %171, %172 : vector<10x32xf32>
    %174 = arith.truncf %173 : vector<10x32xf32> to vector<10x32xbf16>
    %175 = vector.extract_strided_slice %174 {offsets = [2, 0], sizes = [4, 32], strides = [1, 1]} : vector<10x32xbf16> to vector<4x32xbf16>
    %c2_157 = arith.constant 2 : index
    %c0_158 = arith.constant 0 : index
    %c0_159 = arith.constant 0 : index
    %c0_160 = arith.constant 0 : index
    %176 = vector.load %arg6[%c2_157, %c0_158, %c0_159, %c0_160] : memref<4x3x32x32xbf16, #tpu.memory_space<vmem>>, vector<1x1x32x32xbf16>
    %177 = vector.shape_cast %176 : vector<1x1x32x32xbf16> to vector<32x32xbf16>
    %cst_161 = arith.constant dense<0.000000e+00> : vector<4x32xf32>
    %178 = tpu.matmul %175, %177, %cst_161 {dimension_numbers = #tpu.dot_dimension_numbers<[1], [0], [0], [1], [0, 0, 1, 1], [], []>} : vector<4x32xbf16>, vector<32x32xbf16>, vector<4x32xf32> -> vector<4x32xf32>
    %179 = vector.extract_strided_slice %174 {offsets = [3, 0], sizes = [4, 32], strides = [1, 1]} : vector<10x32xbf16> to vector<4x32xbf16>
    %c2_162 = arith.constant 2 : index
    %c1_163 = arith.constant 1 : index
    %c0_164 = arith.constant 0 : index
    %c0_165 = arith.constant 0 : index
    %180 = vector.load %arg6[%c2_162, %c1_163, %c0_164, %c0_165] : memref<4x3x32x32xbf16, #tpu.memory_space<vmem>>, vector<1x1x32x32xbf16>
    %181 = vector.shape_cast %180 : vector<1x1x32x32xbf16> to vector<32x32xbf16>
    %cst_166 = arith.constant dense<0.000000e+00> : vector<4x32xf32>
    %182 = tpu.matmul %179, %181, %cst_166 {dimension_numbers = #tpu.dot_dimension_numbers<[1], [0], [0], [1], [0, 0, 1, 1], [], []>} : vector<4x32xbf16>, vector<32x32xbf16>, vector<4x32xf32> -> vector<4x32xf32>
    %183 = arith.addf %178, %182 : vector<4x32xf32>
    %184 = vector.extract_strided_slice %174 {offsets = [4, 0], sizes = [4, 32], strides = [1, 1]} : vector<10x32xbf16> to vector<4x32xbf16>
    %c2_167 = arith.constant 2 : index
    %c2_168 = arith.constant 2 : index
    %c0_169 = arith.constant 0 : index
    %c0_170 = arith.constant 0 : index
    %185 = vector.load %arg6[%c2_167, %c2_168, %c0_169, %c0_170] : memref<4x3x32x32xbf16, #tpu.memory_space<vmem>>, vector<1x1x32x32xbf16>
    %186 = vector.shape_cast %185 : vector<1x1x32x32xbf16> to vector<32x32xbf16>
    %cst_171 = arith.constant dense<0.000000e+00> : vector<4x32xf32>
    %187 = tpu.matmul %184, %186, %cst_171 {dimension_numbers = #tpu.dot_dimension_numbers<[1], [0], [0], [1], [0, 0, 1, 1], [], []>} : vector<4x32xbf16>, vector<32x32xbf16>, vector<4x32xf32> -> vector<4x32xf32>
    %188 = arith.addf %183, %187 : vector<4x32xf32>
    %c2_172 = arith.constant 2 : index
    %c0_173 = arith.constant 0 : index
    %c0_174 = arith.constant 0 : index
    %189 = vector.load %arg7[%c2_172, %c0_173, %c0_174] : memref<4x1x32xf32, #tpu.memory_space<vmem>>, vector<1x1x32xf32>
    %190 = vector.shape_cast %189 : vector<1x1x32xf32> to vector<1x32xf32>
    %191 = vector.broadcast %190 : vector<1x32xf32> to vector<4x32xf32>
    %192 = arith.addf %188, %191 : vector<4x32xf32>
    %cst_175 = arith.constant 0.000000e+00 : f32
    %193 = vector.broadcast %cst_175 : f32 to vector<4x32xf32>
    %194 = arith.maximumf %192, %193 : vector<4x32xf32>
    %195 = arith.truncf %194 : vector<4x32xf32> to vector<4x32xbf16>
    %c2_176 = arith.constant 2 : index
    %c0_177 = arith.constant 0 : index
    %c0_178 = arith.constant 0 : index
    %196 = vector.load %arg8[%c2_176, %c0_177, %c0_178] : memref<4x32x32xbf16, #tpu.memory_space<vmem>>, vector<1x32x32xbf16>
    %197 = vector.shape_cast %196 : vector<1x32x32xbf16> to vector<32x32xbf16>
    %cst_179 = arith.constant dense<0.000000e+00> : vector<4x32xf32>
    %198 = tpu.matmul %195, %197, %cst_179 {dimension_numbers = #tpu.dot_dimension_numbers<[1], [0], [0], [1], [0, 0, 1, 1], [], []>} : vector<4x32xbf16>, vector<32x32xbf16>, vector<4x32xf32> -> vector<4x32xf32>
    %c2_180 = arith.constant 2 : index
    %c0_181 = arith.constant 0 : index
    %c0_182 = arith.constant 0 : index
    %199 = vector.load %arg9[%c2_180, %c0_181, %c0_182] : memref<4x1x32xf32, #tpu.memory_space<vmem>>, vector<1x1x32xf32>
    %200 = vector.shape_cast %199 : vector<1x1x32xf32> to vector<1x32xf32>
    %201 = vector.broadcast %200 : vector<1x32xf32> to vector<4x32xf32>
    %202 = arith.addf %198, %201 : vector<4x32xf32>
    %c3_183 = arith.constant 3 : index
    %c0_184 = arith.constant 0 : index
    %203 = vector.load %arg16[%c3_183, %c0_184] : memref<10x32xf32, #tpu.memory_space<vmem>>, vector<4x32xf32>
    %204 = arith.addf %203, %202 : vector<4x32xf32>
    %c3_185 = arith.constant 3 : index
    %c0_186 = arith.constant 0 : index
    %205 = vector.load %arg16[%c3_185, %c0_186] : memref<10x32xf32, #tpu.memory_space<vmem>>, vector<4x32xf32>
    tpu.vector_store %arg16[%c3_185, %c0_186], %204 {strides = array<i32>} : memref<10x32xf32, #tpu.memory_space<vmem>>, vector<4x32xf32>,
    %c0_187 = arith.constant 0 : index
    %c0_188 = arith.constant 0 : index
    %206 = vector.load %arg16[%c0_187, %c0_188] : memref<10x32xf32, #tpu.memory_space<vmem>>, vector<10x32xf32>
    %cst_189 = arith.constant 0.000000e+00 : f32
    %207 = vector.broadcast %cst_189 : f32 to vector<10x32xf32>
    %208 = arith.maximumf %206, %207 : vector<10x32xf32>
    %209 = arith.truncf %208 : vector<10x32xf32> to vector<10x32xbf16>
    %210 = vector.extract_strided_slice %209 {offsets = [0, 0], sizes = [4, 32], strides = [1, 1]} : vector<10x32xbf16> to vector<4x32xbf16>
    %c3_190 = arith.constant 3 : index
    %c0_191 = arith.constant 0 : index
    %c0_192 = arith.constant 0 : index
    %c0_193 = arith.constant 0 : index
    %211 = vector.load %arg6[%c3_190, %c0_191, %c0_192, %c0_193] : memref<4x3x32x32xbf16, #tpu.memory_space<vmem>>, vector<1x1x32x32xbf16>
    %212 = vector.shape_cast %211 : vector<1x1x32x32xbf16> to vector<32x32xbf16>
    %cst_194 = arith.constant dense<0.000000e+00> : vector<4x32xf32>
    %213 = tpu.matmul %210, %212, %cst_194 {dimension_numbers = #tpu.dot_dimension_numbers<[1], [0], [0], [1], [0, 0, 1, 1], [], []>} : vector<4x32xbf16>, vector<32x32xbf16>, vector<4x32xf32> -> vector<4x32xf32>
    %214 = vector.extract_strided_slice %209 {offsets = [3, 0], sizes = [4, 32], strides = [1, 1]} : vector<10x32xbf16> to vector<4x32xbf16>
    %c3_195 = arith.constant 3 : index
    %c1_196 = arith.constant 1 : index
    %c0_197 = arith.constant 0 : index
    %c0_198 = arith.constant 0 : index
    %215 = vector.load %arg6[%c3_195, %c1_196, %c0_197, %c0_198] : memref<4x3x32x32xbf16, #tpu.memory_space<vmem>>, vector<1x1x32x32xbf16>
    %216 = vector.shape_cast %215 : vector<1x1x32x32xbf16> to vector<32x32xbf16>
    %cst_199 = arith.constant dense<0.000000e+00> : vector<4x32xf32>
    %217 = tpu.matmul %214, %216, %cst_199 {dimension_numbers = #tpu.dot_dimension_numbers<[1], [0], [0], [1], [0, 0, 1, 1], [], []>} : vector<4x32xbf16>, vector<32x32xbf16>, vector<4x32xf32> -> vector<4x32xf32>
    %218 = arith.addf %213, %217 : vector<4x32xf32>
    %219 = vector.extract_strided_slice %209 {offsets = [6, 0], sizes = [4, 32], strides = [1, 1]} : vector<10x32xbf16> to vector<4x32xbf16>
    %c3_200 = arith.constant 3 : index
    %c2_201 = arith.constant 2 : index
    %c0_202 = arith.constant 0 : index
    %c0_203 = arith.constant 0 : index
    %220 = vector.load %arg6[%c3_200, %c2_201, %c0_202, %c0_203] : memref<4x3x32x32xbf16, #tpu.memory_space<vmem>>, vector<1x1x32x32xbf16>
    %221 = vector.shape_cast %220 : vector<1x1x32x32xbf16> to vector<32x32xbf16>
    %cst_204 = arith.constant dense<0.000000e+00> : vector<4x32xf32>
    %222 = tpu.matmul %219, %221, %cst_204 {dimension_numbers = #tpu.dot_dimension_numbers<[1], [0], [0], [1], [0, 0, 1, 1], [], []>} : vector<4x32xbf16>, vector<32x32xbf16>, vector<4x32xf32> -> vector<4x32xf32>
    %223 = arith.addf %218, %222 : vector<4x32xf32>
    %c3_205 = arith.constant 3 : index
    %c0_206 = arith.constant 0 : index
    %c0_207 = arith.constant 0 : index
    %224 = vector.load %arg7[%c3_205, %c0_206, %c0_207] : memref<4x1x32xf32, #tpu.memory_space<vmem>>, vector<1x1x32xf32>
    %225 = vector.shape_cast %224 : vector<1x1x32xf32> to vector<1x32xf32>
    %226 = vector.broadcast %225 : vector<1x32xf32> to vector<4x32xf32>
    %227 = arith.addf %223, %226 : vector<4x32xf32>
    %cst_208 = arith.constant 0.000000e+00 : f32
    %228 = vector.broadcast %cst_208 : f32 to vector<4x32xf32>
    %229 = arith.maximumf %227, %228 : vector<4x32xf32>
    %230 = arith.truncf %229 : vector<4x32xf32> to vector<4x32xbf16>
    %c3_209 = arith.constant 3 : index
    %c0_210 = arith.constant 0 : index
    %c0_211 = arith.constant 0 : index
    %231 = vector.load %arg8[%c3_209, %c0_210, %c0_211] : memref<4x32x32xbf16, #tpu.memory_space<vmem>>, vector<1x32x32xbf16>
    %232 = vector.shape_cast %231 : vector<1x32x32xbf16> to vector<32x32xbf16>
    %cst_212 = arith.constant dense<0.000000e+00> : vector<4x32xf32>
    %233 = tpu.matmul %230, %232, %cst_212 {dimension_numbers = #tpu.dot_dimension_numbers<[1], [0], [0], [1], [0, 0, 1, 1], [], []>} : vector<4x32xbf16>, vector<32x32xbf16>, vector<4x32xf32> -> vector<4x32xf32>
    %c3_213 = arith.constant 3 : index
    %c0_214 = arith.constant 0 : index
    %c0_215 = arith.constant 0 : index
    %234 = vector.load %arg9[%c3_213, %c0_214, %c0_215] : memref<4x1x32xf32, #tpu.memory_space<vmem>>, vector<1x1x32xf32>
    %235 = vector.shape_cast %234 : vector<1x1x32xf32> to vector<1x32xf32>
    %236 = vector.broadcast %235 : vector<1x32xf32> to vector<4x32xf32>
    %237 = arith.addf %233, %236 : vector<4x32xf32>
    %c3_216 = arith.constant 3 : index
    %c0_217 = arith.constant 0 : index
    %238 = vector.load %arg16[%c3_216, %c0_217] : memref<10x32xf32, #tpu.memory_space<vmem>>, vector<4x32xf32>
    %239 = arith.addf %238, %237 : vector<4x32xf32>
    %c3_218 = arith.constant 3 : index
    %c0_219 = arith.constant 0 : index
    %240 = vector.load %arg16[%c3_218, %c0_219] : memref<10x32xf32, #tpu.memory_space<vmem>>, vector<4x32xf32>
    tpu.vector_store %arg16[%c3_218, %c0_219], %239 {strides = array<i32>} : memref<10x32xf32, #tpu.memory_space<vmem>>, vector<4x32xf32>,
    %c0_220 = arith.constant 0 : index
    %c0_221 = arith.constant 0 : index
    %241 = vector.load %arg16[%c0_220, %c0_221] : memref<10x32xf32, #tpu.memory_space<vmem>>, vector<10x32xf32>
    %242 = arith.truncf %241 : vector<10x32xf32> to vector<10x32xbf16>
    %243 = vector.extract_strided_slice %242 {offsets = [2, 0], sizes = [4, 32], strides = [1, 1]} : vector<10x32xbf16> to vector<4x32xbf16>
    %c0_222 = arith.constant 0 : index
    %c0_223 = arith.constant 0 : index
    %c0_224 = arith.constant 0 : index
    %244 = vector.load %arg10[%c0_222, %c0_223, %c0_224] : memref<3x32x32xbf16, #tpu.memory_space<vmem>>, vector<1x32x32xbf16>
    %245 = vector.shape_cast %244 : vector<1x32x32xbf16> to vector<32x32xbf16>
    %cst_225 = arith.constant dense<0.000000e+00> : vector<4x32xf32>
    %246 = tpu.matmul %243, %245, %cst_225 {dimension_numbers = #tpu.dot_dimension_numbers<[1], [0], [0], [1], [0, 0, 1, 1], [], []>} : vector<4x32xbf16>, vector<32x32xbf16>, vector<4x32xf32> -> vector<4x32xf32>
    %247 = vector.extract_strided_slice %242 {offsets = [3, 0], sizes = [4, 32], strides = [1, 1]} : vector<10x32xbf16> to vector<4x32xbf16>
    %c1_226 = arith.constant 1 : index
    %c0_227 = arith.constant 0 : index
    %c0_228 = arith.constant 0 : index
    %248 = vector.load %arg10[%c1_226, %c0_227, %c0_228] : memref<3x32x32xbf16, #tpu.memory_space<vmem>>, vector<1x32x32xbf16>
    %249 = vector.shape_cast %248 : vector<1x32x32xbf16> to vector<32x32xbf16>
    %cst_229 = arith.constant dense<0.000000e+00> : vector<4x32xf32>
    %250 = tpu.matmul %247, %249, %cst_229 {dimension_numbers = #tpu.dot_dimension_numbers<[1], [0], [0], [1], [0, 0, 1, 1], [], []>} : vector<4x32xbf16>, vector<32x32xbf16>, vector<4x32xf32> -> vector<4x32xf32>
    %251 = arith.addf %246, %250 : vector<4x32xf32>
    %252 = vector.extract_strided_slice %242 {offsets = [4, 0], sizes = [4, 32], strides = [1, 1]} : vector<10x32xbf16> to vector<4x32xbf16>
    %c2_230 = arith.constant 2 : index
    %c0_231 = arith.constant 0 : index
    %c0_232 = arith.constant 0 : index
    %253 = vector.load %arg10[%c2_230, %c0_231, %c0_232] : memref<3x32x32xbf16, #tpu.memory_space<vmem>>, vector<1x32x32xbf16>
    %254 = vector.shape_cast %253 : vector<1x32x32xbf16> to vector<32x32xbf16>
    %cst_233 = arith.constant dense<0.000000e+00> : vector<4x32xf32>
    %255 = tpu.matmul %252, %254, %cst_233 {dimension_numbers = #tpu.dot_dimension_numbers<[1], [0], [0], [1], [0, 0, 1, 1], [], []>} : vector<4x32xbf16>, vector<32x32xbf16>, vector<4x32xf32> -> vector<4x32xf32>
    %256 = arith.addf %251, %255 : vector<4x32xf32>
    %c0_234 = arith.constant 0 : index
    %c0_235 = arith.constant 0 : index
    %257 = vector.load %arg11[%c0_234, %c0_235] : memref<1x32xf32, #tpu.memory_space<vmem>>, vector<1x32xf32>
    %258 = vector.broadcast %257 : vector<1x32xf32> to vector<4x32xf32>
    %259 = arith.addf %256, %258 : vector<4x32xf32>
    %c0_236 = arith.constant 0 : index
    %c0_237 = arith.constant 0 : index
    %c0_238 = arith.constant 0 : index
    %260 = vector.load %arg12[%c0_236, %c0_237, %c0_238] : memref<1x4x32xf32, #tpu.memory_space<vmem>>, vector<1x4x32xf32>
    %261 = vector.shape_cast %260 : vector<1x4x32xf32> to vector<4x32xf32>
    %262 = vector.shape_cast %259 : vector<4x32xf32> to vector<1x4x32xf32>
    tpu.vector_store %arg12[%c0_236, %c0_237, %c0_238], %262 {strides = array<i32>} : memref<1x4x32xf32, #tpu.memory_space<vmem>>, vector<1x4x32xf32>,
    return
  }
  func.func @transform_0(%arg0: i32) -> (i32, i32, i32) {
    %c0_i32 = arith.constant 0 : i32
    %c0_i32_0 = arith.constant 0 : i32
    %c0_i32_1 = arith.constant 0 : i32
    return %arg0, %c0_i32, %c0_i32_0 : i32, i32, i32
  }
  func.func @transform_1(%arg0: i32) -> (i32, i32, i32) {
    %c0_i32 = arith.constant 0 : i32
    %c0_i32_0 = arith.constant 0 : i32
    %c0_i32_1 = arith.constant 0 : i32
    %c0_i32_2 = arith.constant 0 : i32
    return %c0_i32, %c0_i32_0, %c0_i32_1 : i32, i32, i32
  }
  func.func @transform_2(%arg0: i32) -> (i32, i32) {
    %c0_i32 = arith.constant 0 : i32
    %c0_i32_0 = arith.constant 0 : i32
    %c0_i32_1 = arith.constant 0 : i32
    return %c0_i32, %c0_i32_0 : i32, i32
  }
  func.func @transform_3(%arg0: i32) -> (i32, i32, i32, i32) {
    %c0_i32 = arith.constant 0 : i32
    %c0_i32_0 = arith.constant 0 : i32
    %c0_i32_1 = arith.constant 0 : i32
    %c0_i32_2 = arith.constant 0 : i32
    %c0_i32_3 = arith.constant 0 : i32
    return %c0_i32, %c0_i32_0, %c0_i32_1, %c0_i32_2 : i32, i32, i32, i32
  }
  func.func @transform_4(%arg0: i32) -> (i32, i32, i32) {
    %c0_i32 = arith.constant 0 : i32
    %c0_i32_0 = arith.constant 0 : i32
    %c0_i32_1 = arith.constant 0 : i32
    %c0_i32_2 = arith.constant 0 : i32
    return %c0_i32, %c0_i32_0, %c0_i32_1 : i32, i32, i32
  }
  func.func @transform_5(%arg0: i32) -> (i32, i32, i32, i32) {
    %c0_i32 = arith.constant 0 : i32
    %c0_i32_0 = arith.constant 0 : i32
    %c0_i32_1 = arith.constant 0 : i32
    %c0_i32_2 = arith.constant 0 : i32
    %c0_i32_3 = arith.constant 0 : i32
    return %c0_i32, %c0_i32_0, %c0_i32_1, %c0_i32_2 : i32, i32, i32, i32
  }
  func.func @transform_6(%arg0: i32) -> (i32, i32, i32) {
    %c0_i32 = arith.constant 0 : i32
    %c0_i32_0 = arith.constant 0 : i32
    %c0_i32_1 = arith.constant 0 : i32
    %c0_i32_2 = arith.constant 0 : i32
    return %c0_i32, %c0_i32_0, %c0_i32_1 : i32, i32, i32
  }
  func.func @transform_7(%arg0: i32) -> (i32, i32, i32) {
    %c0_i32 = arith.constant 0 : i32
    %c0_i32_0 = arith.constant 0 : i32
    %c0_i32_1 = arith.constant 0 : i32
    %c0_i32_2 = arith.constant 0 : i32
    return %c0_i32, %c0_i32_0, %c0_i32_1 : i32, i32, i32
  }
  func.func @transform_8(%arg0: i32) -> (i32, i32, i32) {
    %c0_i32 = arith.constant 0 : i32
    %c0_i32_0 = arith.constant 0 : i32
    %c0_i32_1 = arith.constant 0 : i32
    %c0_i32_2 = arith.constant 0 : i32
    return %c0_i32, %c0_i32_0, %c0_i32_1 : i32, i32, i32
  }
  func.func @transform_9(%arg0: i32) -> (i32, i32, i32) {
    %c0_i32 = arith.constant 0 : i32
    %c0_i32_0 = arith.constant 0 : i32
    %c0_i32_1 = arith.constant 0 : i32
    %c0_i32_2 = arith.constant 0 : i32
    return %c0_i32, %c0_i32_0, %c0_i32_1 : i32, i32, i32
  }
  func.func @transform_10(%arg0: i32) -> (i32, i32) {
    %c0_i32 = arith.constant 0 : i32
    %c0_i32_0 = arith.constant 0 : i32
    %c0_i32_1 = arith.constant 0 : i32
    return %c0_i32, %c0_i32_0 : i32, i32
  }
  func.func @transform_11(%arg0: i32) -> (i32, i32, i32) {
    %c0_i32 = arith.constant 0 : i32
    %c0_i32_0 = arith.constant 0 : i32
    %c0_i32_1 = arith.constant 0 : i32
    return %arg0, %c0_i32, %c0_i32_0 : i32, i32, i32
  }
}

module attributes {stable_mosaic.version = 11 : i64} {
  func.func @kernel(%arg0: i32, %arg1: memref<1x4x32xf32, #tpu.memory_space<vmem>>, %arg2: memref<3x32x32xbf16, #tpu.memory_space<vmem>>, %arg3: memref<1x32xf32, #tpu.memory_space<vmem>>, %arg4: memref<4x3x32x32xbf16, #tpu.memory_space<vmem>>, %arg5: memref<4x1x32xf32, #tpu.memory_space<vmem>>, %arg6: memref<4x32x32xbf16, #tpu.memory_space<vmem>>, %arg7: memref<4x1x32xf32, #tpu.memory_space<vmem>>, %arg8: memref<2x3x32x32xbf16, #tpu.memory_space<vmem>>, %arg9: memref<2x1x32xf32, #tpu.memory_space<vmem>>, %arg10: memref<3x32x32xbf16, #tpu.memory_space<vmem>>, %arg11: memref<1x32xf32, #tpu.memory_space<vmem>>, %arg12: memref<3x32x8xbf16, #tpu.memory_space<vmem>>, %arg13: memref<1x8xf32, #tpu.memory_space<vmem>>, %arg14: memref<1x16x8xf32, #tpu.memory_space<vmem>>, %arg15: memref<6x32xf32, #tpu.memory_space<vmem>>, %arg16: memref<18x32xf32, #tpu.memory_space<vmem>>, %arg17: memref<10x32xf32, #tpu.memory_space<vmem>>, %arg18: memref<14x32xf32, #tpu.memory_space<vmem>>, %arg19: memref<22x32xf32, #tpu.memory_space<vmem>>) attributes {dimension_semantics = [#tpu.dimension_semantics<parallel>], iteration_bounds = array<i64: 2>, scalar_prefetch = 0 : i64, scratch_operands = 5 : i64, tpu.core_type = #tpu.core_type<tc>, window_params = [{transform_indices = @transform_0, window_bounds = array<i64: 1, 4, 32>}, {pipeline_mode = #tpu.pipeline_mode<synchronous>, transform_indices = @transform_1, window_bounds = array<i64: 3, 32, 32>}, {pipeline_mode = #tpu.pipeline_mode<synchronous>, transform_indices = @transform_2, window_bounds = array<i64: 1, 32>}, {pipeline_mode = #tpu.pipeline_mode<synchronous>, transform_indices = @transform_3, window_bounds = array<i64: 4, 3, 32, 32>}, {pipeline_mode = #tpu.pipeline_mode<synchronous>, transform_indices = @transform_4, window_bounds = array<i64: 4, 1, 32>}, {pipeline_mode = #tpu.pipeline_mode<synchronous>, transform_indices = @transform_5, window_bounds = array<i64: 4, 32, 32>}, {pipeline_mode = #tpu.pipeline_mode<synchronous>, transform_indices = @transform_6, window_bounds = array<i64: 4, 1, 32>}, {pipeline_mode = #tpu.pipeline_mode<synchronous>, transform_indices = @transform_7, window_bounds = array<i64: 2, 3, 32, 32>}, {pipeline_mode = #tpu.pipeline_mode<synchronous>, transform_indices = @transform_8, window_bounds = array<i64: 2, 1, 32>}, {pipeline_mode = #tpu.pipeline_mode<synchronous>, transform_indices = @transform_9, window_bounds = array<i64: 3, 32, 32>}, {pipeline_mode = #tpu.pipeline_mode<synchronous>, transform_indices = @transform_10, window_bounds = array<i64: 1, 32>}, {pipeline_mode = #tpu.pipeline_mode<synchronous>, transform_indices = @transform_11, window_bounds = array<i64: 3, 32, 8>}, {pipeline_mode = #tpu.pipeline_mode<synchronous>, transform_indices = @transform_12, window_bounds = array<i64: 1, 8>}, {transform_indices = @transform_13, window_bounds = array<i64: 1, 16, 8>}]} {
    %cst = arith.constant 0.000000e+00 : f32
    %0 = vector.broadcast %cst : f32 to vector<6x32xf32>
    %c0 = arith.constant 0 : index
    %c0_0 = arith.constant 0 : index
    %1 = vector.load %arg15[%c0, %c0_0] : memref<6x32xf32, #tpu.memory_space<vmem>>, vector<6x32xf32>
    tpu.vector_store %arg15[%c0, %c0_0], %0 {strides = array<i32>} : memref<6x32xf32, #tpu.memory_space<vmem>>, vector<6x32xf32>,
    %cst_1 = arith.constant 0.000000e+00 : f32
    %2 = vector.broadcast %cst_1 : f32 to vector<10x32xf32>
    %c0_2 = arith.constant 0 : index
    %c0_3 = arith.constant 0 : index
    %3 = vector.load %arg17[%c0_2, %c0_3] : memref<10x32xf32, #tpu.memory_space<vmem>>, vector<10x32xf32>
    tpu.vector_store %arg17[%c0_2, %c0_3], %2 {strides = array<i32>} : memref<10x32xf32, #tpu.memory_space<vmem>>, vector<10x32xf32>,
    %cst_4 = arith.constant 0.000000e+00 : f32
    %4 = vector.broadcast %cst_4 : f32 to vector<14x32xf32>
    %c0_5 = arith.constant 0 : index
    %c0_6 = arith.constant 0 : index
    %5 = vector.load %arg18[%c0_5, %c0_6] : memref<14x32xf32, #tpu.memory_space<vmem>>, vector<14x32xf32>
    tpu.vector_store %arg18[%c0_5, %c0_6], %4 {strides = array<i32>} : memref<14x32xf32, #tpu.memory_space<vmem>>, vector<14x32xf32>,
    %cst_7 = arith.constant 0.000000e+00 : f32
    %6 = vector.broadcast %cst_7 : f32 to vector<22x32xf32>
    %c0_8 = arith.constant 0 : index
    %c0_9 = arith.constant 0 : index
    %7 = vector.load %arg19[%c0_8, %c0_9] : memref<22x32xf32, #tpu.memory_space<vmem>>, vector<22x32xf32>
    tpu.vector_store %arg19[%c0_8, %c0_9], %6 {strides = array<i32>} : memref<22x32xf32, #tpu.memory_space<vmem>>, vector<22x32xf32>,
    %c0_10 = arith.constant 0 : index
    %c0_11 = arith.constant 0 : index
    %c0_12 = arith.constant 0 : index
    %8 = vector.load %arg1[%c0_10, %c0_11, %c0_12] : memref<1x4x32xf32, #tpu.memory_space<vmem>>, vector<1x4x32xf32>
    %9 = vector.shape_cast %8 : vector<1x4x32xf32> to vector<4x32xf32>
    %c1 = arith.constant 1 : index
    %c0_13 = arith.constant 0 : index
    %10 = vector.load %arg15[%c1, %c0_13] : memref<6x32xf32, #tpu.memory_space<vmem>>, vector<4x32xf32>
    tpu.vector_store %arg15[%c1, %c0_13], %9 {strides = array<i32>} : memref<6x32xf32, #tpu.memory_space<vmem>>, vector<4x32xf32>,
    %c0_14 = arith.constant 0 : index
    %c0_15 = arith.constant 0 : index
    %11 = vector.load %arg15[%c0_14, %c0_15] : memref<6x32xf32, #tpu.memory_space<vmem>>, vector<6x32xf32>
    %12 = arith.truncf %11 : vector<6x32xf32> to vector<6x32xbf16>
    %13 = vector.extract_strided_slice %12 {offsets = [0, 0], sizes = [4, 32], strides = [1, 1]} : vector<6x32xbf16> to vector<4x32xbf16>
    %c0_16 = arith.constant 0 : index
    %c0_17 = arith.constant 0 : index
    %c0_18 = arith.constant 0 : index
    %14 = vector.load %arg2[%c0_16, %c0_17, %c0_18] : memref<3x32x32xbf16, #tpu.memory_space<vmem>>, vector<1x32x32xbf16>
    %15 = vector.shape_cast %14 : vector<1x32x32xbf16> to vector<32x32xbf16>
    %cst_19 = arith.constant dense<0.000000e+00> : vector<4x32xf32>
    %16 = tpu.matmul %13, %15, %cst_19 {dimension_numbers = #tpu.dot_dimension_numbers<[1], [0], [0], [1], [0, 0, 1, 1], [], []>} : vector<4x32xbf16>, vector<32x32xbf16>, vector<4x32xf32> -> vector<4x32xf32>
    %17 = vector.extract_strided_slice %12 {offsets = [1, 0], sizes = [4, 32], strides = [1, 1]} : vector<6x32xbf16> to vector<4x32xbf16>
    %c1_20 = arith.constant 1 : index
    %c0_21 = arith.constant 0 : index
    %c0_22 = arith.constant 0 : index
    %18 = vector.load %arg2[%c1_20, %c0_21, %c0_22] : memref<3x32x32xbf16, #tpu.memory_space<vmem>>, vector<1x32x32xbf16>
    %19 = vector.shape_cast %18 : vector<1x32x32xbf16> to vector<32x32xbf16>
    %cst_23 = arith.constant dense<0.000000e+00> : vector<4x32xf32>
    %20 = tpu.matmul %17, %19, %cst_23 {dimension_numbers = #tpu.dot_dimension_numbers<[1], [0], [0], [1], [0, 0, 1, 1], [], []>} : vector<4x32xbf16>, vector<32x32xbf16>, vector<4x32xf32> -> vector<4x32xf32>
    %21 = arith.addf %16, %20 : vector<4x32xf32>
    %22 = vector.extract_strided_slice %12 {offsets = [2, 0], sizes = [4, 32], strides = [1, 1]} : vector<6x32xbf16> to vector<4x32xbf16>
    %c2 = arith.constant 2 : index
    %c0_24 = arith.constant 0 : index
    %c0_25 = arith.constant 0 : index
    %23 = vector.load %arg2[%c2, %c0_24, %c0_25] : memref<3x32x32xbf16, #tpu.memory_space<vmem>>, vector<1x32x32xbf16>
    %24 = vector.shape_cast %23 : vector<1x32x32xbf16> to vector<32x32xbf16>
    %cst_26 = arith.constant dense<0.000000e+00> : vector<4x32xf32>
    %25 = tpu.matmul %22, %24, %cst_26 {dimension_numbers = #tpu.dot_dimension_numbers<[1], [0], [0], [1], [0, 0, 1, 1], [], []>} : vector<4x32xbf16>, vector<32x32xbf16>, vector<4x32xf32> -> vector<4x32xf32>
    %26 = arith.addf %21, %25 : vector<4x32xf32>
    %c0_27 = arith.constant 0 : index
    %c0_28 = arith.constant 0 : index
    %27 = vector.load %arg3[%c0_27, %c0_28] : memref<1x32xf32, #tpu.memory_space<vmem>>, vector<1x32xf32>
    %28 = vector.broadcast %27 : vector<1x32xf32> to vector<4x32xf32>
    %29 = arith.addf %26, %28 : vector<4x32xf32>
    %cst_29 = arith.constant 0.000000e+00 : f32
    %30 = vector.broadcast %cst_29 : f32 to vector<4x32xf32>
    %31 = arith.maximumf %29, %30 : vector<4x32xf32>
    %c3 = arith.constant 3 : index
    %c0_30 = arith.constant 0 : index
    %32 = vector.load %arg17[%c3, %c0_30] : memref<10x32xf32, #tpu.memory_space<vmem>>, vector<4x32xf32>
    tpu.vector_store %arg17[%c3, %c0_30], %31 {strides = array<i32>} : memref<10x32xf32, #tpu.memory_space<vmem>>, vector<4x32xf32>,
    %c0_31 = arith.constant 0 : index
    %c0_32 = arith.constant 0 : index
    %33 = vector.load %arg17[%c0_31, %c0_32] : memref<10x32xf32, #tpu.memory_space<vmem>>, vector<10x32xf32>
    %cst_33 = arith.constant 0.000000e+00 : f32
    %34 = vector.broadcast %cst_33 : f32 to vector<10x32xf32>
    %35 = arith.maximumf %33, %34 : vector<10x32xf32>
    %36 = arith.truncf %35 : vector<10x32xf32> to vector<10x32xbf16>
    %37 = vector.extract_strided_slice %36 {offsets = [0, 0], sizes = [4, 32], strides = [1, 1]} : vector<10x32xbf16> to vector<4x32xbf16>
    %c0_34 = arith.constant 0 : index
    %c0_35 = arith.constant 0 : index
    %c0_36 = arith.constant 0 : index
    %c0_37 = arith.constant 0 : index
    %38 = vector.load %arg4[%c0_34, %c0_35, %c0_36, %c0_37] : memref<4x3x32x32xbf16, #tpu.memory_space<vmem>>, vector<1x1x32x32xbf16>
    %39 = vector.shape_cast %38 : vector<1x1x32x32xbf16> to vector<32x32xbf16>
    %cst_38 = arith.constant dense<0.000000e+00> : vector<4x32xf32>
    %40 = tpu.matmul %37, %39, %cst_38 {dimension_numbers = #tpu.dot_dimension_numbers<[1], [0], [0], [1], [0, 0, 1, 1], [], []>} : vector<4x32xbf16>, vector<32x32xbf16>, vector<4x32xf32> -> vector<4x32xf32>
    %41 = vector.extract_strided_slice %36 {offsets = [3, 0], sizes = [4, 32], strides = [1, 1]} : vector<10x32xbf16> to vector<4x32xbf16>
    %c0_39 = arith.constant 0 : index
    %c1_40 = arith.constant 1 : index
    %c0_41 = arith.constant 0 : index
    %c0_42 = arith.constant 0 : index
    %42 = vector.load %arg4[%c0_39, %c1_40, %c0_41, %c0_42] : memref<4x3x32x32xbf16, #tpu.memory_space<vmem>>, vector<1x1x32x32xbf16>
    %43 = vector.shape_cast %42 : vector<1x1x32x32xbf16> to vector<32x32xbf16>
    %cst_43 = arith.constant dense<0.000000e+00> : vector<4x32xf32>
    %44 = tpu.matmul %41, %43, %cst_43 {dimension_numbers = #tpu.dot_dimension_numbers<[1], [0], [0], [1], [0, 0, 1, 1], [], []>} : vector<4x32xbf16>, vector<32x32xbf16>, vector<4x32xf32> -> vector<4x32xf32>
    %45 = arith.addf %40, %44 : vector<4x32xf32>
    %46 = vector.extract_strided_slice %36 {offsets = [6, 0], sizes = [4, 32], strides = [1, 1]} : vector<10x32xbf16> to vector<4x32xbf16>
    %c0_44 = arith.constant 0 : index
    %c2_45 = arith.constant 2 : index
    %c0_46 = arith.constant 0 : index
    %c0_47 = arith.constant 0 : index
    %47 = vector.load %arg4[%c0_44, %c2_45, %c0_46, %c0_47] : memref<4x3x32x32xbf16, #tpu.memory_space<vmem>>, vector<1x1x32x32xbf16>
    %48 = vector.shape_cast %47 : vector<1x1x32x32xbf16> to vector<32x32xbf16>
    %cst_48 = arith.constant dense<0.000000e+00> : vector<4x32xf32>
    %49 = tpu.matmul %46, %48, %cst_48 {dimension_numbers = #tpu.dot_dimension_numbers<[1], [0], [0], [1], [0, 0, 1, 1], [], []>} : vector<4x32xbf16>, vector<32x32xbf16>, vector<4x32xf32> -> vector<4x32xf32>
    %50 = arith.addf %45, %49 : vector<4x32xf32>
    %c0_49 = arith.constant 0 : index
    %c0_50 = arith.constant 0 : index
    %c0_51 = arith.constant 0 : index
    %51 = vector.load %arg5[%c0_49, %c0_50, %c0_51] : memref<4x1x32xf32, #tpu.memory_space<vmem>>, vector<1x1x32xf32>
    %52 = vector.shape_cast %51 : vector<1x1x32xf32> to vector<1x32xf32>
    %53 = vector.broadcast %52 : vector<1x32xf32> to vector<4x32xf32>
    %54 = arith.addf %50, %53 : vector<4x32xf32>
    %cst_52 = arith.constant 0.000000e+00 : f32
    %55 = vector.broadcast %cst_52 : f32 to vector<4x32xf32>
    %56 = arith.maximumf %54, %55 : vector<4x32xf32>
    %57 = arith.truncf %56 : vector<4x32xf32> to vector<4x32xbf16>
    %c0_53 = arith.constant 0 : index
    %c0_54 = arith.constant 0 : index
    %c0_55 = arith.constant 0 : index
    %58 = vector.load %arg6[%c0_53, %c0_54, %c0_55] : memref<4x32x32xbf16, #tpu.memory_space<vmem>>, vector<1x32x32xbf16>
    %59 = vector.shape_cast %58 : vector<1x32x32xbf16> to vector<32x32xbf16>
    %cst_56 = arith.constant dense<0.000000e+00> : vector<4x32xf32>
    %60 = tpu.matmul %57, %59, %cst_56 {dimension_numbers = #tpu.dot_dimension_numbers<[1], [0], [0], [1], [0, 0, 1, 1], [], []>} : vector<4x32xbf16>, vector<32x32xbf16>, vector<4x32xf32> -> vector<4x32xf32>
    %c0_57 = arith.constant 0 : index
    %c0_58 = arith.constant 0 : index
    %c0_59 = arith.constant 0 : index
    %61 = vector.load %arg7[%c0_57, %c0_58, %c0_59] : memref<4x1x32xf32, #tpu.memory_space<vmem>>, vector<1x1x32xf32>
    %62 = vector.shape_cast %61 : vector<1x1x32xf32> to vector<1x32xf32>
    %63 = vector.broadcast %62 : vector<1x32xf32> to vector<4x32xf32>
    %64 = arith.addf %60, %63 : vector<4x32xf32>
    %c3_60 = arith.constant 3 : index
    %c0_61 = arith.constant 0 : index
    %65 = vector.load %arg17[%c3_60, %c0_61] : memref<10x32xf32, #tpu.memory_space<vmem>>, vector<4x32xf32>
    %66 = arith.addf %65, %64 : vector<4x32xf32>
    %c3_62 = arith.constant 3 : index
    %c0_63 = arith.constant 0 : index
    %67 = vector.load %arg17[%c3_62, %c0_63] : memref<10x32xf32, #tpu.memory_space<vmem>>, vector<4x32xf32>
    tpu.vector_store %arg17[%c3_62, %c0_63], %66 {strides = array<i32>} : memref<10x32xf32, #tpu.memory_space<vmem>>, vector<4x32xf32>,
    %c0_64 = arith.constant 0 : index
    %c0_65 = arith.constant 0 : index
    %68 = vector.load %arg17[%c0_64, %c0_65] : memref<10x32xf32, #tpu.memory_space<vmem>>, vector<10x32xf32>
    %cst_66 = arith.constant 0.000000e+00 : f32
    %69 = vector.broadcast %cst_66 : f32 to vector<10x32xf32>
    %70 = arith.maximumf %68, %69 : vector<10x32xf32>
    %71 = arith.truncf %70 : vector<10x32xf32> to vector<10x32xbf16>
    %72 = vector.extract_strided_slice %71 {offsets = [2, 0], sizes = [4, 32], strides = [1, 1]} : vector<10x32xbf16> to vector<4x32xbf16>
    %c1_67 = arith.constant 1 : index
    %c0_68 = arith.constant 0 : index
    %c0_69 = arith.constant 0 : index
    %c0_70 = arith.constant 0 : index
    %73 = vector.load %arg4[%c1_67, %c0_68, %c0_69, %c0_70] : memref<4x3x32x32xbf16, #tpu.memory_space<vmem>>, vector<1x1x32x32xbf16>
    %74 = vector.shape_cast %73 : vector<1x1x32x32xbf16> to vector<32x32xbf16>
    %cst_71 = arith.constant dense<0.000000e+00> : vector<4x32xf32>
    %75 = tpu.matmul %72, %74, %cst_71 {dimension_numbers = #tpu.dot_dimension_numbers<[1], [0], [0], [1], [0, 0, 1, 1], [], []>} : vector<4x32xbf16>, vector<32x32xbf16>, vector<4x32xf32> -> vector<4x32xf32>
    %76 = vector.extract_strided_slice %71 {offsets = [3, 0], sizes = [4, 32], strides = [1, 1]} : vector<10x32xbf16> to vector<4x32xbf16>
    %c1_72 = arith.constant 1 : index
    %c1_73 = arith.constant 1 : index
    %c0_74 = arith.constant 0 : index
    %c0_75 = arith.constant 0 : index
    %77 = vector.load %arg4[%c1_72, %c1_73, %c0_74, %c0_75] : memref<4x3x32x32xbf16, #tpu.memory_space<vmem>>, vector<1x1x32x32xbf16>
    %78 = vector.shape_cast %77 : vector<1x1x32x32xbf16> to vector<32x32xbf16>
    %cst_76 = arith.constant dense<0.000000e+00> : vector<4x32xf32>
    %79 = tpu.matmul %76, %78, %cst_76 {dimension_numbers = #tpu.dot_dimension_numbers<[1], [0], [0], [1], [0, 0, 1, 1], [], []>} : vector<4x32xbf16>, vector<32x32xbf16>, vector<4x32xf32> -> vector<4x32xf32>
    %80 = arith.addf %75, %79 : vector<4x32xf32>
    %81 = vector.extract_strided_slice %71 {offsets = [4, 0], sizes = [4, 32], strides = [1, 1]} : vector<10x32xbf16> to vector<4x32xbf16>
    %c1_77 = arith.constant 1 : index
    %c2_78 = arith.constant 2 : index
    %c0_79 = arith.constant 0 : index
    %c0_80 = arith.constant 0 : index
    %82 = vector.load %arg4[%c1_77, %c2_78, %c0_79, %c0_80] : memref<4x3x32x32xbf16, #tpu.memory_space<vmem>>, vector<1x1x32x32xbf16>
    %83 = vector.shape_cast %82 : vector<1x1x32x32xbf16> to vector<32x32xbf16>
    %cst_81 = arith.constant dense<0.000000e+00> : vector<4x32xf32>
    %84 = tpu.matmul %81, %83, %cst_81 {dimension_numbers = #tpu.dot_dimension_numbers<[1], [0], [0], [1], [0, 0, 1, 1], [], []>} : vector<4x32xbf16>, vector<32x32xbf16>, vector<4x32xf32> -> vector<4x32xf32>
    %85 = arith.addf %80, %84 : vector<4x32xf32>
    %c1_82 = arith.constant 1 : index
    %c0_83 = arith.constant 0 : index
    %c0_84 = arith.constant 0 : index
    %86 = vector.load %arg5[%c1_82, %c0_83, %c0_84] : memref<4x1x32xf32, #tpu.memory_space<vmem>>, vector<1x1x32xf32>
    %87 = vector.shape_cast %86 : vector<1x1x32xf32> to vector<1x32xf32>
    %88 = vector.broadcast %87 : vector<1x32xf32> to vector<4x32xf32>
    %89 = arith.addf %85, %88 : vector<4x32xf32>
    %cst_85 = arith.constant 0.000000e+00 : f32
    %90 = vector.broadcast %cst_85 : f32 to vector<4x32xf32>
    %91 = arith.maximumf %89, %90 : vector<4x32xf32>
    %92 = arith.truncf %91 : vector<4x32xf32> to vector<4x32xbf16>
    %c1_86 = arith.constant 1 : index
    %c0_87 = arith.constant 0 : index
    %c0_88 = arith.constant 0 : index
    %93 = vector.load %arg6[%c1_86, %c0_87, %c0_88] : memref<4x32x32xbf16, #tpu.memory_space<vmem>>, vector<1x32x32xbf16>
    %94 = vector.shape_cast %93 : vector<1x32x32xbf16> to vector<32x32xbf16>
    %cst_89 = arith.constant dense<0.000000e+00> : vector<4x32xf32>
    %95 = tpu.matmul %92, %94, %cst_89 {dimension_numbers = #tpu.dot_dimension_numbers<[1], [0], [0], [1], [0, 0, 1, 1], [], []>} : vector<4x32xbf16>, vector<32x32xbf16>, vector<4x32xf32> -> vector<4x32xf32>
    %c1_90 = arith.constant 1 : index
    %c0_91 = arith.constant 0 : index
    %c0_92 = arith.constant 0 : index
    %96 = vector.load %arg7[%c1_90, %c0_91, %c0_92] : memref<4x1x32xf32, #tpu.memory_space<vmem>>, vector<1x1x32xf32>
    %97 = vector.shape_cast %96 : vector<1x1x32xf32> to vector<1x32xf32>
    %98 = vector.broadcast %97 : vector<1x32xf32> to vector<4x32xf32>
    %99 = arith.addf %95, %98 : vector<4x32xf32>
    %c3_93 = arith.constant 3 : index
    %c0_94 = arith.constant 0 : index
    %100 = vector.load %arg17[%c3_93, %c0_94] : memref<10x32xf32, #tpu.memory_space<vmem>>, vector<4x32xf32>
    %101 = arith.addf %100, %99 : vector<4x32xf32>
    %c3_95 = arith.constant 3 : index
    %c0_96 = arith.constant 0 : index
    %102 = vector.load %arg17[%c3_95, %c0_96] : memref<10x32xf32, #tpu.memory_space<vmem>>, vector<4x32xf32>
    tpu.vector_store %arg17[%c3_95, %c0_96], %101 {strides = array<i32>} : memref<10x32xf32, #tpu.memory_space<vmem>>, vector<4x32xf32>,
    %103 = tpu.iota {dimensions = array<i32: 0>} : vector<8x4xi32>
    %104 = tpu.iota {dimensions = array<i32: 1>} : vector<8x4xi32>
    %c2_i32 = arith.constant 2 : i32
    %105 = vector.broadcast %c2_i32 : i32 to vector<8x4xi32>
    %106 = arith.muli %105, %104 : vector<8x4xi32>
    %107 = arith.cmpi eq, %103, %106 : vector<8x4xi32>
    %c2_i32_97 = arith.constant 2 : i32
    %108 = vector.broadcast %c2_i32_97 : i32 to vector<8x4xi32>
    %109 = arith.muli %108, %104 : vector<8x4xi32>
    %c1_i32 = arith.constant 1 : i32
    %110 = vector.broadcast %c1_i32 : i32 to vector<8x4xi32>
    %111 = arith.addi %109, %110 : vector<8x4xi32>
    %112 = arith.cmpi eq, %103, %111 : vector<8x4xi32>
    %113 = arith.ori %107, %112 : vector<8x4xi1>
    %114 = arith.extui %113 : vector<8x4xi1> to vector<8x4xi32>
    %115 = arith.sitofp %114 : vector<8x4xi32> to vector<8x4xf32>
    %116 = arith.truncf %115 : vector<8x4xf32> to vector<8x4xbf16>
    %cst_98 = arith.constant 0.000000e+00 : f32
    %117 = vector.broadcast %cst_98 : f32 to vector<18x32xf32>
    %c0_99 = arith.constant 0 : index
    %c0_100 = arith.constant 0 : index
    %118 = vector.load %arg16[%c0_99, %c0_100] : memref<18x32xf32, #tpu.memory_space<vmem>>, vector<18x32xf32>
    tpu.vector_store %arg16[%c0_99, %c0_100], %117 {strides = array<i32>} : memref<18x32xf32, #tpu.memory_space<vmem>>, vector<18x32xf32>,
    %c3_101 = arith.constant 3 : index
    %c0_102 = arith.constant 0 : index
    %119 = vector.load %arg17[%c3_101, %c0_102] : memref<10x32xf32, #tpu.memory_space<vmem>>, vector<4x32xf32>
    %120 = arith.truncf %119 : vector<4x32xf32> to vector<4x32xbf16>
    %cst_103 = arith.constant dense<0.000000e+00> : vector<8x32xf32>
    %121 = tpu.matmul %116, %120, %cst_103 {dimension_numbers = #tpu.dot_dimension_numbers<[1], [0], [0], [1], [0, 0, 1, 1], [], []>} : vector<8x4xbf16>, vector<4x32xbf16>, vector<8x32xf32> -> vector<8x32xf32>
    %c1_104 = arith.constant 1 : index
    %c0_105 = arith.constant 0 : index
    %122 = vector.load %arg16[%c1_104, %c0_105] : memref<18x32xf32, #tpu.memory_space<vmem>>, vector<8x32xf32>
    tpu.vector_store %arg16[%c1_104, %c0_105], %121 {strides = array<i32>} : memref<18x32xf32, #tpu.memory_space<vmem>>, vector<8x32xf32>,
    %c0_106 = arith.constant 0 : index
    %c0_107 = arith.constant 0 : index
    %123 = vector.load %arg16[%c0_106, %c0_107] : memref<18x32xf32, #tpu.memory_space<vmem>>, vector<18x32xf32>
    %124 = arith.truncf %123 : vector<18x32xf32> to vector<18x32xbf16>
    %125 = vector.extract_strided_slice %124 {offsets = [0, 0], sizes = [8, 32], strides = [1, 1]} : vector<18x32xbf16> to vector<8x32xbf16>
    %c0_108 = arith.constant 0 : index
    %c0_109 = arith.constant 0 : index
    %c0_110 = arith.constant 0 : index
    %c0_111 = arith.constant 0 : index
    %126 = vector.load %arg8[%c0_108, %c0_109, %c0_110, %c0_111] : memref<2x3x32x32xbf16, #tpu.memory_space<vmem>>, vector<1x1x32x32xbf16>
    %127 = vector.shape_cast %126 : vector<1x1x32x32xbf16> to vector<32x32xbf16>
    %cst_112 = arith.constant dense<0.000000e+00> : vector<8x32xf32>
    %128 = tpu.matmul %125, %127, %cst_112 {dimension_numbers = #tpu.dot_dimension_numbers<[1], [0], [0], [1], [0, 0, 1, 1], [], []>} : vector<8x32xbf16>, vector<32x32xbf16>, vector<8x32xf32> -> vector<8x32xf32>
    %129 = vector.extract_strided_slice %124 {offsets = [1, 0], sizes = [8, 32], strides = [1, 1]} : vector<18x32xbf16> to vector<8x32xbf16>
    %c0_113 = arith.constant 0 : index
    %c1_114 = arith.constant 1 : index
    %c0_115 = arith.constant 0 : index
    %c0_116 = arith.constant 0 : index
    %130 = vector.load %arg8[%c0_113, %c1_114, %c0_115, %c0_116] : memref<2x3x32x32xbf16, #tpu.memory_space<vmem>>, vector<1x1x32x32xbf16>
    %131 = vector.shape_cast %130 : vector<1x1x32x32xbf16> to vector<32x32xbf16>
    %cst_117 = arith.constant dense<0.000000e+00> : vector<8x32xf32>
    %132 = tpu.matmul %129, %131, %cst_117 {dimension_numbers = #tpu.dot_dimension_numbers<[1], [0], [0], [1], [0, 0, 1, 1], [], []>} : vector<8x32xbf16>, vector<32x32xbf16>, vector<8x32xf32> -> vector<8x32xf32>
    %133 = arith.addf %128, %132 : vector<8x32xf32>
    %134 = vector.extract_strided_slice %124 {offsets = [2, 0], sizes = [8, 32], strides = [1, 1]} : vector<18x32xbf16> to vector<8x32xbf16>
    %c0_118 = arith.constant 0 : index
    %c2_119 = arith.constant 2 : index
    %c0_120 = arith.constant 0 : index
    %c0_121 = arith.constant 0 : index
    %135 = vector.load %arg8[%c0_118, %c2_119, %c0_120, %c0_121] : memref<2x3x32x32xbf16, #tpu.memory_space<vmem>>, vector<1x1x32x32xbf16>
    %136 = vector.shape_cast %135 : vector<1x1x32x32xbf16> to vector<32x32xbf16>
    %cst_122 = arith.constant dense<0.000000e+00> : vector<8x32xf32>
    %137 = tpu.matmul %134, %136, %cst_122 {dimension_numbers = #tpu.dot_dimension_numbers<[1], [0], [0], [1], [0, 0, 1, 1], [], []>} : vector<8x32xbf16>, vector<32x32xbf16>, vector<8x32xf32> -> vector<8x32xf32>
    %138 = arith.addf %133, %137 : vector<8x32xf32>
    %c0_123 = arith.constant 0 : index
    %c0_124 = arith.constant 0 : index
    %c0_125 = arith.constant 0 : index
    %139 = vector.load %arg9[%c0_123, %c0_124, %c0_125] : memref<2x1x32xf32, #tpu.memory_space<vmem>>, vector<1x1x32xf32>
    %140 = vector.shape_cast %139 : vector<1x1x32xf32> to vector<1x32xf32>
    %141 = vector.broadcast %140 : vector<1x32xf32> to vector<8x32xf32>
    %142 = arith.addf %138, %141 : vector<8x32xf32>
    %c3_126 = arith.constant 3 : index
    %c0_127 = arith.constant 0 : index
    %143 = vector.load %arg18[%c3_126, %c0_127] : memref<14x32xf32, #tpu.memory_space<vmem>>, vector<8x32xf32>
    tpu.vector_store %arg18[%c3_126, %c0_127], %142 {strides = array<i32>} : memref<14x32xf32, #tpu.memory_space<vmem>>, vector<8x32xf32>,
    %c0_128 = arith.constant 0 : index
    %c0_129 = arith.constant 0 : index
    %144 = vector.load %arg18[%c0_128, %c0_129] : memref<14x32xf32, #tpu.memory_space<vmem>>, vector<14x32xf32>
    %cst_130 = arith.constant 0.000000e+00 : f32
    %145 = vector.broadcast %cst_130 : f32 to vector<14x32xf32>
    %146 = arith.maximumf %144, %145 : vector<14x32xf32>
    %147 = arith.truncf %146 : vector<14x32xf32> to vector<14x32xbf16>
    %148 = vector.extract_strided_slice %147 {offsets = [0, 0], sizes = [8, 32], strides = [1, 1]} : vector<14x32xbf16> to vector<8x32xbf16>
    %c2_131 = arith.constant 2 : index
    %c0_132 = arith.constant 0 : index
    %c0_133 = arith.constant 0 : index
    %c0_134 = arith.constant 0 : index
    %149 = vector.load %arg4[%c2_131, %c0_132, %c0_133, %c0_134] : memref<4x3x32x32xbf16, #tpu.memory_space<vmem>>, vector<1x1x32x32xbf16>
    %150 = vector.shape_cast %149 : vector<1x1x32x32xbf16> to vector<32x32xbf16>
    %cst_135 = arith.constant dense<0.000000e+00> : vector<8x32xf32>
    %151 = tpu.matmul %148, %150, %cst_135 {dimension_numbers = #tpu.dot_dimension_numbers<[1], [0], [0], [1], [0, 0, 1, 1], [], []>} : vector<8x32xbf16>, vector<32x32xbf16>, vector<8x32xf32> -> vector<8x32xf32>
    %152 = vector.extract_strided_slice %147 {offsets = [3, 0], sizes = [8, 32], strides = [1, 1]} : vector<14x32xbf16> to vector<8x32xbf16>
    %c2_136 = arith.constant 2 : index
    %c1_137 = arith.constant 1 : index
    %c0_138 = arith.constant 0 : index
    %c0_139 = arith.constant 0 : index
    %153 = vector.load %arg4[%c2_136, %c1_137, %c0_138, %c0_139] : memref<4x3x32x32xbf16, #tpu.memory_space<vmem>>, vector<1x1x32x32xbf16>
    %154 = vector.shape_cast %153 : vector<1x1x32x32xbf16> to vector<32x32xbf16>
    %cst_140 = arith.constant dense<0.000000e+00> : vector<8x32xf32>
    %155 = tpu.matmul %152, %154, %cst_140 {dimension_numbers = #tpu.dot_dimension_numbers<[1], [0], [0], [1], [0, 0, 1, 1], [], []>} : vector<8x32xbf16>, vector<32x32xbf16>, vector<8x32xf32> -> vector<8x32xf32>
    %156 = arith.addf %151, %155 : vector<8x32xf32>
    %157 = vector.extract_strided_slice %147 {offsets = [6, 0], sizes = [8, 32], strides = [1, 1]} : vector<14x32xbf16> to vector<8x32xbf16>
    %c2_141 = arith.constant 2 : index
    %c2_142 = arith.constant 2 : index
    %c0_143 = arith.constant 0 : index
    %c0_144 = arith.constant 0 : index
    %158 = vector.load %arg4[%c2_141, %c2_142, %c0_143, %c0_144] : memref<4x3x32x32xbf16, #tpu.memory_space<vmem>>, vector<1x1x32x32xbf16>
    %159 = vector.shape_cast %158 : vector<1x1x32x32xbf16> to vector<32x32xbf16>
    %cst_145 = arith.constant dense<0.000000e+00> : vector<8x32xf32>
    %160 = tpu.matmul %157, %159, %cst_145 {dimension_numbers = #tpu.dot_dimension_numbers<[1], [0], [0], [1], [0, 0, 1, 1], [], []>} : vector<8x32xbf16>, vector<32x32xbf16>, vector<8x32xf32> -> vector<8x32xf32>
    %161 = arith.addf %156, %160 : vector<8x32xf32>
    %c2_146 = arith.constant 2 : index
    %c0_147 = arith.constant 0 : index
    %c0_148 = arith.constant 0 : index
    %162 = vector.load %arg5[%c2_146, %c0_147, %c0_148] : memref<4x1x32xf32, #tpu.memory_space<vmem>>, vector<1x1x32xf32>
    %163 = vector.shape_cast %162 : vector<1x1x32xf32> to vector<1x32xf32>
    %164 = vector.broadcast %163 : vector<1x32xf32> to vector<8x32xf32>
    %165 = arith.addf %161, %164 : vector<8x32xf32>
    %cst_149 = arith.constant 0.000000e+00 : f32
    %166 = vector.broadcast %cst_149 : f32 to vector<8x32xf32>
    %167 = arith.maximumf %165, %166 : vector<8x32xf32>
    %168 = arith.truncf %167 : vector<8x32xf32> to vector<8x32xbf16>
    %c2_150 = arith.constant 2 : index
    %c0_151 = arith.constant 0 : index
    %c0_152 = arith.constant 0 : index
    %169 = vector.load %arg6[%c2_150, %c0_151, %c0_152] : memref<4x32x32xbf16, #tpu.memory_space<vmem>>, vector<1x32x32xbf16>
    %170 = vector.shape_cast %169 : vector<1x32x32xbf16> to vector<32x32xbf16>
    %cst_153 = arith.constant dense<0.000000e+00> : vector<8x32xf32>
    %171 = tpu.matmul %168, %170, %cst_153 {dimension_numbers = #tpu.dot_dimension_numbers<[1], [0], [0], [1], [0, 0, 1, 1], [], []>} : vector<8x32xbf16>, vector<32x32xbf16>, vector<8x32xf32> -> vector<8x32xf32>
    %c2_154 = arith.constant 2 : index
    %c0_155 = arith.constant 0 : index
    %c0_156 = arith.constant 0 : index
    %172 = vector.load %arg7[%c2_154, %c0_155, %c0_156] : memref<4x1x32xf32, #tpu.memory_space<vmem>>, vector<1x1x32xf32>
    %173 = vector.shape_cast %172 : vector<1x1x32xf32> to vector<1x32xf32>
    %174 = vector.broadcast %173 : vector<1x32xf32> to vector<8x32xf32>
    %175 = arith.addf %171, %174 : vector<8x32xf32>
    %c3_157 = arith.constant 3 : index
    %c0_158 = arith.constant 0 : index
    %176 = vector.load %arg18[%c3_157, %c0_158] : memref<14x32xf32, #tpu.memory_space<vmem>>, vector<8x32xf32>
    %177 = arith.addf %176, %175 : vector<8x32xf32>
    %c3_159 = arith.constant 3 : index
    %c0_160 = arith.constant 0 : index
    %178 = vector.load %arg18[%c3_159, %c0_160] : memref<14x32xf32, #tpu.memory_space<vmem>>, vector<8x32xf32>
    tpu.vector_store %arg18[%c3_159, %c0_160], %177 {strides = array<i32>} : memref<14x32xf32, #tpu.memory_space<vmem>>, vector<8x32xf32>,
    %c0_161 = arith.constant 0 : index
    %c0_162 = arith.constant 0 : index
    %179 = vector.load %arg18[%c0_161, %c0_162] : memref<14x32xf32, #tpu.memory_space<vmem>>, vector<14x32xf32>
    %cst_163 = arith.constant 0.000000e+00 : f32
    %180 = vector.broadcast %cst_163 : f32 to vector<14x32xf32>
    %181 = arith.maximumf %179, %180 : vector<14x32xf32>
    %182 = arith.truncf %181 : vector<14x32xf32> to vector<14x32xbf16>
    %183 = vector.extract_strided_slice %182 {offsets = [2, 0], sizes = [8, 32], strides = [1, 1]} : vector<14x32xbf16> to vector<8x32xbf16>
    %c3_164 = arith.constant 3 : index
    %c0_165 = arith.constant 0 : index
    %c0_166 = arith.constant 0 : index
    %c0_167 = arith.constant 0 : index
    %184 = vector.load %arg4[%c3_164, %c0_165, %c0_166, %c0_167] : memref<4x3x32x32xbf16, #tpu.memory_space<vmem>>, vector<1x1x32x32xbf16>
    %185 = vector.shape_cast %184 : vector<1x1x32x32xbf16> to vector<32x32xbf16>
    %cst_168 = arith.constant dense<0.000000e+00> : vector<8x32xf32>
    %186 = tpu.matmul %183, %185, %cst_168 {dimension_numbers = #tpu.dot_dimension_numbers<[1], [0], [0], [1], [0, 0, 1, 1], [], []>} : vector<8x32xbf16>, vector<32x32xbf16>, vector<8x32xf32> -> vector<8x32xf32>
    %187 = vector.extract_strided_slice %182 {offsets = [3, 0], sizes = [8, 32], strides = [1, 1]} : vector<14x32xbf16> to vector<8x32xbf16>
    %c3_169 = arith.constant 3 : index
    %c1_170 = arith.constant 1 : index
    %c0_171 = arith.constant 0 : index
    %c0_172 = arith.constant 0 : index
    %188 = vector.load %arg4[%c3_169, %c1_170, %c0_171, %c0_172] : memref<4x3x32x32xbf16, #tpu.memory_space<vmem>>, vector<1x1x32x32xbf16>
    %189 = vector.shape_cast %188 : vector<1x1x32x32xbf16> to vector<32x32xbf16>
    %cst_173 = arith.constant dense<0.000000e+00> : vector<8x32xf32>
    %190 = tpu.matmul %187, %189, %cst_173 {dimension_numbers = #tpu.dot_dimension_numbers<[1], [0], [0], [1], [0, 0, 1, 1], [], []>} : vector<8x32xbf16>, vector<32x32xbf16>, vector<8x32xf32> -> vector<8x32xf32>
    %191 = arith.addf %186, %190 : vector<8x32xf32>
    %192 = vector.extract_strided_slice %182 {offsets = [4, 0], sizes = [8, 32], strides = [1, 1]} : vector<14x32xbf16> to vector<8x32xbf16>
    %c3_174 = arith.constant 3 : index
    %c2_175 = arith.constant 2 : index
    %c0_176 = arith.constant 0 : index
    %c0_177 = arith.constant 0 : index
    %193 = vector.load %arg4[%c3_174, %c2_175, %c0_176, %c0_177] : memref<4x3x32x32xbf16, #tpu.memory_space<vmem>>, vector<1x1x32x32xbf16>
    %194 = vector.shape_cast %193 : vector<1x1x32x32xbf16> to vector<32x32xbf16>
    %cst_178 = arith.constant dense<0.000000e+00> : vector<8x32xf32>
    %195 = tpu.matmul %192, %194, %cst_178 {dimension_numbers = #tpu.dot_dimension_numbers<[1], [0], [0], [1], [0, 0, 1, 1], [], []>} : vector<8x32xbf16>, vector<32x32xbf16>, vector<8x32xf32> -> vector<8x32xf32>
    %196 = arith.addf %191, %195 : vector<8x32xf32>
    %c3_179 = arith.constant 3 : index
    %c0_180 = arith.constant 0 : index
    %c0_181 = arith.constant 0 : index
    %197 = vector.load %arg5[%c3_179, %c0_180, %c0_181] : memref<4x1x32xf32, #tpu.memory_space<vmem>>, vector<1x1x32xf32>
    %198 = vector.shape_cast %197 : vector<1x1x32xf32> to vector<1x32xf32>
    %199 = vector.broadcast %198 : vector<1x32xf32> to vector<8x32xf32>
    %200 = arith.addf %196, %199 : vector<8x32xf32>
    %cst_182 = arith.constant 0.000000e+00 : f32
    %201 = vector.broadcast %cst_182 : f32 to vector<8x32xf32>
    %202 = arith.maximumf %200, %201 : vector<8x32xf32>
    %203 = arith.truncf %202 : vector<8x32xf32> to vector<8x32xbf16>
    %c3_183 = arith.constant 3 : index
    %c0_184 = arith.constant 0 : index
    %c0_185 = arith.constant 0 : index
    %204 = vector.load %arg6[%c3_183, %c0_184, %c0_185] : memref<4x32x32xbf16, #tpu.memory_space<vmem>>, vector<1x32x32xbf16>
    %205 = vector.shape_cast %204 : vector<1x32x32xbf16> to vector<32x32xbf16>
    %cst_186 = arith.constant dense<0.000000e+00> : vector<8x32xf32>
    %206 = tpu.matmul %203, %205, %cst_186 {dimension_numbers = #tpu.dot_dimension_numbers<[1], [0], [0], [1], [0, 0, 1, 1], [], []>} : vector<8x32xbf16>, vector<32x32xbf16>, vector<8x32xf32> -> vector<8x32xf32>
    %c3_187 = arith.constant 3 : index
    %c0_188 = arith.constant 0 : index
    %c0_189 = arith.constant 0 : index
    %207 = vector.load %arg7[%c3_187, %c0_188, %c0_189] : memref<4x1x32xf32, #tpu.memory_space<vmem>>, vector<1x1x32xf32>
    %208 = vector.shape_cast %207 : vector<1x1x32xf32> to vector<1x32xf32>
    %209 = vector.broadcast %208 : vector<1x32xf32> to vector<8x32xf32>
    %210 = arith.addf %206, %209 : vector<8x32xf32>
    %c3_190 = arith.constant 3 : index
    %c0_191 = arith.constant 0 : index
    %211 = vector.load %arg18[%c3_190, %c0_191] : memref<14x32xf32, #tpu.memory_space<vmem>>, vector<8x32xf32>
    %212 = arith.addf %211, %210 : vector<8x32xf32>
    %c3_192 = arith.constant 3 : index
    %c0_193 = arith.constant 0 : index
    %213 = vector.load %arg18[%c3_192, %c0_193] : memref<14x32xf32, #tpu.memory_space<vmem>>, vector<8x32xf32>
    tpu.vector_store %arg18[%c3_192, %c0_193], %212 {strides = array<i32>} : memref<14x32xf32, #tpu.memory_space<vmem>>, vector<8x32xf32>,
    %214 = tpu.iota {dimensions = array<i32: 0>} : vector<16x8xi32>
    %215 = tpu.iota {dimensions = array<i32: 1>} : vector<16x8xi32>
    %c2_i32_194 = arith.constant 2 : i32
    %216 = vector.broadcast %c2_i32_194 : i32 to vector<16x8xi32>
    %217 = arith.muli %216, %215 : vector<16x8xi32>
    %218 = arith.cmpi eq, %214, %217 : vector<16x8xi32>
    %c2_i32_195 = arith.constant 2 : i32
    %219 = vector.broadcast %c2_i32_195 : i32 to vector<16x8xi32>
    %220 = arith.muli %219, %215 : vector<16x8xi32>
    %c1_i32_196 = arith.constant 1 : i32
    %221 = vector.broadcast %c1_i32_196 : i32 to vector<16x8xi32>
    %222 = arith.addi %220, %221 : vector<16x8xi32>
    %223 = arith.cmpi eq, %214, %222 : vector<16x8xi32>
    %224 = arith.ori %218, %223 : vector<16x8xi1>
    %225 = arith.extui %224 : vector<16x8xi1> to vector<16x8xi32>
    %226 = arith.sitofp %225 : vector<16x8xi32> to vector<16x8xf32>
    %227 = arith.truncf %226 : vector<16x8xf32> to vector<16x8xbf16>
    %cst_197 = arith.constant 0.000000e+00 : f32
    %228 = vector.broadcast %cst_197 : f32 to vector<18x32xf32>
    %c0_198 = arith.constant 0 : index
    %c0_199 = arith.constant 0 : index
    %229 = vector.load %arg16[%c0_198, %c0_199] : memref<18x32xf32, #tpu.memory_space<vmem>>, vector<18x32xf32>
    tpu.vector_store %arg16[%c0_198, %c0_199], %228 {strides = array<i32>} : memref<18x32xf32, #tpu.memory_space<vmem>>, vector<18x32xf32>,
    %c3_200 = arith.constant 3 : index
    %c0_201 = arith.constant 0 : index
    %230 = vector.load %arg18[%c3_200, %c0_201] : memref<14x32xf32, #tpu.memory_space<vmem>>, vector<8x32xf32>
    %231 = arith.truncf %230 : vector<8x32xf32> to vector<8x32xbf16>
    %cst_202 = arith.constant dense<0.000000e+00> : vector<16x32xf32>
    %232 = tpu.matmul %227, %231, %cst_202 {dimension_numbers = #tpu.dot_dimension_numbers<[1], [0], [0], [1], [0, 0, 1, 1], [], []>} : vector<16x8xbf16>, vector<8x32xbf16>, vector<16x32xf32> -> vector<16x32xf32>
    %c1_203 = arith.constant 1 : index
    %c0_204 = arith.constant 0 : index
    %233 = vector.load %arg16[%c1_203, %c0_204] : memref<18x32xf32, #tpu.memory_space<vmem>>, vector<16x32xf32>
    tpu.vector_store %arg16[%c1_203, %c0_204], %232 {strides = array<i32>} : memref<18x32xf32, #tpu.memory_space<vmem>>, vector<16x32xf32>,
    %c0_205 = arith.constant 0 : index
    %c0_206 = arith.constant 0 : index
    %234 = vector.load %arg16[%c0_205, %c0_206] : memref<18x32xf32, #tpu.memory_space<vmem>>, vector<18x32xf32>
    %235 = arith.truncf %234 : vector<18x32xf32> to vector<18x32xbf16>
    %236 = vector.extract_strided_slice %235 {offsets = [0, 0], sizes = [16, 32], strides = [1, 1]} : vector<18x32xbf16> to vector<16x32xbf16>
    %c1_207 = arith.constant 1 : index
    %c0_208 = arith.constant 0 : index
    %c0_209 = arith.constant 0 : index
    %c0_210 = arith.constant 0 : index
    %237 = vector.load %arg8[%c1_207, %c0_208, %c0_209, %c0_210] : memref<2x3x32x32xbf16, #tpu.memory_space<vmem>>, vector<1x1x32x32xbf16>
    %238 = vector.shape_cast %237 : vector<1x1x32x32xbf16> to vector<32x32xbf16>
    %cst_211 = arith.constant dense<0.000000e+00> : vector<16x32xf32>
    %239 = tpu.matmul %236, %238, %cst_211 {dimension_numbers = #tpu.dot_dimension_numbers<[1], [0], [0], [1], [0, 0, 1, 1], [], []>} : vector<16x32xbf16>, vector<32x32xbf16>, vector<16x32xf32> -> vector<16x32xf32>
    %240 = vector.extract_strided_slice %235 {offsets = [1, 0], sizes = [16, 32], strides = [1, 1]} : vector<18x32xbf16> to vector<16x32xbf16>
    %c1_212 = arith.constant 1 : index
    %c1_213 = arith.constant 1 : index
    %c0_214 = arith.constant 0 : index
    %c0_215 = arith.constant 0 : index
    %241 = vector.load %arg8[%c1_212, %c1_213, %c0_214, %c0_215] : memref<2x3x32x32xbf16, #tpu.memory_space<vmem>>, vector<1x1x32x32xbf16>
    %242 = vector.shape_cast %241 : vector<1x1x32x32xbf16> to vector<32x32xbf16>
    %cst_216 = arith.constant dense<0.000000e+00> : vector<16x32xf32>
    %243 = tpu.matmul %240, %242, %cst_216 {dimension_numbers = #tpu.dot_dimension_numbers<[1], [0], [0], [1], [0, 0, 1, 1], [], []>} : vector<16x32xbf16>, vector<32x32xbf16>, vector<16x32xf32> -> vector<16x32xf32>
    %244 = arith.addf %239, %243 : vector<16x32xf32>
    %245 = vector.extract_strided_slice %235 {offsets = [2, 0], sizes = [16, 32], strides = [1, 1]} : vector<18x32xbf16> to vector<16x32xbf16>
    %c1_217 = arith.constant 1 : index
    %c2_218 = arith.constant 2 : index
    %c0_219 = arith.constant 0 : index
    %c0_220 = arith.constant 0 : index
    %246 = vector.load %arg8[%c1_217, %c2_218, %c0_219, %c0_220] : memref<2x3x32x32xbf16, #tpu.memory_space<vmem>>, vector<1x1x32x32xbf16>
    %247 = vector.shape_cast %246 : vector<1x1x32x32xbf16> to vector<32x32xbf16>
    %cst_221 = arith.constant dense<0.000000e+00> : vector<16x32xf32>
    %248 = tpu.matmul %245, %247, %cst_221 {dimension_numbers = #tpu.dot_dimension_numbers<[1], [0], [0], [1], [0, 0, 1, 1], [], []>} : vector<16x32xbf16>, vector<32x32xbf16>, vector<16x32xf32> -> vector<16x32xf32>
    %249 = arith.addf %244, %248 : vector<16x32xf32>
    %c1_222 = arith.constant 1 : index
    %c0_223 = arith.constant 0 : index
    %c0_224 = arith.constant 0 : index
    %250 = vector.load %arg9[%c1_222, %c0_223, %c0_224] : memref<2x1x32xf32, #tpu.memory_space<vmem>>, vector<1x1x32xf32>
    %251 = vector.shape_cast %250 : vector<1x1x32xf32> to vector<1x32xf32>
    %252 = vector.broadcast %251 : vector<1x32xf32> to vector<16x32xf32>
    %253 = arith.addf %249, %252 : vector<16x32xf32>
    %c3_225 = arith.constant 3 : index
    %c0_226 = arith.constant 0 : index
    %254 = vector.load %arg19[%c3_225, %c0_226] : memref<22x32xf32, #tpu.memory_space<vmem>>, vector<16x32xf32>
    tpu.vector_store %arg19[%c3_225, %c0_226], %253 {strides = array<i32>} : memref<22x32xf32, #tpu.memory_space<vmem>>, vector<16x32xf32>,
    %c0_227 = arith.constant 0 : index
    %c0_228 = arith.constant 0 : index
    %255 = vector.load %arg19[%c0_227, %c0_228] : memref<22x32xf32, #tpu.memory_space<vmem>>, vector<22x32xf32>
    %256 = arith.truncf %255 : vector<22x32xf32> to vector<22x32xbf16>
    %257 = vector.extract_strided_slice %256 {offsets = [2, 0], sizes = [16, 32], strides = [1, 1]} : vector<22x32xbf16> to vector<16x32xbf16>
    %c0_229 = arith.constant 0 : index
    %c0_230 = arith.constant 0 : index
    %c0_231 = arith.constant 0 : index
    %258 = vector.load %arg10[%c0_229, %c0_230, %c0_231] : memref<3x32x32xbf16, #tpu.memory_space<vmem>>, vector<1x32x32xbf16>
    %259 = vector.shape_cast %258 : vector<1x32x32xbf16> to vector<32x32xbf16>
    %cst_232 = arith.constant dense<0.000000e+00> : vector<16x32xf32>
    %260 = tpu.matmul %257, %259, %cst_232 {dimension_numbers = #tpu.dot_dimension_numbers<[1], [0], [0], [1], [0, 0, 1, 1], [], []>} : vector<16x32xbf16>, vector<32x32xbf16>, vector<16x32xf32> -> vector<16x32xf32>
    %261 = vector.extract_strided_slice %256 {offsets = [3, 0], sizes = [16, 32], strides = [1, 1]} : vector<22x32xbf16> to vector<16x32xbf16>
    %c1_233 = arith.constant 1 : index
    %c0_234 = arith.constant 0 : index
    %c0_235 = arith.constant 0 : index
    %262 = vector.load %arg10[%c1_233, %c0_234, %c0_235] : memref<3x32x32xbf16, #tpu.memory_space<vmem>>, vector<1x32x32xbf16>
    %263 = vector.shape_cast %262 : vector<1x32x32xbf16> to vector<32x32xbf16>
    %cst_236 = arith.constant dense<0.000000e+00> : vector<16x32xf32>
    %264 = tpu.matmul %261, %263, %cst_236 {dimension_numbers = #tpu.dot_dimension_numbers<[1], [0], [0], [1], [0, 0, 1, 1], [], []>} : vector<16x32xbf16>, vector<32x32xbf16>, vector<16x32xf32> -> vector<16x32xf32>
    %265 = arith.addf %260, %264 : vector<16x32xf32>
    %266 = vector.extract_strided_slice %256 {offsets = [4, 0], sizes = [16, 32], strides = [1, 1]} : vector<22x32xbf16> to vector<16x32xbf16>
    %c2_237 = arith.constant 2 : index
    %c0_238 = arith.constant 0 : index
    %c0_239 = arith.constant 0 : index
    %267 = vector.load %arg10[%c2_237, %c0_238, %c0_239] : memref<3x32x32xbf16, #tpu.memory_space<vmem>>, vector<1x32x32xbf16>
    %268 = vector.shape_cast %267 : vector<1x32x32xbf16> to vector<32x32xbf16>
    %cst_240 = arith.constant dense<0.000000e+00> : vector<16x32xf32>
    %269 = tpu.matmul %266, %268, %cst_240 {dimension_numbers = #tpu.dot_dimension_numbers<[1], [0], [0], [1], [0, 0, 1, 1], [], []>} : vector<16x32xbf16>, vector<32x32xbf16>, vector<16x32xf32> -> vector<16x32xf32>
    %270 = arith.addf %265, %269 : vector<16x32xf32>
    %c0_241 = arith.constant 0 : index
    %c0_242 = arith.constant 0 : index
    %271 = vector.load %arg11[%c0_241, %c0_242] : memref<1x32xf32, #tpu.memory_space<vmem>>, vector<1x32xf32>
    %272 = vector.broadcast %271 : vector<1x32xf32> to vector<16x32xf32>
    %273 = arith.addf %270, %272 : vector<16x32xf32>
    %cst_243 = arith.constant 0.000000e+00 : f32
    %274 = vector.broadcast %cst_243 : f32 to vector<18x32xf32>
    %c0_244 = arith.constant 0 : index
    %c0_245 = arith.constant 0 : index
    %275 = vector.load %arg16[%c0_244, %c0_245] : memref<18x32xf32, #tpu.memory_space<vmem>>, vector<18x32xf32>
    tpu.vector_store %arg16[%c0_244, %c0_245], %274 {strides = array<i32>} : memref<18x32xf32, #tpu.memory_space<vmem>>, vector<18x32xf32>,
    %cst_246 = arith.constant 0.000000e+00 : f32
    %276 = vector.broadcast %cst_246 : f32 to vector<16x32xf32>
    %277 = arith.maximumf %273, %276 : vector<16x32xf32>
    %c1_247 = arith.constant 1 : index
    %c0_248 = arith.constant 0 : index
    %278 = vector.load %arg16[%c1_247, %c0_248] : memref<18x32xf32, #tpu.memory_space<vmem>>, vector<16x32xf32>
    tpu.vector_store %arg16[%c1_247, %c0_248], %277 {strides = array<i32>} : memref<18x32xf32, #tpu.memory_space<vmem>>, vector<16x32xf32>,
    %c0_249 = arith.constant 0 : index
    %c0_250 = arith.constant 0 : index
    %279 = vector.load %arg16[%c0_249, %c0_250] : memref<18x32xf32, #tpu.memory_space<vmem>>, vector<18x32xf32>
    %280 = arith.truncf %279 : vector<18x32xf32> to vector<18x32xbf16>
    %281 = vector.extract_strided_slice %280 {offsets = [0, 0], sizes = [16, 32], strides = [1, 1]} : vector<18x32xbf16> to vector<16x32xbf16>
    %c0_251 = arith.constant 0 : index
    %c0_252 = arith.constant 0 : index
    %c0_253 = arith.constant 0 : index
    %282 = vector.load %arg12[%c0_251, %c0_252, %c0_253] : memref<3x32x8xbf16, #tpu.memory_space<vmem>>, vector<1x32x8xbf16>
    %283 = vector.shape_cast %282 : vector<1x32x8xbf16> to vector<32x8xbf16>
    %cst_254 = arith.constant dense<0.000000e+00> : vector<16x8xf32>
    %284 = tpu.matmul %281, %283, %cst_254 {dimension_numbers = #tpu.dot_dimension_numbers<[1], [0], [0], [1], [0, 0, 1, 1], [], []>} : vector<16x32xbf16>, vector<32x8xbf16>, vector<16x8xf32> -> vector<16x8xf32>
    %285 = vector.extract_strided_slice %280 {offsets = [1, 0], sizes = [16, 32], strides = [1, 1]} : vector<18x32xbf16> to vector<16x32xbf16>
    %c1_255 = arith.constant 1 : index
    %c0_256 = arith.constant 0 : index
    %c0_257 = arith.constant 0 : index
    %286 = vector.load %arg12[%c1_255, %c0_256, %c0_257] : memref<3x32x8xbf16, #tpu.memory_space<vmem>>, vector<1x32x8xbf16>
    %287 = vector.shape_cast %286 : vector<1x32x8xbf16> to vector<32x8xbf16>
    %cst_258 = arith.constant dense<0.000000e+00> : vector<16x8xf32>
    %288 = tpu.matmul %285, %287, %cst_258 {dimension_numbers = #tpu.dot_dimension_numbers<[1], [0], [0], [1], [0, 0, 1, 1], [], []>} : vector<16x32xbf16>, vector<32x8xbf16>, vector<16x8xf32> -> vector<16x8xf32>
    %289 = arith.addf %284, %288 : vector<16x8xf32>
    %290 = vector.extract_strided_slice %280 {offsets = [2, 0], sizes = [16, 32], strides = [1, 1]} : vector<18x32xbf16> to vector<16x32xbf16>
    %c2_259 = arith.constant 2 : index
    %c0_260 = arith.constant 0 : index
    %c0_261 = arith.constant 0 : index
    %291 = vector.load %arg12[%c2_259, %c0_260, %c0_261] : memref<3x32x8xbf16, #tpu.memory_space<vmem>>, vector<1x32x8xbf16>
    %292 = vector.shape_cast %291 : vector<1x32x8xbf16> to vector<32x8xbf16>
    %cst_262 = arith.constant dense<0.000000e+00> : vector<16x8xf32>
    %293 = tpu.matmul %290, %292, %cst_262 {dimension_numbers = #tpu.dot_dimension_numbers<[1], [0], [0], [1], [0, 0, 1, 1], [], []>} : vector<16x32xbf16>, vector<32x8xbf16>, vector<16x8xf32> -> vector<16x8xf32>
    %294 = arith.addf %289, %293 : vector<16x8xf32>
    %c0_263 = arith.constant 0 : index
    %c0_264 = arith.constant 0 : index
    %295 = vector.load %arg13[%c0_263, %c0_264] : memref<1x8xf32, #tpu.memory_space<vmem>>, vector<1x8xf32>
    %296 = vector.broadcast %295 : vector<1x8xf32> to vector<16x8xf32>
    %297 = arith.addf %294, %296 : vector<16x8xf32>
    %c0_265 = arith.constant 0 : index
    %c0_266 = arith.constant 0 : index
    %c0_267 = arith.constant 0 : index
    %298 = vector.load %arg14[%c0_265, %c0_266, %c0_267] : memref<1x16x8xf32, #tpu.memory_space<vmem>>, vector<1x16x8xf32>
    %299 = vector.shape_cast %298 : vector<1x16x8xf32> to vector<16x8xf32>
    %300 = vector.shape_cast %297 : vector<16x8xf32> to vector<1x16x8xf32>
    tpu.vector_store %arg14[%c0_265, %c0_266, %c0_267], %300 {strides = array<i32>} : memref<1x16x8xf32, #tpu.memory_space<vmem>>, vector<1x16x8xf32>,
    return
  }
  func.func @transform_0(%arg0: i32) -> (i32, i32, i32) {
    %c0_i32 = arith.constant 0 : i32
    %c0_i32_0 = arith.constant 0 : i32
    %c0_i32_1 = arith.constant 0 : i32
    return %arg0, %c0_i32, %c0_i32_0 : i32, i32, i32
  }
  func.func @transform_1(%arg0: i32) -> (i32, i32, i32) {
    %c0_i32 = arith.constant 0 : i32
    %c0_i32_0 = arith.constant 0 : i32
    %c0_i32_1 = arith.constant 0 : i32
    %c0_i32_2 = arith.constant 0 : i32
    return %c0_i32, %c0_i32_0, %c0_i32_1 : i32, i32, i32
  }
  func.func @transform_2(%arg0: i32) -> (i32, i32) {
    %c0_i32 = arith.constant 0 : i32
    %c0_i32_0 = arith.constant 0 : i32
    %c0_i32_1 = arith.constant 0 : i32
    return %c0_i32, %c0_i32_0 : i32, i32
  }
  func.func @transform_3(%arg0: i32) -> (i32, i32, i32, i32) {
    %c0_i32 = arith.constant 0 : i32
    %c0_i32_0 = arith.constant 0 : i32
    %c0_i32_1 = arith.constant 0 : i32
    %c0_i32_2 = arith.constant 0 : i32
    %c0_i32_3 = arith.constant 0 : i32
    return %c0_i32, %c0_i32_0, %c0_i32_1, %c0_i32_2 : i32, i32, i32, i32
  }
  func.func @transform_4(%arg0: i32) -> (i32, i32, i32) {
    %c0_i32 = arith.constant 0 : i32
    %c0_i32_0 = arith.constant 0 : i32
    %c0_i32_1 = arith.constant 0 : i32
    %c0_i32_2 = arith.constant 0 : i32
    return %c0_i32, %c0_i32_0, %c0_i32_1 : i32, i32, i32
  }
  func.func @transform_5(%arg0: i32) -> (i32, i32, i32) {
    %c0_i32 = arith.constant 0 : i32
    %c0_i32_0 = arith.constant 0 : i32
    %c0_i32_1 = arith.constant 0 : i32
    %c0_i32_2 = arith.constant 0 : i32
    return %c0_i32, %c0_i32_0, %c0_i32_1 : i32, i32, i32
  }
  func.func @transform_6(%arg0: i32) -> (i32, i32, i32) {
    %c0_i32 = arith.constant 0 : i32
    %c0_i32_0 = arith.constant 0 : i32
    %c0_i32_1 = arith.constant 0 : i32
    %c0_i32_2 = arith.constant 0 : i32
    return %c0_i32, %c0_i32_0, %c0_i32_1 : i32, i32, i32
  }
  func.func @transform_7(%arg0: i32) -> (i32, i32, i32, i32) {
    %c0_i32 = arith.constant 0 : i32
    %c0_i32_0 = arith.constant 0 : i32
    %c0_i32_1 = arith.constant 0 : i32
    %c0_i32_2 = arith.constant 0 : i32
    %c0_i32_3 = arith.constant 0 : i32
    return %c0_i32, %c0_i32_0, %c0_i32_1, %c0_i32_2 : i32, i32, i32, i32
  }
  func.func @transform_8(%arg0: i32) -> (i32, i32, i32) {
    %c0_i32 = arith.constant 0 : i32
    %c0_i32_0 = arith.constant 0 : i32
    %c0_i32_1 = arith.constant 0 : i32
    %c0_i32_2 = arith.constant 0 : i32
    return %c0_i32, %c0_i32_0, %c0_i32_1 : i32, i32, i32
  }
  func.func @transform_9(%arg0: i32) -> (i32, i32, i32) {
    %c0_i32 = arith.constant 0 : i32
    %c0_i32_0 = arith.constant 0 : i32
    %c0_i32_1 = arith.constant 0 : i32
    %c0_i32_2 = arith.constant 0 : i32
    return %c0_i32, %c0_i32_0, %c0_i32_1 : i32, i32, i32
  }
  func.func @transform_10(%arg0: i32) -> (i32, i32) {
    %c0_i32 = arith.constant 0 : i32
    %c0_i32_0 = arith.constant 0 : i32
    %c0_i32_1 = arith.constant 0 : i32
    return %c0_i32, %c0_i32_0 : i32, i32
  }
  func.func @transform_11(%arg0: i32) -> (i32, i32, i32) {
    %c0_i32 = arith.constant 0 : i32
    %c0_i32_0 = arith.constant 0 : i32
    %c0_i32_1 = arith.constant 0 : i32
    %c0_i32_2 = arith.constant 0 : i32
    return %c0_i32, %c0_i32_0, %c0_i32_1 : i32, i32, i32
  }
  func.func @transform_12(%arg0: i32) -> (i32, i32) {
    %c0_i32 = arith.constant 0 : i32
    %c0_i32_0 = arith.constant 0 : i32
    %c0_i32_1 = arith.constant 0 : i32
    return %c0_i32, %c0_i32_0 : i32, i32
  }
  func.func @transform_13(%arg0: i32) -> (i32, i32, i32) {
    %c0_i32 = arith.constant 0 : i32
    %c0_i32_0 = arith.constant 0 : i32
    %c0_i32_1 = arith.constant 0 : i32
    return %arg0, %c0_i32, %c0_i32_0 : i32, i32, i32
  }
}

</mosaic_0001>

<llo_original>
// kernel: vqvae_forward.4
$region0: #{vqvae_forward.4}
  #allocation0 [shape = 'u32[]', space=smem, size = 0x4, offset = 0x4, fixed_abs, tag = 'smem constant byte address 0x4 - core index']
  #allocation1 [shape = 'u32[144,128]{1,0:T(1,128)}', space=vmem, size = 0x12000, scoped, tag = 'internal scratch']
  %s0 = inlined_call_operand.vmem [shape: f32[8,32], index: 0, kind: input, shape index: {}]
  %s1 = inlined_call_operand.vmem [shape: f32[32,64], index: 1, kind: input, shape index: {}]
  %s2 = inlined_call_operand.vmem [shape: f32[64,32], index: 2, kind: input, shape index: {}]
  %s3 = inlined_call_operand.vmem [shape: f32[1,64], index: 3, kind: input, shape index: {}]
  %s4 = inlined_call_operand.vmem [shape: f32[8,32], index: 4, kind: output, shape index: {0}]
  %s5 = inlined_call_operand.vmem [shape: s32[8,1], index: 5, kind: output, shape index: {1}]
  %s6 = inlined_call_operand.vmem [shape: f32[1,64], index: 6, kind: output, shape index: {2}]
  %s7 = inlined_call_operand.hbm [shape: f32[1,1], index: 7, kind: output, shape index: {3}]
  %8 = xla_tuple %s4, %s5, %s6, %s7
  %s9 = sld [smem:[#allocation0]]
  $region50: #{vqvae_forward.4} parent=0
    _
  %s11 = ssub.s32 1, %s9
  %s12 = scalar_select 0, %s11, %s9
  $region1: #{vqvae_forward.4} parent=0
    #allocation2 [shape = 'u8[512]{0}', space=vmem, size = 0x400, scoped, tag = 'output window, operand 3, single buffered']
    #allocation3 [shape = 's32[1]{0}', space=sflag, size = 0x4, scoped, tag = 'scoped memory for vqvae_forward.4']
    %13 = vsyncpa [#allocation3], 0
    // Predicated region
    $region2: #{vqvae_forward.4} parent=1 // pred_check
      _
    $region3: #{vqvae_forward.4} parent=1 // pred_check_branch
      %15 = sbr.rel (0) target = $region5
    $region4: #{vqvae_forward.4} parent=1 // pred_region
      _
    $region5: #{vqvae_forward.4} parent=1 // pred_fallthru
      _
    // Predicated region
    $region6: #{vqvae_forward.4} parent=1 // pred_check
      _
    $region7: #{vqvae_forward.4} parent=1 // pred_check_branch
      %17 = sbr.rel (0) target = $region9
    $region8: #{vqvae_forward.4} parent=1 // pred_region
      _
    $region9: #{vqvae_forward.4} parent=1 // pred_fallthru
      _
    // Predicated region
    $region10: #{vqvae_forward.4} parent=1 // pred_check
      _
    $region11: #{vqvae_forward.4} parent=1 // pred_check_branch
      %19 = sbr.rel (0) target = $region13
    $region12: #{vqvae_forward.4} parent=1 // pred_region
      _
    $region13: #{vqvae_forward.4} parent=1 // pred_fallthru
      _
    // Predicated region
    $region14: #{vqvae_forward.4} parent=1 // pred_check
      _
    $region15: #{vqvae_forward.4} parent=1 // pred_check_branch
      %21 = sbr.rel (0) target = $region17
    $region16: #{vqvae_forward.4} parent=1 // pred_region
      _
    $region17: #{vqvae_forward.4} parent=1 // pred_fallthru
      _
    %v22 = vld [vmem:[%s0] sm:$0xff]
    %v23 = vld [vmem:[%s1] sm:$0xff]
    %v24 = vld [vmem:[%s1 + $0x8] sm:$0xff]
    %v25 = vld [vmem:[%s1 + $0x10] sm:$0xff]
    %v26 = vld [vmem:[%s1 + $0x18] sm:$0xff]
    %vm27 = vcmask 261120
    %v29 = vsel %vm27, %v22, 0
    %31 = vmatprep.subr.mxu0 0.0
    %32 = vmatpush1.msra.mxu0 %v23
    %33 = vmatprep.subr.mxu0 0.0
    %34 = vmatpush1.msra.mxu0 %v24
    %35 = vmatprep.subr.mxu0 0.0
    %36 = vmatpush1.msra.mxu0 %v25
    %37 = vmatprep.subr.mxu0 0.0
    %38 = vmatpush1.msra.mxu0 %v26
    %39 = vmatprep.subr.mxu0 0.0
    %40 = vmatpush1.msra.mxu0 0.0
    %41 = vmatprep.subr.mxu0 0.0
    %42 = vmatpush1.msra.mxu0 0.0
    %43 = vmatprep.subr.mxu0 0.0
    %44 = vmatpush1.msra.mxu0 0.0
    %45 = vmatprep.subr.mxu0 0.0
    %46 = vmatpush1.msra.mxu0 0.0
    %47 = vmatprep.subr.mxu0 0.0
    %48 = vmatpush1.msra.mxu0 0.0
    %49 = vmatprep.subr.mxu0 0.0
    %50 = vmatpush1.msra.mxu0 0.0
    %51 = vmatprep.subr.mxu0 0.0
    %52 = vmatpush1.msra.mxu0 0.0
    %53 = vmatprep.subr.mxu0 0.0
    %54 = vmatpush1.msra.mxu0 0.0
    %55 = vmatprep.subr.mxu0 0.0
    %56 = vmatpush1.msra.mxu0 0.0
    %57 = vmatprep.subr.mxu0 0.0
    %58 = vmatpush1.msra.mxu0 0.0
    %59 = vmatprep.subr.mxu0 0.0
    %60 = vmatpush1.msra.mxu0 0.0
    %61 = vmatprep.subr.mxu0 0.0
    %62 = vmatpush1.msra.mxu0 0.0
    %63 = vmatprep.subr.mxu0 0.0
    %64 = vmatpush1.msra.mxu0 0.0
    %65 = vmatprep.subr.mxu0 0.0
    %66 = vmatpush1.msra.mxu0 0.0
    %67 = vmatprep.subr.mxu0 0.0
    %68 = vmatpush1.msra.mxu0 0.0
    %69 = vmatprep.subr.mxu0 0.0
    %70 = vmatpush1.msra.mxu0 0.0
    %71 = vmatprep.subr.mxu0 0.0
    %72 = vmatpush1.msra.mxu0 0.0
    %73 = vmatprep.subr.mxu0 0.0
    %74 = vmatpush1.msra.mxu0 0.0
    %75 = vmatprep.subr.mxu0 0.0
    %76 = vmatpush1.msra.mxu0 0.0
    %77 = vmatprep.subr.mxu0 0.0
    %78 = vmatpush1.msra.mxu0 0.0
    %79 = vmatprep.subr.mxu0 0.0
    %80 = vmatpush1.msra.mxu0 0.0
    %81 = vmatprep.subr.mxu0 0.0
    %82 = vmatpush1.msra.mxu0 0.0
    %83 = vmatprep.subr.mxu0 0.0
    %84 = vmatpush1.msra.mxu0 0.0
    %85 = vmatprep.subr.mxu0 0.0
    %86 = vmatpush1.msra.mxu0 0.0
    %87 = vmatprep.subr.mxu0 0.0
    %88 = vmatpush1.msra.mxu0 0.0
    %89 = vmatprep.subr.mxu0 0.0
    %90 = vmatpush1.msra.mxu0 0.0
    %91 = vmatprep.subr.mxu0 0.0
    %92 = vmatpush1.msra.mxu0 0.0
    %93 = vmatprep.subr.mxu0 0.0
    %94 = vmatpush1.msra.mxu0 0.0
    %95 = vmatprep.mubr.f32.mxu0 0.0
    %96 = vmatmul.mubr.f32.gmra.mrb[0].mxu0 %v29
    %v97 = vpop.f32.mrb[0].mxu0
    %v98 = vadd.f32 0.0, %v97
    %v99 = vpop.f32.mrb[0].mxu0
    %100 = vdwg.mxu0
    %v101 = vld [vmem:[%s3] sm:$0x1]
    %v102 = vmul.f32 %v98, 2.0
    %v104 = vlaneseq
    %v105 = vshrl.u32 %v104, 7
    %v106 = vsub.s32 0, %v105
    %v107 = vrot.slane %v101, %v106
    %v109 = vsub.f32 %v107, %v102
    %vm110 = vcmask 523264
    %v111 = vsel %vm110, %v109, inf
    %112 = vmin.xlane.f32.xlu0 %v111
    %v113 = vpop.xlane.xlu0 %112
    %v114 = vlaneseq
    %v115 = vand.u32 %v114, 127
    %vm116 = vcmp.le.f32.partialorder %v109, %v113
    %v117 = vsel %vm116, %v115, 64
    %v118 = vsel %vm110, %v117, 2147483647
    %v119 = vand.u32 %v118, 65535
    %v120 = vshra.s32 %v118, 16
    %v121 = vcvt.s32.f32 %v119
    %v122 = vcvt.s32.f32 %v120
    %123 = vmin.xlane.f32.xlu0 %v122
    %v124 = vpop.xlane.xlu0 %123
    %vm125 = vcmp.eq.f32.partialorder %v122, %v124
    %v126 = vsel %vm125, %v121, inf
    %127 = vmin.xlane.f32.xlu0 %v126
    %v128 = vpop.xlane.xlu0 %127
    %v129 = vcvt.f32.s32 %v128
    %v130 = vcvt.f32.s32 %v124
    %v131 = vshll.u32 %v130, 16
    %v132 = vadd.s32 %v131, %v129
    %vm133 = vcmp.eq.s32.totalorder %v115, %v132
    %v134 = vsel %vm133, 1, 0
    %v135 = vcvt.s32.f32 %v134
    %v136 = vld [vmem:[%s2] sm:$0xff]
    %v137 = vld [vmem:[%s2 + $0x8] sm:$0xff]
    %v138 = vld [vmem:[%s2 + $0x10] sm:$0xff]
    %v139 = vld [vmem:[%s2 + $0x18] sm:$0xff]
    %v140 = vld [vmem:[%s2 + $0x20] sm:$0xff]
    %v141 = vld [vmem:[%s2 + $0x28] sm:$0xff]
    %v142 = vld [vmem:[%s2 + $0x30] sm:$0xff]
    %v143 = vld [vmem:[%s2 + $0x38] sm:$0xff]
    %v145 = vsel %vm110, %v135, 0
    %147 = vmatprep.subr.mxu0 0.0
    %148 = vmatpush1.msra.mxu0 %v136
    %149 = vmatprep.subr.mxu0 0.0
    %150 = vmatpush1.msra.mxu0 %v137
    %151 = vmatprep.subr.mxu0 0.0
    %152 = vmatpush1.msra.mxu0 %v138
    %153 = vmatprep.subr.mxu0 0.0
    %154 = vmatpush1.msra.mxu0 %v139
    %155 = vmatprep.subr.mxu0 0.0
    %156 = vmatpush1.msra.mxu0 %v140
    %157 = vmatprep.subr.mxu0 0.0
    %158 = vmatpush1.msra.mxu0 %v141
    %159 = vmatprep.subr.mxu0 0.0
    %160 = vmatpush1.msra.mxu0 %v142
    %161 = vmatprep.subr.mxu0 0.0
    %162 = vmatpush1.msra.mxu0 %v143
    %163 = vmatprep.subr.mxu0 0.0
    %164 = vmatpush1.msra.mxu0 0.0
    %165 = vmatprep.subr.mxu0 0.0
    %166 = vmatpush1.msra.mxu0 0.0
    %167 = vmatprep.subr.mxu0 0.0
    %168 = vmatpush1.msra.mxu0 0.0
    %169 = vmatprep.subr.mxu0 0.0
    %170 = vmatpush1.msra.mxu0 0.0
    %171 = vmatprep.subr.mxu0 0.0
    %172 = vmatpush1.msra.mxu0 0.0
    %173 = vmatprep.subr.mxu0 0.0
    %174 = vmatpush1.msra.mxu0 0.0
    %175 = vmatprep.subr.mxu0 0.0
    %176 = vmatpush1.msra.mxu0 0.0
    %177 = vmatprep.subr.mxu0 0.0
    %178 = vmatpush1.msra.mxu0 0.0
    %179 = vmatprep.subr.mxu0 0.0
    %180 = vmatpush1.msra.mxu0 0.0
    %181 = vmatprep.subr.mxu0 0.0
    %182 = vmatpush1.msra.mxu0 0.0
    %183 = vmatprep.subr.mxu0 0.0
    %184 = vmatpush1.msra.mxu0 0.0
    %185 = vmatprep.subr.mxu0 0.0
    %186 = vmatpush1.msra.mxu0 0.0
    %187 = vmatprep.subr.mxu0 0.0
    %188 = vmatpush1.msra.mxu0 0.0
    %189 = vmatprep.subr.mxu0 0.0
    %190 = vmatpush1.msra.mxu0 0.0
    %191 = vmatprep.subr.mxu0 0.0
    %192 = vmatpush1.msra.mxu0 0.0
    %193 = vmatprep.subr.mxu0 0.0
    %194 = vmatpush1.msra.mxu0 0.0
    %195 = vmatprep.subr.mxu0 0.0
    %196 = vmatpush1.msra.mxu0 0.0
    %197 = vmatprep.subr.mxu0 0.0
    %198 = vmatpush1.msra.mxu0 0.0
    %199 = vmatprep.subr.mxu0 0.0
    %200 = vmatpush1.msra.mxu0 0.0
    %201 = vmatprep.subr.mxu0 0.0
    %202 = vmatpush1.msra.mxu0 0.0
    %203 = vmatprep.subr.mxu0 0.0
    %204 = vmatpush1.msra.mxu0 0.0
    %205 = vmatprep.subr.mxu0 0.0
    %206 = vmatpush1.msra.mxu0 0.0
    %207 = vmatprep.subr.mxu0 0.0
    %208 = vmatpush1.msra.mxu0 0.0
    %209 = vmatprep.subr.mxu0 0.0
    %210 = vmatpush1.msra.mxu0 0.0
    %211 = vmatprep.mubr.f32.mxu0 0.0
    %212 = vmatmul.mubr.f32.gmra.mrb[0].mxu0 %v145
    %v213 = vpop.f32.mrb[0].mxu0
    %v214 = vadd.f32 0.0, %v213
    %v215 = vpop.f32.mrb[0].mxu0
    %216 = vdwg.mxu0
    %217 = vst.msk [vmem:[%s4] sm:$0xff] %vm27, %v214
    %vm218 = vcmask 7168
    %219 = vst.msk [vmem:[%s5] sm:$0xff] %vm218, %v132
    %v220 = vsel %vm110, %v135, 0.0
    %v221 = vrot.slane %v220, 4
    %v222 = vadd.f32 %v220, %v221
    %v223 = vrot.slane %v222, 2
    %v224 = vadd.f32 %v222, %v223
    %v225 = vrot.slane %v224, 1
    %v226 = vadd.f32 %v224, %v225
    %vm227 = vcmask 516096
    %228 = vst.msk [vmem:[%s6] sm:$0x1] %vm227, %v226
    %v229 = vsub.f32 %v22, %v214
    %v230 = vmul.f32 %v229, %v229
    %v231 = vsel %vm27, %v230, 0.0
    %232 = vadd.xlane.f32.xlu0 %v231
    %v233 = vpop.xlane.xlu0 %232
    %v234 = vrot.slane %v233, 4
    %v235 = vadd.f32 %v233, %v234
    %v236 = vrot.slane %v235, 2
    %v237 = vadd.f32 %v235, %v236
    %v238 = vrot.slane %v237, 1
    %v239 = vadd.f32 %v237, %v238
    %s240 = vtos %v239
    %v241 = vstv %s240
    %vm242 = vcmask 0
    %243 = vst.msk [vmem:[#allocation2] sm:$0x1] %vm242, %v241
    // Predicated region
    $region18: #{vqvae_forward.4} parent=1 // pred_check
      _
    $region19: #{vqvae_forward.4} parent=1 // pred_check_branch
      %245 = sbr.rel (0) target = $region21
    $region20: #{vqvae_forward.4} parent=1 // pred_region
      _
    $region21: #{vqvae_forward.4} parent=1 // pred_fallthru
      _
    // Predicated region
    $region22: #{vqvae_forward.4} parent=1 // pred_check
      _
    $region23: #{vqvae_forward.4} parent=1 // pred_check_branch
      %247 = sbr.rel (0) target = $region25
    $region24: #{vqvae_forward.4} parent=1 // pred_region
      _
    $region25: #{vqvae_forward.4} parent=1 // pred_fallthru
      _
    // Predicated region
    $region26: #{vqvae_forward.4} parent=1 // pred_check
      _
    $region27: #{vqvae_forward.4} parent=1 // pred_check_branch
      %249 = sbr.rel (0) target = $region29
    $region28: #{vqvae_forward.4} parent=1 // pred_region
      _
    $region29: #{vqvae_forward.4} parent=1 // pred_fallthru
      _
    // Predicated region
    $region30: #{vqvae_forward.4} parent=1 // pred_check
      _
    $region31: #{vqvae_forward.4} parent=1 // pred_check_branch
      %251 = sbr.rel (0) target = $region33
    $region32: #{vqvae_forward.4} parent=1 // pred_region
      %s253 = ssub.s32 16, 16
      %254 = vsyncadd [#allocation3], %s253
      %s256 = sshll.u32 [#allocation2], 4
      %s257 = int_to_ptr.vmem [resolvable:$true] %s256
      %259 = dma.vmem_to_hbm [thread:$0]  %s257, 16, %s7, [#allocation3]
    $region33: #{vqvae_forward.4} parent=1 // pred_fallthru
      _
    // Predicated region
    $region34: #{vqvae_forward.4} parent=1 // pred_check
      _
    $region35: #{vqvae_forward.4} parent=1 // pred_check_branch
      %261 = sbr.rel (0) target = $region37
    $region36: #{vqvae_forward.4} parent=1 // pred_region
      _
    $region37: #{vqvae_forward.4} parent=1 // pred_fallthru
      _
    // Predicated region
    $region38: #{vqvae_forward.4} parent=1 // pred_check
      _
    $region39: #{vqvae_forward.4} parent=1 // pred_check_branch
      %263 = sbr.rel (0) target = $region41
    $region40: #{vqvae_forward.4} parent=1 // pred_region
      _
    $region41: #{vqvae_forward.4} parent=1 // pred_fallthru
      _
    // Predicated region
    $region42: #{vqvae_forward.4} parent=1 // pred_check
      _
    $region43: #{vqvae_forward.4} parent=1 // pred_check_branch
      %265 = sbr.rel (0) target = $region45
    $region44: #{vqvae_forward.4} parent=1 // pred_region
      _
    $region45: #{vqvae_forward.4} parent=1 // pred_fallthru
      _
    // Predicated region
    $region46: #{vqvae_forward.4} parent=1 // pred_check
      _
    $region47: #{vqvae_forward.4} parent=1 // pred_check_branch
      %267 = sbr.rel (0) target = $region49
    $region48: #{vqvae_forward.4} parent=1 // pred_region
      %268 = dma.done [#allocation3], 16
    $region49: #{vqvae_forward.4} parent=1 // pred_fallthru
      _
    %269 = vsyncpa [#allocation3], 1

// kernel: vqvae_forward.5
$region0: #{vqvae_forward.5}
  #allocation0 [shape = 'u32[]', space=smem, size = 0x4, offset = 0x4, fixed_abs, tag = 'smem constant byte address 0x4 - core index']
  #allocation1 [shape = 'u32[144,128]{1,0:T(1,128)}', space=vmem, size = 0x12000, scoped, tag = 'internal scratch']
  #allocation2 [shape = 'f32[6,32]{1,0:T(8,128)}', space=vmem, size = 0x1000, scoped, tag = 'scratch operand']
  #allocation3 [shape = 'f32[18,32]{1,0:T(8,128)}', space=vmem, size = 0x3000, scoped, tag = 'scratch operand']
  #allocation4 [shape = 'f32[10,32]{1,0:T(8,128)}', space=vmem, size = 0x2000, scoped, tag = 'scratch operand']
  #allocation5 [shape = 'f32[14,32]{1,0:T(8,128)}', space=vmem, size = 0x2000, scoped, tag = 'scratch operand']
  #allocation6 [shape = 'f32[22,32]{1,0:T(8,128)}', space=vmem, size = 0x3000, scoped, tag = 'scratch operand']
  %s0 = inlined_call_operand.vmem [shape: f32[2,4,32], index: 0, kind: input, shape index: {}]
  %s1 = inlined_call_operand.vmem [shape: bf16[3,32,32], index: 1, kind: input, shape index: {}]
  %s2 = inlined_call_operand.vmem [shape: f32[1,32], index: 2, kind: input, shape index: {}]
  %s3 = inlined_call_operand.vmem [shape: bf16[4,3,32,32], index: 3, kind: input, shape index: {}]
  %s4 = inlined_call_operand.vmem [shape: f32[4,1,32], index: 4, kind: input, shape index: {}]
  %s5 = inlined_call_operand.vmem [shape: bf16[4,32,32], index: 5, kind: input, shape index: {}]
  %s6 = inlined_call_operand.vmem [shape: f32[4,1,32], index: 6, kind: input, shape index: {}]
  %s7 = inlined_call_operand.vmem [shape: bf16[2,3,32,32], index: 7, kind: input, shape index: {}]
  %s8 = inlined_call_operand.vmem [shape: f32[2,1,32], index: 8, kind: input, shape index: {}]
  %s9 = inlined_call_operand.vmem [shape: bf16[3,32,32], index: 9, kind: input, shape index: {}]
  %s10 = inlined_call_operand.vmem [shape: f32[1,32], index: 10, kind: input, shape index: {}]
  %s11 = inlined_call_operand.vmem [shape: bf16[3,32,8], index: 11, kind: input, shape index: {}]
  %s12 = inlined_call_operand.vmem [shape: f32[1,8], index: 12, kind: input, shape index: {}]
  %s13 = inlined_call_operand.vmem [shape: f32[2,16,8], index: 13, kind: output, shape index: {}]
  %s14 = sld [smem:[#allocation0]]
  $region85: #{vqvae_forward.5} parent=0
    _
  %s16 = ssub.s32 1, %s14
  %s17 = scalar_select 0, %s16, %s14
  loop: start=0, step=1, limit=4
  $region2: #{vqvae_forward.5} parent=0 // loop_pre_header
    _
  $region3: #{vqvae_forward.5} parent=0 // loop_header
    %s19 = sphi 0, %s23
    %p20 = scmp.ge.s32.totalorder %s19, 4
    %s29 = sphi 0, %s31
    %s32 = sphi 0, %s29
    %s33 = sphi 0, %s32
    %s49 = sphi 0, %s33
    %s53 = sphi 0, %s53
    %s55 = sphi 0, %s53
    %s56 = sphi 0, %s55
    %s70 = sphi 0, %s56
    %s74 = sphi 0, %s74
    %s76 = sphi 0, %s74
    %s77 = sphi 0, %s76
    %s91 = sphi 0, %s77
    %s95 = sphi 0, %s95
    %s97 = sphi 0, %s95
    %s98 = sphi 0, %s97
    %s112 = sphi 0, %s98
    %s116 = sphi 0, %s116
    %s118 = sphi 0, %s116
    %s119 = sphi 0, %s118
    %s133 = sphi 0, %s119
    %s137 = sphi 0, %s137
    %s139 = sphi 0, %s137
    %s140 = sphi 0, %s139
    %s154 = sphi 0, %s140
    %s158 = sphi 0, %s158
    %s160 = sphi 0, %s158
    %s161 = sphi 0, %s160
    %s175 = sphi 0, %s161
    %s179 = sphi 0, %s179
    %s181 = sphi 0, %s179
    %s182 = sphi 0, %s181
    %s196 = sphi 0, %s182
    %s200 = sphi 0, %s200
    %s202 = sphi 0, %s200
    %s203 = sphi 0, %s202
    %s217 = sphi 0, %s203
    %s221 = sphi 0, %s221
    %s223 = sphi 0, %s221
    %s224 = sphi 0, %s223
    %s238 = sphi 0, %s224
    %s242 = sphi 0, %s242
    %s244 = sphi 0, %s242
    %s245 = sphi 0, %s244
    %s259 = sphi 0, %s245
    %s263 = sphi 0, %s263
    %s265 = sphi 0, %s263
    %s266 = sphi 0, %s265
    %s280 = sphi 0, %s266
    %s284 = sphi 0, %s284
    %s286 = sphi 0, %s284
    %s287 = sphi 0, %s286
    %s301 = sphi 0, %s287
    %s307 = sphi 0, %s309
    %s310 = sphi 0, %s307
    %s311 = sphi 0, %s310
    %s327 = sphi 0, %s311
  $region4: #{vqvae_forward.5} parent=0 // loop_header_branch
    %22 = sbr.rel (%p20) target = $region8
  $region5: #{vqvae_forward.5} parent=0 // loop_body
    %s24 = ssub.s32 %s19, 1
    %s25 = ssub.s32 %s19, 2
    %s26 = sadd.s32 %s19, 1
    %s27 = ssub.s32 %s19, %s26
    %p28 = scmp.eq.s32.totalorder %s27, 0
    %s30 = sadd.s32 %s29, 1
    %s31 = scalar_select %p28, %s29, %s30
    %p34 = pneg %p28
    %p35 = scmp.eq.s32.totalorder %s19, 1
    %p36 = por %p34, %p35
    %p37 = scmp.ne.s32.totalorder %s29, %s32
    %p38 = scmp.eq.s32.totalorder %s19, 0
    %p39 = por %p37, %p38
    %p40 = scmp.ne.s32.totalorder %s29, %s32
    %p41 = scmp.eq.s32.totalorder %s24, 1
    %p42 = por %p40, %p41
    %p43 = scmp.ne.s32.totalorder %s32, %s33
    %p44 = scmp.eq.s32.totalorder %s24, 0
    %p45 = por %p43, %p44
    %p46 = scmp.ne.s32.totalorder %s32, %s33
    %p47 = scmp.eq.s32.totalorder %s25, 1
    %p48 = por %p46, %p47
    %p50 = scmp.ne.s32.totalorder %s33, %s49
    %p51 = scmp.eq.s32.totalorder %s25, 0
    %p52 = por %p50, %p51
    %s54 = sadd.s32 %s53, 1
    %p57 = scmp.eq.s32.totalorder %s19, 1
    %p58 = scmp.ne.s32.totalorder %s53, %s55
    %p59 = scmp.eq.s32.totalorder %s19, 0
    %p60 = por %p58, %p59
    %p61 = scmp.ne.s32.totalorder %s53, %s55
    %p62 = scmp.eq.s32.totalorder %s24, 1
    %p63 = por %p61, %p62
    %p64 = scmp.ne.s32.totalorder %s55, %s56
    %p65 = scmp.eq.s32.totalorder %s24, 0
    %p66 = por %p64, %p65
    %p67 = scmp.ne.s32.totalorder %s55, %s56
    %p68 = scmp.eq.s32.totalorder %s25, 1
    %p69 = por %p67, %p68
    %p71 = scmp.ne.s32.totalorder %s56, %s70
    %p72 = scmp.eq.s32.totalorder %s25, 0
    %p73 = por %p71, %p72
    %s75 = sadd.s32 %s74, 1
    %p78 = scmp.eq.s32.totalorder %s19, 1
    %p79 = scmp.ne.s32.totalorder %s74, %s76
    %p80 = scmp.eq.s32.totalorder %s19, 0
    %p81 = por %p79, %p80
    %p82 = scmp.ne.s32.totalorder %s74, %s76
    %p83 = scmp.eq.s32.totalorder %s24, 1
    %p84 = por %p82, %p83
    %p85 = scmp.ne.s32.totalorder %s76, %s77
    %p86 = scmp.eq.s32.totalorder %s24, 0
    %p87 = por %p85, %p86
    %p88 = scmp.ne.s32.totalorder %s76, %s77
    %p89 = scmp.eq.s32.totalorder %s25, 1
    %p90 = por %p88, %p89
    %p92 = scmp.ne.s32.totalorder %s77, %s91
    %p93 = scmp.eq.s32.totalorder %s25, 0
    %p94 = por %p92, %p93
    %s96 = sadd.s32 %s95, 1
    %p99 = scmp.eq.s32.totalorder %s19, 1
    %p100 = scmp.ne.s32.totalorder %s95, %s97
    %p101 = scmp.eq.s32.totalorder %s19, 0
    %p102 = por %p100, %p101
    %p103 = scmp.ne.s32.totalorder %s95, %s97
    %p104 = scmp.eq.s32.totalorder %s24, 1
    %p105 = por %p103, %p104
    %p106 = scmp.ne.s32.totalorder %s97, %s98
    %p107 = scmp.eq.s32.totalorder %s24, 0
    %p108 = por %p106, %p107
    %p109 = scmp.ne.s32.totalorder %s97, %s98
    %p110 = scmp.eq.s32.totalorder %s25, 1
    %p111 = por %p109, %p110
    %p113 = scmp.ne.s32.totalorder %s98, %s112
    %p114 = scmp.eq.s32.totalorder %s25, 0
    %p115 = por %p113, %p114
    %s117 = sadd.s32 %s116, 1
    %p120 = scmp.eq.s32.totalorder %s19, 1
    %p121 = scmp.ne.s32.totalorder %s116, %s118
    %p122 = scmp.eq.s32.totalorder %s19, 0
    %p123 = por %p121, %p122
    %p124 = scmp.ne.s32.totalorder %s116, %s118
    %p125 = scmp.eq.s32.totalorder %s24, 1
    %p126 = por %p124, %p125
    %p127 = scmp.ne.s32.totalorder %s118, %s119
    %p128 = scmp.eq.s32.totalorder %s24, 0
    %p129 = por %p127, %p128
    %p130 = scmp.ne.s32.totalorder %s118, %s119
    %p131 = scmp.eq.s32.totalorder %s25, 1
    %p132 = por %p130, %p131
    %p134 = scmp.ne.s32.totalorder %s119, %s133
    %p135 = scmp.eq.s32.totalorder %s25, 0
    %p136 = por %p134, %p135
    %s138 = sadd.s32 %s137, 1
    %p141 = scmp.eq.s32.totalorder %s19, 1
    %p142 = scmp.ne.s32.totalorder %s137, %s139
    %p143 = scmp.eq.s32.totalorder %s19, 0
    %p144 = por %p142, %p143
    %p145 = scmp.ne.s32.totalorder %s137, %s139
    %p146 = scmp.eq.s32.totalorder %s24, 1
    %p147 = por %p145, %p146
    %p148 = scmp.ne.s32.totalorder %s139, %s140
    %p149 = scmp.eq.s32.totalorder %s24, 0
    %p150 = por %p148, %p149
    %p151 = scmp.ne.s32.totalorder %s139, %s140
    %p152 = scmp.eq.s32.totalorder %s25, 1
    %p153 = por %p151, %p152
    %p155 = scmp.ne.s32.totalorder %s140, %s154
    %p156 = scmp.eq.s32.totalorder %s25, 0
    %p157 = por %p155, %p156
    %s159 = sadd.s32 %s158, 1
    %p162 = scmp.eq.s32.totalorder %s19, 1
    %p163 = scmp.ne.s32.totalorder %s158, %s160
    %p164 = scmp.eq.s32.totalorder %s19, 0
    %p165 = por %p163, %p164
    %p166 = scmp.ne.s32.totalorder %s158, %s160
    %p167 = scmp.eq.s32.totalorder %s24, 1
    %p168 = por %p166, %p167
    %p169 = scmp.ne.s32.totalorder %s160, %s161
    %p170 = scmp.eq.s32.totalorder %s24, 0
    %p171 = por %p169, %p170
    %p172 = scmp.ne.s32.totalorder %s160, %s161
    %p173 = scmp.eq.s32.totalorder %s25, 1
    %p174 = por %p172, %p173
    %p176 = scmp.ne.s32.totalorder %s161, %s175
    %p177 = scmp.eq.s32.totalorder %s25, 0
    %p178 = por %p176, %p177
    %s180 = sadd.s32 %s179, 1
    %p183 = scmp.eq.s32.totalorder %s19, 1
    %p184 = scmp.ne.s32.totalorder %s179, %s181
    %p185 = scmp.eq.s32.totalorder %s19, 0
    %p186 = por %p184, %p185
    %p187 = scmp.ne.s32.totalorder %s179, %s181
    %p188 = scmp.eq.s32.totalorder %s24, 1
    %p189 = por %p187, %p188
    %p190 = scmp.ne.s32.totalorder %s181, %s182
    %p191 = scmp.eq.s32.totalorder %s24, 0
    %p192 = por %p190, %p191
    %p193 = scmp.ne.s32.totalorder %s181, %s182
    %p194 = scmp.eq.s32.totalorder %s25, 1
    %p195 = por %p193, %p194
    %p197 = scmp.ne.s32.totalorder %s182, %s196
    %p198 = scmp.eq.s32.totalorder %s25, 0
    %p199 = por %p197, %p198
    %s201 = sadd.s32 %s200, 1
    %p204 = scmp.eq.s32.totalorder %s19, 1
    %p205 = scmp.ne.s32.totalorder %s200, %s202
    %p206 = scmp.eq.s32.totalorder %s19, 0
    %p207 = por %p205, %p206
    %p208 = scmp.ne.s32.totalorder %s200, %s202
    %p209 = scmp.eq.s32.totalorder %s24, 1
    %p210 = por %p208, %p209
    %p211 = scmp.ne.s32.totalorder %s202, %s203
    %p212 = scmp.eq.s32.totalorder %s24, 0
    %p213 = por %p211, %p212
    %p214 = scmp.ne.s32.totalorder %s202, %s203
    %p215 = scmp.eq.s32.totalorder %s25, 1
    %p216 = por %p214, %p215
    %p218 = scmp.ne.s32.totalorder %s203, %s217
    %p219 = scmp.eq.s32.totalorder %s25, 0
    %p220 = por %p218, %p219
    %s222 = sadd.s32 %s221, 1
    %p225 = scmp.eq.s32.totalorder %s19, 1
    %p226 = scmp.ne.s32.totalorder %s221, %s223
    %p227 = scmp.eq.s32.totalorder %s19, 0
    %p228 = por %p226, %p227
    %p229 = scmp.ne.s32.totalorder %s221, %s223
    %p230 = scmp.eq.s32.totalorder %s24, 1
    %p231 = por %p229, %p230
    %p232 = scmp.ne.s32.totalorder %s223, %s224
    %p233 = scmp.eq.s32.totalorder %s24, 0
    %p234 = por %p232, %p233
    %p235 = scmp.ne.s32.totalorder %s223, %s224
    %p236 = scmp.eq.s32.totalorder %s25, 1
    %p237 = por %p235, %p236
    %p239 = scmp.ne.s32.totalorder %s224, %s238
    %p240 = scmp.eq.s32.totalorder %s25, 0
    %p241 = por %p239, %p240
    %s243 = sadd.s32 %s242, 1
    %p246 = scmp.eq.s32.totalorder %s19, 1
    %p247 = scmp.ne.s32.totalorder %s242, %s244
    %p248 = scmp.eq.s32.totalorder %s19, 0
    %p249 = por %p247, %p248
    %p250 = scmp.ne.s32.totalorder %s242, %s244
    %p251 = scmp.eq.s32.totalorder %s24, 1
    %p252 = por %p250, %p251
    %p253 = scmp.ne.s32.totalorder %s244, %s245
    %p254 = scmp.eq.s32.totalorder %s24, 0
    %p255 = por %p253, %p254
    %p256 = scmp.ne.s32.totalorder %s244, %s245
    %p257 = scmp.eq.s32.totalorder %s25, 1
    %p258 = por %p256, %p257
    %p260 = scmp.ne.s32.totalorder %s245, %s259
    %p261 = scmp.eq.s32.totalorder %s25, 0
    %p262 = por %p260, %p261
    %s264 = sadd.s32 %s263, 1
    %p267 = scmp.eq.s32.totalorder %s19, 1
    %p268 = scmp.ne.s32.totalorder %s263, %s265
    %p269 = scmp.eq.s32.totalorder %s19, 0
    %p270 = por %p268, %p269
    %p271 = scmp.ne.s32.totalorder %s263, %s265
    %p272 = scmp.eq.s32.totalorder %s24, 1
    %p273 = por %p271, %p272
    %p274 = scmp.ne.s32.totalorder %s265, %s266
    %p275 = scmp.eq.s32.totalorder %s24, 0
    %p276 = por %p274, %p275
    %p277 = scmp.ne.s32.totalorder %s265, %s266
    %p278 = scmp.eq.s32.totalorder %s25, 1
    %p279 = por %p277, %p278
    %p281 = scmp.ne.s32.totalorder %s266, %s280
    %p282 = scmp.eq.s32.totalorder %s25, 0
    %p283 = por %p281, %p282
    %s285 = sadd.s32 %s284, 1
    %p288 = scmp.eq.s32.totalorder %s19, 1
    %p289 = scmp.ne.s32.totalorder %s284, %s286
    %p290 = scmp.eq.s32.totalorder %s19, 0
    %p291 = por %p289, %p290
    %p292 = scmp.ne.s32.totalorder %s284, %s286
    %p293 = scmp.eq.s32.totalorder %s24, 1
    %p294 = por %p292, %p293
    %p295 = scmp.ne.s32.totalorder %s286, %s287
    %p296 = scmp.eq.s32.totalorder %s24, 0
    %p297 = por %p295, %p296
    %p298 = scmp.ne.s32.totalorder %s286, %s287
    %p299 = scmp.eq.s32.totalorder %s25, 1
    %p300 = por %p298, %p299
    %p302 = scmp.ne.s32.totalorder %s287, %s301
    %p303 = scmp.eq.s32.totalorder %s25, 0
    %p304 = por %p302, %p303
    %s305 = ssub.s32 %s19, %s26
    %p306 = scmp.eq.s32.totalorder %s305, 0
    %s308 = sadd.s32 %s307, 1
    %s309 = scalar_select %p306, %s307, %s308
    %p312 = pneg %p306
    %p313 = scmp.eq.s32.totalorder %s19, 1
    %p314 = por %p312, %p313
    %p315 = scmp.ne.s32.totalorder %s307, %s310
    %p316 = scmp.eq.s32.totalorder %s19, 0
    %p317 = por %p315, %p316
    %p318 = scmp.ne.s32.totalorder %s307, %s310
    %p319 = scmp.eq.s32.totalorder %s24, 1
    %p320 = por %p318, %p319
    %p321 = scmp.ne.s32.totalorder %s310, %s311
    %p322 = scmp.eq.s32.totalorder %s24, 0
    %p323 = por %p321, %p322
    %p324 = scmp.ne.s32.totalorder %s310, %s311
    %p325 = scmp.eq.s32.totalorder %s25, 1
    %p326 = por %p324, %p325
    %p328 = scmp.ne.s32.totalorder %s311, %s327
    %p329 = scmp.eq.s32.totalorder %s25, 0
    %p330 = por %p328, %p329
    %p331 = scmp.le.s32.totalorder 1, %s19
    %p332 = scmp.lt.s32.totalorder %s19, 3
    %p333 = pnand %p331, %p332
    %p334 = pneg %p333
    // Predicated region
    $region9: #{vqvae_forward.5} parent=5 // pred_check
      _
    $region10: #{vqvae_forward.5} parent=5 // pred_check_branch
      %336 = sbr.rel (%p333) target = $region12
    $region11: #{vqvae_forward.5} parent=5 // pred_region
      %s337 = ssub.s32 %s19, 1
      // Predicated region
      $region13: #{vqvae_forward.5} parent=11 // pred_check
        %p338 = pneg %p66
      $region14: #{vqvae_forward.5} parent=11 // pred_check_branch
        %340 = sbr.rel (%p338) target = $region16
      $region15: #{vqvae_forward.5} parent=11 // pred_region
        _
      $region16: #{vqvae_forward.5} parent=11 // pred_fallthru
        _
      // Predicated region
      $region17: #{vqvae_forward.5} parent=11 // pred_check
        %p341 = pneg %p87
      $region18: #{vqvae_forward.5} parent=11 // pred_check_branch
        %343 = sbr.rel (%p341) target = $region20
      $region19: #{vqvae_forward.5} parent=11 // pred_region
        _
      $region20: #{vqvae_forward.5} parent=11 // pred_fallthru
        _
      // Predicated region
      $region21: #{vqvae_forward.5} parent=11 // pred_check
        %p344 = pneg %p108
      $region22: #{vqvae_forward.5} parent=11 // pred_check_branch
        %346 = sbr.rel (%p344) target = $region24
      $region23: #{vqvae_forward.5} parent=11 // pred_region
        _
      $region24: #{vqvae_forward.5} parent=11 // pred_fallthru
        _
      // Predicated region
      $region25: #{vqvae_forward.5} parent=11 // pred_check
        %p347 = pneg %p129
      $region26: #{vqvae_forward.5} parent=11 // pred_check_branch
        %349 = sbr.rel (%p347) target = $region28
      $region27: #{vqvae_forward.5} parent=11 // pred_region
        _
      $region28: #{vqvae_forward.5} parent=11 // pred_fallthru
        _
      // Predicated region
      $region29: #{vqvae_forward.5} parent=11 // pred_check
        %p350 = pneg %p150
      $region30: #{vqvae_forward.5} parent=11 // pred_check_branch
        %352 = sbr.rel (%p350) target = $region32
      $region31: #{vqvae_forward.5} parent=11 // pred_region
        _
      $region32: #{vqvae_forward.5} parent=11 // pred_fallthru
        _
      // Predicated region
      $region33: #{vqvae_forward.5} parent=11 // pred_check
        %p353 = pneg %p171
      $region34: #{vqvae_forward.5} parent=11 // pred_check_branch
        %355 = sbr.rel (%p353) target = $region36
      $region35: #{vqvae_forward.5} parent=11 // pred_region
        _
      $region36: #{vqvae_forward.5} parent=11 // pred_fallthru
        _
      // Predicated region
      $region37: #{vqvae_forward.5} parent=11 // pred_check
        %p356 = pneg %p192
      $region38: #{vqvae_forward.5} parent=11 // pred_check_branch
        %358 = sbr.rel (%p356) target = $region40
      $region39: #{vqvae_forward.5} parent=11 // pred_region
        _
      $region40: #{vqvae_forward.5} parent=11 // pred_fallthru
        _
      // Predicated region
      $region41: #{vqvae_forward.5} parent=11 // pred_check
        %p359 = pneg %p213
      $region42: #{vqvae_forward.5} parent=11 // pred_check_branch
        %361 = sbr.rel (%p359) target = $region44
      $region43: #{vqvae_forward.5} parent=11 // pred_region
        _
      $region44: #{vqvae_forward.5} parent=11 // pred_fallthru
        _
      // Predicated region
      $region45: #{vqvae_forward.5} parent=11 // pred_check
        %p362 = pneg %p234
      $region46: #{vqvae_forward.5} parent=11 // pred_check_branch
        %364 = sbr.rel (%p362) target = $region48
      $region47: #{vqvae_forward.5} parent=11 // pred_region
        _
      $region48: #{vqvae_forward.5} parent=11 // pred_fallthru
        _
      // Predicated region
      $region49: #{vqvae_forward.5} parent=11 // pred_check
        %p365 = pneg %p255
      $region50: #{vqvae_forward.5} parent=11 // pred_check_branch
        %367 = sbr.rel (%p365) target = $region52
      $region51: #{vqvae_forward.5} parent=11 // pred_region
        _
      $region52: #{vqvae_forward.5} parent=11 // pred_fallthru
        _
      // Predicated region
      $region53: #{vqvae_forward.5} parent=11 // pred_check
        %p368 = pneg %p276
      $region54: #{vqvae_forward.5} parent=11 // pred_check_branch
        %370 = sbr.rel (%p368) target = $region56
      $region55: #{vqvae_forward.5} parent=11 // pred_region
        _
      $region56: #{vqvae_forward.5} parent=11 // pred_fallthru
        _
      // Predicated region
      $region57: #{vqvae_forward.5} parent=11 // pred_check
        %p371 = pneg %p297
      $region58: #{vqvae_forward.5} parent=11 // pred_check_branch
        %373 = sbr.rel (%p371) target = $region60
      $region59: #{vqvae_forward.5} parent=11 // pred_region
        _
      $region60: #{vqvae_forward.5} parent=11 // pred_fallthru
        _
    $region12: #{vqvae_forward.5} parent=5 // pred_fallthru
      _
    %p374 = scmp.lt.s32.totalorder %s19, 2
    // Predicated region
    $region61: #{vqvae_forward.5} parent=5 // pred_check
      %p375 = pneg %p374
    $region62: #{vqvae_forward.5} parent=5 // pred_check_branch
      %377 = sbr.rel (%p375) target = $region64
    $region63: #{vqvae_forward.5} parent=5 // pred_region
      // Predicated region
      $region65: #{vqvae_forward.5} parent=63 // pred_check
        %p378 = pneg %p39
      $region66: #{vqvae_forward.5} parent=63 // pred_check_branch
        %380 = sbr.rel (%p378) target = $region68
      $region67: #{vqvae_forward.5} parent=63 // pred_region
        %p381 = scmp.lt.s32.totalorder %s19, 1
        %s382 = scalar_select %p381, %s19, 1
        %s383 = smul.addr %s382, 4
        %s384 = scalar_lea.vmem %s0, %s383
      $region68: #{vqvae_forward.5} parent=63 // pred_fallthru
        _
    $region64: #{vqvae_forward.5} parent=5 // pred_fallthru
      _
    %p385 = scmp.le.s32.totalorder 1, %s19
    %p386 = scmp.lt.s32.totalorder %s19, 3
    %p387 = pnand %p385, %p386
    %p388 = pneg %p387
    // Predicated region
    $region69: #{vqvae_forward.5} parent=5 // pred_check
      _
    $region70: #{vqvae_forward.5} parent=5 // pred_check_branch
      %390 = sbr.rel (%p387) target = $region72
    $region71: #{vqvae_forward.5} parent=5 // pred_region
      %s391 = ssub.s32 %s19, 1
      %p392 = scmp.lt.s32.totalorder %s24, 1
      %s393 = scalar_select %p392, %s24, 1
      %s394 = smul.addr %s393, 4
      %s395 = scalar_lea.vmem %s0, %s394
      %p396 = pneg %p45
      %p397 = pneg %p42
      %p398 = pneg %p66
      %p399 = pneg %p63
      %p400 = pneg %p87
      %p401 = pneg %p84
      %p402 = pneg %p108
      %p403 = pneg %p105
      %p404 = pneg %p129
      %p405 = pneg %p126
      %p406 = pneg %p150
      %p407 = pneg %p147
      %p408 = pneg %p171
      %p409 = pneg %p168
      %p410 = pneg %p192
      %p411 = pneg %p189
      %p412 = pneg %p213
      %p413 = pneg %p210
      %p414 = pneg %p234
      %p415 = pneg %p231
      %p416 = pneg %p255
      %p417 = pneg %p252
      %p418 = pneg %p276
      %p419 = pneg %p273
      %p420 = pneg %p297
      %p421 = pneg %p294
      %p422 = pneg %p323
      %p423 = pneg %p320
      %p424 = scmp.lt.s32.totalorder %s24, 1
      %s425 = scalar_select %p424, %s24, 1
      %s426 = smul.addr %s425, 2
      %s427 = smul.addr %s426, 8
      %s428 = scalar_lea.vmem %s13, %s427
      %p429 = scmp.lt.s32.totalorder %s24, 1
      %s430 = scalar_select %p429, %s24, 1
      %s431 = smul.addr %s430, 4
      %s432 = scalar_lea.vmem %s0, %s431
      %p433 = scmp.lt.s32.totalorder %s24, 1
      %s434 = scalar_select %p433, %s24, 1
      %s435 = smul.addr %s434, 2
      %s436 = smul.addr %s435, 8
      %s437 = scalar_lea.vmem %s13, %s436
      %vm439 = vcmask 259072
      %440 = vst.msk [vmem:[#allocation2] sm:$0x3f] %vm439, 0.0
      %vm441 = vcmask 261120
      %442 = vst.msk [vmem:[#allocation4] sm:$0xff] %vm441, 0.0
      %vm443 = vcmask 254976
      %444 = vst.msk [vmem:[#allocation4 + $0x8] sm:$0x3] %vm443, 0.0
      %445 = vst.msk [vmem:[#allocation5] sm:$0xff] %vm441, 0.0
      %446 = vst.msk [vmem:[#allocation5 + $0x8] sm:$0x3f] %vm439, 0.0
      %447 = vst.msk [vmem:[#allocation6] sm:$0xff] %vm441, 0.0
      %448 = vst.msk [vmem:[#allocation6 + $0x8] sm:$0xff] %vm441, 0.0
      %449 = vst.msk [vmem:[#allocation6 + $0x10] sm:$0x3f] %vm439, 0.0
      %v450 = vld [vmem:[%s432] sm:$0xf]
      %vm451 = vcmask 257024
      %452 = vst.msk [vmem:[#allocation2 + $0x1] sm:$0xf] %vm451, %v450
      %v453 = vld [vmem:[#allocation2] sm:$0x3f]
      %v454 = vpack.c.bf16 %v453, %v453
      %v455 = vld [vmem:[%s1] sm:$0xf]
      %v456 = vld [vmem:[%s1 + $0x4] sm:$0xf]
      %v457 = vld [vmem:[%s1 + $0x8] sm:$0xf]
      %v458 = vld [vmem:[%s1 + $0xc] sm:$0xf]
      %s459 = scalar_lea.vmem %s1, 16
      %v460 = vld [vmem:[%s459] sm:$0xf]
      %v461 = vld [vmem:[%s459 + $0x4] sm:$0xf]
      %v462 = vld [vmem:[%s459 + $0x8] sm:$0xf]
      %v463 = vld [vmem:[%s459 + $0xc] sm:$0xf]
      %v465 = vshrl.u32 %v454, 16
      %v467 = vshll.u32 %v454, 16
      %v469 = vrot.slane %v467, 1
      %v470 = vor.u32 %v465, %v469
      %v475 = vunpack.c.l.b16 %v460
      %v476 = vunpack.c.l.b16 %v461
      %v477 = vunpack.c.l.b16 %v462
      %v478 = vunpack.c.l.b16 %v463
      %v479 = vpack.c.b16 %v476, %v475
      %v480 = vpack.c.b16 %v478, %v477
      %v484 = vsel %vm441, %v470, 0
      %486 = vmatprep.subr.bf16.mxu0 0
      %487 = vmatpush1.bf16.msra.mxu0 %v479
      %488 = vmatprep.subr.bf16.mxu0 0
      %489 = vmatpush1.bf16.msra.mxu0 %v480
      %490 = vmatprep.subr.bf16.mxu0 0
      %491 = vmatpush1.bf16.msra.mxu0 0
      %492 = vmatprep.subr.bf16.mxu0 0
      %493 = vmatpush1.bf16.msra.mxu0 0
      %494 = vmatprep.subr.bf16.mxu0 0
      %495 = vmatpush1.bf16.msra.mxu0 0
      %496 = vmatprep.subr.bf16.mxu0 0
      %497 = vmatpush1.bf16.msra.mxu0 0
      %498 = vmatprep.subr.bf16.mxu0 0
      %499 = vmatpush1.bf16.msra.mxu0 0
      %500 = vmatprep.subr.bf16.mxu0 0
      %501 = vmatpush1.bf16.msra.mxu0 0
      %502 = vmatprep.subr.bf16.mxu0 0
      %503 = vmatpush1.bf16.msra.mxu0 0
      %504 = vmatprep.subr.bf16.mxu0 0
      %505 = vmatpush1.bf16.msra.mxu0 0
      %506 = vmatprep.subr.bf16.mxu0 0
      %507 = vmatpush1.bf16.msra.mxu0 0
      %508 = vmatprep.subr.bf16.mxu0 0
      %509 = vmatpush1.bf16.msra.mxu0 0
      %510 = vmatprep.subr.bf16.mxu0 0
      %511 = vmatpush1.bf16.msra.mxu0 0
      %512 = vmatprep.subr.bf16.mxu0 0
      %513 = vmatpush1.bf16.msra.mxu0 0
      %514 = vmatprep.subr.bf16.mxu0 0
      %515 = vmatpush1.bf16.msra.mxu0 0
      %516 = vmatprep.subr.bf16.mxu0 0
      %517 = vmatpush1.bf16.msra.mxu0 0
      %518 = vmatprep.mubr.bf16.mxu0 0
      %519 = vmatmul.mubr.bf16.gmra.mrb[0].mxu0 %v484
      %v520 = vpop.f32.mrb[0].mxu0
      %v521 = vadd.f32 0.0, %v520
      %v522 = vpop.f32.mrb[0].mxu0
      %v523 = vpop.f32.mrb[0].mxu0
      %v524 = vpop.f32.mrb[0].mxu0
      %525 = vdwg.mxu0
      %v530 = vunpack.c.l.b16 %v455
      %v531 = vunpack.c.l.b16 %v456
      %v532 = vunpack.c.l.b16 %v457
      %v533 = vunpack.c.l.b16 %v458
      %v534 = vpack.c.b16 %v531, %v530
      %v535 = vpack.c.b16 %v533, %v532
      %v538 = vsel %vm441, %v454, 0
      %540 = vmatprep.subr.bf16.mxu0 0
      %541 = vmatpush1.bf16.msra.mxu0 %v534
      %542 = vmatprep.subr.bf16.mxu0 0
      %543 = vmatpush1.bf16.msra.mxu0 %v535
      %544 = vmatprep.subr.bf16.mxu0 0
      %545 = vmatpush1.bf16.msra.mxu0 0
      %546 = vmatprep.subr.bf16.mxu0 0
      %547 = vmatpush1.bf16.msra.mxu0 0
      %548 = vmatprep.subr.bf16.mxu0 0
      %549 = vmatpush1.bf16.msra.mxu0 0
      %550 = vmatprep.subr.bf16.mxu0 0
      %551 = vmatpush1.bf16.msra.mxu0 0
      %552 = vmatprep.subr.bf16.mxu0 0
      %553 = vmatpush1.bf16.msra.mxu0 0
      %554 = vmatprep.subr.bf16.mxu0 0
      %555 = vmatpush1.bf16.msra.mxu0 0
      %556 = vmatprep.subr.bf16.mxu0 0
      %557 = vmatpush1.bf16.msra.mxu0 0
      %558 = vmatprep.subr.bf16.mxu0 0
      %559 = vmatpush1.bf16.msra.mxu0 0
      %560 = vmatprep.subr.bf16.mxu0 0
      %561 = vmatpush1.bf16.msra.mxu0 0
      %562 = vmatprep.subr.bf16.mxu0 0
      %563 = vmatpush1.bf16.msra.mxu0 0
      %564 = vmatprep.subr.bf16.mxu0 0
      %565 = vmatpush1.bf16.msra.mxu0 0
      %566 = vmatprep.subr.bf16.mxu0 0
      %567 = vmatpush1.bf16.msra.mxu0 0
      %568 = vmatprep.subr.bf16.mxu0 0
      %569 = vmatpush1.bf16.msra.mxu0 0
      %570 = vmatprep.subr.bf16.mxu0 0
      %571 = vmatpush1.bf16.msra.mxu0 0
      %572 = vmatprep.mubr.bf16.mxu0 0
      %573 = vmatmul.mubr.bf16.gmra.mrb[0].mxu0 %v538
      %v574 = vpop.f32.mrb[0].mxu0
      %v575 = vadd.f32 %v521, %v574
      %v576 = vpop.f32.mrb[0].mxu0
      %v577 = vpop.f32.mrb[0].mxu0
      %v578 = vpop.f32.mrb[0].mxu0
      %579 = vdwg.mxu0
      %s580 = scalar_lea.vmem %s1, 32
      %v581 = vld [vmem:[%s580] sm:$0xf]
      %v582 = vld [vmem:[%s580 + $0x4] sm:$0xf]
      %v583 = vld [vmem:[%s580 + $0x8] sm:$0xf]
      %v584 = vld [vmem:[%s580 + $0xc] sm:$0xf]
      %v586 = vrot.slane %v454, 1
      %v591 = vunpack.c.l.b16 %v581
      %v592 = vunpack.c.l.b16 %v582
      %v593 = vunpack.c.l.b16 %v583
      %v594 = vunpack.c.l.b16 %v584
      %v595 = vpack.c.b16 %v592, %v591
      %v596 = vpack.c.b16 %v594, %v593
      %v600 = vsel %vm441, %v586, 0
      %602 = vmatprep.subr.bf16.mxu0 0
      %603 = vmatpush1.bf16.msra.mxu0 %v595
      %604 = vmatprep.subr.bf16.mxu0 0
      %605 = vmatpush1.bf16.msra.mxu0 %v596
      %606 = vmatprep.subr.bf16.mxu0 0
      %607 = vmatpush1.bf16.msra.mxu0 0
      %608 = vmatprep.subr.bf16.mxu0 0
      %609 = vmatpush1.bf16.msra.mxu0 0
      %610 = vmatprep.subr.bf16.mxu0 0
      %611 = vmatpush1.bf16.msra.mxu0 0
      %612 = vmatprep.subr.bf16.mxu0 0
      %613 = vmatpush1.bf16.msra.mxu0 0
      %614 = vmatprep.subr.bf16.mxu0 0
      %615 = vmatpush1.bf16.msra.mxu0 0
      %616 = vmatprep.subr.bf16.mxu0 0
      %617 = vmatpush1.bf16.msra.mxu0 0
      %618 = vmatprep.subr.bf16.mxu0 0
      %619 = vmatpush1.bf16.msra.mxu0 0
      %620 = vmatprep.subr.bf16.mxu0 0
      %621 = vmatpush1.bf16.msra.mxu0 0
      %622 = vmatprep.subr.bf16.mxu0 0
      %623 = vmatpush1.bf16.msra.mxu0 0
      %624 = vmatprep.subr.bf16.mxu0 0
      %625 = vmatpush1.bf16.msra.mxu0 0
      %626 = vmatprep.subr.bf16.mxu0 0
      %627 = vmatpush1.bf16.msra.mxu0 0
      %628 = vmatprep.subr.bf16.mxu0 0
      %629 = vmatpush1.bf16.msra.mxu0 0
      %630 = vmatprep.subr.bf16.mxu0 0
      %631 = vmatpush1.bf16.msra.mxu0 0
      %632 = vmatprep.subr.bf16.mxu0 0
      %633 = vmatpush1.bf16.msra.mxu0 0
      %634 = vmatprep.mubr.bf16.mxu0 0
      %635 = vmatmul.mubr.bf16.gmra.mrb[0].mxu0 %v600
      %v636 = vpop.f32.mrb[0].mxu0
      %v637 = vadd.f32 0.0, %v636
      %v638 = vpop.f32.mrb[0].mxu0
      %v639 = vpop.f32.mrb[0].mxu0
      %v640 = vpop.f32.mrb[0].mxu0
      %641 = vdwg.mxu0
      %v642 = vadd.f32 %v575, %v637
      %v643 = vld [vmem:[%s2] sm:$0x1]
      %v645 = vlaneseq
      %v646 = vshrl.u32 %v645, 7
      %v647 = vsub.s32 0, %v646
      %v648 = vrot.slane %v643, %v647
      %v650 = vadd.f32 %v642, %v648
      %v651 = vmax.f32 %v650, 0.0
      %652 = vst.msk [vmem:[#allocation4 + $0x3] sm:$0xf] %vm451, %v651
      %v653 = vld [vmem:[#allocation4] sm:$0xff]
      %v654 = vld [vmem:[#allocation4 + $0x8] sm:$0x3]
      %v655 = vmax.f32 %v653, 0.0
      %v656 = vmax.f32 %v654, 0.0
      %v657 = vpack.c.bf16 %v656, %v655
      %v658 = vld [vmem:[%s3] sm:$0xf]
      %v659 = vld [vmem:[%s3 + $0x4] sm:$0xf]
      %v660 = vld [vmem:[%s3 + $0x8] sm:$0xf]
      %v661 = vld [vmem:[%s3 + $0xc] sm:$0xf]
      %s662 = scalar_lea.vmem %s3, 16
      %v663 = vld [vmem:[%s662] sm:$0xf]
      %v664 = vld [vmem:[%s662 + $0x4] sm:$0xf]
      %v665 = vld [vmem:[%s662 + $0x8] sm:$0xf]
      %v666 = vld [vmem:[%s662 + $0xc] sm:$0xf]
      %v668 = vshrl.u32 %v657, 16
      %v670 = vrot.slane %v668, 1
      %v671 = vshll.u32 %v657, 16
      %v673 = vrot.slane %v671, 2
      %v674 = vor.u32 %v670, %v673
      %v679 = vunpack.c.l.b16 %v663
      %v680 = vunpack.c.l.b16 %v664
      %v681 = vunpack.c.l.b16 %v665
      %v682 = vunpack.c.l.b16 %v666
      %v683 = vpack.c.b16 %v680, %v679
      %v684 = vpack.c.b16 %v682, %v681
      %v688 = vsel %vm441, %v674, 0
      %690 = vmatprep.subr.bf16.mxu0 0
      %691 = vmatpush1.bf16.msra.mxu0 %v683
      %692 = vmatprep.subr.bf16.mxu0 0
      %693 = vmatpush1.bf16.msra.mxu0 %v684
      %694 = vmatprep.subr.bf16.mxu0 0
      %695 = vmatpush1.bf16.msra.mxu0 0
      %696 = vmatprep.subr.bf16.mxu0 0
      %697 = vmatpush1.bf16.msra.mxu0 0
      %698 = vmatprep.subr.bf16.mxu0 0
      %699 = vmatpush1.bf16.msra.mxu0 0
      %700 = vmatprep.subr.bf16.mxu0 0
      %701 = vmatpush1.bf16.msra.mxu0 0
      %702 = vmatprep.subr.bf16.mxu0 0
      %703 = vmatpush1.bf16.msra.mxu0 0
      %704 = vmatprep.subr.bf16.mxu0 0
      %705 = vmatpush1.bf16.msra.mxu0 0
      %706 = vmatprep.subr.bf16.mxu0 0
      %707 = vmatpush1.bf16.msra.mxu0 0
      %708 = vmatprep.subr.bf16.mxu0 0
      %709 = vmatpush1.bf16.msra.mxu0 0
      %710 = vmatprep.subr.bf16.mxu0 0
      %711 = vmatpush1.bf16.msra.mxu0 0
      %712 = vmatprep.subr.bf16.mxu0 0
      %713 = vmatpush1.bf16.msra.mxu0 0
      %714 = vmatprep.subr.bf16.mxu0 0
      %715 = vmatpush1.bf16.msra.mxu0 0
      %716 = vmatprep.subr.bf16.mxu0 0
      %717 = vmatpush1.bf16.msra.mxu0 0
      %718 = vmatprep.subr.bf16.mxu0 0
      %719 = vmatpush1.bf16.msra.mxu0 0
      %720 = vmatprep.subr.bf16.mxu0 0
      %721 = vmatpush1.bf16.msra.mxu0 0
      %722 = vmatprep.mubr.bf16.mxu0 0
      %723 = vmatmul.mubr.bf16.gmra.mrb[0].mxu0 %v688
      %v724 = vpop.f32.mrb[0].mxu0
      %v725 = vadd.f32 0.0, %v724
      %v726 = vpop.f32.mrb[0].mxu0
      %v727 = vpop.f32.mrb[0].mxu0
      %v728 = vpop.f32.mrb[0].mxu0
      %729 = vdwg.mxu0
      %v734 = vunpack.c.l.b16 %v658
      %v735 = vunpack.c.l.b16 %v659
      %v736 = vunpack.c.l.b16 %v660
      %v737 = vunpack.c.l.b16 %v661
      %v738 = vpack.c.b16 %v735, %v734
      %v739 = vpack.c.b16 %v737, %v736
      %v742 = vsel %vm441, %v657, 0
      %744 = vmatprep.subr.bf16.mxu0 0
      %745 = vmatpush1.bf16.msra.mxu0 %v738
      %746 = vmatprep.subr.bf16.mxu0 0
      %747 = vmatpush1.bf16.msra.mxu0 %v739
      %748 = vmatprep.subr.bf16.mxu0 0
      %749 = vmatpush1.bf16.msra.mxu0 0
      %750 = vmatprep.subr.bf16.mxu0 0
      %751 = vmatpush1.bf16.msra.mxu0 0
      %752 = vmatprep.subr.bf16.mxu0 0
      %753 = vmatpush1.bf16.msra.mxu0 0
      %754 = vmatprep.subr.bf16.mxu0 0
      %755 = vmatpush1.bf16.msra.mxu0 0
      %756 = vmatprep.subr.bf16.mxu0 0
      %757 = vmatpush1.bf16.msra.mxu0 0
      %758 = vmatprep.subr.bf16.mxu0 0
      %759 = vmatpush1.bf16.msra.mxu0 0
      %760 = vmatprep.subr.bf16.mxu0 0
      %761 = vmatpush1.bf16.msra.mxu0 0
      %762 = vmatprep.subr.bf16.mxu0 0
      %763 = vmatpush1.bf16.msra.mxu0 0
      %764 = vmatprep.subr.bf16.mxu0 0
      %765 = vmatpush1.bf16.msra.mxu0 0
      %766 = vmatprep.subr.bf16.mxu0 0
      %767 = vmatpush1.bf16.msra.mxu0 0
      %768 = vmatprep.subr.bf16.mxu0 0
      %769 = vmatpush1.bf16.msra.mxu0 0
      %770 = vmatprep.subr.bf16.mxu0 0
      %771 = vmatpush1.bf16.msra.mxu0 0
      %772 = vmatprep.subr.bf16.mxu0 0
      %773 = vmatpush1.bf16.msra.mxu0 0
      %774 = vmatprep.subr.bf16.mxu0 0
      %775 = vmatpush1.bf16.msra.mxu0 0
      %776 = vmatprep.mubr.bf16.mxu0 0
      %777 = vmatmul.mubr.bf16.gmra.mrb[0].mxu0 %v742
      %v778 = vpop.f32.mrb[0].mxu0
      %v779 = vadd.f32 %v725, %v778
      %v780 = vpop.f32.mrb[0].mxu0
      %v781 = vpop.f32.mrb[0].mxu0
      %v782 = vpop.f32.mrb[0].mxu0
      %783 = vdwg.mxu0
      %s784 = scalar_lea.vmem %s3, 32
      %v785 = vld [vmem:[%s784] sm:$0xf]
      %v786 = vld [vmem:[%s784 + $0x4] sm:$0xf]
      %v787 = vld [vmem:[%s784 + $0x8] sm:$0xf]
      %v788 = vld [vmem:[%s784 + $0xc] sm:$0xf]
      %v790 = vrot.slane %v657, 3
      %v795 = vunpack.c.l.b16 %v785
      %v796 = vunpack.c.l.b16 %v786
      %v797 = vunpack.c.l.b16 %v787
      %v798 = vunpack.c.l.b16 %v788
      %v799 = vpack.c.b16 %v796, %v795
      %v800 = vpack.c.b16 %v798, %v797
      %v804 = vsel %vm441, %v790, 0
      %806 = vmatprep.subr.bf16.mxu0 0
      %807 = vmatpush1.bf16.msra.mxu0 %v799
      %808 = vmatprep.subr.bf16.mxu0 0
      %809 = vmatpush1.bf16.msra.mxu0 %v800
      %810 = vmatprep.subr.bf16.mxu0 0
      %811 = vmatpush1.bf16.msra.mxu0 0
      %812 = vmatprep.subr.bf16.mxu0 0
      %813 = vmatpush1.bf16.msra.mxu0 0
      %814 = vmatprep.subr.bf16.mxu0 0
      %815 = vmatpush1.bf16.msra.mxu0 0
      %816 = vmatprep.subr.bf16.mxu0 0
      %817 = vmatpush1.bf16.msra.mxu0 0
      %818 = vmatprep.subr.bf16.mxu0 0
      %819 = vmatpush1.bf16.msra.mxu0 0
      %820 = vmatprep.subr.bf16.mxu0 0
      %821 = vmatpush1.bf16.msra.mxu0 0
      %822 = vmatprep.subr.bf16.mxu0 0
      %823 = vmatpush1.bf16.msra.mxu0 0
      %824 = vmatprep.subr.bf16.mxu0 0
      %825 = vmatpush1.bf16.msra.mxu0 0
      %826 = vmatprep.subr.bf16.mxu0 0
      %827 = vmatpush1.bf16.msra.mxu0 0
      %828 = vmatprep.subr.bf16.mxu0 0
      %829 = vmatpush1.bf16.msra.mxu0 0
      %830 = vmatprep.subr.bf16.mxu0 0
      %831 = vmatpush1.bf16.msra.mxu0 0
      %832 = vmatprep.subr.bf16.mxu0 0
      %833 = vmatpush1.bf16.msra.mxu0 0
      %834 = vmatprep.subr.bf16.mxu0 0
      %835 = vmatpush1.bf16.msra.mxu0 0
      %836 = vmatprep.subr.bf16.mxu0 0
      %837 = vmatpush1.bf16.msra.mxu0 0
      %838 = vmatprep.mubr.bf16.mxu0 0
      %839 = vmatmul.mubr.bf16.gmra.mrb[0].mxu0 %v804
      %v840 = vpop.f32.mrb[0].mxu0
      %v841 = vadd.f32 0.0, %v840
      %v842 = vpop.f32.mrb[0].mxu0
      %v843 = vpop.f32.mrb[0].mxu0
      %v844 = vpop.f32.mrb[0].mxu0
      %845 = vdwg.mxu0
      %v846 = vadd.f32 %v779, %v841
      %v847 = vld [vmem:[%s4] sm:$0x1]
      %v849 = vlaneseq
      %v850 = vshrl.u32 %v849, 7
      %v851 = vsub.s32 0, %v850
      %v852 = vrot.slane %v847, %v851
      %v854 = vadd.f32 %v846, %v852
      %v855 = vmax.f32 %v854, 0.0
      %v856 = vpack.c.bf16 %v855, %v855
      %v857 = vld [vmem:[%s5] sm:$0xf]
      %v858 = vld [vmem:[%s5 + $0x4] sm:$0xf]
      %v859 = vld [vmem:[%s5 + $0x8] sm:$0xf]
      %v860 = vld [vmem:[%s5 + $0xc] sm:$0xf]
      %v861 = vld [vmem:[%s6] sm:$0x1]
      %v863 = vlaneseq
      %v864 = vshrl.u32 %v863, 7
      %v865 = vsub.s32 0, %v864
      %v866 = vrot.slane %v861, %v865
      %v872 = vunpack.c.l.b16 %v857
      %v873 = vunpack.c.l.b16 %v858
      %v874 = vunpack.c.l.b16 %v859
      %v875 = vunpack.c.l.b16 %v860
      %v876 = vpack.c.b16 %v873, %v872
      %v877 = vpack.c.b16 %v875, %v874
      %v881 = vsel %vm441, %v856, 0
      %883 = vmatprep.subr.bf16.mxu0 0
      %884 = vmatpush1.bf16.msra.mxu0 %v876
      %885 = vmatprep.subr.bf16.mxu0 0
      %886 = vmatpush1.bf16.msra.mxu0 %v877
      %887 = vmatprep.subr.bf16.mxu0 0
      %888 = vmatpush1.bf16.msra.mxu0 0
      %889 = vmatprep.subr.bf16.mxu0 0
      %890 = vmatpush1.bf16.msra.mxu0 0
      %891 = vmatprep.subr.bf16.mxu0 0
      %892 = vmatpush1.bf16.msra.mxu0 0
      %893 = vmatprep.subr.bf16.mxu0 0
      %894 = vmatpush1.bf16.msra.mxu0 0
      %895 = vmatprep.subr.bf16.mxu0 0
      %896 = vmatpush1.bf16.msra.mxu0 0
      %897 = vmatprep.subr.bf16.mxu0 0
      %898 = vmatpush1.bf16.msra.mxu0 0
      %899 = vmatprep.subr.bf16.mxu0 0
      %900 = vmatpush1.bf16.msra.mxu0 0
      %901 = vmatprep.subr.bf16.mxu0 0
      %902 = vmatpush1.bf16.msra.mxu0 0
      %903 = vmatprep.subr.bf16.mxu0 0
      %904 = vmatpush1.bf16.msra.mxu0 0
      %905 = vmatprep.subr.bf16.mxu0 0
      %906 = vmatpush1.bf16.msra.mxu0 0
      %907 = vmatprep.subr.bf16.mxu0 0
      %908 = vmatpush1.bf16.msra.mxu0 0
      %909 = vmatprep.subr.bf16.mxu0 0
      %910 = vmatpush1.bf16.msra.mxu0 0
      %911 = vmatprep.subr.bf16.mxu0 0
      %912 = vmatpush1.bf16.msra.mxu0 0
      %913 = vmatprep.subr.bf16.mxu0 0
      %914 = vmatpush1.bf16.msra.mxu0 0
      %915 = vmatprep.mubr.bf16.mxu0 0
      %916 = vmatmul.mubr.bf16.gmra.mrb[0].mxu0 %v881
      %v917 = vpop.f32.mrb[0].mxu0
      %v918 = vadd.f32 %v866, %v917
      %v919 = vpop.f32.mrb[0].mxu0
      %v920 = vpop.f32.mrb[0].mxu0
      %v921 = vpop.f32.mrb[0].mxu0
      %922 = vdwg.mxu0
      %v923 = vld [vmem:[#allocation4 + $0x3] sm:$0xf]
      %v924 = vadd.f32 %v923, %v918
      %925 = vst.msk [vmem:[#allocation4 + $0x3] sm:$0xf] %vm451, %v924
      %v926 = vld [vmem:[#allocation4] sm:$0xff]
      %v927 = vld [vmem:[#allocation4 + $0x8] sm:$0x3]
      %v928 = vmax.f32 %v926, 0.0
      %v929 = vmax.f32 %v927, 0.0
      %v930 = vpack.c.bf16 %v929, %v928
      %s931 = scalar_lea.vmem %s3, 48
      %v932 = vld [vmem:[%s931] sm:$0xf]
      %v933 = vld [vmem:[%s931 + $0x4] sm:$0xf]
      %v934 = vld [vmem:[%s931 + $0x8] sm:$0xf]
      %v935 = vld [vmem:[%s931 + $0xc] sm:$0xf]
      %s936 = scalar_lea.vmem %s3, 64
      %v937 = vld [vmem:[%s936] sm:$0xf]
      %v938 = vld [vmem:[%s936 + $0x4] sm:$0xf]
      %v939 = vld [vmem:[%s936 + $0x8] sm:$0xf]
      %v940 = vld [vmem:[%s936 + $0xc] sm:$0xf]
      %v942 = vshrl.u32 %v930, 16
      %v944 = vrot.slane %v942, 1
      %v945 = vshll.u32 %v930, 16
      %v947 = vrot.slane %v945, 2
      %v948 = vor.u32 %v944, %v947
      %v953 = vunpack.c.l.b16 %v937
      %v954 = vunpack.c.l.b16 %v938
      %v955 = vunpack.c.l.b16 %v939
      %v956 = vunpack.c.l.b16 %v940
      %v957 = vpack.c.b16 %v954, %v953
      %v958 = vpack.c.b16 %v956, %v955
      %v962 = vsel %vm441, %v948, 0
      %964 = vmatprep.subr.bf16.mxu0 0
      %965 = vmatpush1.bf16.msra.mxu0 %v957
      %966 = vmatprep.subr.bf16.mxu0 0
      %967 = vmatpush1.bf16.msra.mxu0 %v958
      %968 = vmatprep.subr.bf16.mxu0 0
      %969 = vmatpush1.bf16.msra.mxu0 0
      %970 = vmatprep.subr.bf16.mxu0 0
      %971 = vmatpush1.bf16.msra.mxu0 0
      %972 = vmatprep.subr.bf16.mxu0 0
      %973 = vmatpush1.bf16.msra.mxu0 0
      %974 = vmatprep.subr.bf16.mxu0 0
      %975 = vmatpush1.bf16.msra.mxu0 0
      %976 = vmatprep.subr.bf16.mxu0 0
      %977 = vmatpush1.bf16.msra.mxu0 0
      %978 = vmatprep.subr.bf16.mxu0 0
      %979 = vmatpush1.bf16.msra.mxu0 0
      %980 = vmatprep.subr.bf16.mxu0 0
      %981 = vmatpush1.bf16.msra.mxu0 0
      %982 = vmatprep.subr.bf16.mxu0 0
      %983 = vmatpush1.bf16.msra.mxu0 0
      %984 = vmatprep.subr.bf16.mxu0 0
      %985 = vmatpush1.bf16.msra.mxu0 0
      %986 = vmatprep.subr.bf16.mxu0 0
      %987 = vmatpush1.bf16.msra.mxu0 0
      %988 = vmatprep.subr.bf16.mxu0 0
      %989 = vmatpush1.bf16.msra.mxu0 0
      %990 = vmatprep.subr.bf16.mxu0 0
      %991 = vmatpush1.bf16.msra.mxu0 0
      %992 = vmatprep.subr.bf16.mxu0 0
      %993 = vmatpush1.bf16.msra.mxu0 0
      %994 = vmatprep.subr.bf16.mxu0 0
      %995 = vmatpush1.bf16.msra.mxu0 0
      %996 = vmatprep.mubr.bf16.mxu0 0
      %997 = vmatmul.mubr.bf16.gmra.mrb[0].mxu0 %v962
      %v998 = vpop.f32.mrb[0].mxu0
      %v999 = vadd.f32 0.0, %v998
      %v1000 = vpop.f32.mrb[0].mxu0
      %v1001 = vpop.f32.mrb[0].mxu0
      %v1002 = vpop.f32.mrb[0].mxu0
      %1003 = vdwg.mxu0
      %v1005 = vrot.slane %v930, 1
      %v1010 = vunpack.c.l.b16 %v932
      %v1011 = vunpack.c.l.b16 %v933
      %v1012 = vunpack.c.l.b16 %v934
      %v1013 = vunpack.c.l.b16 %v935
      %v1014 = vpack.c.b16 %v1011, %v1010
      %v1015 = vpack.c.b16 %v1013, %v1012
      %v1019 = vsel %vm441, %v1005, 0
      %1021 = vmatprep.subr.bf16.mxu0 0
      %1022 = vmatpush1.bf16.msra.mxu0 %v1014
      %1023 = vmatprep.subr.bf16.mxu0 0
      %1024 = vmatpush1.bf16.msra.mxu0 %v1015
      %1025 = vmatprep.subr.bf16.mxu0 0
      %1026 = vmatpush1.bf16.msra.mxu0 0
      %1027 = vmatprep.subr.bf16.mxu0 0
      %1028 = vmatpush1.bf16.msra.mxu0 0
      %1029 = vmatprep.subr.bf16.mxu0 0
      %1030 = vmatpush1.bf16.msra.mxu0 0
      %1031 = vmatprep.subr.bf16.mxu0 0
      %1032 = vmatpush1.bf16.msra.mxu0 0
      %1033 = vmatprep.subr.bf16.mxu0 0
      %1034 = vmatpush1.bf16.msra.mxu0 0
      %1035 = vmatprep.subr.bf16.mxu0 0
      %1036 = vmatpush1.bf16.msra.mxu0 0
      %1037 = vmatprep.subr.bf16.mxu0 0
      %1038 = vmatpush1.bf16.msra.mxu0 0
      %1039 = vmatprep.subr.bf16.mxu0 0
      %1040 = vmatpush1.bf16.msra.mxu0 0
      %1041 = vmatprep.subr.bf16.mxu0 0
      %1042 = vmatpush1.bf16.msra.mxu0 0
      %1043 = vmatprep.subr.bf16.mxu0 0
      %1044 = vmatpush1.bf16.msra.mxu0 0
      %1045 = vmatprep.subr.bf16.mxu0 0
      %1046 = vmatpush1.bf16.msra.mxu0 0
      %1047 = vmatprep.subr.bf16.mxu0 0
      %1048 = vmatpush1.bf16.msra.mxu0 0
      %1049 = vmatprep.subr.bf16.mxu0 0
      %1050 = vmatpush1.bf16.msra.mxu0 0
      %1051 = vmatprep.subr.bf16.mxu0 0
      %1052 = vmatpush1.bf16.msra.mxu0 0
      %1053 = vmatprep.mubr.bf16.mxu0 0
      %1054 = vmatmul.mubr.bf16.gmra.mrb[0].mxu0 %v1019
      %v1055 = vpop.f32.mrb[0].mxu0
      %v1056 = vadd.f32 %v999, %v1055
      %v1057 = vpop.f32.mrb[0].mxu0
      %v1058 = vpop.f32.mrb[0].mxu0
      %v1059 = vpop.f32.mrb[0].mxu0
      %1060 = vdwg.mxu0
      %s1061 = scalar_lea.vmem %s3, 80
      %v1062 = vld [vmem:[%s1061] sm:$0xf]
      %v1063 = vld [vmem:[%s1061 + $0x4] sm:$0xf]
      %v1064 = vld [vmem:[%s1061 + $0x8] sm:$0xf]
      %v1065 = vld [vmem:[%s1061 + $0xc] sm:$0xf]
      %v1066 = vrot.slane %v930, 2
      %v1071 = vunpack.c.l.b16 %v1062
      %v1072 = vunpack.c.l.b16 %v1063
      %v1073 = vunpack.c.l.b16 %v1064
      %v1074 = vunpack.c.l.b16 %v1065
      %v1075 = vpack.c.b16 %v1072, %v1071
      %v1076 = vpack.c.b16 %v1074, %v1073
      %v1080 = vsel %vm441, %v1066, 0
      %1082 = vmatprep.subr.bf16.mxu0 0
      %1083 = vmatpush1.bf16.msra.mxu0 %v1075
      %1084 = vmatprep.subr.bf16.mxu0 0
      %1085 = vmatpush1.bf16.msra.mxu0 %v1076
      %1086 = vmatprep.subr.bf16.mxu0 0
      %1087 = vmatpush1.bf16.msra.mxu0 0
      %1088 = vmatprep.subr.bf16.mxu0 0
      %1089 = vmatpush1.bf16.msra.mxu0 0
      %1090 = vmatprep.subr.bf16.mxu0 0
      %1091 = vmatpush1.bf16.msra.mxu0 0
      %1092 = vmatprep.subr.bf16.mxu0 0
      %1093 = vmatpush1.bf16.msra.mxu0 0
      %1094 = vmatprep.subr.bf16.mxu0 0
      %1095 = vmatpush1.bf16.msra.mxu0 0
      %1096 = vmatprep.subr.bf16.mxu0 0
      %1097 = vmatpush1.bf16.msra.mxu0 0
      %1098 = vmatprep.subr.bf16.mxu0 0
      %1099 = vmatpush1.bf16.msra.mxu0 0
      %1100 = vmatprep.subr.bf16.mxu0 0
      %1101 = vmatpush1.bf16.msra.mxu0 0
      %1102 = vmatprep.subr.bf16.mxu0 0
      %1103 = vmatpush1.bf16.msra.mxu0 0
      %1104 = vmatprep.subr.bf16.mxu0 0
      %1105 = vmatpush1.bf16.msra.mxu0 0
      %1106 = vmatprep.subr.bf16.mxu0 0
      %1107 = vmatpush1.bf16.msra.mxu0 0
      %1108 = vmatprep.subr.bf16.mxu0 0
      %1109 = vmatpush1.bf16.msra.mxu0 0
      %1110 = vmatprep.subr.bf16.mxu0 0
      %1111 = vmatpush1.bf16.msra.mxu0 0
      %1112 = vmatprep.subr.bf16.mxu0 0
      %1113 = vmatpush1.bf16.msra.mxu0 0
      %1114 = vmatprep.mubr.bf16.mxu0 0
      %1115 = vmatmul.mubr.bf16.gmra.mrb[0].mxu0 %v1080
      %v1116 = vpop.f32.mrb[0].mxu0
      %v1117 = vadd.f32 0.0, %v1116
      %v1118 = vpop.f32.mrb[0].mxu0
      %v1119 = vpop.f32.mrb[0].mxu0
      %v1120 = vpop.f32.mrb[0].mxu0
      %1121 = vdwg.mxu0
      %v1122 = vadd.f32 %v1056, %v1117
      %s1123 = scalar_lea.vmem %s4, 1
      %v1124 = vld [vmem:[%s1123] sm:$0x1]
      %v1126 = vlaneseq
      %v1127 = vshrl.u32 %v1126, 7
      %v1128 = vsub.s32 0, %v1127
      %v1129 = vrot.slane %v1124, %v1128
      %v1131 = vadd.f32 %v1122, %v1129
      %v1132 = vmax.f32 %v1131, 0.0
      %v1133 = vpack.c.bf16 %v1132, %v1132
      %s1134 = scalar_lea.vmem %s5, 16
      %v1135 = vld [vmem:[%s1134] sm:$0xf]
      %v1136 = vld [vmem:[%s1134 + $0x4] sm:$0xf]
      %v1137 = vld [vmem:[%s1134 + $0x8] sm:$0xf]
      %v1138 = vld [vmem:[%s1134 + $0xc] sm:$0xf]
      %s1139 = scalar_lea.vmem %s6, 1
      %v1140 = vld [vmem:[%s1139] sm:$0x1]
      %v1142 = vlaneseq
      %v1143 = vshrl.u32 %v1142, 7
      %v1144 = vsub.s32 0, %v1143
      %v1145 = vrot.slane %v1140, %v1144
      %v1151 = vunpack.c.l.b16 %v1135
      %v1152 = vunpack.c.l.b16 %v1136
      %v1153 = vunpack.c.l.b16 %v1137
      %v1154 = vunpack.c.l.b16 %v1138
      %v1155 = vpack.c.b16 %v1152, %v1151
      %v1156 = vpack.c.b16 %v1154, %v1153
      %v1160 = vsel %vm441, %v1133, 0
      %1162 = vmatprep.subr.bf16.mxu0 0
      %1163 = vmatpush1.bf16.msra.mxu0 %v1155
      %1164 = vmatprep.subr.bf16.mxu0 0
      %1165 = vmatpush1.bf16.msra.mxu0 %v1156
      %1166 = vmatprep.subr.bf16.mxu0 0
      %1167 = vmatpush1.bf16.msra.mxu0 0
      %1168 = vmatprep.subr.bf16.mxu0 0
      %1169 = vmatpush1.bf16.msra.mxu0 0
      %1170 = vmatprep.subr.bf16.mxu0 0
      %1171 = vmatpush1.bf16.msra.mxu0 0
      %1172 = vmatprep.subr.bf16.mxu0 0
      %1173 = vmatpush1.bf16.msra.mxu0 0
      %1174 = vmatprep.subr.bf16.mxu0 0
      %1175 = vmatpush1.bf16.msra.mxu0 0
      %1176 = vmatprep.subr.bf16.mxu0 0
      %1177 = vmatpush1.bf16.msra.mxu0 0
      %1178 = vmatprep.subr.bf16.mxu0 0
      %1179 = vmatpush1.bf16.msra.mxu0 0
      %1180 = vmatprep.subr.bf16.mxu0 0
      %1181 = vmatpush1.bf16.msra.mxu0 0
      %1182 = vmatprep.subr.bf16.mxu0 0
      %1183 = vmatpush1.bf16.msra.mxu0 0
      %1184 = vmatprep.subr.bf16.mxu0 0
      %1185 = vmatpush1.bf16.msra.mxu0 0
      %1186 = vmatprep.subr.bf16.mxu0 0
      %1187 = vmatpush1.bf16.msra.mxu0 0
      %1188 = vmatprep.subr.bf16.mxu0 0
      %1189 = vmatpush1.bf16.msra.mxu0 0
      %1190 = vmatprep.subr.bf16.mxu0 0
      %1191 = vmatpush1.bf16.msra.mxu0 0
      %1192 = vmatprep.subr.bf16.mxu0 0
      %1193 = vmatpush1.bf16.msra.mxu0 0
      %1194 = vmatprep.mubr.bf16.mxu0 0
      %1195 = vmatmul.mubr.bf16.gmra.mrb[0].mxu0 %v1160
      %v1196 = vpop.f32.mrb[0].mxu0
      %v1197 = vadd.f32 %v1145, %v1196
      %v1198 = vpop.f32.mrb[0].mxu0
      %v1199 = vpop.f32.mrb[0].mxu0
      %v1200 = vpop.f32.mrb[0].mxu0
      %1201 = vdwg.mxu0
      %v1202 = vld [vmem:[#allocation4 + $0x3] sm:$0xf]
      %v1203 = vadd.f32 %v1202, %v1197
      %1204 = vst.msk [vmem:[#allocation4 + $0x3] sm:$0xf] %vm451, %v1203
      %v1205 = vlaneseq
      %v1206 = vshrl.u32 %v1205, 7
      %v1207 = vlaneseq
      %v1208 = vand.u32 %v1207, 127
      %v1209 = vmul.u32 %v1208, 2
      %vm1210 = vcmp.eq.s32.totalorder %v1206, %v1209
      %v1211 = vadd.s32 %v1209, 1
      %vm1212 = vcmp.eq.s32.totalorder %v1206, %v1211
      %vm1213 = vmor %vm1210, %vm1212
      %v1214 = vsel %vm1213, 1, 0
      %v1215 = vcvt.s32.f32 %v1214
      %v1216 = vpack.c.bf16 %v1215, %v1215
      %1217 = vst.msk [vmem:[#allocation3] sm:$0xff] %vm441, 0.0
      %1218 = vst.msk [vmem:[#allocation3 + $0x8] sm:$0xff] %vm441, 0.0
      %1219 = vst.msk [vmem:[#allocation3 + $0x10] sm:$0x3] %vm443, 0.0
      %v1220 = vld [vmem:[#allocation4 + $0x3] sm:$0xf]
      %v1221 = vpack.c.bf16 %v1220, %v1220
      %vm1222 = vcmask 31744
      %v1224 = vsel %vm1222, %v1216, 0
      %vm1226 = vcmask 1041408
      %v1228 = vsel %vm1226, %v1221, 0
      %1230 = vmatprep.subr.bf16.mxu0 0
      %1231 = vmatpush1.bf16.msra.mxu0 %v1228
      %1232 = vmatprep.subr.bf16.mxu0 0
      %1233 = vmatpush1.bf16.msra.mxu0 0
      %1234 = vmatprep.subr.bf16.mxu0 0
      %1235 = vmatpush1.bf16.msra.mxu0 0
      %1236 = vmatprep.subr.bf16.mxu0 0
      %1237 = vmatpush1.bf16.msra.mxu0 0
      %1238 = vmatprep.subr.bf16.mxu0 0
      %1239 = vmatpush1.bf16.msra.mxu0 0
      %1240 = vmatprep.subr.bf16.mxu0 0
      %1241 = vmatpush1.bf16.msra.mxu0 0
      %1242 = vmatprep.subr.bf16.mxu0 0
      %1243 = vmatpush1.bf16.msra.mxu0 0
      %1244 = vmatprep.subr.bf16.mxu0 0
      %1245 = vmatpush1.bf16.msra.mxu0 0
      %1246 = vmatprep.subr.bf16.mxu0 0
      %1247 = vmatpush1.bf16.msra.mxu0 0
      %1248 = vmatprep.subr.bf16.mxu0 0
      %1249 = vmatpush1.bf16.msra.mxu0 0
      %1250 = vmatprep.subr.bf16.mxu0 0
      %1251 = vmatpush1.bf16.msra.mxu0 0
      %1252 = vmatprep.subr.bf16.mxu0 0
      %1253 = vmatpush1.bf16.msra.mxu0 0
      %1254 = vmatprep.subr.bf16.mxu0 0
      %1255 = vmatpush1.bf16.msra.mxu0 0
      %1256 = vmatprep.subr.bf16.mxu0 0
      %1257 = vmatpush1.bf16.msra.mxu0 0
      %1258 = vmatprep.subr.bf16.mxu0 0
      %1259 = vmatpush1.bf16.msra.mxu0 0
      %1260 = vmatprep.subr.bf16.mxu0 0
      %1261 = vmatpush1.bf16.msra.mxu0 0
      %1262 = vmatprep.mubr.bf16.mxu0 0
      %1263 = vmatmul.mubr.bf16.gmra.mrb[0].mxu0 %v1224
      %v1264 = vpop.f32.mrb[0].mxu0
      %v1265 = vadd.f32 0.0, %v1264
      %v1266 = vpop.f32.mrb[0].mxu0
      %v1267 = vpop.f32.mrb[0].mxu0
      %v1268 = vpop.f32.mrb[0].mxu0
      %1269 = vdwg.mxu0
      %1270 = vst.msk [vmem:[#allocation3 + $0x1] sm:$0xff] %vm441, %v1265
      %v1271 = vld [vmem:[#allocation3] sm:$0xff]
      %v1272 = vld [vmem:[#allocation3 + $0x8] sm:$0xff]
      %v1273 = vpack.c.bf16 %v1272, %v1271
      %v1274 = vld [vmem:[%s7] sm:$0xf]
      %v1275 = vld [vmem:[%s7 + $0x4] sm:$0xf]
      %v1276 = vld [vmem:[%s7 + $0x8] sm:$0xf]
      %v1277 = vld [vmem:[%s7 + $0xc] sm:$0xf]
      %s1278 = scalar_lea.vmem %s7, 16
      %v1279 = vld [vmem:[%s1278] sm:$0xf]
      %v1280 = vld [vmem:[%s1278 + $0x4] sm:$0xf]
      %v1281 = vld [vmem:[%s1278 + $0x8] sm:$0xf]
      %v1282 = vld [vmem:[%s1278 + $0xc] sm:$0xf]
      %v1284 = vshrl.u32 %v1273, 16
      %v1286 = vshll.u32 %v1273, 16
      %v1288 = vrot.slane %v1286, 1
      %v1289 = vor.u32 %v1284, %v1288
      %v1294 = vunpack.c.l.b16 %v1279
      %v1295 = vunpack.c.l.b16 %v1280
      %v1296 = vunpack.c.l.b16 %v1281
      %v1297 = vunpack.c.l.b16 %v1282
      %v1298 = vpack.c.b16 %v1295, %v1294
      %v1299 = vpack.c.b16 %v1297, %v1296
      %v1303 = vsel %vm441, %v1289, 0
      %1305 = vmatprep.subr.bf16.mxu0 0
      %1306 = vmatpush1.bf16.msra.mxu0 %v1298
      %1307 = vmatprep.subr.bf16.mxu0 0
      %1308 = vmatpush1.bf16.msra.mxu0 %v1299
      %1309 = vmatprep.subr.bf16.mxu0 0
      %1310 = vmatpush1.bf16.msra.mxu0 0
      %1311 = vmatprep.subr.bf16.mxu0 0
      %1312 = vmatpush1.bf16.msra.mxu0 0
      %1313 = vmatprep.subr.bf16.mxu0 0
      %1314 = vmatpush1.bf16.msra.mxu0 0
      %1315 = vmatprep.subr.bf16.mxu0 0
      %1316 = vmatpush1.bf16.msra.mxu0 0
      %1317 = vmatprep.subr.bf16.mxu0 0
      %1318 = vmatpush1.bf16.msra.mxu0 0
      %1319 = vmatprep.subr.bf16.mxu0 0
      %1320 = vmatpush1.bf16.msra.mxu0 0
      %1321 = vmatprep.subr.bf16.mxu0 0
      %1322 = vmatpush1.bf16.msra.mxu0 0
      %1323 = vmatprep.subr.bf16.mxu0 0
      %1324 = vmatpush1.bf16.msra.mxu0 0
      %1325 = vmatprep.subr.bf16.mxu0 0
      %1326 = vmatpush1.bf16.msra.mxu0 0
      %1327 = vmatprep.subr.bf16.mxu0 0
      %1328 = vmatpush1.bf16.msra.mxu0 0
      %1329 = vmatprep.subr.bf16.mxu0 0
      %1330 = vmatpush1.bf16.msra.mxu0 0
      %1331 = vmatprep.subr.bf16.mxu0 0
      %1332 = vmatpush1.bf16.msra.mxu0 0
      %1333 = vmatprep.subr.bf16.mxu0 0
      %1334 = vmatpush1.bf16.msra.mxu0 0
      %1335 = vmatprep.subr.bf16.mxu0 0
      %1336 = vmatpush1.bf16.msra.mxu0 0
      %1337 = vmatprep.mubr.bf16.mxu0 0
      %1338 = vmatmul.mubr.bf16.gmra.mrb[0].mxu0 %v1303
      %v1339 = vpop.f32.mrb[0].mxu0
      %v1340 = vadd.f32 0.0, %v1339
      %v1341 = vpop.f32.mrb[0].mxu0
      %v1342 = vpop.f32.mrb[0].mxu0
      %v1343 = vpop.f32.mrb[0].mxu0
      %1344 = vdwg.mxu0
      %v1349 = vunpack.c.l.b16 %v1274
      %v1350 = vunpack.c.l.b16 %v1275
      %v1351 = vunpack.c.l.b16 %v1276
      %v1352 = vunpack.c.l.b16 %v1277
      %v1353 = vpack.c.b16 %v1350, %v1349
      %v1354 = vpack.c.b16 %v1352, %v1351
      %v1357 = vsel %vm441, %v1273, 0
      %1359 = vmatprep.subr.bf16.mxu0 0
      %1360 = vmatpush1.bf16.msra.mxu0 %v1353
      %1361 = vmatprep.subr.bf16.mxu0 0
      %1362 = vmatpush1.bf16.msra.mxu0 %v1354
      %1363 = vmatprep.subr.bf16.mxu0 0
      %1364 = vmatpush1.bf16.msra.mxu0 0
      %1365 = vmatprep.subr.bf16.mxu0 0
      %1366 = vmatpush1.bf16.msra.mxu0 0
      %1367 = vmatprep.subr.bf16.mxu0 0
      %1368 = vmatpush1.bf16.msra.mxu0 0
      %1369 = vmatprep.subr.bf16.mxu0 0
      %1370 = vmatpush1.bf16.msra.mxu0 0
      %1371 = vmatprep.subr.bf16.mxu0 0
      %1372 = vmatpush1.bf16.msra.mxu0 0
      %1373 = vmatprep.subr.bf16.mxu0 0
      %1374 = vmatpush1.bf16.msra.mxu0 0
      %1375 = vmatprep.subr.bf16.mxu0 0
      %1376 = vmatpush1.bf16.msra.mxu0 0
      %1377 = vmatprep.subr.bf16.mxu0 0
      %1378 = vmatpush1.bf16.msra.mxu0 0
      %1379 = vmatprep.subr.bf16.mxu0 0
      %1380 = vmatpush1.bf16.msra.mxu0 0
      %1381 = vmatprep.subr.bf16.mxu0 0
      %1382 = vmatpush1.bf16.msra.mxu0 0
      %1383 = vmatprep.subr.bf16.mxu0 0
      %1384 = vmatpush1.bf16.msra.mxu0 0
      %1385 = vmatprep.subr.bf16.mxu0 0
      %1386 = vmatpush1.bf16.msra.mxu0 0
      %1387 = vmatprep.subr.bf16.mxu0 0
      %1388 = vmatpush1.bf16.msra.mxu0 0
      %1389 = vmatprep.subr.bf16.mxu0 0
      %1390 = vmatpush1.bf16.msra.mxu0 0
      %1391 = vmatprep.mubr.bf16.mxu0 0
      %1392 = vmatmul.mubr.bf16.gmra.mrb[0].mxu0 %v1357
      %v1393 = vpop.f32.mrb[0].mxu0
      %v1394 = vadd.f32 %v1340, %v1393
      %v1395 = vpop.f32.mrb[0].mxu0
      %v1396 = vpop.f32.mrb[0].mxu0
      %v1397 = vpop.f32.mrb[0].mxu0
      %1398 = vdwg.mxu0
      %s1399 = scalar_lea.vmem %s7, 32
      %v1400 = vld [vmem:[%s1399] sm:$0xf]
      %v1401 = vld [vmem:[%s1399 + $0x4] sm:$0xf]
      %v1402 = vld [vmem:[%s1399 + $0x8] sm:$0xf]
      %v1403 = vld [vmem:[%s1399 + $0xc] sm:$0xf]
      %v1405 = vrot.slane %v1273, 1
      %v1410 = vunpack.c.l.b16 %v1400
      %v1411 = vunpack.c.l.b16 %v1401
      %v1412 = vunpack.c.l.b16 %v1402
      %v1413 = vunpack.c.l.b16 %v1403
      %v1414 = vpack.c.b16 %v1411, %v1410
      %v1415 = vpack.c.b16 %v1413, %v1412
      %v1419 = vsel %vm441, %v1405, 0
      %1421 = vmatprep.subr.bf16.mxu0 0
      %1422 = vmatpush1.bf16.msra.mxu0 %v1414
      %1423 = vmatprep.subr.bf16.mxu0 0
      %1424 = vmatpush1.bf16.msra.mxu0 %v1415
      %1425 = vmatprep.subr.bf16.mxu0 0
      %1426 = vmatpush1.bf16.msra.mxu0 0
      %1427 = vmatprep.subr.bf16.mxu0 0
      %1428 = vmatpush1.bf16.msra.mxu0 0
      %1429 = vmatprep.subr.bf16.mxu0 0
      %1430 = vmatpush1.bf16.msra.mxu0 0
      %1431 = vmatprep.subr.bf16.mxu0 0
      %1432 = vmatpush1.bf16.msra.mxu0 0
      %1433 = vmatprep.subr.bf16.mxu0 0
      %1434 = vmatpush1.bf16.msra.mxu0 0
      %1435 = vmatprep.subr.bf16.mxu0 0
      %1436 = vmatpush1.bf16.msra.mxu0 0
      %1437 = vmatprep.subr.bf16.mxu0 0
      %1438 = vmatpush1.bf16.msra.mxu0 0
      %1439 = vmatprep.subr.bf16.mxu0 0
      %1440 = vmatpush1.bf16.msra.mxu0 0
      %1441 = vmatprep.subr.bf16.mxu0 0
      %1442 = vmatpush1.bf16.msra.mxu0 0
      %1443 = vmatprep.subr.bf16.mxu0 0
      %1444 = vmatpush1.bf16.msra.mxu0 0
      %1445 = vmatprep.subr.bf16.mxu0 0
      %1446 = vmatpush1.bf16.msra.mxu0 0
      %1447 = vmatprep.subr.bf16.mxu0 0
      %1448 = vmatpush1.bf16.msra.mxu0 0
      %1449 = vmatprep.subr.bf16.mxu0 0
      %1450 = vmatpush1.bf16.msra.mxu0 0
      %1451 = vmatprep.subr.bf16.mxu0 0
      %1452 = vmatpush1.bf16.msra.mxu0 0
      %1453 = vmatprep.mubr.bf16.mxu0 0
      %1454 = vmatmul.mubr.bf16.gmra.mrb[0].mxu0 %v1419
      %v1455 = vpop.f32.mrb[0].mxu0
      %v1456 = vadd.f32 0.0, %v1455
      %v1457 = vpop.f32.mrb[0].mxu0
      %v1458 = vpop.f32.mrb[0].mxu0
      %v1459 = vpop.f32.mrb[0].mxu0
      %1460 = vdwg.mxu0
      %v1461 = vadd.f32 %v1394, %v1456
      %v1462 = vld [vmem:[%s8] sm:$0x1]
      %v1464 = vlaneseq
      %v1465 = vshrl.u32 %v1464, 7
      %v1466 = vsub.s32 0, %v1465
      %v1467 = vrot.slane %v1462, %v1466
      %v1469 = vadd.f32 %v1461, %v1467
      %1470 = vst.msk [vmem:[#allocation5 + $0x3] sm:$0xff] %vm441, %v1469
      %v1471 = vld [vmem:[#allocation5] sm:$0xff]
      %v1472 = vld [vmem:[#allocation5 + $0x8] sm:$0x3f]
      %v1473 = vmax.f32 %v1471, 0.0
      %v1474 = vmax.f32 %v1472, 0.0
      %v1475 = vpack.c.bf16 %v1474, %v1473
      %s1476 = scalar_lea.vmem %s3, 96
      %v1477 = vld [vmem:[%s1476] sm:$0xf]
      %v1478 = vld [vmem:[%s1476 + $0x4] sm:$0xf]
      %v1479 = vld [vmem:[%s1476 + $0x8] sm:$0xf]
      %v1480 = vld [vmem:[%s1476 + $0xc] sm:$0xf]
      %s1481 = scalar_lea.vmem %s3, 112
      %v1482 = vld [vmem:[%s1481] sm:$0xf]
      %v1483 = vld [vmem:[%s1481 + $0x4] sm:$0xf]
      %v1484 = vld [vmem:[%s1481 + $0x8] sm:$0xf]
      %v1485 = vld [vmem:[%s1481 + $0xc] sm:$0xf]
      %v1487 = vshrl.u32 %v1475, 16
      %v1489 = vrot.slane %v1487, 1
      %v1490 = vshll.u32 %v1475, 16
      %v1492 = vrot.slane %v1490, 2
      %v1493 = vor.u32 %v1489, %v1492
      %v1498 = vunpack.c.l.b16 %v1482
      %v1499 = vunpack.c.l.b16 %v1483
      %v1500 = vunpack.c.l.b16 %v1484
      %v1501 = vunpack.c.l.b16 %v1485
      %v1502 = vpack.c.b16 %v1499, %v1498
      %v1503 = vpack.c.b16 %v1501, %v1500
      %v1507 = vsel %vm441, %v1493, 0
      %1509 = vmatprep.subr.bf16.mxu0 0
      %1510 = vmatpush1.bf16.msra.mxu0 %v1502
      %1511 = vmatprep.subr.bf16.mxu0 0
      %1512 = vmatpush1.bf16.msra.mxu0 %v1503
      %1513 = vmatprep.subr.bf16.mxu0 0
      %1514 = vmatpush1.bf16.msra.mxu0 0
      %1515 = vmatprep.subr.bf16.mxu0 0
      %1516 = vmatpush1.bf16.msra.mxu0 0
      %1517 = vmatprep.subr.bf16.mxu0 0
      %1518 = vmatpush1.bf16.msra.mxu0 0
      %1519 = vmatprep.subr.bf16.mxu0 0
      %1520 = vmatpush1.bf16.msra.mxu0 0
      %1521 = vmatprep.subr.bf16.mxu0 0
      %1522 = vmatpush1.bf16.msra.mxu0 0
      %1523 = vmatprep.subr.bf16.mxu0 0
      %1524 = vmatpush1.bf16.msra.mxu0 0
      %1525 = vmatprep.subr.bf16.mxu0 0
      %1526 = vmatpush1.bf16.msra.mxu0 0
      %1527 = vmatprep.subr.bf16.mxu0 0
      %1528 = vmatpush1.bf16.msra.mxu0 0
      %1529 = vmatprep.subr.bf16.mxu0 0
      %1530 = vmatpush1.bf16.msra.mxu0 0
      %1531 = vmatprep.subr.bf16.mxu0 0
      %1532 = vmatpush1.bf16.msra.mxu0 0
      %1533 = vmatprep.subr.bf16.mxu0 0
      %1534 = vmatpush1.bf16.msra.mxu0 0
      %1535 = vmatprep.subr.bf16.mxu0 0
      %1536 = vmatpush1.bf16.msra.mxu0 0
      %1537 = vmatprep.subr.bf16.mxu0 0
      %1538 = vmatpush1.bf16.msra.mxu0 0
      %1539 = vmatprep.subr.bf16.mxu0 0
      %1540 = vmatpush1.bf16.msra.mxu0 0
      %1541 = vmatprep.mubr.bf16.mxu0 0
      %1542 = vmatmul.mubr.bf16.gmra.mrb[0].mxu0 %v1507
      %v1543 = vpop.f32.mrb[0].mxu0
      %v1544 = vadd.f32 0.0, %v1543
      %v1545 = vpop.f32.mrb[0].mxu0
      %v1546 = vpop.f32.mrb[0].mxu0
      %v1547 = vpop.f32.mrb[0].mxu0
      %1548 = vdwg.mxu0
      %v1553 = vunpack.c.l.b16 %v1477
      %v1554 = vunpack.c.l.b16 %v1478
      %v1555 = vunpack.c.l.b16 %v1479
      %v1556 = vunpack.c.l.b16 %v1480
      %v1557 = vpack.c.b16 %v1554, %v1553
      %v1558 = vpack.c.b16 %v1556, %v1555
      %v1561 = vsel %vm441, %v1475, 0
      %1563 = vmatprep.subr.bf16.mxu0 0
      %1564 = vmatpush1.bf16.msra.mxu0 %v1557
      %1565 = vmatprep.subr.bf16.mxu0 0
      %1566 = vmatpush1.bf16.msra.mxu0 %v1558
      %1567 = vmatprep.subr.bf16.mxu0 0
      %1568 = vmatpush1.bf16.msra.mxu0 0
      %1569 = vmatprep.subr.bf16.mxu0 0
      %1570 = vmatpush1.bf16.msra.mxu0 0
      %1571 = vmatprep.subr.bf16.mxu0 0
      %1572 = vmatpush1.bf16.msra.mxu0 0
      %1573 = vmatprep.subr.bf16.mxu0 0
      %1574 = vmatpush1.bf16.msra.mxu0 0
      %1575 = vmatprep.subr.bf16.mxu0 0
      %1576 = vmatpush1.bf16.msra.mxu0 0
      %1577 = vmatprep.subr.bf16.mxu0 0
      %1578 = vmatpush1.bf16.msra.mxu0 0
      %1579 = vmatprep.subr.bf16.mxu0 0
      %1580 = vmatpush1.bf16.msra.mxu0 0
      %1581 = vmatprep.subr.bf16.mxu0 0
      %1582 = vmatpush1.bf16.msra.mxu0 0
      %1583 = vmatprep.subr.bf16.mxu0 0
      %1584 = vmatpush1.bf16.msra.mxu0 0
      %1585 = vmatprep.subr.bf16.mxu0 0
      %1586 = vmatpush1.bf16.msra.mxu0 0
      %1587 = vmatprep.subr.bf16.mxu0 0
      %1588 = vmatpush1.bf16.msra.mxu0 0
      %1589 = vmatprep.subr.bf16.mxu0 0
      %1590 = vmatpush1.bf16.msra.mxu0 0
      %1591 = vmatprep.subr.bf16.mxu0 0
      %1592 = vmatpush1.bf16.msra.mxu0 0
      %1593 = vmatprep.subr.bf16.mxu0 0
      %1594 = vmatpush1.bf16.msra.mxu0 0
      %1595 = vmatprep.mubr.bf16.mxu0 0
      %1596 = vmatmul.mubr.bf16.gmra.mrb[0].mxu0 %v1561
      %v1597 = vpop.f32.mrb[0].mxu0
      %v1598 = vadd.f32 %v1544, %v1597
      %v1599 = vpop.f32.mrb[0].mxu0
      %v1600 = vpop.f32.mrb[0].mxu0
      %v1601 = vpop.f32.mrb[0].mxu0
      %1602 = vdwg.mxu0
      %s1603 = scalar_lea.vmem %s3, 128
      %v1604 = vld [vmem:[%s1603] sm:$0xf]
      %v1605 = vld [vmem:[%s1603 + $0x4] sm:$0xf]
      %v1606 = vld [vmem:[%s1603 + $0x8] sm:$0xf]
      %v1607 = vld [vmem:[%s1603 + $0xc] sm:$0xf]
      %v1609 = vrot.slane %v1475, 3
      %v1614 = vunpack.c.l.b16 %v1604
      %v1615 = vunpack.c.l.b16 %v1605
      %v1616 = vunpack.c.l.b16 %v1606
      %v1617 = vunpack.c.l.b16 %v1607
      %v1618 = vpack.c.b16 %v1615, %v1614
      %v1619 = vpack.c.b16 %v1617, %v1616
      %v1623 = vsel %vm441, %v1609, 0
      %1625 = vmatprep.subr.bf16.mxu0 0
      %1626 = vmatpush1.bf16.msra.mxu0 %v1618
      %1627 = vmatprep.subr.bf16.mxu0 0
      %1628 = vmatpush1.bf16.msra.mxu0 %v1619
      %1629 = vmatprep.subr.bf16.mxu0 0
      %1630 = vmatpush1.bf16.msra.mxu0 0
      %1631 = vmatprep.subr.bf16.mxu0 0
      %1632 = vmatpush1.bf16.msra.mxu0 0
      %1633 = vmatprep.subr.bf16.mxu0 0
      %1634 = vmatpush1.bf16.msra.mxu0 0
      %1635 = vmatprep.subr.bf16.mxu0 0
      %1636 = vmatpush1.bf16.msra.mxu0 0
      %1637 = vmatprep.subr.bf16.mxu0 0
      %1638 = vmatpush1.bf16.msra.mxu0 0
      %1639 = vmatprep.subr.bf16.mxu0 0
      %1640 = vmatpush1.bf16.msra.mxu0 0
      %1641 = vmatprep.subr.bf16.mxu0 0
      %1642 = vmatpush1.bf16.msra.mxu0 0
      %1643 = vmatprep.subr.bf16.mxu0 0
      %1644 = vmatpush1.bf16.msra.mxu0 0
      %1645 = vmatprep.subr.bf16.mxu0 0
      %1646 = vmatpush1.bf16.msra.mxu0 0
      %1647 = vmatprep.subr.bf16.mxu0 0
      %1648 = vmatpush1.bf16.msra.mxu0 0
      %1649 = vmatprep.subr.bf16.mxu0 0
      %1650 = vmatpush1.bf16.msra.mxu0 0
      %1651 = vmatprep.subr.bf16.mxu0 0
      %1652 = vmatpush1.bf16.msra.mxu0 0
      %1653 = vmatprep.subr.bf16.mxu0 0
      %1654 = vmatpush1.bf16.msra.mxu0 0
      %1655 = vmatprep.subr.bf16.mxu0 0
      %1656 = vmatpush1.bf16.msra.mxu0 0
      %1657 = vmatprep.mubr.bf16.mxu0 0
      %1658 = vmatmul.mubr.bf16.gmra.mrb[0].mxu0 %v1623
      %v1659 = vpop.f32.mrb[0].mxu0
      %v1660 = vadd.f32 0.0, %v1659
      %v1661 = vpop.f32.mrb[0].mxu0
      %v1662 = vpop.f32.mrb[0].mxu0
      %v1663 = vpop.f32.mrb[0].mxu0
      %1664 = vdwg.mxu0
      %v1665 = vadd.f32 %v1598, %v1660
      %s1666 = scalar_lea.vmem %s4, 2
      %v1667 = vld [vmem:[%s1666] sm:$0x1]
      %v1669 = vlaneseq
      %v1670 = vshrl.u32 %v1669, 7
      %v1671 = vsub.s32 0, %v1670
      %v1672 = vrot.slane %v1667, %v1671
      %v1674 = vadd.f32 %v1665, %v1672
      %v1675 = vmax.f32 %v1674, 0.0
      %v1676 = vpack.c.bf16 %v1675, %v1675
      %s1677 = scalar_lea.vmem %s5, 32
      %v1678 = vld [vmem:[%s1677] sm:$0xf]
      %v1679 = vld [vmem:[%s1677 + $0x4] sm:$0xf]
      %v1680 = vld [vmem:[%s1677 + $0x8] sm:$0xf]
      %v1681 = vld [vmem:[%s1677 + $0xc] sm:$0xf]
      %s1682 = scalar_lea.vmem %s6, 2
      %v1683 = vld [vmem:[%s1682] sm:$0x1]
      %v1685 = vlaneseq
      %v1686 = vshrl.u32 %v1685, 7
      %v1687 = vsub.s32 0, %v1686
      %v1688 = vrot.slane %v1683, %v1687
      %v1694 = vunpack.c.l.b16 %v1678
      %v1695 = vunpack.c.l.b16 %v1679
      %v1696 = vunpack.c.l.b16 %v1680
      %v1697 = vunpack.c.l.b16 %v1681
      %v1698 = vpack.c.b16 %v1695, %v1694
      %v1699 = vpack.c.b16 %v1697, %v1696
      %v1703 = vsel %vm441, %v1676, 0
      %1705 = vmatprep.subr.bf16.mxu0 0
      %1706 = vmatpush1.bf16.msra.mxu0 %v1698
      %1707 = vmatprep.subr.bf16.mxu0 0
      %1708 = vmatpush1.bf16.msra.mxu0 %v1699
      %1709 = vmatprep.subr.bf16.mxu0 0
      %1710 = vmatpush1.bf16.msra.mxu0 0
      %1711 = vmatprep.subr.bf16.mxu0 0
      %1712 = vmatpush1.bf16.msra.mxu0 0
      %1713 = vmatprep.subr.bf16.mxu0 0
      %1714 = vmatpush1.bf16.msra.mxu0 0
      %1715 = vmatprep.subr.bf16.mxu0 0
      %1716 = vmatpush1.bf16.msra.mxu0 0
      %1717 = vmatprep.subr.bf16.mxu0 0
      %1718 = vmatpush1.bf16.msra.mxu0 0
      %1719 = vmatprep.subr.bf16.mxu0 0
      %1720 = vmatpush1.bf16.msra.mxu0 0
      %1721 = vmatprep.subr.bf16.mxu0 0
      %1722 = vmatpush1.bf16.msra.mxu0 0
      %1723 = vmatprep.subr.bf16.mxu0 0
      %1724 = vmatpush1.bf16.msra.mxu0 0
      %1725 = vmatprep.subr.bf16.mxu0 0
      %1726 = vmatpush1.bf16.msra.mxu0 0
      %1727 = vmatprep.subr.bf16.mxu0 0
      %1728 = vmatpush1.bf16.msra.mxu0 0
      %1729 = vmatprep.subr.bf16.mxu0 0
      %1730 = vmatpush1.bf16.msra.mxu0 0
      %1731 = vmatprep.subr.bf16.mxu0 0
      %1732 = vmatpush1.bf16.msra.mxu0 0
      %1733 = vmatprep.subr.bf16.mxu0 0
      %1734 = vmatpush1.bf16.msra.mxu0 0
      %1735 = vmatprep.subr.bf16.mxu0 0
      %1736 = vmatpush1.bf16.msra.mxu0 0
      %1737 = vmatprep.mubr.bf16.mxu0 0
      %1738 = vmatmul.mubr.bf16.gmra.mrb[0].mxu0 %v1703
      %v1739 = vpop.f32.mrb[0].mxu0
      %v1740 = vadd.f32 %v1688, %v1739
      %v1741 = vpop.f32.mrb[0].mxu0
      %v1742 = vpop.f32.mrb[0].mxu0
      %v1743 = vpop.f32.mrb[0].mxu0
      %1744 = vdwg.mxu0
      %v1745 = vld [vmem:[#allocation5 + $0x3] sm:$0xff]
      %v1746 = vadd.f32 %v1745, %v1740
      %1747 = vst.msk [vmem:[#allocation5 + $0x3] sm:$0xff] %vm441, %v1746
      %v1748 = vld [vmem:[#allocation5] sm:$0xff]
      %v1749 = vld [vmem:[#allocation5 + $0x8] sm:$0x3f]
      %v1750 = vmax.f32 %v1748, 0.0
      %v1751 = vmax.f32 %v1749, 0.0
      %v1752 = vpack.c.bf16 %v1751, %v1750
      %s1753 = scalar_lea.vmem %s3, 144
      %v1754 = vld [vmem:[%s1753] sm:$0xf]
      %v1755 = vld [vmem:[%s1753 + $0x4] sm:$0xf]
      %v1756 = vld [vmem:[%s1753 + $0x8] sm:$0xf]
      %v1757 = vld [vmem:[%s1753 + $0xc] sm:$0xf]
      %s1758 = scalar_lea.vmem %s3, 160
      %v1759 = vld [vmem:[%s1758] sm:$0xf]
      %v1760 = vld [vmem:[%s1758 + $0x4] sm:$0xf]
      %v1761 = vld [vmem:[%s1758 + $0x8] sm:$0xf]
      %v1762 = vld [vmem:[%s1758 + $0xc] sm:$0xf]
      %v1764 = vshrl.u32 %v1752, 16
      %v1766 = vrot.slane %v1764, 1
      %v1767 = vshll.u32 %v1752, 16
      %v1769 = vrot.slane %v1767, 2
      %v1770 = vor.u32 %v1766, %v1769
      %v1775 = vunpack.c.l.b16 %v1759
      %v1776 = vunpack.c.l.b16 %v1760
      %v1777 = vunpack.c.l.b16 %v1761
      %v1778 = vunpack.c.l.b16 %v1762
      %v1779 = vpack.c.b16 %v1776, %v1775
      %v1780 = vpack.c.b16 %v1778, %v1777
      %v1784 = vsel %vm441, %v1770, 0
      %1786 = vmatprep.subr.bf16.mxu0 0
      %1787 = vmatpush1.bf16.msra.mxu0 %v1779
      %1788 = vmatprep.subr.bf16.mxu0 0
      %1789 = vmatpush1.bf16.msra.mxu0 %v1780
      %1790 = vmatprep.subr.bf16.mxu0 0
      %1791 = vmatpush1.bf16.msra.mxu0 0
      %1792 = vmatprep.subr.bf16.mxu0 0
      %1793 = vmatpush1.bf16.msra.mxu0 0
      %1794 = vmatprep.subr.bf16.mxu0 0
      %1795 = vmatpush1.bf16.msra.mxu0 0
      %1796 = vmatprep.subr.bf16.mxu0 0
      %1797 = vmatpush1.bf16.msra.mxu0 0
      %1798 = vmatprep.subr.bf16.mxu0 0
      %1799 = vmatpush1.bf16.msra.mxu0 0
      %1800 = vmatprep.subr.bf16.mxu0 0
      %1801 = vmatpush1.bf16.msra.mxu0 0
      %1802 = vmatprep.subr.bf16.mxu0 0
      %1803 = vmatpush1.bf16.msra.mxu0 0
      %1804 = vmatprep.subr.bf16.mxu0 0
      %1805 = vmatpush1.bf16.msra.mxu0 0
      %1806 = vmatprep.subr.bf16.mxu0 0
      %1807 = vmatpush1.bf16.msra.mxu0 0
      %1808 = vmatprep.subr.bf16.mxu0 0
      %1809 = vmatpush1.bf16.msra.mxu0 0
      %1810 = vmatprep.subr.bf16.mxu0 0
      %1811 = vmatpush1.bf16.msra.mxu0 0
      %1812 = vmatprep.subr.bf16.mxu0 0
      %1813 = vmatpush1.bf16.msra.mxu0 0
      %1814 = vmatprep.subr.bf16.mxu0 0
      %1815 = vmatpush1.bf16.msra.mxu0 0
      %1816 = vmatprep.subr.bf16.mxu0 0
      %1817 = vmatpush1.bf16.msra.mxu0 0
      %1818 = vmatprep.mubr.bf16.mxu0 0
      %1819 = vmatmul.mubr.bf16.gmra.mrb[0].mxu0 %v1784
      %v1820 = vpop.f32.mrb[0].mxu0
      %v1821 = vadd.f32 0.0, %v1820
      %v1822 = vpop.f32.mrb[0].mxu0
      %v1823 = vpop.f32.mrb[0].mxu0
      %v1824 = vpop.f32.mrb[0].mxu0
      %1825 = vdwg.mxu0
      %v1827 = vrot.slane %v1752, 1
      %v1832 = vunpack.c.l.b16 %v1754
      %v1833 = vunpack.c.l.b16 %v1755
      %v1834 = vunpack.c.l.b16 %v1756
      %v1835 = vunpack.c.l.b16 %v1757
      %v1836 = vpack.c.b16 %v1833, %v1832
      %v1837 = vpack.c.b16 %v1835, %v1834
      %v1841 = vsel %vm441, %v1827, 0
      %1843 = vmatprep.subr.bf16.mxu0 0
      %1844 = vmatpush1.bf16.msra.mxu0 %v1836
      %1845 = vmatprep.subr.bf16.mxu0 0
      %1846 = vmatpush1.bf16.msra.mxu0 %v1837
      %1847 = vmatprep.subr.bf16.mxu0 0
      %1848 = vmatpush1.bf16.msra.mxu0 0
      %1849 = vmatprep.subr.bf16.mxu0 0
      %1850 = vmatpush1.bf16.msra.mxu0 0
      %1851 = vmatprep.subr.bf16.mxu0 0
      %1852 = vmatpush1.bf16.msra.mxu0 0
      %1853 = vmatprep.subr.bf16.mxu0 0
      %1854 = vmatpush1.bf16.msra.mxu0 0
      %1855 = vmatprep.subr.bf16.mxu0 0
      %1856 = vmatpush1.bf16.msra.mxu0 0
      %1857 = vmatprep.subr.bf16.mxu0 0
      %1858 = vmatpush1.bf16.msra.mxu0 0
      %1859 = vmatprep.subr.bf16.mxu0 0
      %1860 = vmatpush1.bf16.msra.mxu0 0
      %1861 = vmatprep.subr.bf16.mxu0 0
      %1862 = vmatpush1.bf16.msra.mxu0 0
      %1863 = vmatprep.subr.bf16.mxu0 0
      %1864 = vmatpush1.bf16.msra.mxu0 0
      %1865 = vmatprep.subr.bf16.mxu0 0
      %1866 = vmatpush1.bf16.msra.mxu0 0
      %1867 = vmatprep.subr.bf16.mxu0 0
      %1868 = vmatpush1.bf16.msra.mxu0 0
      %1869 = vmatprep.subr.bf16.mxu0 0
      %1870 = vmatpush1.bf16.msra.mxu0 0
      %1871 = vmatprep.subr.bf16.mxu0 0
      %1872 = vmatpush1.bf16.msra.mxu0 0
      %1873 = vmatprep.subr.bf16.mxu0 0
      %1874 = vmatpush1.bf16.msra.mxu0 0
      %1875 = vmatprep.mubr.bf16.mxu0 0
      %1876 = vmatmul.mubr.bf16.gmra.mrb[0].mxu0 %v1841
      %v1877 = vpop.f32.mrb[0].mxu0
      %v1878 = vadd.f32 %v1821, %v1877
      %v1879 = vpop.f32.mrb[0].mxu0
      %v1880 = vpop.f32.mrb[0].mxu0
      %v1881 = vpop.f32.mrb[0].mxu0
      %1882 = vdwg.mxu0
      %s1883 = scalar_lea.vmem %s3, 176
      %v1884 = vld [vmem:[%s1883] sm:$0xf]
      %v1885 = vld [vmem:[%s1883 + $0x4] sm:$0xf]
      %v1886 = vld [vmem:[%s1883 + $0x8] sm:$0xf]
      %v1887 = vld [vmem:[%s1883 + $0xc] sm:$0xf]
      %v1888 = vrot.slane %v1752, 2
      %v1893 = vunpack.c.l.b16 %v1884
      %v1894 = vunpack.c.l.b16 %v1885
      %v1895 = vunpack.c.l.b16 %v1886
      %v1896 = vunpack.c.l.b16 %v1887
      %v1897 = vpack.c.b16 %v1894, %v1893
      %v1898 = vpack.c.b16 %v1896, %v1895
      %v1902 = vsel %vm441, %v1888, 0
      %1904 = vmatprep.subr.bf16.mxu0 0
      %1905 = vmatpush1.bf16.msra.mxu0 %v1897
      %1906 = vmatprep.subr.bf16.mxu0 0
      %1907 = vmatpush1.bf16.msra.mxu0 %v1898
      %1908 = vmatprep.subr.bf16.mxu0 0
      %1909 = vmatpush1.bf16.msra.mxu0 0
      %1910 = vmatprep.subr.bf16.mxu0 0
      %1911 = vmatpush1.bf16.msra.mxu0 0
      %1912 = vmatprep.subr.bf16.mxu0 0
      %1913 = vmatpush1.bf16.msra.mxu0 0
      %1914 = vmatprep.subr.bf16.mxu0 0
      %1915 = vmatpush1.bf16.msra.mxu0 0
      %1916 = vmatprep.subr.bf16.mxu0 0
      %1917 = vmatpush1.bf16.msra.mxu0 0
      %1918 = vmatprep.subr.bf16.mxu0 0
      %1919 = vmatpush1.bf16.msra.mxu0 0
      %1920 = vmatprep.subr.bf16.mxu0 0
      %1921 = vmatpush1.bf16.msra.mxu0 0
      %1922 = vmatprep.subr.bf16.mxu0 0
      %1923 = vmatpush1.bf16.msra.mxu0 0
      %1924 = vmatprep.subr.bf16.mxu0 0
      %1925 = vmatpush1.bf16.msra.mxu0 0
      %1926 = vmatprep.subr.bf16.mxu0 0
      %1927 = vmatpush1.bf16.msra.mxu0 0
      %1928 = vmatprep.subr.bf16.mxu0 0
      %1929 = vmatpush1.bf16.msra.mxu0 0
      %1930 = vmatprep.subr.bf16.mxu0 0
      %1931 = vmatpush1.bf16.msra.mxu0 0
      %1932 = vmatprep.subr.bf16.mxu0 0
      %1933 = vmatpush1.bf16.msra.mxu0 0
      %1934 = vmatprep.subr.bf16.mxu0 0
      %1935 = vmatpush1.bf16.msra.mxu0 0
      %1936 = vmatprep.mubr.bf16.mxu0 0
      %1937 = vmatmul.mubr.bf16.gmra.mrb[0].mxu0 %v1902
      %v1938 = vpop.f32.mrb[0].mxu0
      %v1939 = vadd.f32 0.0, %v1938
      %v1940 = vpop.f32.mrb[0].mxu0
      %v1941 = vpop.f32.mrb[0].mxu0
      %v1942 = vpop.f32.mrb[0].mxu0
      %1943 = vdwg.mxu0
      %v1944 = vadd.f32 %v1878, %v1939
      %s1945 = scalar_lea.vmem %s4, 3
      %v1946 = vld [vmem:[%s1945] sm:$0x1]
      %v1948 = vlaneseq
      %v1949 = vshrl.u32 %v1948, 7
      %v1950 = vsub.s32 0, %v1949
      %v1951 = vrot.slane %v1946, %v1950
      %v1953 = vadd.f32 %v1944, %v1951
      %v1954 = vmax.f32 %v1953, 0.0
      %v1955 = vpack.c.bf16 %v1954, %v1954
      %s1956 = scalar_lea.vmem %s5, 48
      %v1957 = vld [vmem:[%s1956] sm:$0xf]
      %v1958 = vld [vmem:[%s1956 + $0x4] sm:$0xf]
      %v1959 = vld [vmem:[%s1956 + $0x8] sm:$0xf]
      %v1960 = vld [vmem:[%s1956 + $0xc] sm:$0xf]
      %s1961 = scalar_lea.vmem %s6, 3
      %v1962 = vld [vmem:[%s1961] sm:$0x1]
      %v1964 = vlaneseq
      %v1965 = vshrl.u32 %v1964, 7
      %v1966 = vsub.s32 0, %v1965
      %v1967 = vrot.slane %v1962, %v1966
      %v1973 = vunpack.c.l.b16 %v1957
      %v1974 = vunpack.c.l.b16 %v1958
      %v1975 = vunpack.c.l.b16 %v1959
      %v1976 = vunpack.c.l.b16 %v1960
      %v1977 = vpack.c.b16 %v1974, %v1973
      %v1978 = vpack.c.b16 %v1976, %v1975
      %v1982 = vsel %vm441, %v1955, 0
      %1984 = vmatprep.subr.bf16.mxu0 0
      %1985 = vmatpush1.bf16.msra.mxu0 %v1977
      %1986 = vmatprep.subr.bf16.mxu0 0
      %1987 = vmatpush1.bf16.msra.mxu0 %v1978
      %1988 = vmatprep.subr.bf16.mxu0 0
      %1989 = vmatpush1.bf16.msra.mxu0 0
      %1990 = vmatprep.subr.bf16.mxu0 0
      %1991 = vmatpush1.bf16.msra.mxu0 0
      %1992 = vmatprep.subr.bf16.mxu0 0
      %1993 = vmatpush1.bf16.msra.mxu0 0
      %1994 = vmatprep.subr.bf16.mxu0 0
      %1995 = vmatpush1.bf16.msra.mxu0 0
      %1996 = vmatprep.subr.bf16.mxu0 0
      %1997 = vmatpush1.bf16.msra.mxu0 0
      %1998 = vmatprep.subr.bf16.mxu0 0
      %1999 = vmatpush1.bf16.msra.mxu0 0
      %2000 = vmatprep.subr.bf16.mxu0 0
      %2001 = vmatpush1.bf16.msra.mxu0 0
      %2002 = vmatprep.subr.bf16.mxu0 0
      %2003 = vmatpush1.bf16.msra.mxu0 0
      %2004 = vmatprep.subr.bf16.mxu0 0
      %2005 = vmatpush1.bf16.msra.mxu0 0
      %2006 = vmatprep.subr.bf16.mxu0 0
      %2007 = vmatpush1.bf16.msra.mxu0 0
      %2008 = vmatprep.subr.bf16.mxu0 0
      %2009 = vmatpush1.bf16.msra.mxu0 0
      %2010 = vmatprep.subr.bf16.mxu0 0
      %2011 = vmatpush1.bf16.msra.mxu0 0
      %2012 = vmatprep.subr.bf16.mxu0 0
      %2013 = vmatpush1.bf16.msra.mxu0 0
      %2014 = vmatprep.subr.bf16.mxu0 0
      %2015 = vmatpush1.bf16.msra.mxu0 0
      %2016 = vmatprep.mubr.bf16.mxu0 0
      %2017 = vmatmul.mubr.bf16.gmra.mrb[0].mxu0 %v1982
      %v2018 = vpop.f32.mrb[0].mxu0
      %v2019 = vadd.f32 %v1967, %v2018
      %v2020 = vpop.f32.mrb[0].mxu0
      %v2021 = vpop.f32.mrb[0].mxu0
      %v2022 = vpop.f32.mrb[0].mxu0
      %2023 = vdwg.mxu0
      %v2024 = vld [vmem:[#allocation5 + $0x3] sm:$0xff]
      %v2025 = vadd.f32 %v2024, %v2019
      %2026 = vst.msk [vmem:[#allocation5 + $0x3] sm:$0xff] %vm441, %v2025
      %v2027 = vadd.s32 %v1206, 8
      %vm2028 = vcmp.eq.s32.totalorder %v2027, %v1209
      %vm2029 = vcmp.eq.s32.totalorder %v2027, %v1211
      %vm2030 = vmor %vm2028, %vm2029
      %v2031 = vsel %vm2030, 1, 0
      %v2032 = vcvt.s32.f32 %v2031
      %v2033 = vpack.c.bf16 %v2032, %v1215
      %2034 = vst.msk [vmem:[#allocation3] sm:$0xff] %vm441, 0.0
      %2035 = vst.msk [vmem:[#allocation3 + $0x8] sm:$0xff] %vm441, 0.0
      %2036 = vst.msk [vmem:[#allocation3 + $0x10] sm:$0x3] %vm443, 0.0
      %v2037 = vld [vmem:[#allocation5 + $0x3] sm:$0xff]
      %v2038 = vpack.c.bf16 %v2037, %v2037
      %vm2039 = vcmask 64512
      %v2041 = vsel %vm2039, %v2033, 0
      %vm2043 = vcmask 1043456
      %v2045 = vsel %vm2043, %v2038, 0
      %2047 = vmatprep.subr.bf16.mxu0 0
      %2048 = vmatpush1.bf16.msra.mxu0 %v2045
      %2049 = vmatprep.subr.bf16.mxu0 0
      %2050 = vmatpush1.bf16.msra.mxu0 0
      %2051 = vmatprep.subr.bf16.mxu0 0
      %2052 = vmatpush1.bf16.msra.mxu0 0
      %2053 = vmatprep.subr.bf16.mxu0 0
      %2054 = vmatpush1.bf16.msra.mxu0 0
      %2055 = vmatprep.subr.bf16.mxu0 0
      %2056 = vmatpush1.bf16.msra.mxu0 0
      %2057 = vmatprep.subr.bf16.mxu0 0
      %2058 = vmatpush1.bf16.msra.mxu0 0
      %2059 = vmatprep.subr.bf16.mxu0 0
      %2060 = vmatpush1.bf16.msra.mxu0 0
      %2061 = vmatprep.subr.bf16.mxu0 0
      %2062 = vmatpush1.bf16.msra.mxu0 0
      %2063 = vmatprep.subr.bf16.mxu0 0
      %2064 = vmatpush1.bf16.msra.mxu0 0
      %2065 = vmatprep.subr.bf16.mxu0 0
      %2066 = vmatpush1.bf16.msra.mxu0 0
      %2067 = vmatprep.subr.bf16.mxu0 0
      %2068 = vmatpush1.bf16.msra.mxu0 0
      %2069 = vmatprep.subr.bf16.mxu0 0
      %2070 = vmatpush1.bf16.msra.mxu0 0
      %2071 = vmatprep.subr.bf16.mxu0 0
      %2072 = vmatpush1.bf16.msra.mxu0 0
      %2073 = vmatprep.subr.bf16.mxu0 0
      %2074 = vmatpush1.bf16.msra.mxu0 0
      %2075 = vmatprep.subr.bf16.mxu0 0
      %2076 = vmatpush1.bf16.msra.mxu0 0
      %2077 = vmatprep.subr.bf16.mxu0 0
      %2078 = vmatpush1.bf16.msra.mxu0 0
      %2079 = vmatprep.mubr.bf16.mxu0 0
      %2080 = vmatmul.mubr.bf16.gmra.mrb[0].mxu0 %v2041
      %v2081 = vpop.f32.mrb[0].mxu0
      %v2082 = vadd.f32 0.0, %v2081
      %v2083 = vpop.f32.mrb[0].mxu0
      %v2084 = vpop.f32.mrb[0].mxu0
      %v2085 = vadd.f32 0.0, %v2084
      %v2086 = vpop.f32.mrb[0].mxu0
      %2087 = vdwg.mxu0
      %2088 = vst.msk [vmem:[#allocation3 + $0x1] sm:$0xff] %vm441, %v2082
      %2089 = vst.msk [vmem:[#allocation3 + $0x9] sm:$0xff] %vm441, %v2085
      %v2090 = vld [vmem:[#allocation3] sm:$0xff]
      %v2091 = vld [vmem:[#allocation3 + $0x8] sm:$0xff]
      %v2092 = vld [vmem:[#allocation3 + $0x10] sm:$0x3]
      %v2093 = vpack.c.bf16 %v2091, %v2090
      %v2094 = vpack.c.bf16 %v2092, %v2092
      %s2095 = scalar_lea.vmem %s7, 48
      %v2096 = vld [vmem:[%s2095] sm:$0xf]
      %v2097 = vld [vmem:[%s2095 + $0x4] sm:$0xf]
      %v2098 = vld [vmem:[%s2095 + $0x8] sm:$0xf]
      %v2099 = vld [vmem:[%s2095 + $0xc] sm:$0xf]
      %s2100 = scalar_lea.vmem %s7, 64
      %v2101 = vld [vmem:[%s2100] sm:$0xf]
      %v2102 = vld [vmem:[%s2100 + $0x4] sm:$0xf]
      %v2103 = vld [vmem:[%s2100 + $0x8] sm:$0xf]
      %v2104 = vld [vmem:[%s2100 + $0xc] sm:$0xf]
      %vm2105 = vsmask.f32 7424
      %v2107 = vshrl.u32 %v2093, 16
      %v2109 = vshll.u32 %v2093, 16
      %v2111 = vrot.slane %v2109, 1
      %v2112 = vor.u32 %v2107, %v2111
      %v2114 = vshll.u32 %v2094, 16
      %v2116 = vrot.slane %v2114, 1
      %v2117 = vsel %vm2105, %v2112, %v2116
      %v2122 = vunpack.c.l.b16 %v2101
      %v2123 = vunpack.c.l.b16 %v2102
      %v2124 = vunpack.c.l.b16 %v2103
      %v2125 = vunpack.c.l.b16 %v2104
      %v2126 = vpack.c.b16 %v2123, %v2122
      %v2127 = vpack.c.b16 %v2125, %v2124
      %v2131 = vsel %vm441, %v2117, 0
      %2133 = vmatprep.subr.bf16.mxu0 0
      %2134 = vmatpush1.bf16.msra.mxu0 %v2126
      %2135 = vmatprep.subr.bf16.mxu0 0
      %2136 = vmatpush1.bf16.msra.mxu0 %v2127
      %2137 = vmatprep.subr.bf16.mxu0 0
      %2138 = vmatpush1.bf16.msra.mxu0 0
      %2139 = vmatprep.subr.bf16.mxu0 0
      %2140 = vmatpush1.bf16.msra.mxu0 0
      %2141 = vmatprep.subr.bf16.mxu0 0
      %2142 = vmatpush1.bf16.msra.mxu0 0
      %2143 = vmatprep.subr.bf16.mxu0 0
      %2144 = vmatpush1.bf16.msra.mxu0 0
      %2145 = vmatprep.subr.bf16.mxu0 0
      %2146 = vmatpush1.bf16.msra.mxu0 0
      %2147 = vmatprep.subr.bf16.mxu0 0
      %2148 = vmatpush1.bf16.msra.mxu0 0
      %2149 = vmatprep.subr.bf16.mxu0 0
      %2150 = vmatpush1.bf16.msra.mxu0 0
      %2151 = vmatprep.subr.bf16.mxu0 0
      %2152 = vmatpush1.bf16.msra.mxu0 0
      %2153 = vmatprep.subr.bf16.mxu0 0
      %2154 = vmatpush1.bf16.msra.mxu0 0
      %2155 = vmatprep.subr.bf16.mxu0 0
      %2156 = vmatpush1.bf16.msra.mxu0 0
      %2157 = vmatprep.subr.bf16.mxu0 0
      %2158 = vmatpush1.bf16.msra.mxu0 0
      %2159 = vmatprep.subr.bf16.mxu0 0
      %2160 = vmatpush1.bf16.msra.mxu0 0
      %2161 = vmatprep.subr.bf16.mxu0 0
      %2162 = vmatpush1.bf16.msra.mxu0 0
      %2163 = vmatprep.subr.bf16.mxu0 0
      %2164 = vmatpush1.bf16.msra.mxu0 0
      %2165 = vmatprep.mubr.bf16.mxu0 0
      %2166 = vmatmul.mubr.bf16.gmra.mrb[0].mxu0 %v2131
      %v2167 = vpop.f32.mrb[0].mxu0
      %v2168 = vadd.f32 0.0, %v2167
      %v2169 = vpop.f32.mrb[0].mxu0
      %v2170 = vpop.f32.mrb[0].mxu0
      %v2171 = vadd.f32 0.0, %v2170
      %v2172 = vpop.f32.mrb[0].mxu0
      %2173 = vdwg.mxu0
      %v2178 = vunpack.c.l.b16 %v2096
      %v2179 = vunpack.c.l.b16 %v2097
      %v2180 = vunpack.c.l.b16 %v2098
      %v2181 = vunpack.c.l.b16 %v2099
      %v2182 = vpack.c.b16 %v2179, %v2178
      %v2183 = vpack.c.b16 %v2181, %v2180
      %v2186 = vsel %vm441, %v2093, 0
      %2188 = vmatprep.subr.bf16.mxu0 0
      %2189 = vmatpush1.bf16.msra.mxu0 %v2182
      %2190 = vmatprep.subr.bf16.mxu0 0
      %2191 = vmatpush1.bf16.msra.mxu0 %v2183
      %2192 = vmatprep.subr.bf16.mxu0 0
      %2193 = vmatpush1.bf16.msra.mxu0 0
      %2194 = vmatprep.subr.bf16.mxu0 0
      %2195 = vmatpush1.bf16.msra.mxu0 0
      %2196 = vmatprep.subr.bf16.mxu0 0
      %2197 = vmatpush1.bf16.msra.mxu0 0
      %2198 = vmatprep.subr.bf16.mxu0 0
      %2199 = vmatpush1.bf16.msra.mxu0 0
      %2200 = vmatprep.subr.bf16.mxu0 0
      %2201 = vmatpush1.bf16.msra.mxu0 0
      %2202 = vmatprep.subr.bf16.mxu0 0
      %2203 = vmatpush1.bf16.msra.mxu0 0
      %2204 = vmatprep.subr.bf16.mxu0 0
      %2205 = vmatpush1.bf16.msra.mxu0 0
      %2206 = vmatprep.subr.bf16.mxu0 0
      %2207 = vmatpush1.bf16.msra.mxu0 0
      %2208 = vmatprep.subr.bf16.mxu0 0
      %2209 = vmatpush1.bf16.msra.mxu0 0
      %2210 = vmatprep.subr.bf16.mxu0 0
      %2211 = vmatpush1.bf16.msra.mxu0 0
      %2212 = vmatprep.subr.bf16.mxu0 0
      %2213 = vmatpush1.bf16.msra.mxu0 0
      %2214 = vmatprep.subr.bf16.mxu0 0
      %2215 = vmatpush1.bf16.msra.mxu0 0
      %2216 = vmatprep.subr.bf16.mxu0 0
      %2217 = vmatpush1.bf16.msra.mxu0 0
      %2218 = vmatprep.subr.bf16.mxu0 0
      %2219 = vmatpush1.bf16.msra.mxu0 0
      %2220 = vmatprep.mubr.bf16.mxu0 0
      %2221 = vmatmul.mubr.bf16.gmra.mrb[0].mxu0 %v2186
      %v2222 = vpop.f32.mrb[0].mxu0
      %v2223 = vadd.f32 %v2168, %v2222
      %v2224 = vpop.f32.mrb[0].mxu0
      %v2225 = vpop.f32.mrb[0].mxu0
      %v2226 = vadd.f32 %v2171, %v2225
      %v2227 = vpop.f32.mrb[0].mxu0
      %2228 = vdwg.mxu0
      %s2229 = scalar_lea.vmem %s7, 80
      %v2230 = vld [vmem:[%s2229] sm:$0xf]
      %v2231 = vld [vmem:[%s2229 + $0x4] sm:$0xf]
      %v2232 = vld [vmem:[%s2229 + $0x8] sm:$0xf]
      %v2233 = vld [vmem:[%s2229 + $0xc] sm:$0xf]
      %vm2236 = vcmask 1046528
      %v2237 = vrot.slane %v2093, 1
      %v2238 = vrot.slane %v2094, 1
      %v2239 = vsel %vm2236, %v2237, %v2238
      %v2244 = vunpack.c.l.b16 %v2230
      %v2245 = vunpack.c.l.b16 %v2231
      %v2246 = vunpack.c.l.b16 %v2232
      %v2247 = vunpack.c.l.b16 %v2233
      %v2248 = vpack.c.b16 %v2245, %v2244
      %v2249 = vpack.c.b16 %v2247, %v2246
      %v2253 = vsel %vm441, %v2239, 0
      %2255 = vmatprep.subr.bf16.mxu0 0
      %2256 = vmatpush1.bf16.msra.mxu0 %v2248
      %2257 = vmatprep.subr.bf16.mxu0 0
      %2258 = vmatpush1.bf16.msra.mxu0 %v2249
      %2259 = vmatprep.subr.bf16.mxu0 0
      %2260 = vmatpush1.bf16.msra.mxu0 0
      %2261 = vmatprep.subr.bf16.mxu0 0
      %2262 = vmatpush1.bf16.msra.mxu0 0
      %2263 = vmatprep.subr.bf16.mxu0 0
      %2264 = vmatpush1.bf16.msra.mxu0 0
      %2265 = vmatprep.subr.bf16.mxu0 0
      %2266 = vmatpush1.bf16.msra.mxu0 0
      %2267 = vmatprep.subr.bf16.mxu0 0
      %2268 = vmatpush1.bf16.msra.mxu0 0
      %2269 = vmatprep.subr.bf16.mxu0 0
      %2270 = vmatpush1.bf16.msra.mxu0 0
      %2271 = vmatprep.subr.bf16.mxu0 0
      %2272 = vmatpush1.bf16.msra.mxu0 0
      %2273 = vmatprep.subr.bf16.mxu0 0
      %2274 = vmatpush1.bf16.msra.mxu0 0
      %2275 = vmatprep.subr.bf16.mxu0 0
      %2276 = vmatpush1.bf16.msra.mxu0 0
      %2277 = vmatprep.subr.bf16.mxu0 0
      %2278 = vmatpush1.bf16.msra.mxu0 0
      %2279 = vmatprep.subr.bf16.mxu0 0
      %2280 = vmatpush1.bf16.msra.mxu0 0
      %2281 = vmatprep.subr.bf16.mxu0 0
      %2282 = vmatpush1.bf16.msra.mxu0 0
      %2283 = vmatprep.subr.bf16.mxu0 0
      %2284 = vmatpush1.bf16.msra.mxu0 0
      %2285 = vmatprep.subr.bf16.mxu0 0
      %2286 = vmatpush1.bf16.msra.mxu0 0
      %2287 = vmatprep.mubr.bf16.mxu0 0
      %2288 = vmatmul.mubr.bf16.gmra.mrb[0].mxu0 %v2253
      %v2289 = vpop.f32.mrb[0].mxu0
      %v2290 = vadd.f32 0.0, %v2289
      %v2291 = vpop.f32.mrb[0].mxu0
      %v2292 = vpop.f32.mrb[0].mxu0
      %v2293 = vadd.f32 0.0, %v2292
      %v2294 = vpop.f32.mrb[0].mxu0
      %2295 = vdwg.mxu0
      %v2296 = vadd.f32 %v2223, %v2290
      %v2297 = vadd.f32 %v2226, %v2293
      %s2298 = scalar_lea.vmem %s8, 1
      %v2299 = vld [vmem:[%s2298] sm:$0x1]
      %v2301 = vlaneseq
      %v2302 = vshrl.u32 %v2301, 7
      %v2303 = vsub.s32 0, %v2302
      %v2304 = vrot.slane %v2299, %v2303
      %v2306 = vadd.f32 %v2296, %v2304
      %v2307 = vadd.f32 %v2297, %v2304
      %2308 = vst.msk [vmem:[#allocation6 + $0x3] sm:$0xff] %vm441, %v2306
      %2309 = vst.msk [vmem:[#allocation6 + $0xb] sm:$0xff] %vm441, %v2307
      %v2310 = vld [vmem:[#allocation6] sm:$0xff]
      %v2311 = vld [vmem:[#allocation6 + $0x8] sm:$0xff]
      %v2312 = vld [vmem:[#allocation6 + $0x10] sm:$0x3f]
      %v2313 = vpack.c.bf16 %v2311, %v2310
      %v2314 = vpack.c.bf16 %v2312, %v2312
      %v2315 = vld [vmem:[%s9] sm:$0xf]
      %v2316 = vld [vmem:[%s9 + $0x4] sm:$0xf]
      %v2317 = vld [vmem:[%s9 + $0x8] sm:$0xf]
      %v2318 = vld [vmem:[%s9 + $0xc] sm:$0xf]
      %s2319 = scalar_lea.vmem %s9, 16
      %v2320 = vld [vmem:[%s2319] sm:$0xf]
      %v2321 = vld [vmem:[%s2319 + $0x4] sm:$0xf]
      %v2322 = vld [vmem:[%s2319 + $0x8] sm:$0xf]
      %v2323 = vld [vmem:[%s2319 + $0xc] sm:$0xf]
      %vm2324 = vsmask.f32 6400
      %v2326 = vshrl.u32 %v2313, 16
      %v2328 = vrot.slane %v2326, 1
      %v2329 = vshll.u32 %v2313, 16
      %v2331 = vrot.slane %v2329, 2
      %v2332 = vor.u32 %v2328, %v2331
      %v2334 = vshrl.u32 %v2314, 16
      %v2336 = vrot.slane %v2334, 1
      %v2337 = vshll.u32 %v2314, 16
      %v2339 = vrot.slane %v2337, 2
      %v2340 = vor.u32 %v2336, %v2339
      %v2341 = vsel %vm2324, %v2332, %v2340
      %v2346 = vunpack.c.l.b16 %v2320
      %v2347 = vunpack.c.l.b16 %v2321
      %v2348 = vunpack.c.l.b16 %v2322
      %v2349 = vunpack.c.l.b16 %v2323
      %v2350 = vpack.c.b16 %v2347, %v2346
      %v2351 = vpack.c.b16 %v2349, %v2348
      %v2355 = vsel %vm441, %v2341, 0
      %2357 = vmatprep.subr.bf16.mxu0 0
      %2358 = vmatpush1.bf16.msra.mxu0 %v2350
      %2359 = vmatprep.subr.bf16.mxu0 0
      %2360 = vmatpush1.bf16.msra.mxu0 %v2351
      %2361 = vmatprep.subr.bf16.mxu0 0
      %2362 = vmatpush1.bf16.msra.mxu0 0
      %2363 = vmatprep.subr.bf16.mxu0 0
      %2364 = vmatpush1.bf16.msra.mxu0 0
      %2365 = vmatprep.subr.bf16.mxu0 0
      %2366 = vmatpush1.bf16.msra.mxu0 0
      %2367 = vmatprep.subr.bf16.mxu0 0
      %2368 = vmatpush1.bf16.msra.mxu0 0
      %2369 = vmatprep.subr.bf16.mxu0 0
      %2370 = vmatpush1.bf16.msra.mxu0 0
      %2371 = vmatprep.subr.bf16.mxu0 0
      %2372 = vmatpush1.bf16.msra.mxu0 0
      %2373 = vmatprep.subr.bf16.mxu0 0
      %2374 = vmatpush1.bf16.msra.mxu0 0
      %2375 = vmatprep.subr.bf16.mxu0 0
      %2376 = vmatpush1.bf16.msra.mxu0 0
      %2377 = vmatprep.subr.bf16.mxu0 0
      %2378 = vmatpush1.bf16.msra.mxu0 0
      %2379 = vmatprep.subr.bf16.mxu0 0
      %2380 = vmatpush1.bf16.msra.mxu0 0
      %2381 = vmatprep.subr.bf16.mxu0 0
      %2382 = vmatpush1.bf16.msra.mxu0 0
      %2383 = vmatprep.subr.bf16.mxu0 0
      %2384 = vmatpush1.bf16.msra.mxu0 0
      %2385 = vmatprep.subr.bf16.mxu0 0
      %2386 = vmatpush1.bf16.msra.mxu0 0
      %2387 = vmatprep.subr.bf16.mxu0 0
      %2388 = vmatpush1.bf16.msra.mxu0 0
      %2389 = vmatprep.mubr.bf16.mxu0 0
      %2390 = vmatmul.mubr.bf16.gmra.mrb[0].mxu0 %v2355
      %v2391 = vpop.f32.mrb[0].mxu0
      %v2392 = vadd.f32 0.0, %v2391
      %v2393 = vpop.f32.mrb[0].mxu0
      %v2394 = vpop.f32.mrb[0].mxu0
      %v2395 = vadd.f32 0.0, %v2394
      %v2396 = vpop.f32.mrb[0].mxu0
      %2397 = vdwg.mxu0
      %v2400 = vrot.slane %v2313, 1
      %v2401 = vrot.slane %v2314, 1
      %v2402 = vsel %vm2236, %v2400, %v2401
      %v2407 = vunpack.c.l.b16 %v2315
      %v2408 = vunpack.c.l.b16 %v2316
      %v2409 = vunpack.c.l.b16 %v2317
      %v2410 = vunpack.c.l.b16 %v2318
      %v2411 = vpack.c.b16 %v2408, %v2407
      %v2412 = vpack.c.b16 %v2410, %v2409
      %v2416 = vsel %vm441, %v2402, 0
      %2418 = vmatprep.subr.bf16.mxu0 0
      %2419 = vmatpush1.bf16.msra.mxu0 %v2411
      %2420 = vmatprep.subr.bf16.mxu0 0
      %2421 = vmatpush1.bf16.msra.mxu0 %v2412
      %2422 = vmatprep.subr.bf16.mxu0 0
      %2423 = vmatpush1.bf16.msra.mxu0 0
      %2424 = vmatprep.subr.bf16.mxu0 0
      %2425 = vmatpush1.bf16.msra.mxu0 0
      %2426 = vmatprep.subr.bf16.mxu0 0
      %2427 = vmatpush1.bf16.msra.mxu0 0
      %2428 = vmatprep.subr.bf16.mxu0 0
      %2429 = vmatpush1.bf16.msra.mxu0 0
      %2430 = vmatprep.subr.bf16.mxu0 0
      %2431 = vmatpush1.bf16.msra.mxu0 0
      %2432 = vmatprep.subr.bf16.mxu0 0
      %2433 = vmatpush1.bf16.msra.mxu0 0
      %2434 = vmatprep.subr.bf16.mxu0 0
      %2435 = vmatpush1.bf16.msra.mxu0 0
      %2436 = vmatprep.subr.bf16.mxu0 0
      %2437 = vmatpush1.bf16.msra.mxu0 0
      %2438 = vmatprep.subr.bf16.mxu0 0
      %2439 = vmatpush1.bf16.msra.mxu0 0
      %2440 = vmatprep.subr.bf16.mxu0 0
      %2441 = vmatpush1.bf16.msra.mxu0 0
      %2442 = vmatprep.subr.bf16.mxu0 0
      %2443 = vmatpush1.bf16.msra.mxu0 0
      %2444 = vmatprep.subr.bf16.mxu0 0
      %2445 = vmatpush1.bf16.msra.mxu0 0
      %2446 = vmatprep.subr.bf16.mxu0 0
      %2447 = vmatpush1.bf16.msra.mxu0 0
      %2448 = vmatprep.subr.bf16.mxu0 0
      %2449 = vmatpush1.bf16.msra.mxu0 0
      %2450 = vmatprep.mubr.bf16.mxu0 0
      %2451 = vmatmul.mubr.bf16.gmra.mrb[0].mxu0 %v2416
      %v2452 = vpop.f32.mrb[0].mxu0
      %v2453 = vadd.f32 %v2392, %v2452
      %v2454 = vpop.f32.mrb[0].mxu0
      %v2455 = vpop.f32.mrb[0].mxu0
      %v2456 = vadd.f32 %v2395, %v2455
      %v2457 = vpop.f32.mrb[0].mxu0
      %2458 = vdwg.mxu0
      %s2459 = scalar_lea.vmem %s9, 32
      %v2460 = vld [vmem:[%s2459] sm:$0xf]
      %v2461 = vld [vmem:[%s2459 + $0x4] sm:$0xf]
      %v2462 = vld [vmem:[%s2459 + $0x8] sm:$0xf]
      %v2463 = vld [vmem:[%s2459 + $0xc] sm:$0xf]
      %vm2464 = vcmask 1045504
      %v2465 = vrot.slane %v2313, 2
      %v2466 = vrot.slane %v2314, 2
      %v2467 = vsel %vm2464, %v2465, %v2466
      %v2472 = vunpack.c.l.b16 %v2460
      %v2473 = vunpack.c.l.b16 %v2461
      %v2474 = vunpack.c.l.b16 %v2462
      %v2475 = vunpack.c.l.b16 %v2463
      %v2476 = vpack.c.b16 %v2473, %v2472
      %v2477 = vpack.c.b16 %v2475, %v2474
      %v2481 = vsel %vm441, %v2467, 0
      %2483 = vmatprep.subr.bf16.mxu0 0
      %2484 = vmatpush1.bf16.msra.mxu0 %v2476
      %2485 = vmatprep.subr.bf16.mxu0 0
      %2486 = vmatpush1.bf16.msra.mxu0 %v2477
      %2487 = vmatprep.subr.bf16.mxu0 0
      %2488 = vmatpush1.bf16.msra.mxu0 0
      %2489 = vmatprep.subr.bf16.mxu0 0
      %2490 = vmatpush1.bf16.msra.mxu0 0
      %2491 = vmatprep.subr.bf16.mxu0 0
      %2492 = vmatpush1.bf16.msra.mxu0 0
      %2493 = vmatprep.subr.bf16.mxu0 0
      %2494 = vmatpush1.bf16.msra.mxu0 0
      %2495 = vmatprep.subr.bf16.mxu0 0
      %2496 = vmatpush1.bf16.msra.mxu0 0
      %2497 = vmatprep.subr.bf16.mxu0 0
      %2498 = vmatpush1.bf16.msra.mxu0 0
      %2499 = vmatprep.subr.bf16.mxu0 0
      %2500 = vmatpush1.bf16.msra.mxu0 0
      %2501 = vmatprep.subr.bf16.mxu0 0
      %2502 = vmatpush1.bf16.msra.mxu0 0
      %2503 = vmatprep.subr.bf16.mxu0 0
      %2504 = vmatpush1.bf16.msra.mxu0 0
      %2505 = vmatprep.subr.bf16.mxu0 0
      %2506 = vmatpush1.bf16.msra.mxu0 0
      %2507 = vmatprep.subr.bf16.mxu0 0
      %2508 = vmatpush1.bf16.msra.mxu0 0
      %2509 = vmatprep.subr.bf16.mxu0 0
      %2510 = vmatpush1.bf16.msra.mxu0 0
      %2511 = vmatprep.subr.bf16.mxu0 0
      %2512 = vmatpush1.bf16.msra.mxu0 0
      %2513 = vmatprep.subr.bf16.mxu0 0
      %2514 = vmatpush1.bf16.msra.mxu0 0
      %2515 = vmatprep.mubr.bf16.mxu0 0
      %2516 = vmatmul.mubr.bf16.gmra.mrb[0].mxu0 %v2481
      %v2517 = vpop.f32.mrb[0].mxu0
      %v2518 = vadd.f32 0.0, %v2517
      %v2519 = vpop.f32.mrb[0].mxu0
      %v2520 = vpop.f32.mrb[0].mxu0
      %v2521 = vadd.f32 0.0, %v2520
      %v2522 = vpop.f32.mrb[0].mxu0
      %2523 = vdwg.mxu0
      %v2524 = vadd.f32 %v2453, %v2518
      %v2525 = vadd.f32 %v2456, %v2521
      %v2526 = vld [vmem:[%s10] sm:$0x1]
      %v2528 = vlaneseq
      %v2529 = vshrl.u32 %v2528, 7
      %v2530 = vsub.s32 0, %v2529
      %v2531 = vrot.slane %v2526, %v2530
      %v2533 = vadd.f32 %v2524, %v2531
      %v2534 = vadd.f32 %v2525, %v2531
      %2535 = vst.msk [vmem:[#allocation3] sm:$0xff] %vm441, 0.0
      %2536 = vst.msk [vmem:[#allocation3 + $0x8] sm:$0xff] %vm441, 0.0
      %2537 = vst.msk [vmem:[#allocation3 + $0x10] sm:$0x3] %vm443, 0.0
      %v2538 = vmax.f32 %v2533, 0.0
      %v2539 = vmax.f32 %v2534, 0.0
      %2540 = vst.msk [vmem:[#allocation3 + $0x1] sm:$0xff] %vm441, %v2538
      %2541 = vst.msk [vmem:[#allocation3 + $0x9] sm:$0xff] %vm441, %v2539
      %v2542 = vld [vmem:[#allocation3] sm:$0xff]
      %v2543 = vld [vmem:[#allocation3 + $0x8] sm:$0xff]
      %v2544 = vld [vmem:[#allocation3 + $0x10] sm:$0x3]
      %v2545 = vpack.c.bf16 %v2543, %v2542
      %v2546 = vpack.c.bf16 %v2544, %v2544
      %v2547 = vld [vmem:[%s11] sm:$0xf]
      %v2548 = vld [vmem:[%s11 + $0x4] sm:$0xf]
      %v2549 = vld [vmem:[%s11 + $0x8] sm:$0xf]
      %v2550 = vld [vmem:[%s11 + $0xc] sm:$0xf]
      %s2551 = scalar_lea.vmem %s11, 16
      %v2552 = vld [vmem:[%s2551] sm:$0xf]
      %v2553 = vld [vmem:[%s2551 + $0x4] sm:$0xf]
      %v2554 = vld [vmem:[%s2551 + $0x8] sm:$0xf]
      %v2555 = vld [vmem:[%s2551 + $0xc] sm:$0xf]
      %v2557 = vshrl.u32 %v2545, 16
      %v2559 = vshll.u32 %v2545, 16
      %v2561 = vrot.slane %v2559, 1
      %v2562 = vor.u32 %v2557, %v2561
      %v2564 = vshll.u32 %v2546, 16
      %v2566 = vrot.slane %v2564, 1
      %v2567 = vsel %vm2105, %v2562, %v2566
      %v2572 = vunpack.c.l.b16 %v2552
      %v2573 = vunpack.c.l.b16 %v2553
      %v2574 = vunpack.c.l.b16 %v2554
      %v2575 = vunpack.c.l.b16 %v2555
      %v2576 = vpack.c.b16 %v2573, %v2572
      %v2577 = vpack.c.b16 %v2575, %v2574
      %v2581 = vsel %vm441, %v2567, 0
      %2583 = vmatprep.subr.bf16.mxu0 0
      %2584 = vmatpush1.bf16.msra.mxu0 %v2576
      %2585 = vmatprep.subr.bf16.mxu0 0
      %2586 = vmatpush1.bf16.msra.mxu0 %v2577
      %2587 = vmatprep.subr.bf16.mxu0 0
      %2588 = vmatpush1.bf16.msra.mxu0 0
      %2589 = vmatprep.subr.bf16.mxu0 0
      %2590 = vmatpush1.bf16.msra.mxu0 0
      %2591 = vmatprep.subr.bf16.mxu0 0
      %2592 = vmatpush1.bf16.msra.mxu0 0
      %2593 = vmatprep.subr.bf16.mxu0 0
      %2594 = vmatpush1.bf16.msra.mxu0 0
      %2595 = vmatprep.subr.bf16.mxu0 0
      %2596 = vmatpush1.bf16.msra.mxu0 0
      %2597 = vmatprep.subr.bf16.mxu0 0
      %2598 = vmatpush1.bf16.msra.mxu0 0
      %2599 = vmatprep.subr.bf16.mxu0 0
      %2600 = vmatpush1.bf16.msra.mxu0 0
      %2601 = vmatprep.subr.bf16.mxu0 0
      %2602 = vmatpush1.bf16.msra.mxu0 0
      %2603 = vmatprep.subr.bf16.mxu0 0
      %2604 = vmatpush1.bf16.msra.mxu0 0
      %2605 = vmatprep.subr.bf16.mxu0 0
      %2606 = vmatpush1.bf16.msra.mxu0 0
      %2607 = vmatprep.subr.bf16.mxu0 0
      %2608 = vmatpush1.bf16.msra.mxu0 0
      %2609 = vmatprep.subr.bf16.mxu0 0
      %2610 = vmatpush1.bf16.msra.mxu0 0
      %2611 = vmatprep.subr.bf16.mxu0 0
      %2612 = vmatpush1.bf16.msra.mxu0 0
      %2613 = vmatprep.subr.bf16.mxu0 0
      %2614 = vmatpush1.bf16.msra.mxu0 0
      %2615 = vmatprep.mubr.bf16.mxu0 0
      %2616 = vmatmul.mubr.bf16.gmra.mrb[0].mxu0 %v2581
      %v2617 = vpop.f32.mrb[0].mxu0
      %v2618 = vadd.f32 0.0, %v2617
      %v2619 = vpop.f32.mrb[0].mxu0
      %v2620 = vpop.f32.mrb[0].mxu0
      %v2621 = vadd.f32 0.0, %v2620
      %v2622 = vpop.f32.mrb[0].mxu0
      %2623 = vdwg.mxu0
      %v2628 = vunpack.c.l.b16 %v2547
      %v2629 = vunpack.c.l.b16 %v2548
      %v2630 = vunpack.c.l.b16 %v2549
      %v2631 = vunpack.c.l.b16 %v2550
      %v2632 = vpack.c.b16 %v2629, %v2628
      %v2633 = vpack.c.b16 %v2631, %v2630
      %v2636 = vsel %vm441, %v2545, 0
      %2638 = vmatprep.subr.bf16.mxu0 0
      %2639 = vmatpush1.bf16.msra.mxu0 %v2632
      %2640 = vmatprep.subr.bf16.mxu0 0
      %2641 = vmatpush1.bf16.msra.mxu0 %v2633
      %2642 = vmatprep.subr.bf16.mxu0 0
      %2643 = vmatpush1.bf16.msra.mxu0 0
      %2644 = vmatprep.subr.bf16.mxu0 0
      %2645 = vmatpush1.bf16.msra.mxu0 0
      %2646 = vmatprep.subr.bf16.mxu0 0
      %2647 = vmatpush1.bf16.msra.mxu0 0
      %2648 = vmatprep.subr.bf16.mxu0 0
      %2649 = vmatpush1.bf16.msra.mxu0 0
      %2650 = vmatprep.subr.bf16.mxu0 0
      %2651 = vmatpush1.bf16.msra.mxu0 0
      %2652 = vmatprep.subr.bf16.mxu0 0
      %2653 = vmatpush1.bf16.msra.mxu0 0
      %2654 = vmatprep.subr.bf16.mxu0 0
      %2655 = vmatpush1.bf16.msra.mxu0 0
      %2656 = vmatprep.subr.bf16.mxu0 0
      %2657 = vmatpush1.bf16.msra.mxu0 0
      %2658 = vmatprep.subr.bf16.mxu0 0
      %2659 = vmatpush1.bf16.msra.mxu0 0
      %2660 = vmatprep.subr.bf16.mxu0 0
      %2661 = vmatpush1.bf16.msra.mxu0 0
      %2662 = vmatprep.subr.bf16.mxu0 0
      %2663 = vmatpush1.bf16.msra.mxu0 0
      %2664 = vmatprep.subr.bf16.mxu0 0
      %2665 = vmatpush1.bf16.msra.mxu0 0
      %2666 = vmatprep.subr.bf16.mxu0 0
      %2667 = vmatpush1.bf16.msra.mxu0 0
      %2668 = vmatprep.subr.bf16.mxu0 0
      %2669 = vmatpush1.bf16.msra.mxu0 0
      %2670 = vmatprep.mubr.bf16.mxu0 0
      %2671 = vmatmul.mubr.bf16.gmra.mrb[0].mxu0 %v2636
      %v2672 = vpop.f32.mrb[0].mxu0
      %v2673 = vadd.f32 %v2618, %v2672
      %v2674 = vpop.f32.mrb[0].mxu0
      %v2675 = vpop.f32.mrb[0].mxu0
      %v2676 = vadd.f32 %v2621, %v2675
      %v2677 = vpop.f32.mrb[0].mxu0
      %2678 = vdwg.mxu0
      %s2679 = scalar_lea.vmem %s11, 32
      %v2680 = vld [vmem:[%s2679] sm:$0xf]
      %v2681 = vld [vmem:[%s2679 + $0x4] sm:$0xf]
      %v2682 = vld [vmem:[%s2679 + $0x8] sm:$0xf]
      %v2683 = vld [vmem:[%s2679 + $0xc] sm:$0xf]
      %v2686 = vrot.slane %v2545, 1
      %v2687 = vrot.slane %v2546, 1
      %v2688 = vsel %vm2236, %v2686, %v2687
      %v2693 = vunpack.c.l.b16 %v2680
      %v2694 = vunpack.c.l.b16 %v2681
      %v2695 = vunpack.c.l.b16 %v2682
      %v2696 = vunpack.c.l.b16 %v2683
      %v2697 = vpack.c.b16 %v2694, %v2693
      %v2698 = vpack.c.b16 %v2696, %v2695
      %v2702 = vsel %vm441, %v2688, 0
      %2704 = vmatprep.subr.bf16.mxu0 0
      %2705 = vmatpush1.bf16.msra.mxu0 %v2697
      %2706 = vmatprep.subr.bf16.mxu0 0
      %2707 = vmatpush1.bf16.msra.mxu0 %v2698
      %2708 = vmatprep.subr.bf16.mxu0 0
      %2709 = vmatpush1.bf16.msra.mxu0 0
      %2710 = vmatprep.subr.bf16.mxu0 0
      %2711 = vmatpush1.bf16.msra.mxu0 0
      %2712 = vmatprep.subr.bf16.mxu0 0
      %2713 = vmatpush1.bf16.msra.mxu0 0
      %2714 = vmatprep.subr.bf16.mxu0 0
      %2715 = vmatpush1.bf16.msra.mxu0 0
      %2716 = vmatprep.subr.bf16.mxu0 0
      %2717 = vmatpush1.bf16.msra.mxu0 0
      %2718 = vmatprep.subr.bf16.mxu0 0
      %2719 = vmatpush1.bf16.msra.mxu0 0
      %2720 = vmatprep.subr.bf16.mxu0 0
      %2721 = vmatpush1.bf16.msra.mxu0 0
      %2722 = vmatprep.subr.bf16.mxu0 0
      %2723 = vmatpush1.bf16.msra.mxu0 0
      %2724 = vmatprep.subr.bf16.mxu0 0
      %2725 = vmatpush1.bf16.msra.mxu0 0
      %2726 = vmatprep.subr.bf16.mxu0 0
      %2727 = vmatpush1.bf16.msra.mxu0 0
      %2728 = vmatprep.subr.bf16.mxu0 0
      %2729 = vmatpush1.bf16.msra.mxu0 0
      %2730 = vmatprep.subr.bf16.mxu0 0
      %2731 = vmatpush1.bf16.msra.mxu0 0
      %2732 = vmatprep.subr.bf16.mxu0 0
      %2733 = vmatpush1.bf16.msra.mxu0 0
      %2734 = vmatprep.subr.bf16.mxu0 0
      %2735 = vmatpush1.bf16.msra.mxu0 0
      %2736 = vmatprep.mubr.bf16.mxu0 0
      %2737 = vmatmul.mubr.bf16.gmra.mrb[0].mxu0 %v2702
      %v2738 = vpop.f32.mrb[0].mxu0
      %v2739 = vadd.f32 0.0, %v2738
      %v2740 = vpop.f32.mrb[0].mxu0
      %v2741 = vpop.f32.mrb[0].mxu0
      %v2742 = vadd.f32 0.0, %v2741
      %v2743 = vpop.f32.mrb[0].mxu0
      %2744 = vdwg.mxu0
      %v2745 = vadd.f32 %v2673, %v2739
      %v2746 = vadd.f32 %v2676, %v2742
      %v2747 = vld [vmem:[%s12] sm:$0x1]
      %v2749 = vlaneseq
      %v2750 = vshrl.u32 %v2749, 7
      %v2751 = vsub.s32 0, %v2750
      %v2752 = vrot.slane %v2747, %v2751
      %v2754 = vadd.f32 %v2745, %v2752
      %v2755 = vadd.f32 %v2746, %v2752
      %2756 = vst.msk [vmem:[%s437] sm:$0xff] %vm2039, %v2754
      %2757 = vst.msk [vmem:[%s437 + $0x8] sm:$0xff] %vm2039, %v2755
      %p2758 = scmp.lt.s32.totalorder %s24, 1
      %s2759 = scalar_select %p2758, %s24, 1
      %s2760 = smul.addr %s2759, 2
      %s2761 = smul.addr %s2760, 8
      %s2762 = scalar_lea.vmem %s13, %s2761
      // Predicated region
      $region73: #{vqvae_forward.5} parent=71 // pred_check
        %p2763 = pneg %p320
      $region74: #{vqvae_forward.5} parent=71 // pred_check_branch
        %2765 = sbr.rel (%p2763) target = $region76
      $region75: #{vqvae_forward.5} parent=71 // pred_region
        _
      $region76: #{vqvae_forward.5} parent=71 // pred_fallthru
        _
    $region72: #{vqvae_forward.5} parent=5 // pred_fallthru
      _
    %p2766 = scmp.le.s32.totalorder 2, %s19
    // Predicated region
    $region77: #{vqvae_forward.5} parent=5 // pred_check
      %p2767 = pneg %p2766
    $region78: #{vqvae_forward.5} parent=5 // pred_check_branch
      %2769 = sbr.rel (%p2767) target = $region80
    $region79: #{vqvae_forward.5} parent=5 // pred_region
      %s2770 = ssub.s32 %s19, 2
      // Predicated region
      $region81: #{vqvae_forward.5} parent=79 // pred_check
        %p2771 = pneg %p326
      $region82: #{vqvae_forward.5} parent=79 // pred_check_branch
        %2773 = sbr.rel (%p2771) target = $region84
      $region83: #{vqvae_forward.5} parent=79 // pred_region
        %p2774 = scmp.lt.s32.totalorder %s25, 1
        %s2775 = scalar_select %p2774, %s25, 1
        %s2776 = smul.addr %s2775, 2
        %s2777 = smul.addr %s2776, 8
        %s2778 = scalar_lea.vmem %s13, %s2777
      $region84: #{vqvae_forward.5} parent=79 // pred_fallthru
        _
    $region80: #{vqvae_forward.5} parent=5 // pred_fallthru
      _
  $region6: #{vqvae_forward.5} parent=0 // loop_footer
    %s23 = sadd.s32 1, %s19
  $region7: #{vqvae_forward.5} parent=0 // loop_footer_branch
    %18 = sbr.rel target = $region3
  $region8: #{vqvae_forward.5} parent=0 // loop_exit
    _

// kernel: vqvae_forward.3
$region0: #{vqvae_forward.3}
  #allocation0 [shape = 'u32[]', space=smem, size = 0x4, offset = 0x4, fixed_abs, tag = 'smem constant byte address 0x4 - core index']
  #allocation1 [shape = 'u32[144,128]{1,0:T(1,128)}', space=vmem, size = 0x12000, scoped, tag = 'internal scratch']
  #allocation2 [shape = 'f32[18,8]{1,0:T(8,128)}', space=vmem, size = 0x3000, scoped, tag = 'scratch operand']
  #allocation3 [shape = 'f32[22,32]{1,0:T(8,128)}', space=vmem, size = 0x3000, scoped, tag = 'scratch operand']
  #allocation4 [shape = 'f32[14,32]{1,0:T(8,128)}', space=vmem, size = 0x2000, scoped, tag = 'scratch operand']
  #allocation5 [shape = 'f32[10,32]{1,0:T(8,128)}', space=vmem, size = 0x2000, scoped, tag = 'scratch operand']
  %s0 = inlined_call_operand.vmem [shape: f32[2,16,8], index: 0, kind: input, shape index: {}]
  %s1 = inlined_call_operand.hbm [shape: bf16[3,8,32], index: 1, kind: input, shape index: {}]
  %s2 = inlined_call_operand.vmem [shape: f32[1,32], index: 2, kind: input, shape index: {}]
  %s3 = inlined_call_operand.vmem [shape: bf16[2,4,32,32], index: 3, kind: input, shape index: {}]
  %s4 = inlined_call_operand.vmem [shape: f32[2,1,32], index: 4, kind: input, shape index: {}]
  %s5 = inlined_call_operand.hbm [shape: bf16[4,3,32,32], index: 5, kind: input, shape index: {}]
  %s6 = inlined_call_operand.hbm [shape: f32[4,1,32], index: 6, kind: input, shape index: {}]
  %s7 = inlined_call_operand.hbm [shape: bf16[4,32,32], index: 7, kind: input, shape index: {}]
  %s8 = inlined_call_operand.hbm [shape: f32[4,1,32], index: 8, kind: input, shape index: {}]
  %s9 = inlined_call_operand.hbm [shape: bf16[3,32,32], index: 9, kind: input, shape index: {}]
  %s10 = inlined_call_operand.hbm [shape: f32[1,32], index: 10, kind: input, shape index: {}]
  %s11 = inlined_call_operand.vmem [shape: f32[2,4,32], index: 11, kind: output, shape index: {}]
  %s12 = sld [smem:[#allocation0]]
  $region105: #{vqvae_forward.3} parent=0
    _
  %s14 = ssub.s32 1, %s12
  %s15 = scalar_select 0, %s14, %s12
  $region1: #{vqvae_forward.3} parent=0
    #allocation6 [shape = 'u8[6144]{0}', space=vmem, size = 0x1800, scoped, tag = 'input window, operand 1, single buffered']
    #allocation7 [shape = 's32[2]{0}', space=sflag, size = 0x8, scoped, tag = 'scoped memory for vqvae_forward.3']
    #allocation8 [shape = 'u8[98304]{0}', space=vmem, size = 0x18000, scoped, tag = 'input window, operand 5, single buffered']
    #allocation9 [shape = 's32[1]{0}', space=sflag, size = 0x4, scoped, tag = 'scoped memory for vqvae_forward.3']
    #allocation10 [shape = 'u8[2048]{0}', space=vmem, size = 0x800, scoped, tag = 'input window, operand 6, single buffered']
    #allocation11 [shape = 'u8[32768]{0}', space=vmem, size = 0x8000, scoped, tag = 'input window, operand 7, single buffered']
    #allocation12 [shape = 's32[1]{0}', space=sflag, size = 0x4, scoped, tag = 'scoped memory for vqvae_forward.3']
    #allocation13 [shape = 'u8[2048]{0}', space=vmem, size = 0x800, scoped, tag = 'input window, operand 8, single buffered']
    #allocation14 [shape = 'u8[24576]{0}', space=vmem, size = 0x6000, scoped, tag = 'input window, operand 9, single buffered']
    #allocation15 [shape = 's32[1]{0}', space=sflag, size = 0x4, scoped, tag = 'scoped memory for vqvae_forward.3']
    #allocation16 [shape = 'u8[512]{0}', space=vmem, size = 0x400, scoped, tag = 'input window, operand 10, single buffered']
    %16 = vsyncpa [#allocation7], 0
    %17 = vsyncpa [#allocation9], 0
    %18 = vsyncpa [#allocation12], 0
    %19 = vsyncpa [#allocation15], 0
    loop: start=0, step=1, limit=4
    $region2: #{vqvae_forward.3} parent=1 // loop_pre_header
      _
    $region3: #{vqvae_forward.3} parent=1 // loop_header
      %s21 = sphi 0, %s25
      %p22 = scmp.ge.s32.totalorder %s21, 4
      %s31 = sphi 0, %s33
      %s34 = sphi 0, %s31
      %s35 = sphi 0, %s34
      %s51 = sphi 0, %s35
      %s55 = sphi 0, %s55
      %s57 = sphi 0, %s55
      %s58 = sphi 0, %s57
      %s72 = sphi 0, %s58
      %s76 = sphi 0, %s76
      %s78 = sphi 0, %s76
      %s79 = sphi 0, %s78
      %s93 = sphi 0, %s79
      %s97 = sphi 0, %s97
      %s99 = sphi 0, %s97
      %s100 = sphi 0, %s99
      %s114 = sphi 0, %s100
      %s118 = sphi 0, %s118
      %s120 = sphi 0, %s118
      %s121 = sphi 0, %s120
      %s135 = sphi 0, %s121
      %s139 = sphi 0, %s139
      %s141 = sphi 0, %s139
      %s142 = sphi 0, %s141
      %s156 = sphi 0, %s142
      %s160 = sphi 0, %s160
      %s162 = sphi 0, %s160
      %s163 = sphi 0, %s162
      %s177 = sphi 0, %s163
      %s181 = sphi 0, %s181
      %s183 = sphi 0, %s181
      %s184 = sphi 0, %s183
      %s198 = sphi 0, %s184
      %s202 = sphi 0, %s202
      %s204 = sphi 0, %s202
      %s205 = sphi 0, %s204
      %s219 = sphi 0, %s205
      %s223 = sphi 0, %s223
      %s225 = sphi 0, %s223
      %s226 = sphi 0, %s225
      %s240 = sphi 0, %s226
      %s244 = sphi 0, %s244
      %s246 = sphi 0, %s244
      %s247 = sphi 0, %s246
      %s261 = sphi 0, %s247
      %s267 = sphi 0, %s269
      %s270 = sphi 0, %s267
      %s271 = sphi 0, %s270
      %s287 = sphi 0, %s271
    $region4: #{vqvae_forward.3} parent=1 // loop_header_branch
      %24 = sbr.rel (%p22) target = $region8
    $region5: #{vqvae_forward.3} parent=1 // loop_body
      %s26 = ssub.s32 %s21, 1
      %s27 = ssub.s32 %s21, 2
      %s28 = sadd.s32 %s21, 1
      %s29 = ssub.s32 %s21, %s28
      %p30 = scmp.eq.s32.totalorder %s29, 0
      %s32 = sadd.s32 %s31, 1
      %s33 = scalar_select %p30, %s31, %s32
      %p36 = pneg %p30
      %p37 = scmp.eq.s32.totalorder %s21, 1
      %p38 = por %p36, %p37
      %p39 = scmp.ne.s32.totalorder %s31, %s34
      %p40 = scmp.eq.s32.totalorder %s21, 0
      %p41 = por %p39, %p40
      %p42 = scmp.ne.s32.totalorder %s31, %s34
      %p43 = scmp.eq.s32.totalorder %s26, 1
      %p44 = por %p42, %p43
      %p45 = scmp.ne.s32.totalorder %s34, %s35
      %p46 = scmp.eq.s32.totalorder %s26, 0
      %p47 = por %p45, %p46
      %p48 = scmp.ne.s32.totalorder %s34, %s35
      %p49 = scmp.eq.s32.totalorder %s27, 1
      %p50 = por %p48, %p49
      %p52 = scmp.ne.s32.totalorder %s35, %s51
      %p53 = scmp.eq.s32.totalorder %s27, 0
      %p54 = por %p52, %p53
      %s56 = sadd.s32 %s55, 1
      %p59 = scmp.eq.s32.totalorder %s21, 1
      %p60 = scmp.ne.s32.totalorder %s55, %s57
      %p61 = scmp.eq.s32.totalorder %s21, 0
      %p62 = por %p60, %p61
      %p63 = scmp.ne.s32.totalorder %s55, %s57
      %p64 = scmp.eq.s32.totalorder %s26, 1
      %p65 = por %p63, %p64
      %p66 = scmp.ne.s32.totalorder %s57, %s58
      %p67 = scmp.eq.s32.totalorder %s26, 0
      %p68 = por %p66, %p67
      %p69 = scmp.ne.s32.totalorder %s57, %s58
      %p70 = scmp.eq.s32.totalorder %s27, 1
      %p71 = por %p69, %p70
      %p73 = scmp.ne.s32.totalorder %s58, %s72
      %p74 = scmp.eq.s32.totalorder %s27, 0
      %p75 = por %p73, %p74
      %s77 = sadd.s32 %s76, 1
      %p80 = scmp.eq.s32.totalorder %s21, 1
      %p81 = scmp.ne.s32.totalorder %s76, %s78
      %p82 = scmp.eq.s32.totalorder %s21, 0
      %p83 = por %p81, %p82
      %p84 = scmp.ne.s32.totalorder %s76, %s78
      %p85 = scmp.eq.s32.totalorder %s26, 1
      %p86 = por %p84, %p85
      %p87 = scmp.ne.s32.totalorder %s78, %s79
      %p88 = scmp.eq.s32.totalorder %s26, 0
      %p89 = por %p87, %p88
      %p90 = scmp.ne.s32.totalorder %s78, %s79
      %p91 = scmp.eq.s32.totalorder %s27, 1
      %p92 = por %p90, %p91
      %p94 = scmp.ne.s32.totalorder %s79, %s93
      %p95 = scmp.eq.s32.totalorder %s27, 0
      %p96 = por %p94, %p95
      %s98 = sadd.s32 %s97, 1
      %p101 = scmp.eq.s32.totalorder %s21, 1
      %p102 = scmp.ne.s32.totalorder %s97, %s99
      %p103 = scmp.eq.s32.totalorder %s21, 0
      %p104 = por %p102, %p103
      %p105 = scmp.ne.s32.totalorder %s97, %s99
      %p106 = scmp.eq.s32.totalorder %s26, 1
      %p107 = por %p105, %p106
      %p108 = scmp.ne.s32.totalorder %s99, %s100
      %p109 = scmp.eq.s32.totalorder %s26, 0
      %p110 = por %p108, %p109
      %p111 = scmp.ne.s32.totalorder %s99, %s100
      %p112 = scmp.eq.s32.totalorder %s27, 1
      %p113 = por %p111, %p112
      %p115 = scmp.ne.s32.totalorder %s100, %s114
      %p116 = scmp.eq.s32.totalorder %s27, 0
      %p117 = por %p115, %p116
      %s119 = sadd.s32 %s118, 1
      %p122 = scmp.eq.s32.totalorder %s21, 1
      %p123 = scmp.ne.s32.totalorder %s118, %s120
      %p124 = scmp.eq.s32.totalorder %s21, 0
      %p125 = por %p123, %p124
      %p126 = scmp.ne.s32.totalorder %s118, %s120
      %p127 = scmp.eq.s32.totalorder %s26, 1
      %p128 = por %p126, %p127
      %p129 = scmp.ne.s32.totalorder %s120, %s121
      %p130 = scmp.eq.s32.totalorder %s26, 0
      %p131 = por %p129, %p130
      %p132 = scmp.ne.s32.totalorder %s120, %s121
      %p133 = scmp.eq.s32.totalorder %s27, 1
      %p134 = por %p132, %p133
      %p136 = scmp.ne.s32.totalorder %s121, %s135
      %p137 = scmp.eq.s32.totalorder %s27, 0
      %p138 = por %p136, %p137
      %s140 = sadd.s32 %s139, 1
      %p143 = scmp.eq.s32.totalorder %s21, 1
      %p144 = scmp.ne.s32.totalorder %s139, %s141
      %p145 = scmp.eq.s32.totalorder %s21, 0
      %p146 = por %p144, %p145
      %p147 = scmp.ne.s32.totalorder %s139, %s141
      %p148 = scmp.eq.s32.totalorder %s26, 1
      %p149 = por %p147, %p148
      %p150 = scmp.ne.s32.totalorder %s141, %s142
      %p151 = scmp.eq.s32.totalorder %s26, 0
      %p152 = por %p150, %p151
      %p153 = scmp.ne.s32.totalorder %s141, %s142
      %p154 = scmp.eq.s32.totalorder %s27, 1
      %p155 = por %p153, %p154
      %p157 = scmp.ne.s32.totalorder %s142, %s156
      %p158 = scmp.eq.s32.totalorder %s27, 0
      %p159 = por %p157, %p158
      %s161 = sadd.s32 %s160, 1
      %p164 = scmp.eq.s32.totalorder %s21, 1
      %p165 = scmp.ne.s32.totalorder %s160, %s162
      %p166 = scmp.eq.s32.totalorder %s21, 0
      %p167 = por %p165, %p166
      %p168 = scmp.ne.s32.totalorder %s160, %s162
      %p169 = scmp.eq.s32.totalorder %s26, 1
      %p170 = por %p168, %p169
      %p171 = scmp.ne.s32.totalorder %s162, %s163
      %p172 = scmp.eq.s32.totalorder %s26, 0
      %p173 = por %p171, %p172
      %p174 = scmp.ne.s32.totalorder %s162, %s163
      %p175 = scmp.eq.s32.totalorder %s27, 1
      %p176 = por %p174, %p175
      %p178 = scmp.ne.s32.totalorder %s163, %s177
      %p179 = scmp.eq.s32.totalorder %s27, 0
      %p180 = por %p178, %p179
      %s182 = sadd.s32 %s181, 1
      %p185 = scmp.eq.s32.totalorder %s21, 1
      %p186 = scmp.ne.s32.totalorder %s181, %s183
      %p187 = scmp.eq.s32.totalorder %s21, 0
      %p188 = por %p186, %p187
      %p189 = scmp.ne.s32.totalorder %s181, %s183
      %p190 = scmp.eq.s32.totalorder %s26, 1
      %p191 = por %p189, %p190
      %p192 = scmp.ne.s32.totalorder %s183, %s184
      %p193 = scmp.eq.s32.totalorder %s26, 0
      %p194 = por %p192, %p193
      %p195 = scmp.ne.s32.totalorder %s183, %s184
      %p196 = scmp.eq.s32.totalorder %s27, 1
      %p197 = por %p195, %p196
      %p199 = scmp.ne.s32.totalorder %s184, %s198
      %p200 = scmp.eq.s32.totalorder %s27, 0
      %p201 = por %p199, %p200
      %s203 = sadd.s32 %s202, 1
      %p206 = scmp.eq.s32.totalorder %s21, 1
      %p207 = scmp.ne.s32.totalorder %s202, %s204
      %p208 = scmp.eq.s32.totalorder %s21, 0
      %p209 = por %p207, %p208
      %p210 = scmp.ne.s32.totalorder %s202, %s204
      %p211 = scmp.eq.s32.totalorder %s26, 1
      %p212 = por %p210, %p211
      %p213 = scmp.ne.s32.totalorder %s204, %s205
      %p214 = scmp.eq.s32.totalorder %s26, 0
      %p215 = por %p213, %p214
      %p216 = scmp.ne.s32.totalorder %s204, %s205
      %p217 = scmp.eq.s32.totalorder %s27, 1
      %p218 = por %p216, %p217
      %p220 = scmp.ne.s32.totalorder %s205, %s219
      %p221 = scmp.eq.s32.totalorder %s27, 0
      %p222 = por %p220, %p221
      %s224 = sadd.s32 %s223, 1
      %p227 = scmp.eq.s32.totalorder %s21, 1
      %p228 = scmp.ne.s32.totalorder %s223, %s225
      %p229 = scmp.eq.s32.totalorder %s21, 0
      %p230 = por %p228, %p229
      %p231 = scmp.ne.s32.totalorder %s223, %s225
      %p232 = scmp.eq.s32.totalorder %s26, 1
      %p233 = por %p231, %p232
      %p234 = scmp.ne.s32.totalorder %s225, %s226
      %p235 = scmp.eq.s32.totalorder %s26, 0
      %p236 = por %p234, %p235
      %p237 = scmp.ne.s32.totalorder %s225, %s226
      %p238 = scmp.eq.s32.totalorder %s27, 1
      %p239 = por %p237, %p238
      %p241 = scmp.ne.s32.totalorder %s226, %s240
      %p242 = scmp.eq.s32.totalorder %s27, 0
      %p243 = por %p241, %p242
      %s245 = sadd.s32 %s244, 1
      %p248 = scmp.eq.s32.totalorder %s21, 1
      %p249 = scmp.ne.s32.totalorder %s244, %s246
      %p250 = scmp.eq.s32.totalorder %s21, 0
      %p251 = por %p249, %p250
      %p252 = scmp.ne.s32.totalorder %s244, %s246
      %p253 = scmp.eq.s32.totalorder %s26, 1
      %p254 = por %p252, %p253
      %p255 = scmp.ne.s32.totalorder %s246, %s247
      %p256 = scmp.eq.s32.totalorder %s26, 0
      %p257 = por %p255, %p256
      %p258 = scmp.ne.s32.totalorder %s246, %s247
      %p259 = scmp.eq.s32.totalorder %s27, 1
      %p260 = por %p258, %p259
      %p262 = scmp.ne.s32.totalorder %s247, %s261
      %p263 = scmp.eq.s32.totalorder %s27, 0
      %p264 = por %p262, %p263
      %s265 = ssub.s32 %s21, %s28
      %p266 = scmp.eq.s32.totalorder %s265, 0
      %s268 = sadd.s32 %s267, 1
      %s269 = scalar_select %p266, %s267, %s268
      %p272 = pneg %p266
      %p273 = scmp.eq.s32.totalorder %s21, 1
      %p274 = por %p272, %p273
      %p275 = scmp.ne.s32.totalorder %s267, %s270
      %p276 = scmp.eq.s32.totalorder %s21, 0
      %p277 = por %p275, %p276
      %p278 = scmp.ne.s32.totalorder %s267, %s270
      %p279 = scmp.eq.s32.totalorder %s26, 1
      %p280 = por %p278, %p279
      %p281 = scmp.ne.s32.totalorder %s270, %s271
      %p282 = scmp.eq.s32.totalorder %s26, 0
      %p283 = por %p281, %p282
      %p284 = scmp.ne.s32.totalorder %s270, %s271
      %p285 = scmp.eq.s32.totalorder %s27, 1
      %p286 = por %p284, %p285
      %p288 = scmp.ne.s32.totalorder %s271, %s287
      %p289 = scmp.eq.s32.totalorder %s27, 0
      %p290 = por %p288, %p289
      %p291 = scmp.le.s32.totalorder 1, %s21
      %p292 = scmp.lt.s32.totalorder %s21, 3
      %p293 = pnand %p291, %p292
      %p294 = pneg %p293
      // Predicated region
      $region9: #{vqvae_forward.3} parent=5 // pred_check
        _
      $region10: #{vqvae_forward.3} parent=5 // pred_check_branch
        %296 = sbr.rel (%p293) target = $region12
      $region11: #{vqvae_forward.3} parent=5 // pred_region
        %s297 = ssub.s32 %s21, 1
        // Predicated region
        $region13: #{vqvae_forward.3} parent=11 // pred_check
          %p298 = pneg %p68
        $region14: #{vqvae_forward.3} parent=11 // pred_check_branch
          %300 = sbr.rel (%p298) target = $region16
        $region15: #{vqvae_forward.3} parent=11 // pred_region
          %s302 = ssub.s32 192, 192
          %303 = vsyncadd [#allocation7], %s302
          %s304 = sshll.u32 [#allocation6], 4
          %s305 = int_to_ptr.vmem [resolvable:$true] %s304
          %310 = dma.hbm_to_vmem [thread:$0]  %s1, 192, %s305, [#allocation7], 64, 64, 4
        $region16: #{vqvae_forward.3} parent=11 // pred_fallthru
          _
        // Predicated region
        $region17: #{vqvae_forward.3} parent=11 // pred_check
          %p311 = pneg %p89
        $region18: #{vqvae_forward.3} parent=11 // pred_check_branch
          %313 = sbr.rel (%p311) target = $region20
        $region19: #{vqvae_forward.3} parent=11 // pred_region
          _
        $region20: #{vqvae_forward.3} parent=11 // pred_fallthru
          _
        // Predicated region
        $region21: #{vqvae_forward.3} parent=11 // pred_check
          %p314 = pneg %p110
        $region22: #{vqvae_forward.3} parent=11 // pred_check_branch
          %316 = sbr.rel (%p314) target = $region24
        $region23: #{vqvae_forward.3} parent=11 // pred_region
          _
        $region24: #{vqvae_forward.3} parent=11 // pred_fallthru
          _
        // Predicated region
        $region25: #{vqvae_forward.3} parent=11 // pred_check
          %p317 = pneg %p131
        $region26: #{vqvae_forward.3} parent=11 // pred_check_branch
          %319 = sbr.rel (%p317) target = $region28
        $region27: #{vqvae_forward.3} parent=11 // pred_region
          _
        $region28: #{vqvae_forward.3} parent=11 // pred_fallthru
          _
        // Predicated region
        $region29: #{vqvae_forward.3} parent=11 // pred_check
          %p320 = pneg %p152
        $region30: #{vqvae_forward.3} parent=11 // pred_check_branch
          %322 = sbr.rel (%p320) target = $region32
        $region31: #{vqvae_forward.3} parent=11 // pred_region
          %s324 = ssub.s32 3072, 3072
          %325 = vsyncadd [#allocation9], %s324
          %s326 = sshll.u32 [#allocation8], 4
          %s327 = int_to_ptr.vmem [resolvable:$true] %s326
          %332 = dma.hbm_to_vmem [thread:$0]  %s5, 3072, %s327, [#allocation9], 64, 64, 4
        $region32: #{vqvae_forward.3} parent=11 // pred_fallthru
          _
        // Predicated region
        $region33: #{vqvae_forward.3} parent=11 // pred_check
          %p333 = pneg %p173
        $region34: #{vqvae_forward.3} parent=11 // pred_check_branch
          %335 = sbr.rel (%p333) target = $region36
        $region35: #{vqvae_forward.3} parent=11 // pred_region
          %s337 = ssub.s32 64, 64
          %338 = vsyncadd [#allocation9], %s337
          %s339 = sshll.u32 [#allocation10], 4
          %s340 = int_to_ptr.vmem [resolvable:$true] %s339
          %345 = dma.hbm_to_vmem [thread:$0]  %s6, 64, %s340, [#allocation9], 16, 16, 1
        $region36: #{vqvae_forward.3} parent=11 // pred_fallthru
          _
        // Predicated region
        $region37: #{vqvae_forward.3} parent=11 // pred_check
          %p346 = pneg %p194
        $region38: #{vqvae_forward.3} parent=11 // pred_check_branch
          %348 = sbr.rel (%p346) target = $region40
        $region39: #{vqvae_forward.3} parent=11 // pred_region
          %s350 = ssub.s32 1024, 1024
          %351 = vsyncadd [#allocation12], %s350
          %s352 = sshll.u32 [#allocation11], 4
          %s353 = int_to_ptr.vmem [resolvable:$true] %s352
          %358 = dma.hbm_to_vmem [thread:$0]  %s7, 1024, %s353, [#allocation12], 64, 64, 4
        $region40: #{vqvae_forward.3} parent=11 // pred_fallthru
          _
        // Predicated region
        $region41: #{vqvae_forward.3} parent=11 // pred_check
          %p359 = pneg %p215
        $region42: #{vqvae_forward.3} parent=11 // pred_check_branch
          %361 = sbr.rel (%p359) target = $region44
        $region43: #{vqvae_forward.3} parent=11 // pred_region
          %s363 = ssub.s32 64, 64
          %364 = vsyncadd [#allocation12], %s363
          %s365 = sshll.u32 [#allocation13], 4
          %s366 = int_to_ptr.vmem [resolvable:$true] %s365
          %371 = dma.hbm_to_vmem [thread:$0]  %s8, 64, %s366, [#allocation12], 16, 16, 1
        $region44: #{vqvae_forward.3} parent=11 // pred_fallthru
          _
        // Predicated region
        $region45: #{vqvae_forward.3} parent=11 // pred_check
          %p372 = pneg %p236
        $region46: #{vqvae_forward.3} parent=11 // pred_check_branch
          %374 = sbr.rel (%p372) target = $region48
        $region47: #{vqvae_forward.3} parent=11 // pred_region
          %s376 = ssub.s32 768, 768
          %377 = vsyncadd [#allocation15], %s376
          %s378 = sshll.u32 [#allocation14], 4
          %s379 = int_to_ptr.vmem [resolvable:$true] %s378
          %384 = dma.hbm_to_vmem [thread:$0]  %s9, 768, %s379, [#allocation15], 64, 64, 4
        $region48: #{vqvae_forward.3} parent=11 // pred_fallthru
          _
        // Predicated region
        $region49: #{vqvae_forward.3} parent=11 // pred_check
          %p385 = pneg %p257
        $region50: #{vqvae_forward.3} parent=11 // pred_check_branch
          %387 = sbr.rel (%p385) target = $region52
        $region51: #{vqvae_forward.3} parent=11 // pred_region
          %s389 = ssub.s32 16, 16
          %390 = vsyncadd [#allocation15], %s389
          %s392 = sshll.u32 [#allocation16], 4
          %s393 = int_to_ptr.vmem [resolvable:$true] %s392
          %395 = dma.hbm_to_vmem [thread:$0]  %s10, 16, %s393, [#allocation15]
        $region52: #{vqvae_forward.3} parent=11 // pred_fallthru
          _
      $region12: #{vqvae_forward.3} parent=5 // pred_fallthru
        _
      %p396 = scmp.lt.s32.totalorder %s21, 2
      // Predicated region
      $region53: #{vqvae_forward.3} parent=5 // pred_check
        %p397 = pneg %p396
      $region54: #{vqvae_forward.3} parent=5 // pred_check_branch
        %399 = sbr.rel (%p397) target = $region56
      $region55: #{vqvae_forward.3} parent=5 // pred_region
        // Predicated region
        $region57: #{vqvae_forward.3} parent=55 // pred_check
          %p400 = pneg %p41
        $region58: #{vqvae_forward.3} parent=55 // pred_check_branch
          %402 = sbr.rel (%p400) target = $region60
        $region59: #{vqvae_forward.3} parent=55 // pred_region
          %p403 = scmp.lt.s32.totalorder %s21, 1
          %s404 = scalar_select %p403, %s21, 1
          %s405 = smul.addr %s404, 2
          %s406 = smul.addr %s405, 8
          %s407 = scalar_lea.vmem %s0, %s406
        $region60: #{vqvae_forward.3} parent=55 // pred_fallthru
          _
      $region56: #{vqvae_forward.3} parent=5 // pred_fallthru
        _
      %p408 = scmp.le.s32.totalorder 1, %s21
      %p409 = scmp.lt.s32.totalorder %s21, 3
      %p410 = pnand %p408, %p409
      %p411 = pneg %p410
      // Predicated region
      $region61: #{vqvae_forward.3} parent=5 // pred_check
        _
      $region62: #{vqvae_forward.3} parent=5 // pred_check_branch
        %413 = sbr.rel (%p410) target = $region64
      $region63: #{vqvae_forward.3} parent=5 // pred_region
        %s414 = ssub.s32 %s21, 1
        // Predicated region
        $region65: #{vqvae_forward.3} parent=63 // pred_check
          %p415 = pneg %p68
        $region66: #{vqvae_forward.3} parent=63 // pred_check_branch
          %417 = sbr.rel (%p415) target = $region68
        $region67: #{vqvae_forward.3} parent=63 // pred_region
          %418 = dma.done [#allocation7], 192
        $region68: #{vqvae_forward.3} parent=63 // pred_fallthru
          _
        // Predicated region
        $region69: #{vqvae_forward.3} parent=63 // pred_check
          %p419 = pneg %p152
        $region70: #{vqvae_forward.3} parent=63 // pred_check_branch
          %421 = sbr.rel (%p419) target = $region72
        $region71: #{vqvae_forward.3} parent=63 // pred_region
          %422 = dma.done [#allocation9], 3072
        $region72: #{vqvae_forward.3} parent=63 // pred_fallthru
          _
        // Predicated region
        $region73: #{vqvae_forward.3} parent=63 // pred_check
          %p423 = pneg %p173
        $region74: #{vqvae_forward.3} parent=63 // pred_check_branch
          %425 = sbr.rel (%p423) target = $region76
        $region75: #{vqvae_forward.3} parent=63 // pred_region
          %426 = dma.done [#allocation9], 64
        $region76: #{vqvae_forward.3} parent=63 // pred_fallthru
          _
        // Predicated region
        $region77: #{vqvae_forward.3} parent=63 // pred_check
          %p427 = pneg %p194
        $region78: #{vqvae_forward.3} parent=63 // pred_check_branch
          %429 = sbr.rel (%p427) target = $region80
        $region79: #{vqvae_forward.3} parent=63 // pred_region
          %430 = dma.done [#allocation12], 1024
        $region80: #{vqvae_forward.3} parent=63 // pred_fallthru
          _
        // Predicated region
        $region81: #{vqvae_forward.3} parent=63 // pred_check
          %p431 = pneg %p215
        $region82: #{vqvae_forward.3} parent=63 // pred_check_branch
          %433 = sbr.rel (%p431) target = $region84
        $region83: #{vqvae_forward.3} parent=63 // pred_region
          %434 = dma.done [#allocation12], 64
        $region84: #{vqvae_forward.3} parent=63 // pred_fallthru
          _
        // Predicated region
        $region85: #{vqvae_forward.3} parent=63 // pred_check
          %p435 = pneg %p236
        $region86: #{vqvae_forward.3} parent=63 // pred_check_branch
          %437 = sbr.rel (%p435) target = $region88
        $region87: #{vqvae_forward.3} parent=63 // pred_region
          %438 = dma.done [#allocation15], 768
        $region88: #{vqvae_forward.3} parent=63 // pred_fallthru
          _
        // Predicated region
        $region89: #{vqvae_forward.3} parent=63 // pred_check
          %p439 = pneg %p257
        $region90: #{vqvae_forward.3} parent=63 // pred_check_branch
          %441 = sbr.rel (%p439) target = $region92
        $region91: #{vqvae_forward.3} parent=63 // pred_region
          %442 = dma.done [#allocation15], 16
        $region92: #{vqvae_forward.3} parent=63 // pred_fallthru
          _
        %p443 = scmp.lt.s32.totalorder %s26, 1
        %s444 = scalar_select %p443, %s26, 1
        %s445 = smul.addr %s444, 2
        %s446 = smul.addr %s445, 8
        %s447 = scalar_lea.vmem %s0, %s446
        %p448 = pneg %p47
        %p449 = pneg %p44
        %p450 = pneg %p68
        %p451 = pneg %p65
        %p452 = pneg %p89
        %p453 = pneg %p86
        %p454 = pneg %p110
        %p455 = pneg %p107
        %p456 = pneg %p131
        %p457 = pneg %p128
        %p458 = pneg %p152
        %p459 = pneg %p149
        %p460 = pneg %p173
        %p461 = pneg %p170
        %p462 = pneg %p194
        %p463 = pneg %p191
        %p464 = pneg %p215
        %p465 = pneg %p212
        %p466 = pneg %p236
        %p467 = pneg %p233
        %p468 = pneg %p257
        %p469 = pneg %p254
        %p470 = pneg %p283
        %p471 = pneg %p280
        %p472 = scmp.lt.s32.totalorder %s26, 1
        %s473 = scalar_select %p472, %s26, 1
        %s474 = smul.addr %s473, 4
        %s475 = scalar_lea.vmem %s11, %s474
        %p476 = scmp.lt.s32.totalorder %s26, 1
        %s477 = scalar_select %p476, %s26, 1
        %s478 = smul.addr %s477, 2
        %s479 = smul.addr %s478, 8
        %s480 = scalar_lea.vmem %s0, %s479
        %p481 = scmp.lt.s32.totalorder %s26, 1
        %s482 = scalar_select %p481, %s26, 1
        %s483 = smul.addr %s482, 4
        %s484 = scalar_lea.vmem %s11, %s483
        %vm486 = vcmask 64512
        %487 = vst.msk [vmem:[#allocation2] sm:$0xff] %vm486, 0.0
        %488 = vst.msk [vmem:[#allocation2 + $0x8] sm:$0xff] %vm486, 0.0
        %vm489 = vcmask 58368
        %490 = vst.msk [vmem:[#allocation2 + $0x10] sm:$0x3] %vm489, 0.0
        %vm491 = vcmask 261120
        %492 = vst.msk [vmem:[#allocation3] sm:$0xff] %vm491, 0.0
        %493 = vst.msk [vmem:[#allocation3 + $0x8] sm:$0xff] %vm491, 0.0
        %vm494 = vcmask 259072
        %495 = vst.msk [vmem:[#allocation3 + $0x10] sm:$0x3f] %vm494, 0.0
        %496 = vst.msk [vmem:[#allocation4] sm:$0xff] %vm491, 0.0
        %497 = vst.msk [vmem:[#allocation4 + $0x8] sm:$0x3f] %vm494, 0.0
        %498 = vst.msk [vmem:[#allocation5] sm:$0xff] %vm491, 0.0
        %vm499 = vcmask 254976
        %500 = vst.msk [vmem:[#allocation5 + $0x8] sm:$0x3] %vm499, 0.0
        %v501 = vld [vmem:[%s480] sm:$0xff]
        %v502 = vld [vmem:[%s480 + $0x8] sm:$0xff]
        %503 = vst.msk [vmem:[#allocation2 + $0x1] sm:$0xff] %vm486, %v501
        %504 = vst.msk [vmem:[#allocation2 + $0x9] sm:$0xff] %vm486, %v502
        %v505 = vld [vmem:[#allocation2] sm:$0xff]
        %v506 = vld [vmem:[#allocation2 + $0x8] sm:$0xff]
        %v507 = vld [vmem:[#allocation2 + $0x10] sm:$0x3]
        %v508 = vpack.c.bf16 %v506, %v505
        %v509 = vpack.c.bf16 %v507, %v507
        %v510 = vld [vmem:[#allocation6] sm:$0xf]
        %s511 = scalar_lea.vmem [#allocation6], 4
        %v512 = vld [vmem:[%s511] sm:$0xf]
        %vm513 = vsmask.f32 7424
        %v515 = vshrl.u32 %v508, 16
        %v517 = vshll.u32 %v508, 16
        %v519 = vrot.slane %v517, 1
        %v520 = vor.u32 %v515, %v519
        %v522 = vshll.u32 %v509, 16
        %v524 = vrot.slane %v522, 1
        %v525 = vsel %vm513, %v520, %v524
        %v527 = vsel %vm486, %v525, 0
        %vm529 = vcmask 1043456
        %v531 = vsel %vm529, %v512, 0
        %533 = vmatprep.subr.bf16.mxu0 0
        %534 = vmatpush1.bf16.msra.mxu0 %v531
        %535 = vmatprep.subr.bf16.mxu0 0
        %536 = vmatpush1.bf16.msra.mxu0 0
        %537 = vmatprep.subr.bf16.mxu0 0
        %538 = vmatpush1.bf16.msra.mxu0 0
        %539 = vmatprep.subr.bf16.mxu0 0
        %540 = vmatpush1.bf16.msra.mxu0 0
        %541 = vmatprep.subr.bf16.mxu0 0
        %542 = vmatpush1.bf16.msra.mxu0 0
        %543 = vmatprep.subr.bf16.mxu0 0
        %544 = vmatpush1.bf16.msra.mxu0 0
        %545 = vmatprep.subr.bf16.mxu0 0
        %546 = vmatpush1.bf16.msra.mxu0 0
        %547 = vmatprep.subr.bf16.mxu0 0
        %548 = vmatpush1.bf16.msra.mxu0 0
        %549 = vmatprep.subr.bf16.mxu0 0
        %550 = vmatpush1.bf16.msra.mxu0 0
        %551 = vmatprep.subr.bf16.mxu0 0
        %552 = vmatpush1.bf16.msra.mxu0 0
        %553 = vmatprep.subr.bf16.mxu0 0
        %554 = vmatpush1.bf16.msra.mxu0 0
        %555 = vmatprep.subr.bf16.mxu0 0
        %556 = vmatpush1.bf16.msra.mxu0 0
        %557 = vmatprep.subr.bf16.mxu0 0
        %558 = vmatpush1.bf16.msra.mxu0 0
        %559 = vmatprep.subr.bf16.mxu0 0
        %560 = vmatpush1.bf16.msra.mxu0 0
        %561 = vmatprep.subr.bf16.mxu0 0
        %562 = vmatpush1.bf16.msra.mxu0 0
        %563 = vmatprep.subr.bf16.mxu0 0
        %564 = vmatpush1.bf16.msra.mxu0 0
        %565 = vmatprep.mubr.bf16.mxu0 0
        %566 = vmatmul.mubr.bf16.gmra.mrb[0].mxu0 %v527
        %v567 = vpop.f32.mrb[0].mxu0
        %v568 = vadd.f32 0.0, %v567
        %v569 = vpop.f32.mrb[0].mxu0
        %v570 = vpop.f32.mrb[0].mxu0
        %v571 = vadd.f32 0.0, %v570
        %v572 = vpop.f32.mrb[0].mxu0
        %573 = vdwg.mxu0
        %v574 = vsel %vm486, %v508, 0
        %v577 = vsel %vm529, %v510, 0
        %579 = vmatprep.subr.bf16.mxu0 0
        %580 = vmatpush1.bf16.msra.mxu0 %v577
        %581 = vmatprep.subr.bf16.mxu0 0
        %582 = vmatpush1.bf16.msra.mxu0 0
        %583 = vmatprep.subr.bf16.mxu0 0
        %584 = vmatpush1.bf16.msra.mxu0 0
        %585 = vmatprep.subr.bf16.mxu0 0
        %586 = vmatpush1.bf16.msra.mxu0 0
        %587 = vmatprep.subr.bf16.mxu0 0
        %588 = vmatpush1.bf16.msra.mxu0 0
        %589 = vmatprep.subr.bf16.mxu0 0
        %590 = vmatpush1.bf16.msra.mxu0 0
        %591 = vmatprep.subr.bf16.mxu0 0
        %592 = vmatpush1.bf16.msra.mxu0 0
        %593 = vmatprep.subr.bf16.mxu0 0
        %594 = vmatpush1.bf16.msra.mxu0 0
        %595 = vmatprep.subr.bf16.mxu0 0
        %596 = vmatpush1.bf16.msra.mxu0 0
        %597 = vmatprep.subr.bf16.mxu0 0
        %598 = vmatpush1.bf16.msra.mxu0 0
        %599 = vmatprep.subr.bf16.mxu0 0
        %600 = vmatpush1.bf16.msra.mxu0 0
        %601 = vmatprep.subr.bf16.mxu0 0
        %602 = vmatpush1.bf16.msra.mxu0 0
        %603 = vmatprep.subr.bf16.mxu0 0
        %604 = vmatpush1.bf16.msra.mxu0 0
        %605 = vmatprep.subr.bf16.mxu0 0
        %606 = vmatpush1.bf16.msra.mxu0 0
        %607 = vmatprep.subr.bf16.mxu0 0
        %608 = vmatpush1.bf16.msra.mxu0 0
        %609 = vmatprep.subr.bf16.mxu0 0
        %610 = vmatpush1.bf16.msra.mxu0 0
        %611 = vmatprep.mubr.bf16.mxu0 0
        %612 = vmatmul.mubr.bf16.gmra.mrb[0].mxu0 %v574
        %v613 = vpop.f32.mrb[0].mxu0
        %v614 = vadd.f32 %v568, %v613
        %v615 = vpop.f32.mrb[0].mxu0
        %v616 = vpop.f32.mrb[0].mxu0
        %v617 = vadd.f32 %v571, %v616
        %v618 = vpop.f32.mrb[0].mxu0
        %619 = vdwg.mxu0
        %s620 = scalar_lea.vmem [#allocation6], 8
        %v621 = vld [vmem:[%s620] sm:$0xf]
        %vm624 = vcmask 1046528
        %v625 = vrot.slane %v508, 1
        %v626 = vrot.slane %v509, 1
        %v627 = vsel %vm624, %v625, %v626
        %v629 = vsel %vm486, %v627, 0
        %v632 = vsel %vm529, %v621, 0
        %634 = vmatprep.subr.bf16.mxu0 0
        %635 = vmatpush1.bf16.msra.mxu0 %v632
        %636 = vmatprep.subr.bf16.mxu0 0
        %637 = vmatpush1.bf16.msra.mxu0 0
        %638 = vmatprep.subr.bf16.mxu0 0
        %639 = vmatpush1.bf16.msra.mxu0 0
        %640 = vmatprep.subr.bf16.mxu0 0
        %641 = vmatpush1.bf16.msra.mxu0 0
        %642 = vmatprep.subr.bf16.mxu0 0
        %643 = vmatpush1.bf16.msra.mxu0 0
        %644 = vmatprep.subr.bf16.mxu0 0
        %645 = vmatpush1.bf16.msra.mxu0 0
        %646 = vmatprep.subr.bf16.mxu0 0
        %647 = vmatpush1.bf16.msra.mxu0 0
        %648 = vmatprep.subr.bf16.mxu0 0
        %649 = vmatpush1.bf16.msra.mxu0 0
        %650 = vmatprep.subr.bf16.mxu0 0
        %651 = vmatpush1.bf16.msra.mxu0 0
        %652 = vmatprep.subr.bf16.mxu0 0
        %653 = vmatpush1.bf16.msra.mxu0 0
        %654 = vmatprep.subr.bf16.mxu0 0
        %655 = vmatpush1.bf16.msra.mxu0 0
        %656 = vmatprep.subr.bf16.mxu0 0
        %657 = vmatpush1.bf16.msra.mxu0 0
        %658 = vmatprep.subr.bf16.mxu0 0
        %659 = vmatpush1.bf16.msra.mxu0 0
        %660 = vmatprep.subr.bf16.mxu0 0
        %661 = vmatpush1.bf16.msra.mxu0 0
        %662 = vmatprep.subr.bf16.mxu0 0
        %663 = vmatpush1.bf16.msra.mxu0 0
        %664 = vmatprep.subr.bf16.mxu0 0
        %665 = vmatpush1.bf16.msra.mxu0 0
        %666 = vmatprep.mubr.bf16.mxu0 0
        %667 = vmatmul.mubr.bf16.gmra.mrb[0].mxu0 %v629
        %v668 = vpop.f32.mrb[0].mxu0
        %v669 = vadd.f32 0.0, %v668
        %v670 = vpop.f32.mrb[0].mxu0
        %v671 = vpop.f32.mrb[0].mxu0
        %v672 = vadd.f32 0.0, %v671
        %v673 = vpop.f32.mrb[0].mxu0
        %674 = vdwg.mxu0
        %v675 = vadd.f32 %v614, %v669
        %v676 = vadd.f32 %v617, %v672
        %v677 = vld [vmem:[%s2] sm:$0x1]
        %v679 = vlaneseq
        %v680 = vshrl.u32 %v679, 7
        %v681 = vsub.s32 0, %v680
        %v682 = vrot.slane %v677, %v681
        %v684 = vadd.f32 %v675, %v682
        %v685 = vadd.f32 %v676, %v682
        %v686 = vmax.f32 %v684, 0.0
        %v687 = vmax.f32 %v685, 0.0
        %688 = vst.msk [vmem:[#allocation3 + $0x3] sm:$0xff] %vm491, %v686
        %689 = vst.msk [vmem:[#allocation3 + $0xb] sm:$0xff] %vm491, %v687
        %v690 = vld [vmem:[#allocation3] sm:$0xff]
        %v691 = vld [vmem:[#allocation3 + $0x8] sm:$0xff]
        %v692 = vld [vmem:[#allocation3 + $0x10] sm:$0x3f]
        %v693 = vpack.c.bf16 %v691, %v690
        %v694 = vpack.c.bf16 %v692, %v692
        %v695 = vld [vmem:[%s3] sm:$0xf]
        %v696 = vld [vmem:[%s3 + $0x4] sm:$0xf]
        %v697 = vld [vmem:[%s3 + $0x8] sm:$0xf]
        %v698 = vld [vmem:[%s3 + $0xc] sm:$0xf]
        %s699 = scalar_lea.vmem %s3, 16
        %v700 = vld [vmem:[%s699] sm:$0xf]
        %v701 = vld [vmem:[%s699 + $0x4] sm:$0xf]
        %v702 = vld [vmem:[%s699 + $0x8] sm:$0xf]
        %v703 = vld [vmem:[%s699 + $0xc] sm:$0xf]
        %vm704 = vsmask.f32 6400
        %v706 = vshrl.u32 %v693, 16
        %v708 = vrot.slane %v706, 1
        %v709 = vshll.u32 %v693, 16
        %v711 = vrot.slane %v709, 2
        %v712 = vor.u32 %v708, %v711
        %v714 = vshrl.u32 %v694, 16
        %v716 = vrot.slane %v714, 1
        %v717 = vshll.u32 %v694, 16
        %v719 = vrot.slane %v717, 2
        %v720 = vor.u32 %v716, %v719
        %v721 = vsel %vm704, %v712, %v720
        %v726 = vunpack.c.l.b16 %v700
        %v727 = vunpack.c.l.b16 %v701
        %v728 = vunpack.c.l.b16 %v702
        %v729 = vunpack.c.l.b16 %v703
        %v730 = vpack.c.b16 %v727, %v726
        %v731 = vpack.c.b16 %v729, %v728
        %v735 = vsel %vm491, %v721, 0
        %737 = vmatprep.subr.bf16.mxu0 0
        %738 = vmatpush1.bf16.msra.mxu0 %v730
        %739 = vmatprep.subr.bf16.mxu0 0
        %740 = vmatpush1.bf16.msra.mxu0 %v731
        %741 = vmatprep.subr.bf16.mxu0 0
        %742 = vmatpush1.bf16.msra.mxu0 0
        %743 = vmatprep.subr.bf16.mxu0 0
        %744 = vmatpush1.bf16.msra.mxu0 0
        %745 = vmatprep.subr.bf16.mxu0 0
        %746 = vmatpush1.bf16.msra.mxu0 0
        %747 = vmatprep.subr.bf16.mxu0 0
        %748 = vmatpush1.bf16.msra.mxu0 0
        %749 = vmatprep.subr.bf16.mxu0 0
        %750 = vmatpush1.bf16.msra.mxu0 0
        %751 = vmatprep.subr.bf16.mxu0 0
        %752 = vmatpush1.bf16.msra.mxu0 0
        %753 = vmatprep.subr.bf16.mxu0 0
        %754 = vmatpush1.bf16.msra.mxu0 0
        %755 = vmatprep.subr.bf16.mxu0 0
        %756 = vmatpush1.bf16.msra.mxu0 0
        %757 = vmatprep.subr.bf16.mxu0 0
        %758 = vmatpush1.bf16.msra.mxu0 0
        %759 = vmatprep.subr.bf16.mxu0 0
        %760 = vmatpush1.bf16.msra.mxu0 0
        %761 = vmatprep.subr.bf16.mxu0 0
        %762 = vmatpush1.bf16.msra.mxu0 0
        %763 = vmatprep.subr.bf16.mxu0 0
        %764 = vmatpush1.bf16.msra.mxu0 0
        %765 = vmatprep.subr.bf16.mxu0 0
        %766 = vmatpush1.bf16.msra.mxu0 0
        %767 = vmatprep.subr.bf16.mxu0 0
        %768 = vmatpush1.bf16.msra.mxu0 0
        %769 = vmatprep.mubr.bf16.mxu0 0
        %770 = vmatmul.mubr.bf16.gmra.mrb[0].mxu0 %v735
        %v771 = vpop.f32.mrb[0].mxu0
        %v772 = vadd.f32 0.0, %v771
        %v773 = vpop.f32.mrb[0].mxu0
        %v774 = vpop.f32.mrb[0].mxu0
        %v775 = vadd.f32 0.0, %v774
        %v776 = vpop.f32.mrb[0].mxu0
        %777 = vdwg.mxu0
        %v780 = vrot.slane %v693, 1
        %v781 = vrot.slane %v694, 1
        %v782 = vsel %vm624, %v780, %v781
        %v787 = vunpack.c.l.b16 %v695
        %v788 = vunpack.c.l.b16 %v696
        %v789 = vunpack.c.l.b16 %v697
        %v790 = vunpack.c.l.b16 %v698
        %v791 = vpack.c.b16 %v788, %v787
        %v792 = vpack.c.b16 %v790, %v789
        %v796 = vsel %vm491, %v782, 0
        %798 = vmatprep.subr.bf16.mxu0 0
        %799 = vmatpush1.bf16.msra.mxu0 %v791
        %800 = vmatprep.subr.bf16.mxu0 0
        %801 = vmatpush1.bf16.msra.mxu0 %v792
        %802 = vmatprep.subr.bf16.mxu0 0
        %803 = vmatpush1.bf16.msra.mxu0 0
        %804 = vmatprep.subr.bf16.mxu0 0
        %805 = vmatpush1.bf16.msra.mxu0 0
        %806 = vmatprep.subr.bf16.mxu0 0
        %807 = vmatpush1.bf16.msra.mxu0 0
        %808 = vmatprep.subr.bf16.mxu0 0
        %809 = vmatpush1.bf16.msra.mxu0 0
        %810 = vmatprep.subr.bf16.mxu0 0
        %811 = vmatpush1.bf16.msra.mxu0 0
        %812 = vmatprep.subr.bf16.mxu0 0
        %813 = vmatpush1.bf16.msra.mxu0 0
        %814 = vmatprep.subr.bf16.mxu0 0
        %815 = vmatpush1.bf16.msra.mxu0 0
        %816 = vmatprep.subr.bf16.mxu0 0
        %817 = vmatpush1.bf16.msra.mxu0 0
        %818 = vmatprep.subr.bf16.mxu0 0
        %819 = vmatpush1.bf16.msra.mxu0 0
        %820 = vmatprep.subr.bf16.mxu0 0
        %821 = vmatpush1.bf16.msra.mxu0 0
        %822 = vmatprep.subr.bf16.mxu0 0
        %823 = vmatpush1.bf16.msra.mxu0 0
        %824 = vmatprep.subr.bf16.mxu0 0
        %825 = vmatpush1.bf16.msra.mxu0 0
        %826 = vmatprep.subr.bf16.mxu0 0
        %827 = vmatpush1.bf16.msra.mxu0 0
        %828 = vmatprep.subr.bf16.mxu0 0
        %829 = vmatpush1.bf16.msra.mxu0 0
        %830 = vmatprep.mubr.bf16.mxu0 0
        %831 = vmatmul.mubr.bf16.gmra.mrb[0].mxu0 %v796
        %v832 = vpop.f32.mrb[0].mxu0
        %v833 = vadd.f32 %v772, %v832
        %v834 = vpop.f32.mrb[0].mxu0
        %v835 = vpop.f32.mrb[0].mxu0
        %v836 = vadd.f32 %v775, %v835
        %v837 = vpop.f32.mrb[0].mxu0
        %838 = vdwg.mxu0
        %s839 = scalar_lea.vmem %s3, 32
        %v840 = vld [vmem:[%s839] sm:$0xf]
        %v841 = vld [vmem:[%s839 + $0x4] sm:$0xf]
        %v842 = vld [vmem:[%s839 + $0x8] sm:$0xf]
        %v843 = vld [vmem:[%s839 + $0xc] sm:$0xf]
        %vm844 = vcmask 1045504
        %v845 = vrot.slane %v693, 2
        %v846 = vrot.slane %v694, 2
        %v847 = vsel %vm844, %v845, %v846
        %v852 = vunpack.c.l.b16 %v840
        %v853 = vunpack.c.l.b16 %v841
        %v854 = vunpack.c.l.b16 %v842
        %v855 = vunpack.c.l.b16 %v843
        %v856 = vpack.c.b16 %v853, %v852
        %v857 = vpack.c.b16 %v855, %v854
        %v861 = vsel %vm491, %v847, 0
        %863 = vmatprep.subr.bf16.mxu0 0
        %864 = vmatpush1.bf16.msra.mxu0 %v856
        %865 = vmatprep.subr.bf16.mxu0 0
        %866 = vmatpush1.bf16.msra.mxu0 %v857
        %867 = vmatprep.subr.bf16.mxu0 0
        %868 = vmatpush1.bf16.msra.mxu0 0
        %869 = vmatprep.subr.bf16.mxu0 0
        %870 = vmatpush1.bf16.msra.mxu0 0
        %871 = vmatprep.subr.bf16.mxu0 0
        %872 = vmatpush1.bf16.msra.mxu0 0
        %873 = vmatprep.subr.bf16.mxu0 0
        %874 = vmatpush1.bf16.msra.mxu0 0
        %875 = vmatprep.subr.bf16.mxu0 0
        %876 = vmatpush1.bf16.msra.mxu0 0
        %877 = vmatprep.subr.bf16.mxu0 0
        %878 = vmatpush1.bf16.msra.mxu0 0
        %879 = vmatprep.subr.bf16.mxu0 0
        %880 = vmatpush1.bf16.msra.mxu0 0
        %881 = vmatprep.subr.bf16.mxu0 0
        %882 = vmatpush1.bf16.msra.mxu0 0
        %883 = vmatprep.subr.bf16.mxu0 0
        %884 = vmatpush1.bf16.msra.mxu0 0
        %885 = vmatprep.subr.bf16.mxu0 0
        %886 = vmatpush1.bf16.msra.mxu0 0
        %887 = vmatprep.subr.bf16.mxu0 0
        %888 = vmatpush1.bf16.msra.mxu0 0
        %889 = vmatprep.subr.bf16.mxu0 0
        %890 = vmatpush1.bf16.msra.mxu0 0
        %891 = vmatprep.subr.bf16.mxu0 0
        %892 = vmatpush1.bf16.msra.mxu0 0
        %893 = vmatprep.subr.bf16.mxu0 0
        %894 = vmatpush1.bf16.msra.mxu0 0
        %895 = vmatprep.mubr.bf16.mxu0 0
        %896 = vmatmul.mubr.bf16.gmra.mrb[0].mxu0 %v861
        %v897 = vpop.f32.mrb[0].mxu0
        %v898 = vadd.f32 0.0, %v897
        %v899 = vpop.f32.mrb[0].mxu0
        %v900 = vpop.f32.mrb[0].mxu0
        %v901 = vadd.f32 0.0, %v900
        %v902 = vpop.f32.mrb[0].mxu0
        %903 = vdwg.mxu0
        %v904 = vadd.f32 %v833, %v898
        %v905 = vadd.f32 %v836, %v901
        %s906 = scalar_lea.vmem %s3, 48
        %v907 = vld [vmem:[%s906] sm:$0xf]
        %v908 = vld [vmem:[%s906 + $0x4] sm:$0xf]
        %v909 = vld [vmem:[%s906 + $0x8] sm:$0xf]
        %v910 = vld [vmem:[%s906 + $0xc] sm:$0xf]
        %vm911 = vsmask.f32 5376
        %v912 = vrot.slane %v706, 2
        %v913 = vrot.slane %v709, 3
        %v914 = vor.u32 %v912, %v913
        %v915 = vrot.slane %v714, 2
        %v916 = vrot.slane %v717, 3
        %v917 = vor.u32 %v915, %v916
        %v918 = vsel %vm911, %v914, %v917
        %v923 = vunpack.c.l.b16 %v907
        %v924 = vunpack.c.l.b16 %v908
        %v925 = vunpack.c.l.b16 %v909
        %v926 = vunpack.c.l.b16 %v910
        %v927 = vpack.c.b16 %v924, %v923
        %v928 = vpack.c.b16 %v926, %v925
        %v932 = vsel %vm491, %v918, 0
        %934 = vmatprep.subr.bf16.mxu0 0
        %935 = vmatpush1.bf16.msra.mxu0 %v927
        %936 = vmatprep.subr.bf16.mxu0 0
        %937 = vmatpush1.bf16.msra.mxu0 %v928
        %938 = vmatprep.subr.bf16.mxu0 0
        %939 = vmatpush1.bf16.msra.mxu0 0
        %940 = vmatprep.subr.bf16.mxu0 0
        %941 = vmatpush1.bf16.msra.mxu0 0
        %942 = vmatprep.subr.bf16.mxu0 0
        %943 = vmatpush1.bf16.msra.mxu0 0
        %944 = vmatprep.subr.bf16.mxu0 0
        %945 = vmatpush1.bf16.msra.mxu0 0
        %946 = vmatprep.subr.bf16.mxu0 0
        %947 = vmatpush1.bf16.msra.mxu0 0
        %948 = vmatprep.subr.bf16.mxu0 0
        %949 = vmatpush1.bf16.msra.mxu0 0
        %950 = vmatprep.subr.bf16.mxu0 0
        %951 = vmatpush1.bf16.msra.mxu0 0
        %952 = vmatprep.subr.bf16.mxu0 0
        %953 = vmatpush1.bf16.msra.mxu0 0
        %954 = vmatprep.subr.bf16.mxu0 0
        %955 = vmatpush1.bf16.msra.mxu0 0
        %956 = vmatprep.subr.bf16.mxu0 0
        %957 = vmatpush1.bf16.msra.mxu0 0
        %958 = vmatprep.subr.bf16.mxu0 0
        %959 = vmatpush1.bf16.msra.mxu0 0
        %960 = vmatprep.subr.bf16.mxu0 0
        %961 = vmatpush1.bf16.msra.mxu0 0
        %962 = vmatprep.subr.bf16.mxu0 0
        %963 = vmatpush1.bf16.msra.mxu0 0
        %964 = vmatprep.subr.bf16.mxu0 0
        %965 = vmatpush1.bf16.msra.mxu0 0
        %966 = vmatprep.mubr.bf16.mxu0 0
        %967 = vmatmul.mubr.bf16.gmra.mrb[0].mxu0 %v932
        %v968 = vpop.f32.mrb[0].mxu0
        %v969 = vadd.f32 0.0, %v968
        %v970 = vpop.f32.mrb[0].mxu0
        %v971 = vpop.f32.mrb[0].mxu0
        %v972 = vadd.f32 0.0, %v971
        %v973 = vpop.f32.mrb[0].mxu0
        %974 = vdwg.mxu0
        %v975 = vadd.f32 %v904, %v969
        %v976 = vadd.f32 %v905, %v972
        %v977 = vlaneseq
        %v978 = vshrl.u32 %v977, 7
        %v979 = vlaneseq
        %v980 = vand.u32 %v979, 127
        %v981 = vmul.u32 %v978, 2
        %vm982 = vcmp.eq.s32.totalorder %v980, %v981
        %v983 = vsel %vm982, 1, 0
        %v984 = vcvt.s32.f32 %v983
        %v985 = vld [vmem:[%s4] sm:$0x1]
        %v987 = vlaneseq
        %v988 = vshrl.u32 %v987, 7
        %v989 = vsub.s32 0, %v988
        %v990 = vrot.slane %v985, %v989
        %vm992 = vcmask 121856
        %v994 = vsel %vm992, %v984, 0
        %vm996 = vcmask 1046528
        %v998 = vsel %vm996, %v976, 0
        %1000 = vmatprep.subr.mxu0 0.0
        %1001 = vmatpush1.msra.mxu0 %v975
        %1002 = vmatprep.subr.mxu0 0.0
        %1003 = vmatpush1.msra.mxu0 %v998
        %1004 = vmatprep.subr.mxu0 0.0
        %1005 = vmatpush1.msra.mxu0 0.0
        %1006 = vmatprep.subr.mxu0 0.0
        %1007 = vmatpush1.msra.mxu0 0.0
        %1008 = vmatprep.subr.mxu0 0.0
        %1009 = vmatpush1.msra.mxu0 0.0
        %1010 = vmatprep.subr.mxu0 0.0
        %1011 = vmatpush1.msra.mxu0 0.0
        %1012 = vmatprep.subr.mxu0 0.0
        %1013 = vmatpush1.msra.mxu0 0.0
        %1014 = vmatprep.subr.mxu0 0.0
        %1015 = vmatpush1.msra.mxu0 0.0
        %1016 = vmatprep.subr.mxu0 0.0
        %1017 = vmatpush1.msra.mxu0 0.0
        %1018 = vmatprep.subr.mxu0 0.0
        %1019 = vmatpush1.msra.mxu0 0.0
        %1020 = vmatprep.subr.mxu0 0.0
        %1021 = vmatpush1.msra.mxu0 0.0
        %1022 = vmatprep.subr.mxu0 0.0
        %1023 = vmatpush1.msra.mxu0 0.0
        %1024 = vmatprep.subr.mxu0 0.0
        %1025 = vmatpush1.msra.mxu0 0.0
        %1026 = vmatprep.subr.mxu0 0.0
        %1027 = vmatpush1.msra.mxu0 0.0
        %1028 = vmatprep.subr.mxu0 0.0
        %1029 = vmatpush1.msra.mxu0 0.0
        %1030 = vmatprep.subr.mxu0 0.0
        %1031 = vmatpush1.msra.mxu0 0.0
        %1032 = vmatprep.subr.mxu0 0.0
        %1033 = vmatpush1.msra.mxu0 0.0
        %1034 = vmatprep.subr.mxu0 0.0
        %1035 = vmatpush1.msra.mxu0 0.0
        %1036 = vmatprep.subr.mxu0 0.0
        %1037 = vmatpush1.msra.mxu0 0.0
        %1038 = vmatprep.subr.mxu0 0.0
        %1039 = vmatpush1.msra.mxu0 0.0
        %1040 = vmatprep.subr.mxu0 0.0
        %1041 = vmatpush1.msra.mxu0 0.0
        %1042 = vmatprep.subr.mxu0 0.0
        %1043 = vmatpush1.msra.mxu0 0.0
        %1044 = vmatprep.subr.mxu0 0.0
        %1045 = vmatpush1.msra.mxu0 0.0
        %1046 = vmatprep.subr.mxu0 0.0
        %1047 = vmatpush1.msra.mxu0 0.0
        %1048 = vmatprep.subr.mxu0 0.0
        %1049 = vmatpush1.msra.mxu0 0.0
        %1050 = vmatprep.subr.mxu0 0.0
        %1051 = vmatpush1.msra.mxu0 0.0
        %1052 = vmatprep.subr.mxu0 0.0
        %1053 = vmatpush1.msra.mxu0 0.0
        %1054 = vmatprep.subr.mxu0 0.0
        %1055 = vmatpush1.msra.mxu0 0.0
        %1056 = vmatprep.subr.mxu0 0.0
        %1057 = vmatpush1.msra.mxu0 0.0
        %1058 = vmatprep.subr.mxu0 0.0
        %1059 = vmatpush1.msra.mxu0 0.0
        %1060 = vmatprep.subr.mxu0 0.0
        %1061 = vmatpush1.msra.mxu0 0.0
        %1062 = vmatprep.subr.mxu0 0.0
        %1063 = vmatpush1.msra.mxu0 0.0
        %1064 = vmatprep.mubr.f32.mxu0 0.0
        %1065 = vmatmul.mubr.f32.gmra.mrb[0].mxu0 %v994
        %v1066 = vpop.f32.mrb[0].mxu0
        %v1067 = vadd.f32 %v990, %v1066
        %v1068 = vpop.f32.mrb[0].mxu0
        %1069 = vdwg.mxu0
        %1070 = vst.msk [vmem:[#allocation4 + $0x3] sm:$0xff] %vm491, %v1067
        %v1071 = vld [vmem:[#allocation4] sm:$0xff]
        %v1072 = vld [vmem:[#allocation4 + $0x8] sm:$0x3f]
        %v1073 = vmax.f32 %v1071, 0.0
        %v1074 = vmax.f32 %v1072, 0.0
        %v1075 = vpack.c.bf16 %v1074, %v1073
        %v1076 = vld [vmem:[#allocation8] sm:$0xf]
        %v1077 = vld [vmem:[#allocation8 + $0x4] sm:$0xf]
        %v1078 = vld [vmem:[#allocation8 + $0x8] sm:$0xf]
        %v1079 = vld [vmem:[#allocation8 + $0xc] sm:$0xf]
        %s1080 = scalar_lea.vmem [#allocation8], 16
        %v1081 = vld [vmem:[%s1080] sm:$0xf]
        %v1082 = vld [vmem:[%s1080 + $0x4] sm:$0xf]
        %v1083 = vld [vmem:[%s1080 + $0x8] sm:$0xf]
        %v1084 = vld [vmem:[%s1080 + $0xc] sm:$0xf]
        %v1086 = vshrl.u32 %v1075, 16
        %v1088 = vrot.slane %v1086, 1
        %v1089 = vshll.u32 %v1075, 16
        %v1091 = vrot.slane %v1089, 2
        %v1092 = vor.u32 %v1088, %v1091
        %v1097 = vunpack.c.l.b16 %v1081
        %v1098 = vunpack.c.l.b16 %v1082
        %v1099 = vunpack.c.l.b16 %v1083
        %v1100 = vunpack.c.l.b16 %v1084
        %v1101 = vpack.c.b16 %v1098, %v1097
        %v1102 = vpack.c.b16 %v1100, %v1099
        %v1106 = vsel %vm491, %v1092, 0
        %1108 = vmatprep.subr.bf16.mxu0 0
        %1109 = vmatpush1.bf16.msra.mxu0 %v1101
        %1110 = vmatprep.subr.bf16.mxu0 0
        %1111 = vmatpush1.bf16.msra.mxu0 %v1102
        %1112 = vmatprep.subr.bf16.mxu0 0
        %1113 = vmatpush1.bf16.msra.mxu0 0
        %1114 = vmatprep.subr.bf16.mxu0 0
        %1115 = vmatpush1.bf16.msra.mxu0 0
        %1116 = vmatprep.subr.bf16.mxu0 0
        %1117 = vmatpush1.bf16.msra.mxu0 0
        %1118 = vmatprep.subr.bf16.mxu0 0
        %1119 = vmatpush1.bf16.msra.mxu0 0
        %1120 = vmatprep.subr.bf16.mxu0 0
        %1121 = vmatpush1.bf16.msra.mxu0 0
        %1122 = vmatprep.subr.bf16.mxu0 0
        %1123 = vmatpush1.bf16.msra.mxu0 0
        %1124 = vmatprep.subr.bf16.mxu0 0
        %1125 = vmatpush1.bf16.msra.mxu0 0
        %1126 = vmatprep.subr.bf16.mxu0 0
        %1127 = vmatpush1.bf16.msra.mxu0 0
        %1128 = vmatprep.subr.bf16.mxu0 0
        %1129 = vmatpush1.bf16.msra.mxu0 0
        %1130 = vmatprep.subr.bf16.mxu0 0
        %1131 = vmatpush1.bf16.msra.mxu0 0
        %1132 = vmatprep.subr.bf16.mxu0 0
        %1133 = vmatpush1.bf16.msra.mxu0 0
        %1134 = vmatprep.subr.bf16.mxu0 0
        %1135 = vmatpush1.bf16.msra.mxu0 0
        %1136 = vmatprep.subr.bf16.mxu0 0
        %1137 = vmatpush1.bf16.msra.mxu0 0
        %1138 = vmatprep.subr.bf16.mxu0 0
        %1139 = vmatpush1.bf16.msra.mxu0 0
        %1140 = vmatprep.mubr.bf16.mxu0 0
        %1141 = vmatmul.mubr.bf16.gmra.mrb[0].mxu0 %v1106
        %v1142 = vpop.f32.mrb[0].mxu0
        %v1143 = vadd.f32 0.0, %v1142
        %v1144 = vpop.f32.mrb[0].mxu0
        %v1145 = vpop.f32.mrb[0].mxu0
        %v1146 = vpop.f32.mrb[0].mxu0
        %1147 = vdwg.mxu0
        %v1149 = vrot.slane %v1075, 1
        %v1154 = vunpack.c.l.b16 %v1076
        %v1155 = vunpack.c.l.b16 %v1077
        %v1156 = vunpack.c.l.b16 %v1078
        %v1157 = vunpack.c.l.b16 %v1079
        %v1158 = vpack.c.b16 %v1155, %v1154
        %v1159 = vpack.c.b16 %v1157, %v1156
        %v1163 = vsel %vm491, %v1149, 0
        %1165 = vmatprep.subr.bf16.mxu0 0
        %1166 = vmatpush1.bf16.msra.mxu0 %v1158
        %1167 = vmatprep.subr.bf16.mxu0 0
        %1168 = vmatpush1.bf16.msra.mxu0 %v1159
        %1169 = vmatprep.subr.bf16.mxu0 0
        %1170 = vmatpush1.bf16.msra.mxu0 0
        %1171 = vmatprep.subr.bf16.mxu0 0
        %1172 = vmatpush1.bf16.msra.mxu0 0
        %1173 = vmatprep.subr.bf16.mxu0 0
        %1174 = vmatpush1.bf16.msra.mxu0 0
        %1175 = vmatprep.subr.bf16.mxu0 0
        %1176 = vmatpush1.bf16.msra.mxu0 0
        %1177 = vmatprep.subr.bf16.mxu0 0
        %1178 = vmatpush1.bf16.msra.mxu0 0
        %1179 = vmatprep.subr.bf16.mxu0 0
        %1180 = vmatpush1.bf16.msra.mxu0 0
        %1181 = vmatprep.subr.bf16.mxu0 0
        %1182 = vmatpush1.bf16.msra.mxu0 0
        %1183 = vmatprep.subr.bf16.mxu0 0
        %1184 = vmatpush1.bf16.msra.mxu0 0
        %1185 = vmatprep.subr.bf16.mxu0 0
        %1186 = vmatpush1.bf16.msra.mxu0 0
        %1187 = vmatprep.subr.bf16.mxu0 0
        %1188 = vmatpush1.bf16.msra.mxu0 0
        %1189 = vmatprep.subr.bf16.mxu0 0
        %1190 = vmatpush1.bf16.msra.mxu0 0
        %1191 = vmatprep.subr.bf16.mxu0 0
        %1192 = vmatpush1.bf16.msra.mxu0 0
        %1193 = vmatprep.subr.bf16.mxu0 0
        %1194 = vmatpush1.bf16.msra.mxu0 0
        %1195 = vmatprep.subr.bf16.mxu0 0
        %1196 = vmatpush1.bf16.msra.mxu0 0
        %1197 = vmatprep.mubr.bf16.mxu0 0
        %1198 = vmatmul.mubr.bf16.gmra.mrb[0].mxu0 %v1163
        %v1199 = vpop.f32.mrb[0].mxu0
        %v1200 = vadd.f32 %v1143, %v1199
        %v1201 = vpop.f32.mrb[0].mxu0
        %v1202 = vpop.f32.mrb[0].mxu0
        %v1203 = vpop.f32.mrb[0].mxu0
        %1204 = vdwg.mxu0
        %s1205 = scalar_lea.vmem [#allocation8], 32
        %v1206 = vld [vmem:[%s1205] sm:$0xf]
        %v1207 = vld [vmem:[%s1205 + $0x4] sm:$0xf]
        %v1208 = vld [vmem:[%s1205 + $0x8] sm:$0xf]
        %v1209 = vld [vmem:[%s1205 + $0xc] sm:$0xf]
        %v1210 = vrot.slane %v1075, 2
        %v1215 = vunpack.c.l.b16 %v1206
        %v1216 = vunpack.c.l.b16 %v1207
        %v1217 = vunpack.c.l.b16 %v1208
        %v1218 = vunpack.c.l.b16 %v1209
        %v1219 = vpack.c.b16 %v1216, %v1215
        %v1220 = vpack.c.b16 %v1218, %v1217
        %v1224 = vsel %vm491, %v1210, 0
        %1226 = vmatprep.subr.bf16.mxu0 0
        %1227 = vmatpush1.bf16.msra.mxu0 %v1219
        %1228 = vmatprep.subr.bf16.mxu0 0
        %1229 = vmatpush1.bf16.msra.mxu0 %v1220
        %1230 = vmatprep.subr.bf16.mxu0 0
        %1231 = vmatpush1.bf16.msra.mxu0 0
        %1232 = vmatprep.subr.bf16.mxu0 0
        %1233 = vmatpush1.bf16.msra.mxu0 0
        %1234 = vmatprep.subr.bf16.mxu0 0
        %1235 = vmatpush1.bf16.msra.mxu0 0
        %1236 = vmatprep.subr.bf16.mxu0 0
        %1237 = vmatpush1.bf16.msra.mxu0 0
        %1238 = vmatprep.subr.bf16.mxu0 0
        %1239 = vmatpush1.bf16.msra.mxu0 0
        %1240 = vmatprep.subr.bf16.mxu0 0
        %1241 = vmatpush1.bf16.msra.mxu0 0
        %1242 = vmatprep.subr.bf16.mxu0 0
        %1243 = vmatpush1.bf16.msra.mxu0 0
        %1244 = vmatprep.subr.bf16.mxu0 0
        %1245 = vmatpush1.bf16.msra.mxu0 0
        %1246 = vmatprep.subr.bf16.mxu0 0
        %1247 = vmatpush1.bf16.msra.mxu0 0
        %1248 = vmatprep.subr.bf16.mxu0 0
        %1249 = vmatpush1.bf16.msra.mxu0 0
        %1250 = vmatprep.subr.bf16.mxu0 0
        %1251 = vmatpush1.bf16.msra.mxu0 0
        %1252 = vmatprep.subr.bf16.mxu0 0
        %1253 = vmatpush1.bf16.msra.mxu0 0
        %1254 = vmatprep.subr.bf16.mxu0 0
        %1255 = vmatpush1.bf16.msra.mxu0 0
        %1256 = vmatprep.subr.bf16.mxu0 0
        %1257 = vmatpush1.bf16.msra.mxu0 0
        %1258 = vmatprep.mubr.bf16.mxu0 0
        %1259 = vmatmul.mubr.bf16.gmra.mrb[0].mxu0 %v1224
        %v1260 = vpop.f32.mrb[0].mxu0
        %v1261 = vadd.f32 0.0, %v1260
        %v1262 = vpop.f32.mrb[0].mxu0
        %v1263 = vpop.f32.mrb[0].mxu0
        %v1264 = vpop.f32.mrb[0].mxu0
        %1265 = vdwg.mxu0
        %v1266 = vadd.f32 %v1200, %v1261
        %v1267 = vld [vmem:[#allocation10] sm:$0x1]
        %v1269 = vlaneseq
        %v1270 = vshrl.u32 %v1269, 7
        %v1271 = vsub.s32 0, %v1270
        %v1272 = vrot.slane %v1267, %v1271
        %v1274 = vadd.f32 %v1266, %v1272
        %v1275 = vmax.f32 %v1274, 0.0
        %v1276 = vpack.c.bf16 %v1275, %v1275
        %v1277 = vld [vmem:[#allocation11] sm:$0xf]
        %v1278 = vld [vmem:[#allocation11 + $0x4] sm:$0xf]
        %v1279 = vld [vmem:[#allocation11 + $0x8] sm:$0xf]
        %v1280 = vld [vmem:[#allocation11 + $0xc] sm:$0xf]
        %v1281 = vld [vmem:[#allocation13] sm:$0x1]
        %v1283 = vlaneseq
        %v1284 = vshrl.u32 %v1283, 7
        %v1285 = vsub.s32 0, %v1284
        %v1286 = vrot.slane %v1281, %v1285
        %v1292 = vunpack.c.l.b16 %v1277
        %v1293 = vunpack.c.l.b16 %v1278
        %v1294 = vunpack.c.l.b16 %v1279
        %v1295 = vunpack.c.l.b16 %v1280
        %v1296 = vpack.c.b16 %v1293, %v1292
        %v1297 = vpack.c.b16 %v1295, %v1294
        %v1301 = vsel %vm491, %v1276, 0
        %1303 = vmatprep.subr.bf16.mxu0 0
        %1304 = vmatpush1.bf16.msra.mxu0 %v1296
        %1305 = vmatprep.subr.bf16.mxu0 0
        %1306 = vmatpush1.bf16.msra.mxu0 %v1297
        %1307 = vmatprep.subr.bf16.mxu0 0
        %1308 = vmatpush1.bf16.msra.mxu0 0
        %1309 = vmatprep.subr.bf16.mxu0 0
        %1310 = vmatpush1.bf16.msra.mxu0 0
        %1311 = vmatprep.subr.bf16.mxu0 0
        %1312 = vmatpush1.bf16.msra.mxu0 0
        %1313 = vmatprep.subr.bf16.mxu0 0
        %1314 = vmatpush1.bf16.msra.mxu0 0
        %1315 = vmatprep.subr.bf16.mxu0 0
        %1316 = vmatpush1.bf16.msra.mxu0 0
        %1317 = vmatprep.subr.bf16.mxu0 0
        %1318 = vmatpush1.bf16.msra.mxu0 0
        %1319 = vmatprep.subr.bf16.mxu0 0
        %1320 = vmatpush1.bf16.msra.mxu0 0
        %1321 = vmatprep.subr.bf16.mxu0 0
        %1322 = vmatpush1.bf16.msra.mxu0 0
        %1323 = vmatprep.subr.bf16.mxu0 0
        %1324 = vmatpush1.bf16.msra.mxu0 0
        %1325 = vmatprep.subr.bf16.mxu0 0
        %1326 = vmatpush1.bf16.msra.mxu0 0
        %1327 = vmatprep.subr.bf16.mxu0 0
        %1328 = vmatpush1.bf16.msra.mxu0 0
        %1329 = vmatprep.subr.bf16.mxu0 0
        %1330 = vmatpush1.bf16.msra.mxu0 0
        %1331 = vmatprep.subr.bf16.mxu0 0
        %1332 = vmatpush1.bf16.msra.mxu0 0
        %1333 = vmatprep.subr.bf16.mxu0 0
        %1334 = vmatpush1.bf16.msra.mxu0 0
        %1335 = vmatprep.mubr.bf16.mxu0 0
        %1336 = vmatmul.mubr.bf16.gmra.mrb[0].mxu0 %v1301
        %v1337 = vpop.f32.mrb[0].mxu0
        %v1338 = vadd.f32 %v1286, %v1337
        %v1339 = vpop.f32.mrb[0].mxu0
        %v1340 = vpop.f32.mrb[0].mxu0
        %v1341 = vpop.f32.mrb[0].mxu0
        %1342 = vdwg.mxu0
        %v1343 = vld [vmem:[#allocation4 + $0x3] sm:$0xff]
        %v1344 = vadd.f32 %v1343, %v1338
        %1345 = vst.msk [vmem:[#allocation4 + $0x3] sm:$0xff] %vm491, %v1344
        %v1346 = vld [vmem:[#allocation4] sm:$0xff]
        %v1347 = vld [vmem:[#allocation4 + $0x8] sm:$0x3f]
        %v1348 = vmax.f32 %v1346, 0.0
        %v1349 = vmax.f32 %v1347, 0.0
        %v1350 = vpack.c.bf16 %v1349, %v1348
        %s1351 = scalar_lea.vmem [#allocation8], 48
        %v1352 = vld [vmem:[%s1351] sm:$0xf]
        %v1353 = vld [vmem:[%s1351 + $0x4] sm:$0xf]
        %v1354 = vld [vmem:[%s1351 + $0x8] sm:$0xf]
        %v1355 = vld [vmem:[%s1351 + $0xc] sm:$0xf]
        %s1356 = scalar_lea.vmem [#allocation8], 64
        %v1357 = vld [vmem:[%s1356] sm:$0xf]
        %v1358 = vld [vmem:[%s1356 + $0x4] sm:$0xf]
        %v1359 = vld [vmem:[%s1356 + $0x8] sm:$0xf]
        %v1360 = vld [vmem:[%s1356 + $0xc] sm:$0xf]
        %v1362 = vshrl.u32 %v1350, 16
        %v1364 = vrot.slane %v1362, 1
        %v1365 = vshll.u32 %v1350, 16
        %v1367 = vrot.slane %v1365, 2
        %v1368 = vor.u32 %v1364, %v1367
        %v1373 = vunpack.c.l.b16 %v1357
        %v1374 = vunpack.c.l.b16 %v1358
        %v1375 = vunpack.c.l.b16 %v1359
        %v1376 = vunpack.c.l.b16 %v1360
        %v1377 = vpack.c.b16 %v1374, %v1373
        %v1378 = vpack.c.b16 %v1376, %v1375
        %v1382 = vsel %vm491, %v1368, 0
        %1384 = vmatprep.subr.bf16.mxu0 0
        %1385 = vmatpush1.bf16.msra.mxu0 %v1377
        %1386 = vmatprep.subr.bf16.mxu0 0
        %1387 = vmatpush1.bf16.msra.mxu0 %v1378
        %1388 = vmatprep.subr.bf16.mxu0 0
        %1389 = vmatpush1.bf16.msra.mxu0 0
        %1390 = vmatprep.subr.bf16.mxu0 0
        %1391 = vmatpush1.bf16.msra.mxu0 0
        %1392 = vmatprep.subr.bf16.mxu0 0
        %1393 = vmatpush1.bf16.msra.mxu0 0
        %1394 = vmatprep.subr.bf16.mxu0 0
        %1395 = vmatpush1.bf16.msra.mxu0 0
        %1396 = vmatprep.subr.bf16.mxu0 0
        %1397 = vmatpush1.bf16.msra.mxu0 0
        %1398 = vmatprep.subr.bf16.mxu0 0
        %1399 = vmatpush1.bf16.msra.mxu0 0
        %1400 = vmatprep.subr.bf16.mxu0 0
        %1401 = vmatpush1.bf16.msra.mxu0 0
        %1402 = vmatprep.subr.bf16.mxu0 0
        %1403 = vmatpush1.bf16.msra.mxu0 0
        %1404 = vmatprep.subr.bf16.mxu0 0
        %1405 = vmatpush1.bf16.msra.mxu0 0
        %1406 = vmatprep.subr.bf16.mxu0 0
        %1407 = vmatpush1.bf16.msra.mxu0 0
        %1408 = vmatprep.subr.bf16.mxu0 0
        %1409 = vmatpush1.bf16.msra.mxu0 0
        %1410 = vmatprep.subr.bf16.mxu0 0
        %1411 = vmatpush1.bf16.msra.mxu0 0
        %1412 = vmatprep.subr.bf16.mxu0 0
        %1413 = vmatpush1.bf16.msra.mxu0 0
        %1414 = vmatprep.subr.bf16.mxu0 0
        %1415 = vmatpush1.bf16.msra.mxu0 0
        %1416 = vmatprep.mubr.bf16.mxu0 0
        %1417 = vmatmul.mubr.bf16.gmra.mrb[0].mxu0 %v1382
        %v1418 = vpop.f32.mrb[0].mxu0
        %v1419 = vadd.f32 0.0, %v1418
        %v1420 = vpop.f32.mrb[0].mxu0
        %v1421 = vpop.f32.mrb[0].mxu0
        %v1422 = vpop.f32.mrb[0].mxu0
        %1423 = vdwg.mxu0
        %v1428 = vunpack.c.l.b16 %v1352
        %v1429 = vunpack.c.l.b16 %v1353
        %v1430 = vunpack.c.l.b16 %v1354
        %v1431 = vunpack.c.l.b16 %v1355
        %v1432 = vpack.c.b16 %v1429, %v1428
        %v1433 = vpack.c.b16 %v1431, %v1430
        %v1436 = vsel %vm491, %v1350, 0
        %1438 = vmatprep.subr.bf16.mxu0 0
        %1439 = vmatpush1.bf16.msra.mxu0 %v1432
        %1440 = vmatprep.subr.bf16.mxu0 0
        %1441 = vmatpush1.bf16.msra.mxu0 %v1433
        %1442 = vmatprep.subr.bf16.mxu0 0
        %1443 = vmatpush1.bf16.msra.mxu0 0
        %1444 = vmatprep.subr.bf16.mxu0 0
        %1445 = vmatpush1.bf16.msra.mxu0 0
        %1446 = vmatprep.subr.bf16.mxu0 0
        %1447 = vmatpush1.bf16.msra.mxu0 0
        %1448 = vmatprep.subr.bf16.mxu0 0
        %1449 = vmatpush1.bf16.msra.mxu0 0
        %1450 = vmatprep.subr.bf16.mxu0 0
        %1451 = vmatpush1.bf16.msra.mxu0 0
        %1452 = vmatprep.subr.bf16.mxu0 0
        %1453 = vmatpush1.bf16.msra.mxu0 0
        %1454 = vmatprep.subr.bf16.mxu0 0
        %1455 = vmatpush1.bf16.msra.mxu0 0
        %1456 = vmatprep.subr.bf16.mxu0 0
        %1457 = vmatpush1.bf16.msra.mxu0 0
        %1458 = vmatprep.subr.bf16.mxu0 0
        %1459 = vmatpush1.bf16.msra.mxu0 0
        %1460 = vmatprep.subr.bf16.mxu0 0
        %1461 = vmatpush1.bf16.msra.mxu0 0
        %1462 = vmatprep.subr.bf16.mxu0 0
        %1463 = vmatpush1.bf16.msra.mxu0 0
        %1464 = vmatprep.subr.bf16.mxu0 0
        %1465 = vmatpush1.bf16.msra.mxu0 0
        %1466 = vmatprep.subr.bf16.mxu0 0
        %1467 = vmatpush1.bf16.msra.mxu0 0
        %1468 = vmatprep.subr.bf16.mxu0 0
        %1469 = vmatpush1.bf16.msra.mxu0 0
        %1470 = vmatprep.mubr.bf16.mxu0 0
        %1471 = vmatmul.mubr.bf16.gmra.mrb[0].mxu0 %v1436
        %v1472 = vpop.f32.mrb[0].mxu0
        %v1473 = vadd.f32 %v1419, %v1472
        %v1474 = vpop.f32.mrb[0].mxu0
        %v1475 = vpop.f32.mrb[0].mxu0
        %v1476 = vpop.f32.mrb[0].mxu0
        %1477 = vdwg.mxu0
        %s1478 = scalar_lea.vmem [#allocation8], 80
        %v1479 = vld [vmem:[%s1478] sm:$0xf]
        %v1480 = vld [vmem:[%s1478 + $0x4] sm:$0xf]
        %v1481 = vld [vmem:[%s1478 + $0x8] sm:$0xf]
        %v1482 = vld [vmem:[%s1478 + $0xc] sm:$0xf]
        %v1484 = vrot.slane %v1350, 3
        %v1489 = vunpack.c.l.b16 %v1479
        %v1490 = vunpack.c.l.b16 %v1480
        %v1491 = vunpack.c.l.b16 %v1481
        %v1492 = vunpack.c.l.b16 %v1482
        %v1493 = vpack.c.b16 %v1490, %v1489
        %v1494 = vpack.c.b16 %v1492, %v1491
        %v1498 = vsel %vm491, %v1484, 0
        %1500 = vmatprep.subr.bf16.mxu0 0
        %1501 = vmatpush1.bf16.msra.mxu0 %v1493
        %1502 = vmatprep.subr.bf16.mxu0 0
        %1503 = vmatpush1.bf16.msra.mxu0 %v1494
        %1504 = vmatprep.subr.bf16.mxu0 0
        %1505 = vmatpush1.bf16.msra.mxu0 0
        %1506 = vmatprep.subr.bf16.mxu0 0
        %1507 = vmatpush1.bf16.msra.mxu0 0
        %1508 = vmatprep.subr.bf16.mxu0 0
        %1509 = vmatpush1.bf16.msra.mxu0 0
        %1510 = vmatprep.subr.bf16.mxu0 0
        %1511 = vmatpush1.bf16.msra.mxu0 0
        %1512 = vmatprep.subr.bf16.mxu0 0
        %1513 = vmatpush1.bf16.msra.mxu0 0
        %1514 = vmatprep.subr.bf16.mxu0 0
        %1515 = vmatpush1.bf16.msra.mxu0 0
        %1516 = vmatprep.subr.bf16.mxu0 0
        %1517 = vmatpush1.bf16.msra.mxu0 0
        %1518 = vmatprep.subr.bf16.mxu0 0
        %1519 = vmatpush1.bf16.msra.mxu0 0
        %1520 = vmatprep.subr.bf16.mxu0 0
        %1521 = vmatpush1.bf16.msra.mxu0 0
        %1522 = vmatprep.subr.bf16.mxu0 0
        %1523 = vmatpush1.bf16.msra.mxu0 0
        %1524 = vmatprep.subr.bf16.mxu0 0
        %1525 = vmatpush1.bf16.msra.mxu0 0
        %1526 = vmatprep.subr.bf16.mxu0 0
        %1527 = vmatpush1.bf16.msra.mxu0 0
        %1528 = vmatprep.subr.bf16.mxu0 0
        %1529 = vmatpush1.bf16.msra.mxu0 0
        %1530 = vmatprep.subr.bf16.mxu0 0
        %1531 = vmatpush1.bf16.msra.mxu0 0
        %1532 = vmatprep.mubr.bf16.mxu0 0
        %1533 = vmatmul.mubr.bf16.gmra.mrb[0].mxu0 %v1498
        %v1534 = vpop.f32.mrb[0].mxu0
        %v1535 = vadd.f32 0.0, %v1534
        %v1536 = vpop.f32.mrb[0].mxu0
        %v1537 = vpop.f32.mrb[0].mxu0
        %v1538 = vpop.f32.mrb[0].mxu0
        %1539 = vdwg.mxu0
        %v1540 = vadd.f32 %v1473, %v1535
        %s1541 = scalar_lea.vmem [#allocation10], 1
        %v1542 = vld [vmem:[%s1541] sm:$0x1]
        %v1544 = vlaneseq
        %v1545 = vshrl.u32 %v1544, 7
        %v1546 = vsub.s32 0, %v1545
        %v1547 = vrot.slane %v1542, %v1546
        %v1549 = vadd.f32 %v1540, %v1547
        %v1550 = vmax.f32 %v1549, 0.0
        %v1551 = vpack.c.bf16 %v1550, %v1550
        %s1552 = scalar_lea.vmem [#allocation11], 16
        %v1553 = vld [vmem:[%s1552] sm:$0xf]
        %v1554 = vld [vmem:[%s1552 + $0x4] sm:$0xf]
        %v1555 = vld [vmem:[%s1552 + $0x8] sm:$0xf]
        %v1556 = vld [vmem:[%s1552 + $0xc] sm:$0xf]
        %s1557 = scalar_lea.vmem [#allocation13], 1
        %v1558 = vld [vmem:[%s1557] sm:$0x1]
        %v1560 = vlaneseq
        %v1561 = vshrl.u32 %v1560, 7
        %v1562 = vsub.s32 0, %v1561
        %v1563 = vrot.slane %v1558, %v1562
        %v1569 = vunpack.c.l.b16 %v1553
        %v1570 = vunpack.c.l.b16 %v1554
        %v1571 = vunpack.c.l.b16 %v1555
        %v1572 = vunpack.c.l.b16 %v1556
        %v1573 = vpack.c.b16 %v1570, %v1569
        %v1574 = vpack.c.b16 %v1572, %v1571
        %v1578 = vsel %vm491, %v1551, 0
        %1580 = vmatprep.subr.bf16.mxu0 0
        %1581 = vmatpush1.bf16.msra.mxu0 %v1573
        %1582 = vmatprep.subr.bf16.mxu0 0
        %1583 = vmatpush1.bf16.msra.mxu0 %v1574
        %1584 = vmatprep.subr.bf16.mxu0 0
        %1585 = vmatpush1.bf16.msra.mxu0 0
        %1586 = vmatprep.subr.bf16.mxu0 0
        %1587 = vmatpush1.bf16.msra.mxu0 0
        %1588 = vmatprep.subr.bf16.mxu0 0
        %1589 = vmatpush1.bf16.msra.mxu0 0
        %1590 = vmatprep.subr.bf16.mxu0 0
        %1591 = vmatpush1.bf16.msra.mxu0 0
        %1592 = vmatprep.subr.bf16.mxu0 0
        %1593 = vmatpush1.bf16.msra.mxu0 0
        %1594 = vmatprep.subr.bf16.mxu0 0
        %1595 = vmatpush1.bf16.msra.mxu0 0
        %1596 = vmatprep.subr.bf16.mxu0 0
        %1597 = vmatpush1.bf16.msra.mxu0 0
        %1598 = vmatprep.subr.bf16.mxu0 0
        %1599 = vmatpush1.bf16.msra.mxu0 0
        %1600 = vmatprep.subr.bf16.mxu0 0
        %1601 = vmatpush1.bf16.msra.mxu0 0
        %1602 = vmatprep.subr.bf16.mxu0 0
        %1603 = vmatpush1.bf16.msra.mxu0 0
        %1604 = vmatprep.subr.bf16.mxu0 0
        %1605 = vmatpush1.bf16.msra.mxu0 0
        %1606 = vmatprep.subr.bf16.mxu0 0
        %1607 = vmatpush1.bf16.msra.mxu0 0
        %1608 = vmatprep.subr.bf16.mxu0 0
        %1609 = vmatpush1.bf16.msra.mxu0 0
        %1610 = vmatprep.subr.bf16.mxu0 0
        %1611 = vmatpush1.bf16.msra.mxu0 0
        %1612 = vmatprep.mubr.bf16.mxu0 0
        %1613 = vmatmul.mubr.bf16.gmra.mrb[0].mxu0 %v1578
        %v1614 = vpop.f32.mrb[0].mxu0
        %v1615 = vadd.f32 %v1563, %v1614
        %v1616 = vpop.f32.mrb[0].mxu0
        %v1617 = vpop.f32.mrb[0].mxu0
        %v1618 = vpop.f32.mrb[0].mxu0
        %1619 = vdwg.mxu0
        %v1620 = vld [vmem:[#allocation4 + $0x3] sm:$0xff]
        %v1621 = vadd.f32 %v1620, %v1615
        %1622 = vst.msk [vmem:[#allocation4 + $0x3] sm:$0xff] %vm491, %v1621
        %v1623 = vld [vmem:[#allocation4] sm:$0xff]
        %v1624 = vld [vmem:[#allocation4 + $0x8] sm:$0x3f]
        %v1625 = vpack.c.bf16 %v1624, %v1623
        %s1626 = scalar_lea.vmem %s3, 64
        %v1627 = vld [vmem:[%s1626] sm:$0xf]
        %v1628 = vld [vmem:[%s1626 + $0x4] sm:$0xf]
        %v1629 = vld [vmem:[%s1626 + $0x8] sm:$0xf]
        %v1630 = vld [vmem:[%s1626 + $0xc] sm:$0xf]
        %s1631 = scalar_lea.vmem %s3, 80
        %v1632 = vld [vmem:[%s1631] sm:$0xf]
        %v1633 = vld [vmem:[%s1631 + $0x4] sm:$0xf]
        %v1634 = vld [vmem:[%s1631 + $0x8] sm:$0xf]
        %v1635 = vld [vmem:[%s1631 + $0xc] sm:$0xf]
        %v1637 = vshrl.u32 %v1625, 16
        %v1639 = vrot.slane %v1637, 1
        %v1640 = vshll.u32 %v1625, 16
        %v1642 = vrot.slane %v1640, 2
        %v1643 = vor.u32 %v1639, %v1642
        %v1648 = vunpack.c.l.b16 %v1632
        %v1649 = vunpack.c.l.b16 %v1633
        %v1650 = vunpack.c.l.b16 %v1634
        %v1651 = vunpack.c.l.b16 %v1635
        %v1652 = vpack.c.b16 %v1649, %v1648
        %v1653 = vpack.c.b16 %v1651, %v1650
        %v1657 = vsel %vm491, %v1643, 0
        %1659 = vmatprep.subr.bf16.mxu0 0
        %1660 = vmatpush1.bf16.msra.mxu0 %v1652
        %1661 = vmatprep.subr.bf16.mxu0 0
        %1662 = vmatpush1.bf16.msra.mxu0 %v1653
        %1663 = vmatprep.subr.bf16.mxu0 0
        %1664 = vmatpush1.bf16.msra.mxu0 0
        %1665 = vmatprep.subr.bf16.mxu0 0
        %1666 = vmatpush1.bf16.msra.mxu0 0
        %1667 = vmatprep.subr.bf16.mxu0 0
        %1668 = vmatpush1.bf16.msra.mxu0 0
        %1669 = vmatprep.subr.bf16.mxu0 0
        %1670 = vmatpush1.bf16.msra.mxu0 0
        %1671 = vmatprep.subr.bf16.mxu0 0
        %1672 = vmatpush1.bf16.msra.mxu0 0
        %1673 = vmatprep.subr.bf16.mxu0 0
        %1674 = vmatpush1.bf16.msra.mxu0 0
        %1675 = vmatprep.subr.bf16.mxu0 0
        %1676 = vmatpush1.bf16.msra.mxu0 0
        %1677 = vmatprep.subr.bf16.mxu0 0
        %1678 = vmatpush1.bf16.msra.mxu0 0
        %1679 = vmatprep.subr.bf16.mxu0 0
        %1680 = vmatpush1.bf16.msra.mxu0 0
        %1681 = vmatprep.subr.bf16.mxu0 0
        %1682 = vmatpush1.bf16.msra.mxu0 0
        %1683 = vmatprep.subr.bf16.mxu0 0
        %1684 = vmatpush1.bf16.msra.mxu0 0
        %1685 = vmatprep.subr.bf16.mxu0 0
        %1686 = vmatpush1.bf16.msra.mxu0 0
        %1687 = vmatprep.subr.bf16.mxu0 0
        %1688 = vmatpush1.bf16.msra.mxu0 0
        %1689 = vmatprep.subr.bf16.mxu0 0
        %1690 = vmatpush1.bf16.msra.mxu0 0
        %1691 = vmatprep.mubr.bf16.mxu0 0
        %1692 = vmatmul.mubr.bf16.gmra.mrb[0].mxu0 %v1657
        %v1693 = vpop.f32.mrb[0].mxu0
        %v1694 = vadd.f32 0.0, %v1693
        %v1695 = vpop.f32.mrb[0].mxu0
        %v1696 = vpop.f32.mrb[0].mxu0
        %v1697 = vpop.f32.mrb[0].mxu0
        %1698 = vdwg.mxu0
        %v1700 = vrot.slane %v1625, 1
        %v1705 = vunpack.c.l.b16 %v1627
        %v1706 = vunpack.c.l.b16 %v1628
        %v1707 = vunpack.c.l.b16 %v1629
        %v1708 = vunpack.c.l.b16 %v1630
        %v1709 = vpack.c.b16 %v1706, %v1705
        %v1710 = vpack.c.b16 %v1708, %v1707
        %v1714 = vsel %vm491, %v1700, 0
        %1716 = vmatprep.subr.bf16.mxu0 0
        %1717 = vmatpush1.bf16.msra.mxu0 %v1709
        %1718 = vmatprep.subr.bf16.mxu0 0
        %1719 = vmatpush1.bf16.msra.mxu0 %v1710
        %1720 = vmatprep.subr.bf16.mxu0 0
        %1721 = vmatpush1.bf16.msra.mxu0 0
        %1722 = vmatprep.subr.bf16.mxu0 0
        %1723 = vmatpush1.bf16.msra.mxu0 0
        %1724 = vmatprep.subr.bf16.mxu0 0
        %1725 = vmatpush1.bf16.msra.mxu0 0
        %1726 = vmatprep.subr.bf16.mxu0 0
        %1727 = vmatpush1.bf16.msra.mxu0 0
        %1728 = vmatprep.subr.bf16.mxu0 0
        %1729 = vmatpush1.bf16.msra.mxu0 0
        %1730 = vmatprep.subr.bf16.mxu0 0
        %1731 = vmatpush1.bf16.msra.mxu0 0
        %1732 = vmatprep.subr.bf16.mxu0 0
        %1733 = vmatpush1.bf16.msra.mxu0 0
        %1734 = vmatprep.subr.bf16.mxu0 0
        %1735 = vmatpush1.bf16.msra.mxu0 0
        %1736 = vmatprep.subr.bf16.mxu0 0
        %1737 = vmatpush1.bf16.msra.mxu0 0
        %1738 = vmatprep.subr.bf16.mxu0 0
        %1739 = vmatpush1.bf16.msra.mxu0 0
        %1740 = vmatprep.subr.bf16.mxu0 0
        %1741 = vmatpush1.bf16.msra.mxu0 0
        %1742 = vmatprep.subr.bf16.mxu0 0
        %1743 = vmatpush1.bf16.msra.mxu0 0
        %1744 = vmatprep.subr.bf16.mxu0 0
        %1745 = vmatpush1.bf16.msra.mxu0 0
        %1746 = vmatprep.subr.bf16.mxu0 0
        %1747 = vmatpush1.bf16.msra.mxu0 0
        %1748 = vmatprep.mubr.bf16.mxu0 0
        %1749 = vmatmul.mubr.bf16.gmra.mrb[0].mxu0 %v1714
        %v1750 = vpop.f32.mrb[0].mxu0
        %v1751 = vadd.f32 %v1694, %v1750
        %v1752 = vpop.f32.mrb[0].mxu0
        %v1753 = vpop.f32.mrb[0].mxu0
        %v1754 = vpop.f32.mrb[0].mxu0
        %1755 = vdwg.mxu0
        %s1756 = scalar_lea.vmem %s3, 96
        %v1757 = vld [vmem:[%s1756] sm:$0xf]
        %v1758 = vld [vmem:[%s1756 + $0x4] sm:$0xf]
        %v1759 = vld [vmem:[%s1756 + $0x8] sm:$0xf]
        %v1760 = vld [vmem:[%s1756 + $0xc] sm:$0xf]
        %v1761 = vrot.slane %v1625, 2
        %v1766 = vunpack.c.l.b16 %v1757
        %v1767 = vunpack.c.l.b16 %v1758
        %v1768 = vunpack.c.l.b16 %v1759
        %v1769 = vunpack.c.l.b16 %v1760
        %v1770 = vpack.c.b16 %v1767, %v1766
        %v1771 = vpack.c.b16 %v1769, %v1768
        %v1775 = vsel %vm491, %v1761, 0
        %1777 = vmatprep.subr.bf16.mxu0 0
        %1778 = vmatpush1.bf16.msra.mxu0 %v1770
        %1779 = vmatprep.subr.bf16.mxu0 0
        %1780 = vmatpush1.bf16.msra.mxu0 %v1771
        %1781 = vmatprep.subr.bf16.mxu0 0
        %1782 = vmatpush1.bf16.msra.mxu0 0
        %1783 = vmatprep.subr.bf16.mxu0 0
        %1784 = vmatpush1.bf16.msra.mxu0 0
        %1785 = vmatprep.subr.bf16.mxu0 0
        %1786 = vmatpush1.bf16.msra.mxu0 0
        %1787 = vmatprep.subr.bf16.mxu0 0
        %1788 = vmatpush1.bf16.msra.mxu0 0
        %1789 = vmatprep.subr.bf16.mxu0 0
        %1790 = vmatpush1.bf16.msra.mxu0 0
        %1791 = vmatprep.subr.bf16.mxu0 0
        %1792 = vmatpush1.bf16.msra.mxu0 0
        %1793 = vmatprep.subr.bf16.mxu0 0
        %1794 = vmatpush1.bf16.msra.mxu0 0
        %1795 = vmatprep.subr.bf16.mxu0 0
        %1796 = vmatpush1.bf16.msra.mxu0 0
        %1797 = vmatprep.subr.bf16.mxu0 0
        %1798 = vmatpush1.bf16.msra.mxu0 0
        %1799 = vmatprep.subr.bf16.mxu0 0
        %1800 = vmatpush1.bf16.msra.mxu0 0
        %1801 = vmatprep.subr.bf16.mxu0 0
        %1802 = vmatpush1.bf16.msra.mxu0 0
        %1803 = vmatprep.subr.bf16.mxu0 0
        %1804 = vmatpush1.bf16.msra.mxu0 0
        %1805 = vmatprep.subr.bf16.mxu0 0
        %1806 = vmatpush1.bf16.msra.mxu0 0
        %1807 = vmatprep.subr.bf16.mxu0 0
        %1808 = vmatpush1.bf16.msra.mxu0 0
        %1809 = vmatprep.mubr.bf16.mxu0 0
        %1810 = vmatmul.mubr.bf16.gmra.mrb[0].mxu0 %v1775
        %v1811 = vpop.f32.mrb[0].mxu0
        %v1812 = vadd.f32 0.0, %v1811
        %v1813 = vpop.f32.mrb[0].mxu0
        %v1814 = vpop.f32.mrb[0].mxu0
        %v1815 = vpop.f32.mrb[0].mxu0
        %1816 = vdwg.mxu0
        %v1817 = vadd.f32 %v1751, %v1812
        %s1818 = scalar_lea.vmem %s3, 112
        %v1819 = vld [vmem:[%s1818] sm:$0xf]
        %v1820 = vld [vmem:[%s1818 + $0x4] sm:$0xf]
        %v1821 = vld [vmem:[%s1818 + $0x8] sm:$0xf]
        %v1822 = vld [vmem:[%s1818 + $0xc] sm:$0xf]
        %v1823 = vrot.slane %v1637, 2
        %v1824 = vrot.slane %v1640, 3
        %v1825 = vor.u32 %v1823, %v1824
        %v1830 = vunpack.c.l.b16 %v1819
        %v1831 = vunpack.c.l.b16 %v1820
        %v1832 = vunpack.c.l.b16 %v1821
        %v1833 = vunpack.c.l.b16 %v1822
        %v1834 = vpack.c.b16 %v1831, %v1830
        %v1835 = vpack.c.b16 %v1833, %v1832
        %v1839 = vsel %vm491, %v1825, 0
        %1841 = vmatprep.subr.bf16.mxu0 0
        %1842 = vmatpush1.bf16.msra.mxu0 %v1834
        %1843 = vmatprep.subr.bf16.mxu0 0
        %1844 = vmatpush1.bf16.msra.mxu0 %v1835
        %1845 = vmatprep.subr.bf16.mxu0 0
        %1846 = vmatpush1.bf16.msra.mxu0 0
        %1847 = vmatprep.subr.bf16.mxu0 0
        %1848 = vmatpush1.bf16.msra.mxu0 0
        %1849 = vmatprep.subr.bf16.mxu0 0
        %1850 = vmatpush1.bf16.msra.mxu0 0
        %1851 = vmatprep.subr.bf16.mxu0 0
        %1852 = vmatpush1.bf16.msra.mxu0 0
        %1853 = vmatprep.subr.bf16.mxu0 0
        %1854 = vmatpush1.bf16.msra.mxu0 0
        %1855 = vmatprep.subr.bf16.mxu0 0
        %1856 = vmatpush1.bf16.msra.mxu0 0
        %1857 = vmatprep.subr.bf16.mxu0 0
        %1858 = vmatpush1.bf16.msra.mxu0 0
        %1859 = vmatprep.subr.bf16.mxu0 0
        %1860 = vmatpush1.bf16.msra.mxu0 0
        %1861 = vmatprep.subr.bf16.mxu0 0
        %1862 = vmatpush1.bf16.msra.mxu0 0
        %1863 = vmatprep.subr.bf16.mxu0 0
        %1864 = vmatpush1.bf16.msra.mxu0 0
        %1865 = vmatprep.subr.bf16.mxu0 0
        %1866 = vmatpush1.bf16.msra.mxu0 0
        %1867 = vmatprep.subr.bf16.mxu0 0
        %1868 = vmatpush1.bf16.msra.mxu0 0
        %1869 = vmatprep.subr.bf16.mxu0 0
        %1870 = vmatpush1.bf16.msra.mxu0 0
        %1871 = vmatprep.subr.bf16.mxu0 0
        %1872 = vmatpush1.bf16.msra.mxu0 0
        %1873 = vmatprep.mubr.bf16.mxu0 0
        %1874 = vmatmul.mubr.bf16.gmra.mrb[0].mxu0 %v1839
        %v1875 = vpop.f32.mrb[0].mxu0
        %v1876 = vadd.f32 0.0, %v1875
        %v1877 = vpop.f32.mrb[0].mxu0
        %v1878 = vpop.f32.mrb[0].mxu0
        %v1879 = vpop.f32.mrb[0].mxu0
        %1880 = vdwg.mxu0
        %v1881 = vadd.f32 %v1817, %v1876
        %s1882 = scalar_lea.vmem %s4, 1
        %v1883 = vld [vmem:[%s1882] sm:$0x1]
        %v1885 = vlaneseq
        %v1886 = vshrl.u32 %v1885, 7
        %v1887 = vsub.s32 0, %v1886
        %v1888 = vrot.slane %v1883, %v1887
        %vm1890 = vcmask 56320
        %v1891 = vsel %vm1890, %v984, 0
        %v1894 = vsel %vm996, %v1881, 0
        %1896 = vmatprep.subr.mxu0 0.0
        %1897 = vmatpush1.msra.mxu0 %v1894
        %1898 = vmatprep.subr.mxu0 0.0
        %1899 = vmatpush1.msra.mxu0 0.0
        %1900 = vmatprep.subr.mxu0 0.0
        %1901 = vmatpush1.msra.mxu0 0.0
        %1902 = vmatprep.subr.mxu0 0.0
        %1903 = vmatpush1.msra.mxu0 0.0
        %1904 = vmatprep.subr.mxu0 0.0
        %1905 = vmatpush1.msra.mxu0 0.0
        %1906 = vmatprep.subr.mxu0 0.0
        %1907 = vmatpush1.msra.mxu0 0.0
        %1908 = vmatprep.subr.mxu0 0.0
        %1909 = vmatpush1.msra.mxu0 0.0
        %1910 = vmatprep.subr.mxu0 0.0
        %1911 = vmatpush1.msra.mxu0 0.0
        %1912 = vmatprep.subr.mxu0 0.0
        %1913 = vmatpush1.msra.mxu0 0.0
        %1914 = vmatprep.subr.mxu0 0.0
        %1915 = vmatpush1.msra.mxu0 0.0
        %1916 = vmatprep.subr.mxu0 0.0
        %1917 = vmatpush1.msra.mxu0 0.0
        %1918 = vmatprep.subr.mxu0 0.0
        %1919 = vmatpush1.msra.mxu0 0.0
        %1920 = vmatprep.subr.mxu0 0.0
        %1921 = vmatpush1.msra.mxu0 0.0
        %1922 = vmatprep.subr.mxu0 0.0
        %1923 = vmatpush1.msra.mxu0 0.0
        %1924 = vmatprep.subr.mxu0 0.0
        %1925 = vmatpush1.msra.mxu0 0.0
        %1926 = vmatprep.subr.mxu0 0.0
        %1927 = vmatpush1.msra.mxu0 0.0
        %1928 = vmatprep.subr.mxu0 0.0
        %1929 = vmatpush1.msra.mxu0 0.0
        %1930 = vmatprep.subr.mxu0 0.0
        %1931 = vmatpush1.msra.mxu0 0.0
        %1932 = vmatprep.subr.mxu0 0.0
        %1933 = vmatpush1.msra.mxu0 0.0
        %1934 = vmatprep.subr.mxu0 0.0
        %1935 = vmatpush1.msra.mxu0 0.0
        %1936 = vmatprep.subr.mxu0 0.0
        %1937 = vmatpush1.msra.mxu0 0.0
        %1938 = vmatprep.subr.mxu0 0.0
        %1939 = vmatpush1.msra.mxu0 0.0
        %1940 = vmatprep.subr.mxu0 0.0
        %1941 = vmatpush1.msra.mxu0 0.0
        %1942 = vmatprep.subr.mxu0 0.0
        %1943 = vmatpush1.msra.mxu0 0.0
        %1944 = vmatprep.subr.mxu0 0.0
        %1945 = vmatpush1.msra.mxu0 0.0
        %1946 = vmatprep.subr.mxu0 0.0
        %1947 = vmatpush1.msra.mxu0 0.0
        %1948 = vmatprep.subr.mxu0 0.0
        %1949 = vmatpush1.msra.mxu0 0.0
        %1950 = vmatprep.subr.mxu0 0.0
        %1951 = vmatpush1.msra.mxu0 0.0
        %1952 = vmatprep.subr.mxu0 0.0
        %1953 = vmatpush1.msra.mxu0 0.0
        %1954 = vmatprep.subr.mxu0 0.0
        %1955 = vmatpush1.msra.mxu0 0.0
        %1956 = vmatprep.subr.mxu0 0.0
        %1957 = vmatpush1.msra.mxu0 0.0
        %1958 = vmatprep.subr.mxu0 0.0
        %1959 = vmatpush1.msra.mxu0 0.0
        %1960 = vmatprep.mubr.f32.mxu0 0.0
        %1961 = vmatmul.mubr.f32.gmra.mrb[0].mxu0 %v1891
        %v1962 = vpop.f32.mrb[0].mxu0
        %v1963 = vadd.f32 %v1888, %v1962
        %v1964 = vpop.f32.mrb[0].mxu0
        %1965 = vdwg.mxu0
        %vm1966 = vcmask 257024
        %1967 = vst.msk [vmem:[#allocation5 + $0x3] sm:$0xf] %vm1966, %v1963
        %v1968 = vld [vmem:[#allocation5] sm:$0xff]
        %v1969 = vld [vmem:[#allocation5 + $0x8] sm:$0x3]
        %v1970 = vmax.f32 %v1968, 0.0
        %v1971 = vmax.f32 %v1969, 0.0
        %v1972 = vpack.c.bf16 %v1971, %v1970
        %s1973 = scalar_lea.vmem [#allocation8], 96
        %v1974 = vld [vmem:[%s1973] sm:$0xf]
        %v1975 = vld [vmem:[%s1973 + $0x4] sm:$0xf]
        %v1976 = vld [vmem:[%s1973 + $0x8] sm:$0xf]
        %v1977 = vld [vmem:[%s1973 + $0xc] sm:$0xf]
        %s1978 = scalar_lea.vmem [#allocation8], 112
        %v1979 = vld [vmem:[%s1978] sm:$0xf]
        %v1980 = vld [vmem:[%s1978 + $0x4] sm:$0xf]
        %v1981 = vld [vmem:[%s1978 + $0x8] sm:$0xf]
        %v1982 = vld [vmem:[%s1978 + $0xc] sm:$0xf]
        %v1984 = vshrl.u32 %v1972, 16
        %v1986 = vrot.slane %v1984, 1
        %v1987 = vshll.u32 %v1972, 16
        %v1989 = vrot.slane %v1987, 2
        %v1990 = vor.u32 %v1986, %v1989
        %v1995 = vunpack.c.l.b16 %v1979
        %v1996 = vunpack.c.l.b16 %v1980
        %v1997 = vunpack.c.l.b16 %v1981
        %v1998 = vunpack.c.l.b16 %v1982
        %v1999 = vpack.c.b16 %v1996, %v1995
        %v2000 = vpack.c.b16 %v1998, %v1997
        %v2004 = vsel %vm491, %v1990, 0
        %2006 = vmatprep.subr.bf16.mxu0 0
        %2007 = vmatpush1.bf16.msra.mxu0 %v1999
        %2008 = vmatprep.subr.bf16.mxu0 0
        %2009 = vmatpush1.bf16.msra.mxu0 %v2000
        %2010 = vmatprep.subr.bf16.mxu0 0
        %2011 = vmatpush1.bf16.msra.mxu0 0
        %2012 = vmatprep.subr.bf16.mxu0 0
        %2013 = vmatpush1.bf16.msra.mxu0 0
        %2014 = vmatprep.subr.bf16.mxu0 0
        %2015 = vmatpush1.bf16.msra.mxu0 0
        %2016 = vmatprep.subr.bf16.mxu0 0
        %2017 = vmatpush1.bf16.msra.mxu0 0
        %2018 = vmatprep.subr.bf16.mxu0 0
        %2019 = vmatpush1.bf16.msra.mxu0 0
        %2020 = vmatprep.subr.bf16.mxu0 0
        %2021 = vmatpush1.bf16.msra.mxu0 0
        %2022 = vmatprep.subr.bf16.mxu0 0
        %2023 = vmatpush1.bf16.msra.mxu0 0
        %2024 = vmatprep.subr.bf16.mxu0 0
        %2025 = vmatpush1.bf16.msra.mxu0 0
        %2026 = vmatprep.subr.bf16.mxu0 0
        %2027 = vmatpush1.bf16.msra.mxu0 0
        %2028 = vmatprep.subr.bf16.mxu0 0
        %2029 = vmatpush1.bf16.msra.mxu0 0
        %2030 = vmatprep.subr.bf16.mxu0 0
        %2031 = vmatpush1.bf16.msra.mxu0 0
        %2032 = vmatprep.subr.bf16.mxu0 0
        %2033 = vmatpush1.bf16.msra.mxu0 0
        %2034 = vmatprep.subr.bf16.mxu0 0
        %2035 = vmatpush1.bf16.msra.mxu0 0
        %2036 = vmatprep.subr.bf16.mxu0 0
        %2037 = vmatpush1.bf16.msra.mxu0 0
        %2038 = vmatprep.mubr.bf16.mxu0 0
        %2039 = vmatmul.mubr.bf16.gmra.mrb[0].mxu0 %v2004
        %v2040 = vpop.f32.mrb[0].mxu0
        %v2041 = vadd.f32 0.0, %v2040
        %v2042 = vpop.f32.mrb[0].mxu0
        %v2043 = vpop.f32.mrb[0].mxu0
        %v2044 = vpop.f32.mrb[0].mxu0
        %2045 = vdwg.mxu0
        %v2047 = vrot.slane %v1972, 1
        %v2052 = vunpack.c.l.b16 %v1974
        %v2053 = vunpack.c.l.b16 %v1975
        %v2054 = vunpack.c.l.b16 %v1976
        %v2055 = vunpack.c.l.b16 %v1977
        %v2056 = vpack.c.b16 %v2053, %v2052
        %v2057 = vpack.c.b16 %v2055, %v2054
        %v2061 = vsel %vm491, %v2047, 0
        %2063 = vmatprep.subr.bf16.mxu0 0
        %2064 = vmatpush1.bf16.msra.mxu0 %v2056
        %2065 = vmatprep.subr.bf16.mxu0 0
        %2066 = vmatpush1.bf16.msra.mxu0 %v2057
        %2067 = vmatprep.subr.bf16.mxu0 0
        %2068 = vmatpush1.bf16.msra.mxu0 0
        %2069 = vmatprep.subr.bf16.mxu0 0
        %2070 = vmatpush1.bf16.msra.mxu0 0
        %2071 = vmatprep.subr.bf16.mxu0 0
        %2072 = vmatpush1.bf16.msra.mxu0 0
        %2073 = vmatprep.subr.bf16.mxu0 0
        %2074 = vmatpush1.bf16.msra.mxu0 0
        %2075 = vmatprep.subr.bf16.mxu0 0
        %2076 = vmatpush1.bf16.msra.mxu0 0
        %2077 = vmatprep.subr.bf16.mxu0 0
        %2078 = vmatpush1.bf16.msra.mxu0 0
        %2079 = vmatprep.subr.bf16.mxu0 0
        %2080 = vmatpush1.bf16.msra.mxu0 0
        %2081 = vmatprep.subr.bf16.mxu0 0
        %2082 = vmatpush1.bf16.msra.mxu0 0
        %2083 = vmatprep.subr.bf16.mxu0 0
        %2084 = vmatpush1.bf16.msra.mxu0 0
        %2085 = vmatprep.subr.bf16.mxu0 0
        %2086 = vmatpush1.bf16.msra.mxu0 0
        %2087 = vmatprep.subr.bf16.mxu0 0
        %2088 = vmatpush1.bf16.msra.mxu0 0
        %2089 = vmatprep.subr.bf16.mxu0 0
        %2090 = vmatpush1.bf16.msra.mxu0 0
        %2091 = vmatprep.subr.bf16.mxu0 0
        %2092 = vmatpush1.bf16.msra.mxu0 0
        %2093 = vmatprep.subr.bf16.mxu0 0
        %2094 = vmatpush1.bf16.msra.mxu0 0
        %2095 = vmatprep.mubr.bf16.mxu0 0
        %2096 = vmatmul.mubr.bf16.gmra.mrb[0].mxu0 %v2061
        %v2097 = vpop.f32.mrb[0].mxu0
        %v2098 = vadd.f32 %v2041, %v2097
        %v2099 = vpop.f32.mrb[0].mxu0
        %v2100 = vpop.f32.mrb[0].mxu0
        %v2101 = vpop.f32.mrb[0].mxu0
        %2102 = vdwg.mxu0
        %s2103 = scalar_lea.vmem [#allocation8], 128
        %v2104 = vld [vmem:[%s2103] sm:$0xf]
        %v2105 = vld [vmem:[%s2103 + $0x4] sm:$0xf]
        %v2106 = vld [vmem:[%s2103 + $0x8] sm:$0xf]
        %v2107 = vld [vmem:[%s2103 + $0xc] sm:$0xf]
        %v2108 = vrot.slane %v1972, 2
        %v2113 = vunpack.c.l.b16 %v2104
        %v2114 = vunpack.c.l.b16 %v2105
        %v2115 = vunpack.c.l.b16 %v2106
        %v2116 = vunpack.c.l.b16 %v2107
        %v2117 = vpack.c.b16 %v2114, %v2113
        %v2118 = vpack.c.b16 %v2116, %v2115
        %v2122 = vsel %vm491, %v2108, 0
        %2124 = vmatprep.subr.bf16.mxu0 0
        %2125 = vmatpush1.bf16.msra.mxu0 %v2117
        %2126 = vmatprep.subr.bf16.mxu0 0
        %2127 = vmatpush1.bf16.msra.mxu0 %v2118
        %2128 = vmatprep.subr.bf16.mxu0 0
        %2129 = vmatpush1.bf16.msra.mxu0 0
        %2130 = vmatprep.subr.bf16.mxu0 0
        %2131 = vmatpush1.bf16.msra.mxu0 0
        %2132 = vmatprep.subr.bf16.mxu0 0
        %2133 = vmatpush1.bf16.msra.mxu0 0
        %2134 = vmatprep.subr.bf16.mxu0 0
        %2135 = vmatpush1.bf16.msra.mxu0 0
        %2136 = vmatprep.subr.bf16.mxu0 0
        %2137 = vmatpush1.bf16.msra.mxu0 0
        %2138 = vmatprep.subr.bf16.mxu0 0
        %2139 = vmatpush1.bf16.msra.mxu0 0
        %2140 = vmatprep.subr.bf16.mxu0 0
        %2141 = vmatpush1.bf16.msra.mxu0 0
        %2142 = vmatprep.subr.bf16.mxu0 0
        %2143 = vmatpush1.bf16.msra.mxu0 0
        %2144 = vmatprep.subr.bf16.mxu0 0
        %2145 = vmatpush1.bf16.msra.mxu0 0
        %2146 = vmatprep.subr.bf16.mxu0 0
        %2147 = vmatpush1.bf16.msra.mxu0 0
        %2148 = vmatprep.subr.bf16.mxu0 0
        %2149 = vmatpush1.bf16.msra.mxu0 0
        %2150 = vmatprep.subr.bf16.mxu0 0
        %2151 = vmatpush1.bf16.msra.mxu0 0
        %2152 = vmatprep.subr.bf16.mxu0 0
        %2153 = vmatpush1.bf16.msra.mxu0 0
        %2154 = vmatprep.subr.bf16.mxu0 0
        %2155 = vmatpush1.bf16.msra.mxu0 0
        %2156 = vmatprep.mubr.bf16.mxu0 0
        %2157 = vmatmul.mubr.bf16.gmra.mrb[0].mxu0 %v2122
        %v2158 = vpop.f32.mrb[0].mxu0
        %v2159 = vadd.f32 0.0, %v2158
        %v2160 = vpop.f32.mrb[0].mxu0
        %v2161 = vpop.f32.mrb[0].mxu0
        %v2162 = vpop.f32.mrb[0].mxu0
        %2163 = vdwg.mxu0
        %v2164 = vadd.f32 %v2098, %v2159
        %s2165 = scalar_lea.vmem [#allocation10], 2
        %v2166 = vld [vmem:[%s2165] sm:$0x1]
        %v2168 = vlaneseq
        %v2169 = vshrl.u32 %v2168, 7
        %v2170 = vsub.s32 0, %v2169
        %v2171 = vrot.slane %v2166, %v2170
        %v2173 = vadd.f32 %v2164, %v2171
        %v2174 = vmax.f32 %v2173, 0.0
        %v2175 = vpack.c.bf16 %v2174, %v2174
        %s2176 = scalar_lea.vmem [#allocation11], 32
        %v2177 = vld [vmem:[%s2176] sm:$0xf]
        %v2178 = vld [vmem:[%s2176 + $0x4] sm:$0xf]
        %v2179 = vld [vmem:[%s2176 + $0x8] sm:$0xf]
        %v2180 = vld [vmem:[%s2176 + $0xc] sm:$0xf]
        %s2181 = scalar_lea.vmem [#allocation13], 2
        %v2182 = vld [vmem:[%s2181] sm:$0x1]
        %v2184 = vlaneseq
        %v2185 = vshrl.u32 %v2184, 7
        %v2186 = vsub.s32 0, %v2185
        %v2187 = vrot.slane %v2182, %v2186
        %v2193 = vunpack.c.l.b16 %v2177
        %v2194 = vunpack.c.l.b16 %v2178
        %v2195 = vunpack.c.l.b16 %v2179
        %v2196 = vunpack.c.l.b16 %v2180
        %v2197 = vpack.c.b16 %v2194, %v2193
        %v2198 = vpack.c.b16 %v2196, %v2195
        %v2202 = vsel %vm491, %v2175, 0
        %2204 = vmatprep.subr.bf16.mxu0 0
        %2205 = vmatpush1.bf16.msra.mxu0 %v2197
        %2206 = vmatprep.subr.bf16.mxu0 0
        %2207 = vmatpush1.bf16.msra.mxu0 %v2198
        %2208 = vmatprep.subr.bf16.mxu0 0
        %2209 = vmatpush1.bf16.msra.mxu0 0
        %2210 = vmatprep.subr.bf16.mxu0 0
        %2211 = vmatpush1.bf16.msra.mxu0 0
        %2212 = vmatprep.subr.bf16.mxu0 0
        %2213 = vmatpush1.bf16.msra.mxu0 0
        %2214 = vmatprep.subr.bf16.mxu0 0
        %2215 = vmatpush1.bf16.msra.mxu0 0
        %2216 = vmatprep.subr.bf16.mxu0 0
        %2217 = vmatpush1.bf16.msra.mxu0 0
        %2218 = vmatprep.subr.bf16.mxu0 0
        %2219 = vmatpush1.bf16.msra.mxu0 0
        %2220 = vmatprep.subr.bf16.mxu0 0
        %2221 = vmatpush1.bf16.msra.mxu0 0
        %2222 = vmatprep.subr.bf16.mxu0 0
        %2223 = vmatpush1.bf16.msra.mxu0 0
        %2224 = vmatprep.subr.bf16.mxu0 0
        %2225 = vmatpush1.bf16.msra.mxu0 0
        %2226 = vmatprep.subr.bf16.mxu0 0
        %2227 = vmatpush1.bf16.msra.mxu0 0
        %2228 = vmatprep.subr.bf16.mxu0 0
        %2229 = vmatpush1.bf16.msra.mxu0 0
        %2230 = vmatprep.subr.bf16.mxu0 0
        %2231 = vmatpush1.bf16.msra.mxu0 0
        %2232 = vmatprep.subr.bf16.mxu0 0
        %2233 = vmatpush1.bf16.msra.mxu0 0
        %2234 = vmatprep.subr.bf16.mxu0 0
        %2235 = vmatpush1.bf16.msra.mxu0 0
        %2236 = vmatprep.mubr.bf16.mxu0 0
        %2237 = vmatmul.mubr.bf16.gmra.mrb[0].mxu0 %v2202
        %v2238 = vpop.f32.mrb[0].mxu0
        %v2239 = vadd.f32 %v2187, %v2238
        %v2240 = vpop.f32.mrb[0].mxu0
        %v2241 = vpop.f32.mrb[0].mxu0
        %v2242 = vpop.f32.mrb[0].mxu0
        %2243 = vdwg.mxu0
        %v2244 = vld [vmem:[#allocation5 + $0x3] sm:$0xf]
        %v2245 = vadd.f32 %v2244, %v2239
        %2246 = vst.msk [vmem:[#allocation5 + $0x3] sm:$0xf] %vm1966, %v2245
        %v2247 = vld [vmem:[#allocation5] sm:$0xff]
        %v2248 = vld [vmem:[#allocation5 + $0x8] sm:$0x3]
        %v2249 = vmax.f32 %v2247, 0.0
        %v2250 = vmax.f32 %v2248, 0.0
        %v2251 = vpack.c.bf16 %v2250, %v2249
        %s2252 = scalar_lea.vmem [#allocation8], 144
        %v2253 = vld [vmem:[%s2252] sm:$0xf]
        %v2254 = vld [vmem:[%s2252 + $0x4] sm:$0xf]
        %v2255 = vld [vmem:[%s2252 + $0x8] sm:$0xf]
        %v2256 = vld [vmem:[%s2252 + $0xc] sm:$0xf]
        %s2257 = scalar_lea.vmem [#allocation8], 160
        %v2258 = vld [vmem:[%s2257] sm:$0xf]
        %v2259 = vld [vmem:[%s2257 + $0x4] sm:$0xf]
        %v2260 = vld [vmem:[%s2257 + $0x8] sm:$0xf]
        %v2261 = vld [vmem:[%s2257 + $0xc] sm:$0xf]
        %v2263 = vshrl.u32 %v2251, 16
        %v2265 = vrot.slane %v2263, 1
        %v2266 = vshll.u32 %v2251, 16
        %v2268 = vrot.slane %v2266, 2
        %v2269 = vor.u32 %v2265, %v2268
        %v2274 = vunpack.c.l.b16 %v2258
        %v2275 = vunpack.c.l.b16 %v2259
        %v2276 = vunpack.c.l.b16 %v2260
        %v2277 = vunpack.c.l.b16 %v2261
        %v2278 = vpack.c.b16 %v2275, %v2274
        %v2279 = vpack.c.b16 %v2277, %v2276
        %v2283 = vsel %vm491, %v2269, 0
        %2285 = vmatprep.subr.bf16.mxu0 0
        %2286 = vmatpush1.bf16.msra.mxu0 %v2278
        %2287 = vmatprep.subr.bf16.mxu0 0
        %2288 = vmatpush1.bf16.msra.mxu0 %v2279
        %2289 = vmatprep.subr.bf16.mxu0 0
        %2290 = vmatpush1.bf16.msra.mxu0 0
        %2291 = vmatprep.subr.bf16.mxu0 0
        %2292 = vmatpush1.bf16.msra.mxu0 0
        %2293 = vmatprep.subr.bf16.mxu0 0
        %2294 = vmatpush1.bf16.msra.mxu0 0
        %2295 = vmatprep.subr.bf16.mxu0 0
        %2296 = vmatpush1.bf16.msra.mxu0 0
        %2297 = vmatprep.subr.bf16.mxu0 0
        %2298 = vmatpush1.bf16.msra.mxu0 0
        %2299 = vmatprep.subr.bf16.mxu0 0
        %2300 = vmatpush1.bf16.msra.mxu0 0
        %2301 = vmatprep.subr.bf16.mxu0 0
        %2302 = vmatpush1.bf16.msra.mxu0 0
        %2303 = vmatprep.subr.bf16.mxu0 0
        %2304 = vmatpush1.bf16.msra.mxu0 0
        %2305 = vmatprep.subr.bf16.mxu0 0
        %2306 = vmatpush1.bf16.msra.mxu0 0
        %2307 = vmatprep.subr.bf16.mxu0 0
        %2308 = vmatpush1.bf16.msra.mxu0 0
        %2309 = vmatprep.subr.bf16.mxu0 0
        %2310 = vmatpush1.bf16.msra.mxu0 0
        %2311 = vmatprep.subr.bf16.mxu0 0
        %2312 = vmatpush1.bf16.msra.mxu0 0
        %2313 = vmatprep.subr.bf16.mxu0 0
        %2314 = vmatpush1.bf16.msra.mxu0 0
        %2315 = vmatprep.subr.bf16.mxu0 0
        %2316 = vmatpush1.bf16.msra.mxu0 0
        %2317 = vmatprep.mubr.bf16.mxu0 0
        %2318 = vmatmul.mubr.bf16.gmra.mrb[0].mxu0 %v2283
        %v2319 = vpop.f32.mrb[0].mxu0
        %v2320 = vadd.f32 0.0, %v2319
        %v2321 = vpop.f32.mrb[0].mxu0
        %v2322 = vpop.f32.mrb[0].mxu0
        %v2323 = vpop.f32.mrb[0].mxu0
        %2324 = vdwg.mxu0
        %v2329 = vunpack.c.l.b16 %v2253
        %v2330 = vunpack.c.l.b16 %v2254
        %v2331 = vunpack.c.l.b16 %v2255
        %v2332 = vunpack.c.l.b16 %v2256
        %v2333 = vpack.c.b16 %v2330, %v2329
        %v2334 = vpack.c.b16 %v2332, %v2331
        %v2337 = vsel %vm491, %v2251, 0
        %2339 = vmatprep.subr.bf16.mxu0 0
        %2340 = vmatpush1.bf16.msra.mxu0 %v2333
        %2341 = vmatprep.subr.bf16.mxu0 0
        %2342 = vmatpush1.bf16.msra.mxu0 %v2334
        %2343 = vmatprep.subr.bf16.mxu0 0
        %2344 = vmatpush1.bf16.msra.mxu0 0
        %2345 = vmatprep.subr.bf16.mxu0 0
        %2346 = vmatpush1.bf16.msra.mxu0 0
        %2347 = vmatprep.subr.bf16.mxu0 0
        %2348 = vmatpush1.bf16.msra.mxu0 0
        %2349 = vmatprep.subr.bf16.mxu0 0
        %2350 = vmatpush1.bf16.msra.mxu0 0
        %2351 = vmatprep.subr.bf16.mxu0 0
        %2352 = vmatpush1.bf16.msra.mxu0 0
        %2353 = vmatprep.subr.bf16.mxu0 0
        %2354 = vmatpush1.bf16.msra.mxu0 0
        %2355 = vmatprep.subr.bf16.mxu0 0
        %2356 = vmatpush1.bf16.msra.mxu0 0
        %2357 = vmatprep.subr.bf16.mxu0 0
        %2358 = vmatpush1.bf16.msra.mxu0 0
        %2359 = vmatprep.subr.bf16.mxu0 0
        %2360 = vmatpush1.bf16.msra.mxu0 0
        %2361 = vmatprep.subr.bf16.mxu0 0
        %2362 = vmatpush1.bf16.msra.mxu0 0
        %2363 = vmatprep.subr.bf16.mxu0 0
        %2364 = vmatpush1.bf16.msra.mxu0 0
        %2365 = vmatprep.subr.bf16.mxu0 0
        %2366 = vmatpush1.bf16.msra.mxu0 0
        %2367 = vmatprep.subr.bf16.mxu0 0
        %2368 = vmatpush1.bf16.msra.mxu0 0
        %2369 = vmatprep.subr.bf16.mxu0 0
        %2370 = vmatpush1.bf16.msra.mxu0 0
        %2371 = vmatprep.mubr.bf16.mxu0 0
        %2372 = vmatmul.mubr.bf16.gmra.mrb[0].mxu0 %v2337
        %v2373 = vpop.f32.mrb[0].mxu0
        %v2374 = vadd.f32 %v2320, %v2373
        %v2375 = vpop.f32.mrb[0].mxu0
        %v2376 = vpop.f32.mrb[0].mxu0
        %v2377 = vpop.f32.mrb[0].mxu0
        %2378 = vdwg.mxu0
        %s2379 = scalar_lea.vmem [#allocation8], 176
        %v2380 = vld [vmem:[%s2379] sm:$0xf]
        %v2381 = vld [vmem:[%s2379 + $0x4] sm:$0xf]
        %v2382 = vld [vmem:[%s2379 + $0x8] sm:$0xf]
        %v2383 = vld [vmem:[%s2379 + $0xc] sm:$0xf]
        %v2385 = vrot.slane %v2251, 3
        %v2390 = vunpack.c.l.b16 %v2380
        %v2391 = vunpack.c.l.b16 %v2381
        %v2392 = vunpack.c.l.b16 %v2382
        %v2393 = vunpack.c.l.b16 %v2383
        %v2394 = vpack.c.b16 %v2391, %v2390
        %v2395 = vpack.c.b16 %v2393, %v2392
        %v2399 = vsel %vm491, %v2385, 0
        %2401 = vmatprep.subr.bf16.mxu0 0
        %2402 = vmatpush1.bf16.msra.mxu0 %v2394
        %2403 = vmatprep.subr.bf16.mxu0 0
        %2404 = vmatpush1.bf16.msra.mxu0 %v2395
        %2405 = vmatprep.subr.bf16.mxu0 0
        %2406 = vmatpush1.bf16.msra.mxu0 0
        %2407 = vmatprep.subr.bf16.mxu0 0
        %2408 = vmatpush1.bf16.msra.mxu0 0
        %2409 = vmatprep.subr.bf16.mxu0 0
        %2410 = vmatpush1.bf16.msra.mxu0 0
        %2411 = vmatprep.subr.bf16.mxu0 0
        %2412 = vmatpush1.bf16.msra.mxu0 0
        %2413 = vmatprep.subr.bf16.mxu0 0
        %2414 = vmatpush1.bf16.msra.mxu0 0
        %2415 = vmatprep.subr.bf16.mxu0 0
        %2416 = vmatpush1.bf16.msra.mxu0 0
        %2417 = vmatprep.subr.bf16.mxu0 0
        %2418 = vmatpush1.bf16.msra.mxu0 0
        %2419 = vmatprep.subr.bf16.mxu0 0
        %2420 = vmatpush1.bf16.msra.mxu0 0
        %2421 = vmatprep.subr.bf16.mxu0 0
        %2422 = vmatpush1.bf16.msra.mxu0 0
        %2423 = vmatprep.subr.bf16.mxu0 0
        %2424 = vmatpush1.bf16.msra.mxu0 0
        %2425 = vmatprep.subr.bf16.mxu0 0
        %2426 = vmatpush1.bf16.msra.mxu0 0
        %2427 = vmatprep.subr.bf16.mxu0 0
        %2428 = vmatpush1.bf16.msra.mxu0 0
        %2429 = vmatprep.subr.bf16.mxu0 0
        %2430 = vmatpush1.bf16.msra.mxu0 0
        %2431 = vmatprep.subr.bf16.mxu0 0
        %2432 = vmatpush1.bf16.msra.mxu0 0
        %2433 = vmatprep.mubr.bf16.mxu0 0
        %2434 = vmatmul.mubr.bf16.gmra.mrb[0].mxu0 %v2399
        %v2435 = vpop.f32.mrb[0].mxu0
        %v2436 = vadd.f32 0.0, %v2435
        %v2437 = vpop.f32.mrb[0].mxu0
        %v2438 = vpop.f32.mrb[0].mxu0
        %v2439 = vpop.f32.mrb[0].mxu0
        %2440 = vdwg.mxu0
        %v2441 = vadd.f32 %v2374, %v2436
        %s2442 = scalar_lea.vmem [#allocation10], 3
        %v2443 = vld [vmem:[%s2442] sm:$0x1]
        %v2445 = vlaneseq
        %v2446 = vshrl.u32 %v2445, 7
        %v2447 = vsub.s32 0, %v2446
        %v2448 = vrot.slane %v2443, %v2447
        %v2450 = vadd.f32 %v2441, %v2448
        %v2451 = vmax.f32 %v2450, 0.0
        %v2452 = vpack.c.bf16 %v2451, %v2451
        %s2453 = scalar_lea.vmem [#allocation11], 48
        %v2454 = vld [vmem:[%s2453] sm:$0xf]
        %v2455 = vld [vmem:[%s2453 + $0x4] sm:$0xf]
        %v2456 = vld [vmem:[%s2453 + $0x8] sm:$0xf]
        %v2457 = vld [vmem:[%s2453 + $0xc] sm:$0xf]
        %s2458 = scalar_lea.vmem [#allocation13], 3
        %v2459 = vld [vmem:[%s2458] sm:$0x1]
        %v2461 = vlaneseq
        %v2462 = vshrl.u32 %v2461, 7
        %v2463 = vsub.s32 0, %v2462
        %v2464 = vrot.slane %v2459, %v2463
        %v2470 = vunpack.c.l.b16 %v2454
        %v2471 = vunpack.c.l.b16 %v2455
        %v2472 = vunpack.c.l.b16 %v2456
        %v2473 = vunpack.c.l.b16 %v2457
        %v2474 = vpack.c.b16 %v2471, %v2470
        %v2475 = vpack.c.b16 %v2473, %v2472
        %v2479 = vsel %vm491, %v2452, 0
        %2481 = vmatprep.subr.bf16.mxu0 0
        %2482 = vmatpush1.bf16.msra.mxu0 %v2474
        %2483 = vmatprep.subr.bf16.mxu0 0
        %2484 = vmatpush1.bf16.msra.mxu0 %v2475
        %2485 = vmatprep.subr.bf16.mxu0 0
        %2486 = vmatpush1.bf16.msra.mxu0 0
        %2487 = vmatprep.subr.bf16.mxu0 0
        %2488 = vmatpush1.bf16.msra.mxu0 0
        %2489 = vmatprep.subr.bf16.mxu0 0
        %2490 = vmatpush1.bf16.msra.mxu0 0
        %2491 = vmatprep.subr.bf16.mxu0 0
        %2492 = vmatpush1.bf16.msra.mxu0 0
        %2493 = vmatprep.subr.bf16.mxu0 0
        %2494 = vmatpush1.bf16.msra.mxu0 0
        %2495 = vmatprep.subr.bf16.mxu0 0
        %2496 = vmatpush1.bf16.msra.mxu0 0
        %2497 = vmatprep.subr.bf16.mxu0 0
        %2498 = vmatpush1.bf16.msra.mxu0 0
        %2499 = vmatprep.subr.bf16.mxu0 0
        %2500 = vmatpush1.bf16.msra.mxu0 0
        %2501 = vmatprep.subr.bf16.mxu0 0
        %2502 = vmatpush1.bf16.msra.mxu0 0
        %2503 = vmatprep.subr.bf16.mxu0 0
        %2504 = vmatpush1.bf16.msra.mxu0 0
        %2505 = vmatprep.subr.bf16.mxu0 0
        %2506 = vmatpush1.bf16.msra.mxu0 0
        %2507 = vmatprep.subr.bf16.mxu0 0
        %2508 = vmatpush1.bf16.msra.mxu0 0
        %2509 = vmatprep.subr.bf16.mxu0 0
        %2510 = vmatpush1.bf16.msra.mxu0 0
        %2511 = vmatprep.subr.bf16.mxu0 0
        %2512 = vmatpush1.bf16.msra.mxu0 0
        %2513 = vmatprep.mubr.bf16.mxu0 0
        %2514 = vmatmul.mubr.bf16.gmra.mrb[0].mxu0 %v2479
        %v2515 = vpop.f32.mrb[0].mxu0
        %v2516 = vadd.f32 %v2464, %v2515
        %v2517 = vpop.f32.mrb[0].mxu0
        %v2518 = vpop.f32.mrb[0].mxu0
        %v2519 = vpop.f32.mrb[0].mxu0
        %2520 = vdwg.mxu0
        %v2521 = vld [vmem:[#allocation5 + $0x3] sm:$0xf]
        %v2522 = vadd.f32 %v2521, %v2516
        %2523 = vst.msk [vmem:[#allocation5 + $0x3] sm:$0xf] %vm1966, %v2522
        %v2524 = vld [vmem:[#allocation5] sm:$0xff]
        %v2525 = vld [vmem:[#allocation5 + $0x8] sm:$0x3]
        %v2526 = vpack.c.bf16 %v2525, %v2524
        %v2527 = vld [vmem:[#allocation14] sm:$0xf]
        %v2528 = vld [vmem:[#allocation14 + $0x4] sm:$0xf]
        %v2529 = vld [vmem:[#allocation14 + $0x8] sm:$0xf]
        %v2530 = vld [vmem:[#allocation14 + $0xc] sm:$0xf]
        %s2531 = scalar_lea.vmem [#allocation14], 16
        %v2532 = vld [vmem:[%s2531] sm:$0xf]
        %v2533 = vld [vmem:[%s2531 + $0x4] sm:$0xf]
        %v2534 = vld [vmem:[%s2531 + $0x8] sm:$0xf]
        %v2535 = vld [vmem:[%s2531 + $0xc] sm:$0xf]
        %v2537 = vshrl.u32 %v2526, 16
        %v2539 = vrot.slane %v2537, 1
        %v2540 = vshll.u32 %v2526, 16
        %v2542 = vrot.slane %v2540, 2
        %v2543 = vor.u32 %v2539, %v2542
        %v2548 = vunpack.c.l.b16 %v2532
        %v2549 = vunpack.c.l.b16 %v2533
        %v2550 = vunpack.c.l.b16 %v2534
        %v2551 = vunpack.c.l.b16 %v2535
        %v2552 = vpack.c.b16 %v2549, %v2548
        %v2553 = vpack.c.b16 %v2551, %v2550
        %v2557 = vsel %vm491, %v2543, 0
        %2559 = vmatprep.subr.bf16.mxu0 0
        %2560 = vmatpush1.bf16.msra.mxu0 %v2552
        %2561 = vmatprep.subr.bf16.mxu0 0
        %2562 = vmatpush1.bf16.msra.mxu0 %v2553
        %2563 = vmatprep.subr.bf16.mxu0 0
        %2564 = vmatpush1.bf16.msra.mxu0 0
        %2565 = vmatprep.subr.bf16.mxu0 0
        %2566 = vmatpush1.bf16.msra.mxu0 0
        %2567 = vmatprep.subr.bf16.mxu0 0
        %2568 = vmatpush1.bf16.msra.mxu0 0
        %2569 = vmatprep.subr.bf16.mxu0 0
        %2570 = vmatpush1.bf16.msra.mxu0 0
        %2571 = vmatprep.subr.bf16.mxu0 0
        %2572 = vmatpush1.bf16.msra.mxu0 0
        %2573 = vmatprep.subr.bf16.mxu0 0
        %2574 = vmatpush1.bf16.msra.mxu0 0
        %2575 = vmatprep.subr.bf16.mxu0 0
        %2576 = vmatpush1.bf16.msra.mxu0 0
        %2577 = vmatprep.subr.bf16.mxu0 0
        %2578 = vmatpush1.bf16.msra.mxu0 0
        %2579 = vmatprep.subr.bf16.mxu0 0
        %2580 = vmatpush1.bf16.msra.mxu0 0
        %2581 = vmatprep.subr.bf16.mxu0 0
        %2582 = vmatpush1.bf16.msra.mxu0 0
        %2583 = vmatprep.subr.bf16.mxu0 0
        %2584 = vmatpush1.bf16.msra.mxu0 0
        %2585 = vmatprep.subr.bf16.mxu0 0
        %2586 = vmatpush1.bf16.msra.mxu0 0
        %2587 = vmatprep.subr.bf16.mxu0 0
        %2588 = vmatpush1.bf16.msra.mxu0 0
        %2589 = vmatprep.subr.bf16.mxu0 0
        %2590 = vmatpush1.bf16.msra.mxu0 0
        %2591 = vmatprep.mubr.bf16.mxu0 0
        %2592 = vmatmul.mubr.bf16.gmra.mrb[0].mxu0 %v2557
        %v2593 = vpop.f32.mrb[0].mxu0
        %v2594 = vadd.f32 0.0, %v2593
        %v2595 = vpop.f32.mrb[0].mxu0
        %v2596 = vpop.f32.mrb[0].mxu0
        %v2597 = vpop.f32.mrb[0].mxu0
        %2598 = vdwg.mxu0
        %v2600 = vrot.slane %v2526, 1
        %v2605 = vunpack.c.l.b16 %v2527
        %v2606 = vunpack.c.l.b16 %v2528
        %v2607 = vunpack.c.l.b16 %v2529
        %v2608 = vunpack.c.l.b16 %v2530
        %v2609 = vpack.c.b16 %v2606, %v2605
        %v2610 = vpack.c.b16 %v2608, %v2607
        %v2614 = vsel %vm491, %v2600, 0
        %2616 = vmatprep.subr.bf16.mxu0 0
        %2617 = vmatpush1.bf16.msra.mxu0 %v2609
        %2618 = vmatprep.subr.bf16.mxu0 0
        %2619 = vmatpush1.bf16.msra.mxu0 %v2610
        %2620 = vmatprep.subr.bf16.mxu0 0
        %2621 = vmatpush1.bf16.msra.mxu0 0
        %2622 = vmatprep.subr.bf16.mxu0 0
        %2623 = vmatpush1.bf16.msra.mxu0 0
        %2624 = vmatprep.subr.bf16.mxu0 0
        %2625 = vmatpush1.bf16.msra.mxu0 0
        %2626 = vmatprep.subr.bf16.mxu0 0
        %2627 = vmatpush1.bf16.msra.mxu0 0
        %2628 = vmatprep.subr.bf16.mxu0 0
        %2629 = vmatpush1.bf16.msra.mxu0 0
        %2630 = vmatprep.subr.bf16.mxu0 0
        %2631 = vmatpush1.bf16.msra.mxu0 0
        %2632 = vmatprep.subr.bf16.mxu0 0
        %2633 = vmatpush1.bf16.msra.mxu0 0
        %2634 = vmatprep.subr.bf16.mxu0 0
        %2635 = vmatpush1.bf16.msra.mxu0 0
        %2636 = vmatprep.subr.bf16.mxu0 0
        %2637 = vmatpush1.bf16.msra.mxu0 0
        %2638 = vmatprep.subr.bf16.mxu0 0
        %2639 = vmatpush1.bf16.msra.mxu0 0
        %2640 = vmatprep.subr.bf16.mxu0 0
        %2641 = vmatpush1.bf16.msra.mxu0 0
        %2642 = vmatprep.subr.bf16.mxu0 0
        %2643 = vmatpush1.bf16.msra.mxu0 0
        %2644 = vmatprep.subr.bf16.mxu0 0
        %2645 = vmatpush1.bf16.msra.mxu0 0
        %2646 = vmatprep.subr.bf16.mxu0 0
        %2647 = vmatpush1.bf16.msra.mxu0 0
        %2648 = vmatprep.mubr.bf16.mxu0 0
        %2649 = vmatmul.mubr.bf16.gmra.mrb[0].mxu0 %v2614
        %v2650 = vpop.f32.mrb[0].mxu0
        %v2651 = vadd.f32 %v2594, %v2650
        %v2652 = vpop.f32.mrb[0].mxu0
        %v2653 = vpop.f32.mrb[0].mxu0
        %v2654 = vpop.f32.mrb[0].mxu0
        %2655 = vdwg.mxu0
        %s2656 = scalar_lea.vmem [#allocation14], 32
        %v2657 = vld [vmem:[%s2656] sm:$0xf]
        %v2658 = vld [vmem:[%s2656 + $0x4] sm:$0xf]
        %v2659 = vld [vmem:[%s2656 + $0x8] sm:$0xf]
        %v2660 = vld [vmem:[%s2656 + $0xc] sm:$0xf]
        %v2661 = vrot.slane %v2526, 2
        %v2666 = vunpack.c.l.b16 %v2657
        %v2667 = vunpack.c.l.b16 %v2658
        %v2668 = vunpack.c.l.b16 %v2659
        %v2669 = vunpack.c.l.b16 %v2660
        %v2670 = vpack.c.b16 %v2667, %v2666
        %v2671 = vpack.c.b16 %v2669, %v2668
        %v2675 = vsel %vm491, %v2661, 0
        %2677 = vmatprep.subr.bf16.mxu0 0
        %2678 = vmatpush1.bf16.msra.mxu0 %v2670
        %2679 = vmatprep.subr.bf16.mxu0 0
        %2680 = vmatpush1.bf16.msra.mxu0 %v2671
        %2681 = vmatprep.subr.bf16.mxu0 0
        %2682 = vmatpush1.bf16.msra.mxu0 0
        %2683 = vmatprep.subr.bf16.mxu0 0
        %2684 = vmatpush1.bf16.msra.mxu0 0
        %2685 = vmatprep.subr.bf16.mxu0 0
        %2686 = vmatpush1.bf16.msra.mxu0 0
        %2687 = vmatprep.subr.bf16.mxu0 0
        %2688 = vmatpush1.bf16.msra.mxu0 0
        %2689 = vmatprep.subr.bf16.mxu0 0
        %2690 = vmatpush1.bf16.msra.mxu0 0
        %2691 = vmatprep.subr.bf16.mxu0 0
        %2692 = vmatpush1.bf16.msra.mxu0 0
        %2693 = vmatprep.subr.bf16.mxu0 0
        %2694 = vmatpush1.bf16.msra.mxu0 0
        %2695 = vmatprep.subr.bf16.mxu0 0
        %2696 = vmatpush1.bf16.msra.mxu0 0
        %2697 = vmatprep.subr.bf16.mxu0 0
        %2698 = vmatpush1.bf16.msra.mxu0 0
        %2699 = vmatprep.subr.bf16.mxu0 0
        %2700 = vmatpush1.bf16.msra.mxu0 0
        %2701 = vmatprep.subr.bf16.mxu0 0
        %2702 = vmatpush1.bf16.msra.mxu0 0
        %2703 = vmatprep.subr.bf16.mxu0 0
        %2704 = vmatpush1.bf16.msra.mxu0 0
        %2705 = vmatprep.subr.bf16.mxu0 0
        %2706 = vmatpush1.bf16.msra.mxu0 0
        %2707 = vmatprep.subr.bf16.mxu0 0
        %2708 = vmatpush1.bf16.msra.mxu0 0
        %2709 = vmatprep.mubr.bf16.mxu0 0
        %2710 = vmatmul.mubr.bf16.gmra.mrb[0].mxu0 %v2675
        %v2711 = vpop.f32.mrb[0].mxu0
        %v2712 = vadd.f32 0.0, %v2711
        %v2713 = vpop.f32.mrb[0].mxu0
        %v2714 = vpop.f32.mrb[0].mxu0
        %v2715 = vpop.f32.mrb[0].mxu0
        %2716 = vdwg.mxu0
        %v2717 = vadd.f32 %v2651, %v2712
        %v2718 = vld [vmem:[#allocation16] sm:$0x1]
        %v2720 = vlaneseq
        %v2721 = vshrl.u32 %v2720, 7
        %v2722 = vsub.s32 0, %v2721
        %v2723 = vrot.slane %v2718, %v2722
        %v2725 = vadd.f32 %v2717, %v2723
        %2726 = vst.msk [vmem:[%s484] sm:$0xf] %vm1966, %v2725
        %p2727 = scmp.lt.s32.totalorder %s26, 1
        %s2728 = scalar_select %p2727, %s26, 1
        %s2729 = smul.addr %s2728, 4
        %s2730 = scalar_lea.vmem %s11, %s2729
        // Predicated region
        $region93: #{vqvae_forward.3} parent=63 // pred_check
          %p2731 = pneg %p280
        $region94: #{vqvae_forward.3} parent=63 // pred_check_branch
          %2733 = sbr.rel (%p2731) target = $region96
        $region95: #{vqvae_forward.3} parent=63 // pred_region
          _
        $region96: #{vqvae_forward.3} parent=63 // pred_fallthru
          _
      $region64: #{vqvae_forward.3} parent=5 // pred_fallthru
        _
      %p2734 = scmp.le.s32.totalorder 2, %s21
      // Predicated region
      $region97: #{vqvae_forward.3} parent=5 // pred_check
        %p2735 = pneg %p2734
      $region98: #{vqvae_forward.3} parent=5 // pred_check_branch
        %2737 = sbr.rel (%p2735) target = $region100
      $region99: #{vqvae_forward.3} parent=5 // pred_region
        %s2738 = ssub.s32 %s21, 2
        // Predicated region
        $region101: #{vqvae_forward.3} parent=99 // pred_check
          %p2739 = pneg %p286
        $region102: #{vqvae_forward.3} parent=99 // pred_check_branch
          %2741 = sbr.rel (%p2739) target = $region104
        $region103: #{vqvae_forward.3} parent=99 // pred_region
          %p2742 = scmp.lt.s32.totalorder %s27, 1
          %s2743 = scalar_select %p2742, %s27, 1
          %s2744 = smul.addr %s2743, 4
          %s2745 = scalar_lea.vmem %s11, %s2744
        $region104: #{vqvae_forward.3} parent=99 // pred_fallthru
          _
      $region100: #{vqvae_forward.3} parent=5 // pred_fallthru
        _
    $region6: #{vqvae_forward.3} parent=1 // loop_footer
      %s25 = sadd.s32 1, %s21
    $region7: #{vqvae_forward.3} parent=1 // loop_footer_branch
      %20 = sbr.rel target = $region3
    $region8: #{vqvae_forward.3} parent=1 // loop_exit
      _
    %2746 = vsyncpa [#allocation7], 1
    %s2747 = scalar_lea.sflag [#allocation7], 1
    %2748 = vsyncpa %s2747, 1
    %2749 = vsyncpa [#allocation9], 1
    %2750 = vsyncpa [#allocation12], 1
    %2751 = vsyncpa [#allocation15], 1

</llo_original>
